<compile_context>
chip_gen: v5e
topology: v5e:2x2
jax: 0.10.0
libtpu: 0.0.40
codegen_flags: <defaults>
</compile_context>

<pallas_src>
import functools

import jax
import jax.numpy as jnp
from jax import lax
from jax.experimental import pallas as pl
from jax.experimental.pallas import tpu as pltpu

MXU_DTYPE = jnp.bfloat16   # MXU-native input dtype on v5e/v6e/v7x (f32 accumulate)


def _inception_kernel(H, W, Cin, Cout,
                      x_ref, wred_ref, bred_ref,
                      w2b_ref, b2b_ref, w3b_ref, b3b_ref,
                      w4_ref, b4_ref,
                      out_ref, buf_ref):
    f32 = jnp.float32
    mxu = buf_ref.dtype    # bfloat16

    # Zero ONLY the border rings of the padded bf16 scratch; the (H, W)
    # interior is fully overwritten below.  Done every grid step (not gated on
    # program_id) so correctness holds when the parallel batch axis is split
    # across TensorCores and a core never executes step 0.
    buf_ref[0:2, :, :] = jnp.zeros((2, W + 4, Cout), mxu)
    buf_ref[H + 2:H + 4, :, :] = jnp.zeros((2, W + 4, Cout), mxu)
    buf_ref[2:H + 2, 0:2, :] = jnp.zeros((H, 2, Cout), mxu)
    buf_ref[2:H + 2, W + 2:W + 4, :] = jnp.zeros((H, 2, Cout), mxu)

    # One aligned full-tile load of the input, cast to the MXU dtype once and
    # reused by the reduce matmul and the maxpool branch.
    xc = x_ref[0].astype(mxu)                                  # (H, W, Cin)
    xc2 = xc.reshape(H * W, Cin)

    # ---- fused 1x1 reduce convs (branch 1 output + branch 2/3 intermediates) --
    red = jnp.dot(xc2, wred_ref[...],
                  preferred_element_type=f32) + bred_ref[...]  # (H*W, 3*Cout) f32
    o1 = jnp.maximum(red[:, 0:Cout], 0.0)                      # branch 1 (+ReLU)
    t2 = red[:, Cout:2 * Cout].astype(mxu)                     # branch 2 (no ReLU, per spec)
    t3 = red[:, 2 * Cout:3 * Cout].astype(mxu)                 # branch 3 (no ReLU, per spec)

    # ---- branch 2: 3x3 conv (pad 1) over t2 -> ReLU ---------------------------
    # Per-dy fused matmuls: K = 3*Cout, 3 dots instead of 9; cols stay bf16.
    buf_ref[2:2 + H, 2:2 + W, :] = t2.reshape(H, W, Cout)
    acc2 = jnp.broadcast_to(b2b_ref[...], (H * W, Cout)).astype(f32)
    for dy in range(3):
        rows = buf_ref[1 + dy:1 + dy + H, 1:W + 3, :]          # (H, W+2, Cout) bf16
        cols = jnp.concatenate([rows[:, dx:dx + W, :] for dx in range(3)],
                               axis=-1)                        # (H, W, 3*Cout)
        acc2 = acc2 + jnp.dot(cols.reshape(H * W, 3 * Cout), w2b_ref[dy],
                              preferred_element_type=f32)
    o2 = jnp.maximum(acc2, 0.0)

    # ---- branch 3: 5x5 conv (pad 2) over t3 -> ReLU ---------------------------
    # Per-dy fused matmuls: K = 5*Cout, 5 dots instead of 25.
    buf_ref[2:2 + H, 2:2 + W, :] = t3.reshape(H, W, Cout)
    acc3 = jnp.broadcast_to(b3b_ref[...], (H * W, Cout)).astype(f32)
    for dy in range(5):
        rows = buf_ref[dy:dy + H, :, :]                        # (H, W+4, Cout) bf16
        cols = jnp.concatenate([rows[:, dx:dx + W, :] for dx in range(5)],
                               axis=-1)                        # (H, W, 5*Cout)
        acc3 = acc3 + jnp.dot(cols.reshape(H * W, 5 * Cout), w3b_ref[dy],
                              preferred_element_type=f32)
    o3 = jnp.maximum(acc3, 0.0)

    # ---- branch 4: 3x3 maxpool (stride 1, pad 1) -> 1x1 conv -> ReLU ----------
    # Separable max with replicate-edge clamping.  Clamping only re-introduces
    # values already inside the valid window, so it equals the -inf-padded
    # (i.e. PyTorch) maxpool.  Keep this proof — the equivalence is load-bearing.
    # Done in bf16 (bit-identical: max commutes with monotone rounding and the
    # following matmul casts to bf16 anyway).
    left = jnp.concatenate([xc[:, 0:1, :], xc[:, 0:W - 1, :]], axis=1)
    right = jnp.concatenate([xc[:, 1:W, :], xc[:, W - 1:W, :]], axis=1)
    cmax = jnp.maximum(xc, jnp.maximum(left, right))
    up = jnp.concatenate([cmax[0:1, :, :], cmax[0:H - 1, :, :]], axis=0)
    down = jnp.concatenate([cmax[1:H, :, :], cmax[H - 1:H, :, :]], axis=0)
    mp = jnp.maximum(cmax, jnp.maximum(up, down))              # (H, W, Cin) bf16
    o4 = jnp.maximum(
        jnp.dot(mp.reshape(H * W, Cin), w4_ref[...],
                preferred_element_type=f32) + b4_ref[...], 0.0)

    # ---- channel concat: one full-tile store (no padding / amplification) -----
    full = jnp.concatenate([o1, o2, o3, o4], axis=-1)          # (H*W, 4*Cout) f32
    out_ref[...] = full.reshape(1, H * W, 4 * Cout)


def inception_forward(x_nchw, p, *, mxu_dtype=MXU_DTYPE):
    """x_nchw: (N, Cin, H, W) float32.  Returns (N, 4*Cout, H, W) float32."""
    N, Cin, H, W = x_nchw.shape
    Cout = p["w1"].shape[1]

    x = jnp.transpose(x_nchw, (0, 2, 3, 1)).astype(jnp.float32)    # NHWC, no halo pad

    # Fuse the three 1x1 "reduce" convs into one (Cin, 3*Cout) weight slab.
    wred = jnp.concatenate([p["w1"], p["w2a"], p["w3a"]], axis=1).astype(mxu_dtype)
    bred = jnp.concatenate([p["b1"], p["b2a"], p["b3a"]], axis=1).astype(jnp.float32)
    # Per-dy weight slabs (dy, dx*Cout + cin, cout) for the fused tap matmuls.
    w2b = p["w2b"].reshape(3, 3 * Cout, Cout).astype(mxu_dtype)
    w3b = p["w3b"].reshape(5, 5 * Cout, Cout).astype(mxu_dtype)
    w4 = p["w4"].astype(mxu_dtype)

    # Derive the VMEM budget from the device instead of hard-coding 32 MiB
    # (lets v6e use larger tiles; stays safe on v5e/v7x).
    try:
        vmem_cap = getattr(pltpu.get_tpu_info(), "vmem_capacity_bytes",
                           64 * 1024 * 1024)
    except Exception:
        vmem_cap = 64 * 1024 * 1024
    vmem_limit = min(int(vmem_cap * 3 // 4), 100 * 1024 * 1024)

    kernel = functools.partial(_inception_kernel, H, W, Cin, Cout)
    const2 = lambda n: (0, 0)
    const3 = lambda n: (0, 0, 0)

    out = pl.pallas_call(
        kernel,
        out_shape=jax.ShapeDtypeStruct((N, H * W, 4 * Cout), jnp.float32),
        grid=(N,),
        in_specs=[
            pl.BlockSpec((1, H, W, Cin), lambda n: (n, 0, 0, 0)),   # unpadded input tile
            pl.BlockSpec((Cin, 3 * Cout), const2),       # fused 1x1 weights
            pl.BlockSpec((1, 3 * Cout), const2),         # fused 1x1 biases
            pl.BlockSpec((3, 3 * Cout, Cout), const3),   # 3x3 per-dy slabs
            pl.BlockSpec((1, Cout), const2),
            pl.BlockSpec((5, 5 * Cout, Cout), const3),   # 5x5 per-dy slabs
            pl.BlockSpec((1, Cout), const2),
            pl.BlockSpec((Cin, Cout), const2),           # branch 4 1x1
            pl.BlockSpec((1, Cout), const2),
        ],
        out_specs=pl.BlockSpec((1, H * W, 4 * Cout), lambda n: (n, 0, 0)),
        scratch_shapes=[pltpu.VMEM((H + 4, W + 4, Cout), mxu_dtype)],
        compiler_params=pltpu.CompilerParams(
            dimension_semantics=("parallel",),
            vmem_limit_bytes=vmem_limit),
    )(x, wred, bred, w2b, p["b2b"], w3b, p["b3b"], w4, p["b4"])

    out = out.reshape(N, H, W, 4 * Cout)                       # free row-major reshape
    return jnp.transpose(out, (0, 3, 1, 2))                    # back to NCHW

# TODO(synk): if the surrounding model can stay NHWC end-to-end, drop the two
# wrapper transposes (two full HBM passes) and emit bf16 output directly.


def inception_reference(x_nchw, p):
    """Pure-JAX reference (lax convs, f32) for correctness checking."""
    Cin = x_nchw.shape[1]
    Cout = p["w1"].shape[1]
    x = jnp.transpose(x_nchw, (0, 2, 3, 1)).astype(jnp.float32)

    def conv(inp, w_hwio, b, pad):
        y = lax.conv_general_dilated(inp, w_hwio, (1, 1), [(pad, pad), (pad, pad)],
                                     dimension_numbers=("NHWC", "HWIO", "NHWC"))
        return y + b

    o1 = jax.nn.relu(conv(x, p["w1"].reshape(1, 1, Cin, Cout), p["b1"], 0))
    t2 = conv(x, p["w2a"].reshape(1, 1, Cin, Cout), p["b2a"], 0)
    o2 = jax.nn.relu(conv(t2, p["w2b"], p["b2b"], 1))
    t3 = conv(x, p["w3a"].reshape(1, 1, Cin, Cout), p["b3a"], 0)
    o3 = jax.nn.relu(conv(t3, p["w3b"], p["b3b"], 2))
    xm = jnp.pad(x, ((0, 0), (1, 1), (1, 1), (0, 0)), constant_values=-jnp.inf)
    mp = lax.reduce_window(xm, -jnp.inf, lax.max, (1, 3, 3, 1), (1, 1, 1, 1), "VALID")
    o4 = jax.nn.relu(conv(mp, p["w4"].reshape(1, 1, Cin, Cout), p["b4"], 0))
    out = jnp.concatenate([o1, o2, o3, o4], axis=-1)
    return jnp.transpose(out, (0, 3, 1, 2))


if __name__ == "__main__":
    N, Cin, H, W, Cout = 2, 4, 16, 16, 8
    key = jax.random.PRNGKey(0)
    ks = jax.random.split(key, 13)

    def uinit(k, shape, fan_in):
        bound = 1.0 / (fan_in ** 0.5)
        return jax.random.uniform(k, shape, jnp.float32, -bound, bound)

    x = jax.random.normal(ks[0], (N, Cin, H, W), jnp.float32)
    params = {
        # 1x1 conv weights stored as (Cin, Cout); KxK conv weights as HWIO.
        "w1":  uinit(ks[1], (Cin, Cout), Cin),             "b1":  uinit(ks[2], (1, Cout), Cin),
        "w2a": uinit(ks[3], (Cin, Cout), Cin),             "b2a": uinit(ks[4], (1, Cout), Cin),
        "w2b": uinit(ks[5], (3, 3, Cout, Cout), 9 * Cout),  "b2b": uinit(ks[6], (1, Cout), 9 * Cout),
        "w3a": uinit(ks[7], (Cin, Cout), Cin),             "b3a": uinit(ks[8], (1, Cout), Cin),
        "w3b": uinit(ks[9], (5, 5, Cout, Cout), 25 * Cout), "b3b": uinit(ks[10], (1, Cout), 25 * Cout),
        "w4":  uinit(ks[11], (Cin, Cout), Cin),            "b4":  uinit(ks[12], (1, Cout), Cin),
    }

    out = inception_forward(x, params)
    jax.block_until_ready(out)

    ref = inception_reference(x, params)
    assert out.shape == (N, 4 * Cout, H, W), out.shape
    # Tolerance accounts for bf16 MXU inputs (f32 accumulation); observed error ~1e-3.
    assert jnp.allclose(out, ref, atol=3e-2, rtol=3e-2), "mismatch vs JAX reference"
    print("KERNEL_OK")
</pallas_src>

<mosaic_0001>
module attributes {stable_mosaic.version = 11 : i64} {
  func.func @_inception_kernel(%arg0: i32, %arg1: memref<1x16x16x4xf32, #tpu.memory_space<vmem>>, %arg2: memref<4x24xbf16, #tpu.memory_space<vmem>>, %arg3: memref<1x24xf32, #tpu.memory_space<vmem>>, %arg4: memref<3x24x8xbf16, #tpu.memory_space<vmem>>, %arg5: memref<1x8xf32, #tpu.memory_space<vmem>>, %arg6: memref<5x40x8xbf16, #tpu.memory_space<vmem>>, %arg7: memref<1x8xf32, #tpu.memory_space<vmem>>, %arg8: memref<4x8xbf16, #tpu.memory_space<vmem>>, %arg9: memref<1x8xf32, #tpu.memory_space<vmem>>, %arg10: memref<1x256x32xf32, #tpu.memory_space<vmem>>, %arg11: memref<20x20x8xbf16, #tpu.memory_space<vmem>>) attributes {dimension_semantics = [#tpu.dimension_semantics<parallel>], iteration_bounds = array<i64: 2>, scalar_prefetch = 0 : i64, scratch_operands = 1 : i64, tpu.core_type = #tpu.core_type<tc>, window_params = [{transform_indices = @transform_0, window_bounds = array<i64: 1, 16, 16, 4>}, {pipeline_mode = #tpu.pipeline_mode<synchronous>, transform_indices = @transform_1, window_bounds = array<i64: 4, 24>}, {pipeline_mode = #tpu.pipeline_mode<synchronous>, transform_indices = @transform_2, window_bounds = array<i64: 1, 24>}, {pipeline_mode = #tpu.pipeline_mode<synchronous>, transform_indices = @transform_3, window_bounds = array<i64: 3, 24, 8>}, {pipeline_mode = #tpu.pipeline_mode<synchronous>, transform_indices = @transform_4, window_bounds = array<i64: 1, 8>}, {pipeline_mode = #tpu.pipeline_mode<synchronous>, transform_indices = @transform_5, window_bounds = array<i64: 5, 40, 8>}, {pipeline_mode = #tpu.pipeline_mode<synchronous>, transform_indices = @transform_6, window_bounds = array<i64: 1, 8>}, {pipeline_mode = #tpu.pipeline_mode<synchronous>, transform_indices = @transform_7, window_bounds = array<i64: 4, 8>}, {pipeline_mode = #tpu.pipeline_mode<synchronous>, transform_indices = @transform_8, window_bounds = array<i64: 1, 8>}, {transform_indices = @transform_9, window_bounds = array<i64: 1, 256, 32>}]} {
    %cst = arith.constant 0.000000e+00 : bf16
    %0 = vector.broadcast %cst : bf16 to vector<2x20x8xbf16>
    %c0 = arith.constant 0 : index
    %c0_0 = arith.constant 0 : index
    %c0_1 = arith.constant 0 : index
    %1 = vector.load %arg11[%c0, %c0_0, %c0_1] : memref<20x20x8xbf16, #tpu.memory_space<vmem>>, vector<2x20x8xbf16>
    tpu.vector_store %arg11[%c0, %c0_0, %c0_1], %0 {strides = array<i32>} : memref<20x20x8xbf16, #tpu.memory_space<vmem>>, vector<2x20x8xbf16>,
    %cst_2 = arith.constant 0.000000e+00 : bf16
    %2 = vector.broadcast %cst_2 : bf16 to vector<2x20x8xbf16>
    %c18 = arith.constant 18 : index
    %c0_3 = arith.constant 0 : index
    %c0_4 = arith.constant 0 : index
    %3 = vector.load %arg11[%c18, %c0_3, %c0_4] : memref<20x20x8xbf16, #tpu.memory_space<vmem>>, vector<2x20x8xbf16>
    tpu.vector_store %arg11[%c18, %c0_3, %c0_4], %2 {strides = array<i32>} : memref<20x20x8xbf16, #tpu.memory_space<vmem>>, vector<2x20x8xbf16>,
    %cst_5 = arith.constant 0.000000e+00 : bf16
    %4 = vector.broadcast %cst_5 : bf16 to vector<16x2x8xbf16>
    %c2 = arith.constant 2 : index
    %c0_6 = arith.constant 0 : index
    %c0_7 = arith.constant 0 : index
    %5 = vector.load %arg11[%c2, %c0_6, %c0_7] : memref<20x20x8xbf16, #tpu.memory_space<vmem>>, vector<16x2x8xbf16>
    tpu.vector_store %arg11[%c2, %c0_6, %c0_7], %4 {strides = array<i32>} : memref<20x20x8xbf16, #tpu.memory_space<vmem>>, vector<16x2x8xbf16>,
    %cst_8 = arith.constant 0.000000e+00 : bf16
    %6 = vector.broadcast %cst_8 : bf16 to vector<16x2x8xbf16>
    %c2_9 = arith.constant 2 : index
    %c18_10 = arith.constant 18 : index
    %c0_11 = arith.constant 0 : index
    %7 = vector.load %arg11[%c2_9, %c18_10, %c0_11] : memref<20x20x8xbf16, #tpu.memory_space<vmem>>, vector<16x2x8xbf16>
    tpu.vector_store %arg11[%c2_9, %c18_10, %c0_11], %6 {strides = array<i32>} : memref<20x20x8xbf16, #tpu.memory_space<vmem>>, vector<16x2x8xbf16>,
    %c0_12 = arith.constant 0 : index
    %c0_13 = arith.constant 0 : index
    %c0_14 = arith.constant 0 : index
    %c0_15 = arith.constant 0 : index
    %8 = vector.load %arg1[%c0_12, %c0_13, %c0_14, %c0_15] : memref<1x16x16x4xf32, #tpu.memory_space<vmem>>, vector<1x16x16x4xf32>
    %9 = vector.shape_cast %8 : vector<1x16x16x4xf32> to vector<16x16x4xf32>
    %10 = arith.truncf %9 : vector<16x16x4xf32> to vector<16x16x4xbf16>
    %11 = vector.shape_cast %10 : vector<16x16x4xbf16> to vector<256x4xbf16>
    %c0_16 = arith.constant 0 : index
    %c0_17 = arith.constant 0 : index
    %12 = vector.load %arg2[%c0_16, %c0_17] : memref<4x24xbf16, #tpu.memory_space<vmem>>, vector<4x24xbf16>
    %cst_18 = arith.constant dense<0.000000e+00> : vector<256x24xf32>
    %13 = tpu.matmul %11, %12, %cst_18 {dimension_numbers = #tpu.dot_dimension_numbers<[1], [0], [0], [1], [0, 0, 1, 1], [], []>} : vector<256x4xbf16>, vector<4x24xbf16>, vector<256x24xf32> -> vector<256x24xf32>
    %c0_19 = arith.constant 0 : index
    %c0_20 = arith.constant 0 : index
    %14 = vector.load %arg3[%c0_19, %c0_20] : memref<1x24xf32, #tpu.memory_space<vmem>>, vector<1x24xf32>
    %15 = vector.broadcast %14 : vector<1x24xf32> to vector<256x24xf32>
    %16 = arith.addf %13, %15 : vector<256x24xf32>
    %17 = vector.extract_strided_slice %16 {offsets = [0, 0], sizes = [256, 8], strides = [1, 1]} : vector<256x24xf32> to vector<256x8xf32>
    %cst_21 = arith.constant 0.000000e+00 : f32
    %18 = vector.broadcast %cst_21 : f32 to vector<256x8xf32>
    %19 = arith.maximumf %17, %18 : vector<256x8xf32>
    %20 = vector.extract_strided_slice %16 {offsets = [0, 8], sizes = [256, 8], strides = [1, 1]} : vector<256x24xf32> to vector<256x8xf32>
    %21 = arith.truncf %20 : vector<256x8xf32> to vector<256x8xbf16>
    %22 = vector.extract_strided_slice %16 {offsets = [0, 16], sizes = [256, 8], strides = [1, 1]} : vector<256x24xf32> to vector<256x8xf32>
    %23 = arith.truncf %22 : vector<256x8xf32> to vector<256x8xbf16>
    %24 = vector.shape_cast %21 : vector<256x8xbf16> to vector<16x16x8xbf16>
    %c2_22 = arith.constant 2 : index
    %c2_23 = arith.constant 2 : index
    %c0_24 = arith.constant 0 : index
    %25 = vector.load %arg11[%c2_22, %c2_23, %c0_24] : memref<20x20x8xbf16, #tpu.memory_space<vmem>>, vector<16x16x8xbf16>
    tpu.vector_store %arg11[%c2_22, %c2_23, %c0_24], %24 {strides = array<i32>} : memref<20x20x8xbf16, #tpu.memory_space<vmem>>, vector<16x16x8xbf16>,
    %c0_25 = arith.constant 0 : index
    %c0_26 = arith.constant 0 : index
    %26 = vector.load %arg5[%c0_25, %c0_26] : memref<1x8xf32, #tpu.memory_space<vmem>>, vector<1x8xf32>
    %27 = vector.shape_cast %26 : vector<1x8xf32> to vector<1x8xf32>
    %28 = vector.broadcast %27 : vector<1x8xf32> to vector<256x8xf32>
    %c1 = arith.constant 1 : index
    %c1_27 = arith.constant 1 : index
    %c0_28 = arith.constant 0 : index
    %29 = vector.load %arg11[%c1, %c1_27, %c0_28] : memref<20x20x8xbf16, #tpu.memory_space<vmem>>, vector<16x18x8xbf16>
    %30 = vector.extract_strided_slice %29 {offsets = [0, 0, 0], sizes = [16, 16, 8], strides = [1, 1, 1]} : vector<16x18x8xbf16> to vector<16x16x8xbf16>
    %31 = vector.extract_strided_slice %29 {offsets = [0, 1, 0], sizes = [16, 16, 8], strides = [1, 1, 1]} : vector<16x18x8xbf16> to vector<16x16x8xbf16>
    %32 = vector.extract_strided_slice %29 {offsets = [0, 2, 0], sizes = [16, 16, 8], strides = [1, 1, 1]} : vector<16x18x8xbf16> to vector<16x16x8xbf16>
    %33 = tpu.concatenate %30, %31, %32 in 2 : vector<16x16x8xbf16>, vector<16x16x8xbf16>, vector<16x16x8xbf16> -> vector<16x16x24xbf16>
    %34 = vector.shape_cast %33 : vector<16x16x24xbf16> to vector<256x24xbf16>
    %c0_29 = arith.constant 0 : index
    %c0_30 = arith.constant 0 : index
    %c0_31 = arith.constant 0 : index
    %35 = vector.load %arg4[%c0_29, %c0_30, %c0_31] : memref<3x24x8xbf16, #tpu.memory_space<vmem>>, vector<1x24x8xbf16>
    %36 = vector.shape_cast %35 : vector<1x24x8xbf16> to vector<24x8xbf16>
    %cst_32 = arith.constant dense<0.000000e+00> : vector<256x8xf32>
    %37 = tpu.matmul %34, %36, %cst_32 {dimension_numbers = #tpu.dot_dimension_numbers<[1], [0], [0], [1], [0, 0, 1, 1], [], []>} : vector<256x24xbf16>, vector<24x8xbf16>, vector<256x8xf32> -> vector<256x8xf32>
    %38 = arith.addf %28, %37 : vector<256x8xf32>
    %c2_33 = arith.constant 2 : index
    %c1_34 = arith.constant 1 : index
    %c0_35 = arith.constant 0 : index
    %39 = vector.load %arg11[%c2_33, %c1_34, %c0_35] : memref<20x20x8xbf16, #tpu.memory_space<vmem>>, vector<16x18x8xbf16>
    %40 = vector.extract_strided_slice %39 {offsets = [0, 0, 0], sizes = [16, 16, 8], strides = [1, 1, 1]} : vector<16x18x8xbf16> to vector<16x16x8xbf16>
    %41 = vector.extract_strided_slice %39 {offsets = [0, 1, 0], sizes = [16, 16, 8], strides = [1, 1, 1]} : vector<16x18x8xbf16> to vector<16x16x8xbf16>
    %42 = vector.extract_strided_slice %39 {offsets = [0, 2, 0], sizes = [16, 16, 8], strides = [1, 1, 1]} : vector<16x18x8xbf16> to vector<16x16x8xbf16>
    %43 = tpu.concatenate %40, %41, %42 in 2 : vector<16x16x8xbf16>, vector<16x16x8xbf16>, vector<16x16x8xbf16> -> vector<16x16x24xbf16>
    %44 = vector.shape_cast %43 : vector<16x16x24xbf16> to vector<256x24xbf16>
    %c1_36 = arith.constant 1 : index
    %c0_37 = arith.constant 0 : index
    %c0_38 = arith.constant 0 : index
    %45 = vector.load %arg4[%c1_36, %c0_37, %c0_38] : memref<3x24x8xbf16, #tpu.memory_space<vmem>>, vector<1x24x8xbf16>
    %46 = vector.shape_cast %45 : vector<1x24x8xbf16> to vector<24x8xbf16>
    %cst_39 = arith.constant dense<0.000000e+00> : vector<256x8xf32>
    %47 = tpu.matmul %44, %46, %cst_39 {dimension_numbers = #tpu.dot_dimension_numbers<[1], [0], [0], [1], [0, 0, 1, 1], [], []>} : vector<256x24xbf16>, vector<24x8xbf16>, vector<256x8xf32> -> vector<256x8xf32>
    %48 = arith.addf %38, %47 : vector<256x8xf32>
    %c3 = arith.constant 3 : index
    %c1_40 = arith.constant 1 : index
    %c0_41 = arith.constant 0 : index
    %49 = vector.load %arg11[%c3, %c1_40, %c0_41] : memref<20x20x8xbf16, #tpu.memory_space<vmem>>, vector<16x18x8xbf16>
    %50 = vector.extract_strided_slice %49 {offsets = [0, 0, 0], sizes = [16, 16, 8], strides = [1, 1, 1]} : vector<16x18x8xbf16> to vector<16x16x8xbf16>
    %51 = vector.extract_strided_slice %49 {offsets = [0, 1, 0], sizes = [16, 16, 8], strides = [1, 1, 1]} : vector<16x18x8xbf16> to vector<16x16x8xbf16>
    %52 = vector.extract_strided_slice %49 {offsets = [0, 2, 0], sizes = [16, 16, 8], strides = [1, 1, 1]} : vector<16x18x8xbf16> to vector<16x16x8xbf16>
    %53 = tpu.concatenate %50, %51, %52 in 2 : vector<16x16x8xbf16>, vector<16x16x8xbf16>, vector<16x16x8xbf16> -> vector<16x16x24xbf16>
    %54 = vector.shape_cast %53 : vector<16x16x24xbf16> to vector<256x24xbf16>
    %c2_42 = arith.constant 2 : index
    %c0_43 = arith.constant 0 : index
    %c0_44 = arith.constant 0 : index
    %55 = vector.load %arg4[%c2_42, %c0_43, %c0_44] : memref<3x24x8xbf16, #tpu.memory_space<vmem>>, vector<1x24x8xbf16>
    %56 = vector.shape_cast %55 : vector<1x24x8xbf16> to vector<24x8xbf16>
    %cst_45 = arith.constant dense<0.000000e+00> : vector<256x8xf32>
    %57 = tpu.matmul %54, %56, %cst_45 {dimension_numbers = #tpu.dot_dimension_numbers<[1], [0], [0], [1], [0, 0, 1, 1], [], []>} : vector<256x24xbf16>, vector<24x8xbf16>, vector<256x8xf32> -> vector<256x8xf32>
    %58 = arith.addf %48, %57 : vector<256x8xf32>
    %cst_46 = arith.constant 0.000000e+00 : f32
    %59 = vector.broadcast %cst_46 : f32 to vector<256x8xf32>
    %60 = arith.maximumf %58, %59 : vector<256x8xf32>
    %61 = vector.shape_cast %23 : vector<256x8xbf16> to vector<16x16x8xbf16>
    %c2_47 = arith.constant 2 : index
    %c2_48 = arith.constant 2 : index
    %c0_49 = arith.constant 0 : index
    %62 = vector.load %arg11[%c2_47, %c2_48, %c0_49] : memref<20x20x8xbf16, #tpu.memory_space<vmem>>, vector<16x16x8xbf16>
    tpu.vector_store %arg11[%c2_47, %c2_48, %c0_49], %61 {strides = array<i32>} : memref<20x20x8xbf16, #tpu.memory_space<vmem>>, vector<16x16x8xbf16>,
    %c0_50 = arith.constant 0 : index
    %c0_51 = arith.constant 0 : index
    %63 = vector.load %arg7[%c0_50, %c0_51] : memref<1x8xf32, #tpu.memory_space<vmem>>, vector<1x8xf32>
    %64 = vector.shape_cast %63 : vector<1x8xf32> to vector<1x8xf32>
    %65 = vector.broadcast %64 : vector<1x8xf32> to vector<256x8xf32>
    %c0_52 = arith.constant 0 : index
    %c0_53 = arith.constant 0 : index
    %c0_54 = arith.constant 0 : index
    %66 = vector.load %arg11[%c0_52, %c0_53, %c0_54] : memref<20x20x8xbf16, #tpu.memory_space<vmem>>, vector<16x20x8xbf16>
    %67 = vector.extract_strided_slice %66 {offsets = [0, 0, 0], sizes = [16, 16, 8], strides = [1, 1, 1]} : vector<16x20x8xbf16> to vector<16x16x8xbf16>
    %68 = vector.extract_strided_slice %66 {offsets = [0, 1, 0], sizes = [16, 16, 8], strides = [1, 1, 1]} : vector<16x20x8xbf16> to vector<16x16x8xbf16>
    %69 = vector.extract_strided_slice %66 {offsets = [0, 2, 0], sizes = [16, 16, 8], strides = [1, 1, 1]} : vector<16x20x8xbf16> to vector<16x16x8xbf16>
    %70 = vector.extract_strided_slice %66 {offsets = [0, 3, 0], sizes = [16, 16, 8], strides = [1, 1, 1]} : vector<16x20x8xbf16> to vector<16x16x8xbf16>
    %71 = vector.extract_strided_slice %66 {offsets = [0, 4, 0], sizes = [16, 16, 8], strides = [1, 1, 1]} : vector<16x20x8xbf16> to vector<16x16x8xbf16>
    %72 = tpu.concatenate %67, %68, %69, %70, %71 in 2 : vector<16x16x8xbf16>, vector<16x16x8xbf16>, vector<16x16x8xbf16>, vector<16x16x8xbf16>, vector<16x16x8xbf16> -> vector<16x16x40xbf16>
    %73 = vector.shape_cast %72 : vector<16x16x40xbf16> to vector<256x40xbf16>
    %c0_55 = arith.constant 0 : index
    %c0_56 = arith.constant 0 : index
    %c0_57 = arith.constant 0 : index
    %74 = vector.load %arg6[%c0_55, %c0_56, %c0_57] : memref<5x40x8xbf16, #tpu.memory_space<vmem>>, vector<1x40x8xbf16>
    %75 = vector.shape_cast %74 : vector<1x40x8xbf16> to vector<40x8xbf16>
    %cst_58 = arith.constant dense<0.000000e+00> : vector<256x8xf32>
    %76 = tpu.matmul %73, %75, %cst_58 {dimension_numbers = #tpu.dot_dimension_numbers<[1], [0], [0], [1], [0, 0, 1, 1], [], []>} : vector<256x40xbf16>, vector<40x8xbf16>, vector<256x8xf32> -> vector<256x8xf32>
    %77 = arith.addf %65, %76 : vector<256x8xf32>
    %c1_59 = arith.constant 1 : index
    %c0_60 = arith.constant 0 : index
    %c0_61 = arith.constant 0 : index
    %78 = vector.load %arg11[%c1_59, %c0_60, %c0_61] : memref<20x20x8xbf16, #tpu.memory_space<vmem>>, vector<16x20x8xbf16>
    %79 = vector.extract_strided_slice %78 {offsets = [0, 0, 0], sizes = [16, 16, 8], strides = [1, 1, 1]} : vector<16x20x8xbf16> to vector<16x16x8xbf16>
    %80 = vector.extract_strided_slice %78 {offsets = [0, 1, 0], sizes = [16, 16, 8], strides = [1, 1, 1]} : vector<16x20x8xbf16> to vector<16x16x8xbf16>
    %81 = vector.extract_strided_slice %78 {offsets = [0, 2, 0], sizes = [16, 16, 8], strides = [1, 1, 1]} : vector<16x20x8xbf16> to vector<16x16x8xbf16>
    %82 = vector.extract_strided_slice %78 {offsets = [0, 3, 0], sizes = [16, 16, 8], strides = [1, 1, 1]} : vector<16x20x8xbf16> to vector<16x16x8xbf16>
    %83 = vector.extract_strided_slice %78 {offsets = [0, 4, 0], sizes = [16, 16, 8], strides = [1, 1, 1]} : vector<16x20x8xbf16> to vector<16x16x8xbf16>
    %84 = tpu.concatenate %79, %80, %81, %82, %83 in 2 : vector<16x16x8xbf16>, vector<16x16x8xbf16>, vector<16x16x8xbf16>, vector<16x16x8xbf16>, vector<16x16x8xbf16> -> vector<16x16x40xbf16>
    %85 = vector.shape_cast %84 : vector<16x16x40xbf16> to vector<256x40xbf16>
    %c1_62 = arith.constant 1 : index
    %c0_63 = arith.constant 0 : index
    %c0_64 = arith.constant 0 : index
    %86 = vector.load %arg6[%c1_62, %c0_63, %c0_64] : memref<5x40x8xbf16, #tpu.memory_space<vmem>>, vector<1x40x8xbf16>
    %87 = vector.shape_cast %86 : vector<1x40x8xbf16> to vector<40x8xbf16>
    %cst_65 = arith.constant dense<0.000000e+00> : vector<256x8xf32>
    %88 = tpu.matmul %85, %87, %cst_65 {dimension_numbers = #tpu.dot_dimension_numbers<[1], [0], [0], [1], [0, 0, 1, 1], [], []>} : vector<256x40xbf16>, vector<40x8xbf16>, vector<256x8xf32> -> vector<256x8xf32>
    %89 = arith.addf %77, %88 : vector<256x8xf32>
    %c2_66 = arith.constant 2 : index
    %c0_67 = arith.constant 0 : index
    %c0_68 = arith.constant 0 : index
    %90 = vector.load %arg11[%c2_66, %c0_67, %c0_68] : memref<20x20x8xbf16, #tpu.memory_space<vmem>>, vector<16x20x8xbf16>
    %91 = vector.extract_strided_slice %90 {offsets = [0, 0, 0], sizes = [16, 16, 8], strides = [1, 1, 1]} : vector<16x20x8xbf16> to vector<16x16x8xbf16>
    %92 = vector.extract_strided_slice %90 {offsets = [0, 1, 0], sizes = [16, 16, 8], strides = [1, 1, 1]} : vector<16x20x8xbf16> to vector<16x16x8xbf16>
    %93 = vector.extract_strided_slice %90 {offsets = [0, 2, 0], sizes = [16, 16, 8], strides = [1, 1, 1]} : vector<16x20x8xbf16> to vector<16x16x8xbf16>
    %94 = vector.extract_strided_slice %90 {offsets = [0, 3, 0], sizes = [16, 16, 8], strides = [1, 1, 1]} : vector<16x20x8xbf16> to vector<16x16x8xbf16>
    %95 = vector.extract_strided_slice %90 {offsets = [0, 4, 0], sizes = [16, 16, 8], strides = [1, 1, 1]} : vector<16x20x8xbf16> to vector<16x16x8xbf16>
    %96 = tpu.concatenate %91, %92, %93, %94, %95 in 2 : vector<16x16x8xbf16>, vector<16x16x8xbf16>, vector<16x16x8xbf16>, vector<16x16x8xbf16>, vector<16x16x8xbf16> -> vector<16x16x40xbf16>
    %97 = vector.shape_cast %96 : vector<16x16x40xbf16> to vector<256x40xbf16>
    %c2_69 = arith.constant 2 : index
    %c0_70 = arith.constant 0 : index
    %c0_71 = arith.constant 0 : index
    %98 = vector.load %arg6[%c2_69, %c0_70, %c0_71] : memref<5x40x8xbf16, #tpu.memory_space<vmem>>, vector<1x40x8xbf16>
    %99 = vector.shape_cast %98 : vector<1x40x8xbf16> to vector<40x8xbf16>
    %cst_72 = arith.constant dense<0.000000e+00> : vector<256x8xf32>
    %100 = tpu.matmul %97, %99, %cst_72 {dimension_numbers = #tpu.dot_dimension_numbers<[1], [0], [0], [1], [0, 0, 1, 1], [], []>} : vector<256x40xbf16>, vector<40x8xbf16>, vector<256x8xf32> -> vector<256x8xf32>
    %101 = arith.addf %89, %100 : vector<256x8xf32>
    %c3_73 = arith.constant 3 : index
    %c0_74 = arith.constant 0 : index
    %c0_75 = arith.constant 0 : index
    %102 = vector.load %arg11[%c3_73, %c0_74, %c0_75] : memref<20x20x8xbf16, #tpu.memory_space<vmem>>, vector<16x20x8xbf16>
    %103 = vector.extract_strided_slice %102 {offsets = [0, 0, 0], sizes = [16, 16, 8], strides = [1, 1, 1]} : vector<16x20x8xbf16> to vector<16x16x8xbf16>
    %104 = vector.extract_strided_slice %102 {offsets = [0, 1, 0], sizes = [16, 16, 8], strides = [1, 1, 1]} : vector<16x20x8xbf16> to vector<16x16x8xbf16>
    %105 = vector.extract_strided_slice %102 {offsets = [0, 2, 0], sizes = [16, 16, 8], strides = [1, 1, 1]} : vector<16x20x8xbf16> to vector<16x16x8xbf16>
    %106 = vector.extract_strided_slice %102 {offsets = [0, 3, 0], sizes = [16, 16, 8], strides = [1, 1, 1]} : vector<16x20x8xbf16> to vector<16x16x8xbf16>
    %107 = vector.extract_strided_slice %102 {offsets = [0, 4, 0], sizes = [16, 16, 8], strides = [1, 1, 1]} : vector<16x20x8xbf16> to vector<16x16x8xbf16>
    %108 = tpu.concatenate %103, %104, %105, %106, %107 in 2 : vector<16x16x8xbf16>, vector<16x16x8xbf16>, vector<16x16x8xbf16>, vector<16x16x8xbf16>, vector<16x16x8xbf16> -> vector<16x16x40xbf16>
    %109 = vector.shape_cast %108 : vector<16x16x40xbf16> to vector<256x40xbf16>
    %c3_76 = arith.constant 3 : index
    %c0_77 = arith.constant 0 : index
    %c0_78 = arith.constant 0 : index
    %110 = vector.load %arg6[%c3_76, %c0_77, %c0_78] : memref<5x40x8xbf16, #tpu.memory_space<vmem>>, vector<1x40x8xbf16>
    %111 = vector.shape_cast %110 : vector<1x40x8xbf16> to vector<40x8xbf16>
    %cst_79 = arith.constant dense<0.000000e+00> : vector<256x8xf32>
    %112 = tpu.matmul %109, %111, %cst_79 {dimension_numbers = #tpu.dot_dimension_numbers<[1], [0], [0], [1], [0, 0, 1, 1], [], []>} : vector<256x40xbf16>, vector<40x8xbf16>, vector<256x8xf32> -> vector<256x8xf32>
    %113 = arith.addf %101, %112 : vector<256x8xf32>
    %c4 = arith.constant 4 : index
    %c0_80 = arith.constant 0 : index
    %c0_81 = arith.constant 0 : index
    %114 = vector.load %arg11[%c4, %c0_80, %c0_81] : memref<20x20x8xbf16, #tpu.memory_space<vmem>>, vector<16x20x8xbf16>
    %115 = vector.extract_strided_slice %114 {offsets = [0, 0, 0], sizes = [16, 16, 8], strides = [1, 1, 1]} : vector<16x20x8xbf16> to vector<16x16x8xbf16>
    %116 = vector.extract_strided_slice %114 {offsets = [0, 1, 0], sizes = [16, 16, 8], strides = [1, 1, 1]} : vector<16x20x8xbf16> to vector<16x16x8xbf16>
    %117 = vector.extract_strided_slice %114 {offsets = [0, 2, 0], sizes = [16, 16, 8], strides = [1, 1, 1]} : vector<16x20x8xbf16> to vector<16x16x8xbf16>
    %118 = vector.extract_strided_slice %114 {offsets = [0, 3, 0], sizes = [16, 16, 8], strides = [1, 1, 1]} : vector<16x20x8xbf16> to vector<16x16x8xbf16>
    %119 = vector.extract_strided_slice %114 {offsets = [0, 4, 0], sizes = [16, 16, 8], strides = [1, 1, 1]} : vector<16x20x8xbf16> to vector<16x16x8xbf16>
    %120 = tpu.concatenate %115, %116, %117, %118, %119 in 2 : vector<16x16x8xbf16>, vector<16x16x8xbf16>, vector<16x16x8xbf16>, vector<16x16x8xbf16>, vector<16x16x8xbf16> -> vector<16x16x40xbf16>
    %121 = vector.shape_cast %120 : vector<16x16x40xbf16> to vector<256x40xbf16>
    %c4_82 = arith.constant 4 : index
    %c0_83 = arith.constant 0 : index
    %c0_84 = arith.constant 0 : index
    %122 = vector.load %arg6[%c4_82, %c0_83, %c0_84] : memref<5x40x8xbf16, #tpu.memory_space<vmem>>, vector<1x40x8xbf16>
    %123 = vector.shape_cast %122 : vector<1x40x8xbf16> to vector<40x8xbf16>
    %cst_85 = arith.constant dense<0.000000e+00> : vector<256x8xf32>
    %124 = tpu.matmul %121, %123, %cst_85 {dimension_numbers = #tpu.dot_dimension_numbers<[1], [0], [0], [1], [0, 0, 1, 1], [], []>} : vector<256x40xbf16>, vector<40x8xbf16>, vector<256x8xf32> -> vector<256x8xf32>
    %125 = arith.addf %113, %124 : vector<256x8xf32>
    %cst_86 = arith.constant 0.000000e+00 : f32
    %126 = vector.broadcast %cst_86 : f32 to vector<256x8xf32>
    %127 = arith.maximumf %125, %126 : vector<256x8xf32>
    %128 = vector.extract_strided_slice %10 {offsets = [0, 0, 0], sizes = [16, 1, 4], strides = [1, 1, 1]} : vector<16x16x4xbf16> to vector<16x1x4xbf16>
    %129 = vector.extract_strided_slice %10 {offsets = [0, 0, 0], sizes = [16, 15, 4], strides = [1, 1, 1]} : vector<16x16x4xbf16> to vector<16x15x4xbf16>
    %130 = tpu.concatenate %128, %129 in 1 : vector<16x1x4xbf16>, vector<16x15x4xbf16> -> vector<16x16x4xbf16>
    %131 = vector.extract_strided_slice %10 {offsets = [0, 1, 0], sizes = [16, 15, 4], strides = [1, 1, 1]} : vector<16x16x4xbf16> to vector<16x15x4xbf16>
    %132 = vector.extract_strided_slice %10 {offsets = [0, 15, 0], sizes = [16, 1, 4], strides = [1, 1, 1]} : vector<16x16x4xbf16> to vector<16x1x4xbf16>
    %133 = tpu.concatenate %131, %132 in 1 : vector<16x15x4xbf16>, vector<16x1x4xbf16> -> vector<16x16x4xbf16>
    %134 = arith.maximumf %130, %133 : vector<16x16x4xbf16>
    %135 = arith.maximumf %10, %134 : vector<16x16x4xbf16>
    %136 = vector.extract_strided_slice %135 {offsets = [0, 0, 0], sizes = [1, 16, 4], strides = [1, 1, 1]} : vector<16x16x4xbf16> to vector<1x16x4xbf16>
    %137 = vector.extract_strided_slice %135 {offsets = [0, 0, 0], sizes = [15, 16, 4], strides = [1, 1, 1]} : vector<16x16x4xbf16> to vector<15x16x4xbf16>
    %138 = tpu.concatenate %136, %137 in 0 : vector<1x16x4xbf16>, vector<15x16x4xbf16> -> vector<16x16x4xbf16>
    %139 = vector.extract_strided_slice %135 {offsets = [1, 0, 0], sizes = [15, 16, 4], strides = [1, 1, 1]} : vector<16x16x4xbf16> to vector<15x16x4xbf16>
    %140 = vector.extract_strided_slice %135 {offsets = [15, 0, 0], sizes = [1, 16, 4], strides = [1, 1, 1]} : vector<16x16x4xbf16> to vector<1x16x4xbf16>
    %141 = tpu.concatenate %139, %140 in 0 : vector<15x16x4xbf16>, vector<1x16x4xbf16> -> vector<16x16x4xbf16>
    %142 = arith.maximumf %138, %141 : vector<16x16x4xbf16>
    %143 = arith.maximumf %135, %142 : vector<16x16x4xbf16>
    %144 = vector.shape_cast %143 : vector<16x16x4xbf16> to vector<256x4xbf16>
    %c0_87 = arith.constant 0 : index
    %c0_88 = arith.constant 0 : index
    %145 = vector.load %arg8[%c0_87, %c0_88] : memref<4x8xbf16, #tpu.memory_space<vmem>>, vector<4x8xbf16>
    %cst_89 = arith.constant dense<0.000000e+00> : vector<256x8xf32>
    %146 = tpu.matmul %144, %145, %cst_89 {dimension_numbers = #tpu.dot_dimension_numbers<[1], [0], [0], [1], [0, 0, 1, 1], [], []>} : vector<256x4xbf16>, vector<4x8xbf16>, vector<256x8xf32> -> vector<256x8xf32>
    %c0_90 = arith.constant 0 : index
    %c0_91 = arith.constant 0 : index
    %147 = vector.load %arg9[%c0_90, %c0_91] : memref<1x8xf32, #tpu.memory_space<vmem>>, vector<1x8xf32>
    %148 = vector.broadcast %147 : vector<1x8xf32> to vector<256x8xf32>
    %149 = arith.addf %146, %148 : vector<256x8xf32>
    %cst_92 = arith.constant 0.000000e+00 : f32
    %150 = vector.broadcast %cst_92 : f32 to vector<256x8xf32>
    %151 = arith.maximumf %149, %150 : vector<256x8xf32>
    %152 = tpu.concatenate %19, %60, %127, %151 in 1 : vector<256x8xf32>, vector<256x8xf32>, vector<256x8xf32>, vector<256x8xf32> -> vector<256x32xf32>
    %153 = vector.shape_cast %152 : vector<256x32xf32> to vector<1x256x32xf32>
    %c0_93 = arith.constant 0 : index
    %c0_94 = arith.constant 0 : index
    %c0_95 = arith.constant 0 : index
    %154 = vector.load %arg10[%c0_93, %c0_94, %c0_95] : memref<1x256x32xf32, #tpu.memory_space<vmem>>, vector<1x256x32xf32>
    tpu.vector_store %arg10[%c0_93, %c0_94, %c0_95], %153 {strides = array<i32>} : memref<1x256x32xf32, #tpu.memory_space<vmem>>, vector<1x256x32xf32>,
    return
  }
  func.func @transform_0(%arg0: i32) -> (i32, i32, i32, i32) {
    %c0_i32 = arith.constant 0 : i32
    %c0_i32_0 = arith.constant 0 : i32
    %c0_i32_1 = arith.constant 0 : i32
    %c0_i32_2 = arith.constant 0 : i32
    return %arg0, %c0_i32, %c0_i32_0, %c0_i32_1 : i32, i32, i32, i32
  }
  func.func @transform_1(%arg0: i32) -> (i32, i32) {
    %c0_i32 = arith.constant 0 : i32
    %c0_i32_0 = arith.constant 0 : i32
    %c0_i32_1 = arith.constant 0 : i32
    return %c0_i32, %c0_i32_0 : i32, i32
  }
  func.func @transform_2(%arg0: i32) -> (i32, i32) {
    %c0_i32 = arith.constant 0 : i32
    %c0_i32_0 = arith.constant 0 : i32
    %c0_i32_1 = arith.constant 0 : i32
    return %c0_i32, %c0_i32_0 : i32, i32
  }
  func.func @transform_3(%arg0: i32) -> (i32, i32, i32) {
    %c0_i32 = arith.constant 0 : i32
    %c0_i32_0 = arith.constant 0 : i32
    %c0_i32_1 = arith.constant 0 : i32
    %c0_i32_2 = arith.constant 0 : i32
    return %c0_i32, %c0_i32_0, %c0_i32_1 : i32, i32, i32
  }
  func.func @transform_4(%arg0: i32) -> (i32, i32) {
    %c0_i32 = arith.constant 0 : i32
    %c0_i32_0 = arith.constant 0 : i32
    %c0_i32_1 = arith.constant 0 : i32
    return %c0_i32, %c0_i32_0 : i32, i32
  }
  func.func @transform_5(%arg0: i32) -> (i32, i32, i32) {
    %c0_i32 = arith.constant 0 : i32
    %c0_i32_0 = arith.constant 0 : i32
    %c0_i32_1 = arith.constant 0 : i32
    %c0_i32_2 = arith.constant 0 : i32
    return %c0_i32, %c0_i32_0, %c0_i32_1 : i32, i32, i32
  }
  func.func @transform_6(%arg0: i32) -> (i32, i32) {
    %c0_i32 = arith.constant 0 : i32
    %c0_i32_0 = arith.constant 0 : i32
    %c0_i32_1 = arith.constant 0 : i32
    return %c0_i32, %c0_i32_0 : i32, i32
  }
  func.func @transform_7(%arg0: i32) -> (i32, i32) {
    %c0_i32 = arith.constant 0 : i32
    %c0_i32_0 = arith.constant 0 : i32
    %c0_i32_1 = arith.constant 0 : i32
    return %c0_i32, %c0_i32_0 : i32, i32
  }
  func.func @transform_8(%arg0: i32) -> (i32, i32) {
    %c0_i32 = arith.constant 0 : i32
    %c0_i32_0 = arith.constant 0 : i32
    %c0_i32_1 = arith.constant 0 : i32
    return %c0_i32, %c0_i32_0 : i32, i32
  }
  func.func @transform_9(%arg0: i32) -> (i32, i32, i32) {
    %c0_i32 = arith.constant 0 : i32
    %c0_i32_0 = arith.constant 0 : i32
    %c0_i32_1 = arith.constant 0 : i32
    return %arg0, %c0_i32, %c0_i32_0 : i32, i32, i32
  }
}

</mosaic_0001>

<llo_original>
// kernel: tpu_custom_call.1
$region0: #{tpu_custom_call.1}
  #allocation0 [shape = 'u32[]', space=smem, size = 0x4, offset = 0x4, fixed_abs, tag = 'smem constant byte address 0x4 - core index']
  #allocation1 [shape = 'u32[72,128]{1,0:T(1,128)}', space=vmem, size = 0x9000, scoped, tag = 'internal scratch']
  #allocation2 [shape = 'bf16[20,20,8]{2,1,0:T(8,128)(2,1)}', space=vmem, size = 0x1e000, scoped, tag = 'scratch operand']
  %s0 = inlined_call_operand.vmem [shape: f32[2,16,16,4], index: 0, kind: input, shape index: {}]
  %s1 = inlined_call_operand.vmem [shape: bf16[4,24], index: 1, kind: input, shape index: {}]
  %s2 = inlined_call_operand.vmem [shape: f32[1,24], index: 2, kind: input, shape index: {}]
  %s3 = inlined_call_operand.vmem [shape: bf16[3,24,8], index: 3, kind: input, shape index: {}]
  %s4 = inlined_call_operand.vmem [shape: f32[1,8], index: 4, kind: input, shape index: {}]
  %s5 = inlined_call_operand.vmem [shape: bf16[5,40,8], index: 5, kind: input, shape index: {}]
  %s6 = inlined_call_operand.vmem [shape: f32[1,8], index: 6, kind: input, shape index: {}]
  %s7 = inlined_call_operand.vmem [shape: bf16[4,8], index: 7, kind: input, shape index: {}]
  %s8 = inlined_call_operand.vmem [shape: f32[1,8], index: 8, kind: input, shape index: {}]
  %s9 = inlined_call_operand.vmem [shape: f32[2,256,32], index: 9, kind: output, shape index: {}]
  %s10 = sld [smem:[#allocation0]]
  $region69: #{tpu_custom_call.1} parent=0
    _
  %s12 = ssub.s32 1, %s10
  %s13 = scalar_select 0, %s12, %s10
  loop: start=0, step=1, limit=4
  $region2: #{tpu_custom_call.1} parent=0 // loop_pre_header
    _
  $region3: #{tpu_custom_call.1} parent=0 // loop_header
    %s15 = sphi 0, %s19
    %p16 = scmp.ge.s32.totalorder %s15, 4
    %s25 = sphi 0, %s27
    %s28 = sphi 0, %s25
    %s29 = sphi 0, %s28
    %s45 = sphi 0, %s29
    %s49 = sphi 0, %s49
    %s51 = sphi 0, %s49
    %s52 = sphi 0, %s51
    %s66 = sphi 0, %s52
    %s70 = sphi 0, %s70
    %s72 = sphi 0, %s70
    %s73 = sphi 0, %s72
    %s87 = sphi 0, %s73
    %s91 = sphi 0, %s91
    %s93 = sphi 0, %s91
    %s94 = sphi 0, %s93
    %s108 = sphi 0, %s94
    %s112 = sphi 0, %s112
    %s114 = sphi 0, %s112
    %s115 = sphi 0, %s114
    %s129 = sphi 0, %s115
    %s133 = sphi 0, %s133
    %s135 = sphi 0, %s133
    %s136 = sphi 0, %s135
    %s150 = sphi 0, %s136
    %s154 = sphi 0, %s154
    %s156 = sphi 0, %s154
    %s157 = sphi 0, %s156
    %s171 = sphi 0, %s157
    %s175 = sphi 0, %s175
    %s177 = sphi 0, %s175
    %s178 = sphi 0, %s177
    %s192 = sphi 0, %s178
    %s196 = sphi 0, %s196
    %s198 = sphi 0, %s196
    %s199 = sphi 0, %s198
    %s213 = sphi 0, %s199
    %s219 = sphi 0, %s221
    %s222 = sphi 0, %s219
    %s223 = sphi 0, %s222
    %s239 = sphi 0, %s223
  $region4: #{tpu_custom_call.1} parent=0 // loop_header_branch
    %18 = sbr.rel (%p16) target = $region8
  $region5: #{tpu_custom_call.1} parent=0 // loop_body
    %s20 = ssub.s32 %s15, 1
    %s21 = ssub.s32 %s15, 2
    %s22 = sadd.s32 %s15, 1
    %s23 = ssub.s32 %s15, %s22
    %p24 = scmp.eq.s32.totalorder %s23, 0
    %s26 = sadd.s32 %s25, 1
    %s27 = scalar_select %p24, %s25, %s26
    %p30 = pneg %p24
    %p31 = scmp.eq.s32.totalorder %s15, 1
    %p32 = por %p30, %p31
    %p33 = scmp.ne.s32.totalorder %s25, %s28
    %p34 = scmp.eq.s32.totalorder %s15, 0
    %p35 = por %p33, %p34
    %p36 = scmp.ne.s32.totalorder %s25, %s28
    %p37 = scmp.eq.s32.totalorder %s20, 1
    %p38 = por %p36, %p37
    %p39 = scmp.ne.s32.totalorder %s28, %s29
    %p40 = scmp.eq.s32.totalorder %s20, 0
    %p41 = por %p39, %p40
    %p42 = scmp.ne.s32.totalorder %s28, %s29
    %p43 = scmp.eq.s32.totalorder %s21, 1
    %p44 = por %p42, %p43
    %p46 = scmp.ne.s32.totalorder %s29, %s45
    %p47 = scmp.eq.s32.totalorder %s21, 0
    %p48 = por %p46, %p47
    %s50 = sadd.s32 %s49, 1
    %p53 = scmp.eq.s32.totalorder %s15, 1
    %p54 = scmp.ne.s32.totalorder %s49, %s51
    %p55 = scmp.eq.s32.totalorder %s15, 0
    %p56 = por %p54, %p55
    %p57 = scmp.ne.s32.totalorder %s49, %s51
    %p58 = scmp.eq.s32.totalorder %s20, 1
    %p59 = por %p57, %p58
    %p60 = scmp.ne.s32.totalorder %s51, %s52
    %p61 = scmp.eq.s32.totalorder %s20, 0
    %p62 = por %p60, %p61
    %p63 = scmp.ne.s32.totalorder %s51, %s52
    %p64 = scmp.eq.s32.totalorder %s21, 1
    %p65 = por %p63, %p64
    %p67 = scmp.ne.s32.totalorder %s52, %s66
    %p68 = scmp.eq.s32.totalorder %s21, 0
    %p69 = por %p67, %p68
    %s71 = sadd.s32 %s70, 1
    %p74 = scmp.eq.s32.totalorder %s15, 1
    %p75 = scmp.ne.s32.totalorder %s70, %s72
    %p76 = scmp.eq.s32.totalorder %s15, 0
    %p77 = por %p75, %p76
    %p78 = scmp.ne.s32.totalorder %s70, %s72
    %p79 = scmp.eq.s32.totalorder %s20, 1
    %p80 = por %p78, %p79
    %p81 = scmp.ne.s32.totalorder %s72, %s73
    %p82 = scmp.eq.s32.totalorder %s20, 0
    %p83 = por %p81, %p82
    %p84 = scmp.ne.s32.totalorder %s72, %s73
    %p85 = scmp.eq.s32.totalorder %s21, 1
    %p86 = por %p84, %p85
    %p88 = scmp.ne.s32.totalorder %s73, %s87
    %p89 = scmp.eq.s32.totalorder %s21, 0
    %p90 = por %p88, %p89
    %s92 = sadd.s32 %s91, 1
    %p95 = scmp.eq.s32.totalorder %s15, 1
    %p96 = scmp.ne.s32.totalorder %s91, %s93
    %p97 = scmp.eq.s32.totalorder %s15, 0
    %p98 = por %p96, %p97
    %p99 = scmp.ne.s32.totalorder %s91, %s93
    %p100 = scmp.eq.s32.totalorder %s20, 1
    %p101 = por %p99, %p100
    %p102 = scmp.ne.s32.totalorder %s93, %s94
    %p103 = scmp.eq.s32.totalorder %s20, 0
    %p104 = por %p102, %p103
    %p105 = scmp.ne.s32.totalorder %s93, %s94
    %p106 = scmp.eq.s32.totalorder %s21, 1
    %p107 = por %p105, %p106
    %p109 = scmp.ne.s32.totalorder %s94, %s108
    %p110 = scmp.eq.s32.totalorder %s21, 0
    %p111 = por %p109, %p110
    %s113 = sadd.s32 %s112, 1
    %p116 = scmp.eq.s32.totalorder %s15, 1
    %p117 = scmp.ne.s32.totalorder %s112, %s114
    %p118 = scmp.eq.s32.totalorder %s15, 0
    %p119 = por %p117, %p118
    %p120 = scmp.ne.s32.totalorder %s112, %s114
    %p121 = scmp.eq.s32.totalorder %s20, 1
    %p122 = por %p120, %p121
    %p123 = scmp.ne.s32.totalorder %s114, %s115
    %p124 = scmp.eq.s32.totalorder %s20, 0
    %p125 = por %p123, %p124
    %p126 = scmp.ne.s32.totalorder %s114, %s115
    %p127 = scmp.eq.s32.totalorder %s21, 1
    %p128 = por %p126, %p127
    %p130 = scmp.ne.s32.totalorder %s115, %s129
    %p131 = scmp.eq.s32.totalorder %s21, 0
    %p132 = por %p130, %p131
    %s134 = sadd.s32 %s133, 1
    %p137 = scmp.eq.s32.totalorder %s15, 1
    %p138 = scmp.ne.s32.totalorder %s133, %s135
    %p139 = scmp.eq.s32.totalorder %s15, 0
    %p140 = por %p138, %p139
    %p141 = scmp.ne.s32.totalorder %s133, %s135
    %p142 = scmp.eq.s32.totalorder %s20, 1
    %p143 = por %p141, %p142
    %p144 = scmp.ne.s32.totalorder %s135, %s136
    %p145 = scmp.eq.s32.totalorder %s20, 0
    %p146 = por %p144, %p145
    %p147 = scmp.ne.s32.totalorder %s135, %s136
    %p148 = scmp.eq.s32.totalorder %s21, 1
    %p149 = por %p147, %p148
    %p151 = scmp.ne.s32.totalorder %s136, %s150
    %p152 = scmp.eq.s32.totalorder %s21, 0
    %p153 = por %p151, %p152
    %s155 = sadd.s32 %s154, 1
    %p158 = scmp.eq.s32.totalorder %s15, 1
    %p159 = scmp.ne.s32.totalorder %s154, %s156
    %p160 = scmp.eq.s32.totalorder %s15, 0
    %p161 = por %p159, %p160
    %p162 = scmp.ne.s32.totalorder %s154, %s156
    %p163 = scmp.eq.s32.totalorder %s20, 1
    %p164 = por %p162, %p163
    %p165 = scmp.ne.s32.totalorder %s156, %s157
    %p166 = scmp.eq.s32.totalorder %s20, 0
    %p167 = por %p165, %p166
    %p168 = scmp.ne.s32.totalorder %s156, %s157
    %p169 = scmp.eq.s32.totalorder %s21, 1
    %p170 = por %p168, %p169
    %p172 = scmp.ne.s32.totalorder %s157, %s171
    %p173 = scmp.eq.s32.totalorder %s21, 0
    %p174 = por %p172, %p173
    %s176 = sadd.s32 %s175, 1
    %p179 = scmp.eq.s32.totalorder %s15, 1
    %p180 = scmp.ne.s32.totalorder %s175, %s177
    %p181 = scmp.eq.s32.totalorder %s15, 0
    %p182 = por %p180, %p181
    %p183 = scmp.ne.s32.totalorder %s175, %s177
    %p184 = scmp.eq.s32.totalorder %s20, 1
    %p185 = por %p183, %p184
    %p186 = scmp.ne.s32.totalorder %s177, %s178
    %p187 = scmp.eq.s32.totalorder %s20, 0
    %p188 = por %p186, %p187
    %p189 = scmp.ne.s32.totalorder %s177, %s178
    %p190 = scmp.eq.s32.totalorder %s21, 1
    %p191 = por %p189, %p190
    %p193 = scmp.ne.s32.totalorder %s178, %s192
    %p194 = scmp.eq.s32.totalorder %s21, 0
    %p195 = por %p193, %p194
    %s197 = sadd.s32 %s196, 1
    %p200 = scmp.eq.s32.totalorder %s15, 1
    %p201 = scmp.ne.s32.totalorder %s196, %s198
    %p202 = scmp.eq.s32.totalorder %s15, 0
    %p203 = por %p201, %p202
    %p204 = scmp.ne.s32.totalorder %s196, %s198
    %p205 = scmp.eq.s32.totalorder %s20, 1
    %p206 = por %p204, %p205
    %p207 = scmp.ne.s32.totalorder %s198, %s199
    %p208 = scmp.eq.s32.totalorder %s20, 0
    %p209 = por %p207, %p208
    %p210 = scmp.ne.s32.totalorder %s198, %s199
    %p211 = scmp.eq.s32.totalorder %s21, 1
    %p212 = por %p210, %p211
    %p214 = scmp.ne.s32.totalorder %s199, %s213
    %p215 = scmp.eq.s32.totalorder %s21, 0
    %p216 = por %p214, %p215
    %s217 = ssub.s32 %s15, %s22
    %p218 = scmp.eq.s32.totalorder %s217, 0
    %s220 = sadd.s32 %s219, 1
    %s221 = scalar_select %p218, %s219, %s220
    %p224 = pneg %p218
    %p225 = scmp.eq.s32.totalorder %s15, 1
    %p226 = por %p224, %p225
    %p227 = scmp.ne.s32.totalorder %s219, %s222
    %p228 = scmp.eq.s32.totalorder %s15, 0
    %p229 = por %p227, %p228
    %p230 = scmp.ne.s32.totalorder %s219, %s222
    %p231 = scmp.eq.s32.totalorder %s20, 1
    %p232 = por %p230, %p231
    %p233 = scmp.ne.s32.totalorder %s222, %s223
    %p234 = scmp.eq.s32.totalorder %s20, 0
    %p235 = por %p233, %p234
    %p236 = scmp.ne.s32.totalorder %s222, %s223
    %p237 = scmp.eq.s32.totalorder %s21, 1
    %p238 = por %p236, %p237
    %p240 = scmp.ne.s32.totalorder %s223, %s239
    %p241 = scmp.eq.s32.totalorder %s21, 0
    %p242 = por %p240, %p241
    %p243 = scmp.le.s32.totalorder 1, %s15
    %p244 = scmp.lt.s32.totalorder %s15, 3
    %p245 = pnand %p243, %p244
    %p246 = pneg %p245
    // Predicated region
    $region9: #{tpu_custom_call.1} parent=5 // pred_check
      _
    $region10: #{tpu_custom_call.1} parent=5 // pred_check_branch
      %248 = sbr.rel (%p245) target = $region12
    $region11: #{tpu_custom_call.1} parent=5 // pred_region
      %s249 = ssub.s32 %s15, 1
      // Predicated region
      $region13: #{tpu_custom_call.1} parent=11 // pred_check
        %p250 = pneg %p62
      $region14: #{tpu_custom_call.1} parent=11 // pred_check_branch
        %252 = sbr.rel (%p250) target = $region16
      $region15: #{tpu_custom_call.1} parent=11 // pred_region
        _
      $region16: #{tpu_custom_call.1} parent=11 // pred_fallthru
        _
      // Predicated region
      $region17: #{tpu_custom_call.1} parent=11 // pred_check
        %p253 = pneg %p83
      $region18: #{tpu_custom_call.1} parent=11 // pred_check_branch
        %255 = sbr.rel (%p253) target = $region20
      $region19: #{tpu_custom_call.1} parent=11 // pred_region
        _
      $region20: #{tpu_custom_call.1} parent=11 // pred_fallthru
        _
      // Predicated region
      $region21: #{tpu_custom_call.1} parent=11 // pred_check
        %p256 = pneg %p104
      $region22: #{tpu_custom_call.1} parent=11 // pred_check_branch
        %258 = sbr.rel (%p256) target = $region24
      $region23: #{tpu_custom_call.1} parent=11 // pred_region
        _
      $region24: #{tpu_custom_call.1} parent=11 // pred_fallthru
        _
      // Predicated region
      $region25: #{tpu_custom_call.1} parent=11 // pred_check
        %p259 = pneg %p125
      $region26: #{tpu_custom_call.1} parent=11 // pred_check_branch
        %261 = sbr.rel (%p259) target = $region28
      $region27: #{tpu_custom_call.1} parent=11 // pred_region
        _
      $region28: #{tpu_custom_call.1} parent=11 // pred_fallthru
        _
      // Predicated region
      $region29: #{tpu_custom_call.1} parent=11 // pred_check
        %p262 = pneg %p146
      $region30: #{tpu_custom_call.1} parent=11 // pred_check_branch
        %264 = sbr.rel (%p262) target = $region32
      $region31: #{tpu_custom_call.1} parent=11 // pred_region
        _
      $region32: #{tpu_custom_call.1} parent=11 // pred_fallthru
        _
      // Predicated region
      $region33: #{tpu_custom_call.1} parent=11 // pred_check
        %p265 = pneg %p167
      $region34: #{tpu_custom_call.1} parent=11 // pred_check_branch
        %267 = sbr.rel (%p265) target = $region36
      $region35: #{tpu_custom_call.1} parent=11 // pred_region
        _
      $region36: #{tpu_custom_call.1} parent=11 // pred_fallthru
        _
      // Predicated region
      $region37: #{tpu_custom_call.1} parent=11 // pred_check
        %p268 = pneg %p188
      $region38: #{tpu_custom_call.1} parent=11 // pred_check_branch
        %270 = sbr.rel (%p268) target = $region40
      $region39: #{tpu_custom_call.1} parent=11 // pred_region
        _
      $region40: #{tpu_custom_call.1} parent=11 // pred_fallthru
        _
      // Predicated region
      $region41: #{tpu_custom_call.1} parent=11 // pred_check
        %p271 = pneg %p209
      $region42: #{tpu_custom_call.1} parent=11 // pred_check_branch
        %273 = sbr.rel (%p271) target = $region44
      $region43: #{tpu_custom_call.1} parent=11 // pred_region
        _
      $region44: #{tpu_custom_call.1} parent=11 // pred_fallthru
        _
    $region12: #{tpu_custom_call.1} parent=5 // pred_fallthru
      _
    %p274 = scmp.lt.s32.totalorder %s15, 2
    // Predicated region
    $region45: #{tpu_custom_call.1} parent=5 // pred_check
      %p275 = pneg %p274
    $region46: #{tpu_custom_call.1} parent=5 // pred_check_branch
      %277 = sbr.rel (%p275) target = $region48
    $region47: #{tpu_custom_call.1} parent=5 // pred_region
      // Predicated region
      $region49: #{tpu_custom_call.1} parent=47 // pred_check
        %p278 = pneg %p35
      $region50: #{tpu_custom_call.1} parent=47 // pred_check_branch
        %280 = sbr.rel (%p278) target = $region52
      $region51: #{tpu_custom_call.1} parent=47 // pred_region
        %p281 = scmp.lt.s32.totalorder %s15, 1
        %s282 = scalar_select %p281, %s15, 1
        %s283 = smul.addr %s282, 32
        %s284 = smul.addr %s283, 8
        %s285 = scalar_lea.vmem %s0, %s284
      $region52: #{tpu_custom_call.1} parent=47 // pred_fallthru
        _
    $region48: #{tpu_custom_call.1} parent=5 // pred_fallthru
      _
    %p286 = scmp.le.s32.totalorder 1, %s15
    %p287 = scmp.lt.s32.totalorder %s15, 3
    %p288 = pnand %p286, %p287
    %p289 = pneg %p288
    // Predicated region
    $region53: #{tpu_custom_call.1} parent=5 // pred_check
      _
    $region54: #{tpu_custom_call.1} parent=5 // pred_check_branch
      %291 = sbr.rel (%p288) target = $region56
    $region55: #{tpu_custom_call.1} parent=5 // pred_region
      %s292 = ssub.s32 %s15, 1
      %p293 = scmp.lt.s32.totalorder %s20, 1
      %s294 = scalar_select %p293, %s20, 1
      %s295 = smul.addr %s294, 32
      %s296 = smul.addr %s295, 8
      %s297 = scalar_lea.vmem %s0, %s296
      %p298 = pneg %p41
      %p299 = pneg %p38
      %p300 = pneg %p62
      %p301 = pneg %p59
      %p302 = pneg %p83
      %p303 = pneg %p80
      %p304 = pneg %p104
      %p305 = pneg %p101
      %p306 = pneg %p125
      %p307 = pneg %p122
      %p308 = pneg %p146
      %p309 = pneg %p143
      %p310 = pneg %p167
      %p311 = pneg %p164
      %p312 = pneg %p188
      %p313 = pneg %p185
      %p314 = pneg %p209
      %p315 = pneg %p206
      %p316 = pneg %p235
      %p317 = pneg %p232
      %p318 = scmp.lt.s32.totalorder %s20, 1
      %s319 = scalar_select %p318, %s20, 1
      %s320 = smul.addr %s319, 32
      %s321 = smul.addr %s320, 8
      %s322 = scalar_lea.vmem %s9, %s321
      %p323 = scmp.lt.s32.totalorder %s20, 1
      %s324 = scalar_select %p323, %s20, 1
      %s325 = smul.addr %s324, 32
      %s326 = smul.addr %s325, 8
      %s327 = scalar_lea.vmem %s0, %s326
      %p328 = scmp.lt.s32.totalorder %s20, 1
      %s329 = scalar_select %p328, %s20, 1
      %s330 = smul.addr %s329, 32
      %s331 = smul.addr %s330, 8
      %s332 = scalar_lea.vmem %s9, %s331
      %vm334 = vcmask 60416
      %335 = vst.msk [vmem:[#allocation2] sm:$0xf] %vm334, 0
      %336 = vst.msk [vmem:[#allocation2 + $0x4] sm:$0xf] %vm334, 0
      %vm337 = vcmask 58368
      %338 = vst.msk [vmem:[#allocation2 + $0x8] sm:$0x3] %vm337, 0
      %339 = vst.msk [vmem:[#allocation2 + $0xc] sm:$0xf] %vm334, 0
      %340 = vst.msk [vmem:[#allocation2 + $0x10] sm:$0xf] %vm334, 0
      %341 = vst.msk [vmem:[#allocation2 + $0x14] sm:$0x3] %vm337, 0
      %s342 = scalar_lea.vmem [#allocation2], 216
      %343 = vst.msk [vmem:[%s342] sm:$0xf] %vm334, 0
      %344 = vst.msk [vmem:[%s342 + $0x4] sm:$0xf] %vm334, 0
      %345 = vst.msk [vmem:[%s342 + $0x8] sm:$0x3] %vm337, 0
      %346 = vst.msk [vmem:[%s342 + $0xc] sm:$0xf] %vm334, 0
      %347 = vst.msk [vmem:[%s342 + $0x10] sm:$0xf] %vm334, 0
      %348 = vst.msk [vmem:[%s342 + $0x14] sm:$0x3] %vm337, 0
      %s349 = scalar_lea.vmem [#allocation2], 24
      %vm350 = vcmask 57344
      %351 = vst.msk [vmem:[%s349] sm:$0x1] %vm350, 0
      %352 = vst.msk [vmem:[%s349 + $0xc] sm:$0x1] %vm350, 0
      %353 = vst.msk [vmem:[%s349 + $0x18] sm:$0x1] %vm350, 0
      %354 = vst.msk [vmem:[%s349 + $0x24] sm:$0x1] %vm350, 0
      %355 = vst.msk [vmem:[%s349 + $0x30] sm:$0x1] %vm350, 0
      %356 = vst.msk [vmem:[%s349 + $0x3c] sm:$0x1] %vm350, 0
      %357 = vst.msk [vmem:[%s349 + $0x48] sm:$0x1] %vm350, 0
      %358 = vst.msk [vmem:[%s349 + $0x54] sm:$0x1] %vm350, 0
      %359 = vst.msk [vmem:[%s349 + $0x60] sm:$0x1] %vm350, 0
      %360 = vst.msk [vmem:[%s349 + $0x6c] sm:$0x1] %vm350, 0
      %361 = vst.msk [vmem:[%s349 + $0x78] sm:$0x1] %vm350, 0
      %362 = vst.msk [vmem:[%s349 + $0x84] sm:$0x1] %vm350, 0
      %363 = vst.msk [vmem:[%s349 + $0x90] sm:$0x1] %vm350, 0
      %364 = vst.msk [vmem:[%s349 + $0x9c] sm:$0x1] %vm350, 0
      %365 = vst.msk [vmem:[%s349 + $0xa8] sm:$0x1] %vm350, 0
      %366 = vst.msk [vmem:[%s349 + $0xb4] sm:$0x1] %vm350, 0
      %vm367 = vcmask 58369
      %368 = vst.msk [vmem:[%s349 + $0x8] sm:$0x2] %vm367, 0
      %369 = vst.msk [vmem:[%s349 + $0x14] sm:$0x2] %vm367, 0
      %370 = vst.msk [vmem:[%s349 + $0x20] sm:$0x2] %vm367, 0
      %371 = vst.msk [vmem:[%s349 + $0x2c] sm:$0x2] %vm367, 0
      %372 = vst.msk [vmem:[%s349 + $0x38] sm:$0x2] %vm367, 0
      %373 = vst.msk [vmem:[%s349 + $0x44] sm:$0x2] %vm367, 0
      %374 = vst.msk [vmem:[%s349 + $0x50] sm:$0x2] %vm367, 0
      %375 = vst.msk [vmem:[%s349 + $0x5c] sm:$0x2] %vm367, 0
      %376 = vst.msk [vmem:[%s349 + $0x68] sm:$0x2] %vm367, 0
      %377 = vst.msk [vmem:[%s349 + $0x74] sm:$0x2] %vm367, 0
      %378 = vst.msk [vmem:[%s349 + $0x80] sm:$0x2] %vm367, 0
      %379 = vst.msk [vmem:[%s349 + $0x8c] sm:$0x2] %vm367, 0
      %380 = vst.msk [vmem:[%s349 + $0x98] sm:$0x2] %vm367, 0
      %381 = vst.msk [vmem:[%s349 + $0xa4] sm:$0x2] %vm367, 0
      %382 = vst.msk [vmem:[%s349 + $0xb0] sm:$0x2] %vm367, 0
      %383 = vst.msk [vmem:[%s349 + $0xbc] sm:$0x2] %vm367, 0
      %v384 = vld [vmem:[%s327] sm:$0xff]
      %v385 = vld [vmem:[%s327 + $0x8] sm:$0xff]
      %v386 = vld [vmem:[%s327 + $0x10] sm:$0xff]
      %v387 = vld [vmem:[%s327 + $0x18] sm:$0xff]
      %v388 = vld [vmem:[%s327 + $0x20] sm:$0xff]
      %v389 = vld [vmem:[%s327 + $0x28] sm:$0xff]
      %v390 = vld [vmem:[%s327 + $0x30] sm:$0xff]
      %v391 = vld [vmem:[%s327 + $0x38] sm:$0xff]
      %v392 = vld [vmem:[%s327 + $0x40] sm:$0xff]
      %v393 = vld [vmem:[%s327 + $0x48] sm:$0xff]
      %v394 = vld [vmem:[%s327 + $0x50] sm:$0xff]
      %v395 = vld [vmem:[%s327 + $0x58] sm:$0xff]
      %v396 = vld [vmem:[%s327 + $0x60] sm:$0xff]
      %v397 = vld [vmem:[%s327 + $0x68] sm:$0xff]
      %v398 = vld [vmem:[%s327 + $0x70] sm:$0xff]
      %v399 = vld [vmem:[%s327 + $0x78] sm:$0xff]
      %v400 = vld [vmem:[%s327 + $0x80] sm:$0xff]
      %v401 = vld [vmem:[%s327 + $0x88] sm:$0xff]
      %v402 = vld [vmem:[%s327 + $0x90] sm:$0xff]
      %v403 = vld [vmem:[%s327 + $0x98] sm:$0xff]
      %v404 = vld [vmem:[%s327 + $0xa0] sm:$0xff]
      %v405 = vld [vmem:[%s327 + $0xa8] sm:$0xff]
      %v406 = vld [vmem:[%s327 + $0xb0] sm:$0xff]
      %v407 = vld [vmem:[%s327 + $0xb8] sm:$0xff]
      %v408 = vld [vmem:[%s327 + $0xc0] sm:$0xff]
      %v409 = vld [vmem:[%s327 + $0xc8] sm:$0xff]
      %v410 = vld [vmem:[%s327 + $0xd0] sm:$0xff]
      %v411 = vld [vmem:[%s327 + $0xd8] sm:$0xff]
      %v412 = vld [vmem:[%s327 + $0xe0] sm:$0xff]
      %v413 = vld [vmem:[%s327 + $0xe8] sm:$0xff]
      %v414 = vld [vmem:[%s327 + $0xf0] sm:$0xff]
      %v415 = vld [vmem:[%s327 + $0xf8] sm:$0xff]
      %v416 = vpack.c.bf16 %v384, %v384
      %v417 = vpack.c.bf16 %v385, %v385
      %v418 = vpack.c.bf16 %v386, %v386
      %v419 = vpack.c.bf16 %v387, %v387
      %v420 = vpack.c.bf16 %v388, %v388
      %v421 = vpack.c.bf16 %v389, %v389
      %v422 = vpack.c.bf16 %v390, %v390
      %v423 = vpack.c.bf16 %v391, %v391
      %v424 = vpack.c.bf16 %v392, %v392
      %v425 = vpack.c.bf16 %v393, %v393
      %v426 = vpack.c.bf16 %v394, %v394
      %v427 = vpack.c.bf16 %v395, %v395
      %v428 = vpack.c.bf16 %v396, %v396
      %v429 = vpack.c.bf16 %v397, %v397
      %v430 = vpack.c.bf16 %v398, %v398
      %v431 = vpack.c.bf16 %v399, %v399
      %v432 = vpack.c.bf16 %v400, %v400
      %v433 = vpack.c.bf16 %v401, %v401
      %v434 = vpack.c.bf16 %v402, %v402
      %v435 = vpack.c.bf16 %v403, %v403
      %v436 = vpack.c.bf16 %v404, %v404
      %v437 = vpack.c.bf16 %v405, %v405
      %v438 = vpack.c.bf16 %v406, %v406
      %v439 = vpack.c.bf16 %v407, %v407
      %v440 = vpack.c.bf16 %v408, %v408
      %v441 = vpack.c.bf16 %v409, %v409
      %v442 = vpack.c.bf16 %v410, %v410
      %v443 = vpack.c.bf16 %v411, %v411
      %v444 = vpack.c.bf16 %v412, %v412
      %v445 = vpack.c.bf16 %v413, %v413
      %v446 = vpack.c.bf16 %v414, %v414
      %v447 = vpack.c.bf16 %v415, %v415
      %v448 = vld [vmem:[%s1] sm:$0x3]
      %v449 = vld [vmem:[%s2] sm:$0x1]
      %v451 = vperm.slane %v449, 0
      %v485 = vunpack.c.l.b16 %v416
      %v486 = vunpack.c.l.b16 %v417
      %v487 = vunpack.c.l.b16 %v418
      %v488 = vunpack.c.l.b16 %v419
      %v489 = vunpack.c.l.b16 %v420
      %v490 = vunpack.c.l.b16 %v421
      %v491 = vunpack.c.l.b16 %v422
      %v492 = vunpack.c.l.b16 %v423
      %v493 = vunpack.c.l.b16 %v424
      %v494 = vunpack.c.l.b16 %v425
      %v495 = vunpack.c.l.b16 %v426
      %v496 = vunpack.c.l.b16 %v427
      %v497 = vunpack.c.l.b16 %v428
      %v498 = vunpack.c.l.b16 %v429
      %v499 = vunpack.c.l.b16 %v430
      %v500 = vunpack.c.l.b16 %v431
      %v501 = vunpack.c.l.b16 %v432
      %v502 = vunpack.c.l.b16 %v433
      %v503 = vunpack.c.l.b16 %v434
      %v504 = vunpack.c.l.b16 %v435
      %v505 = vunpack.c.l.b16 %v436
      %v506 = vunpack.c.l.b16 %v437
      %v507 = vunpack.c.l.b16 %v438
      %v508 = vunpack.c.l.b16 %v439
      %v509 = vunpack.c.l.b16 %v440
      %v510 = vunpack.c.l.b16 %v441
      %v511 = vunpack.c.l.b16 %v442
      %v512 = vunpack.c.l.b16 %v443
      %v513 = vunpack.c.l.b16 %v444
      %v514 = vunpack.c.l.b16 %v445
      %v515 = vunpack.c.l.b16 %v446
      %v516 = vunpack.c.l.b16 %v447
      %v517 = vpack.c.b16 %v486, %v485
      %v518 = vpack.c.b16 %v488, %v487
      %v519 = vpack.c.b16 %v490, %v489
      %v520 = vpack.c.b16 %v492, %v491
      %v521 = vpack.c.b16 %v494, %v493
      %v522 = vpack.c.b16 %v496, %v495
      %v523 = vpack.c.b16 %v498, %v497
      %v524 = vpack.c.b16 %v500, %v499
      %v525 = vpack.c.b16 %v502, %v501
      %v526 = vpack.c.b16 %v504, %v503
      %v527 = vpack.c.b16 %v506, %v505
      %v528 = vpack.c.b16 %v508, %v507
      %v529 = vpack.c.b16 %v510, %v509
      %v530 = vpack.c.b16 %v512, %v511
      %v531 = vpack.c.b16 %v514, %v513
      %v532 = vpack.c.b16 %v516, %v515
      %vm533 = vcmask 31744
      %v535 = vsel %vm533, %v517, 0
      %v538 = vsel %vm533, %v518, 0
      %v541 = vsel %vm533, %v519, 0
      %v544 = vsel %vm533, %v520, 0
      %v547 = vsel %vm533, %v521, 0
      %v550 = vsel %vm533, %v522, 0
      %v553 = vsel %vm533, %v523, 0
      %v556 = vsel %vm533, %v524, 0
      %v559 = vsel %vm533, %v525, 0
      %v562 = vsel %vm533, %v526, 0
      %v565 = vsel %vm533, %v527, 0
      %v568 = vsel %vm533, %v528, 0
      %v571 = vsel %vm533, %v529, 0
      %v574 = vsel %vm533, %v530, 0
      %v577 = vsel %vm533, %v531, 0
      %v580 = vsel %vm533, %v532, 0
      %vm582 = vcmask 1041408
      %v584 = vsel %vm582, %v448, 0
      %586 = vmatpush.bf16.msra.mxu0 0
      %587 = vmatpush.bf16.msra.mxu0 0
      %588 = vmatpush.bf16.msra.mxu0 0
      %589 = vmatpush.bf16.msra.mxu0 0
      %590 = vmatpush.bf16.msra.mxu0 0
      %591 = vmatpush.bf16.msra.mxu0 0
      %592 = vmatpush.bf16.msra.mxu0 0
      %593 = vmatpush.bf16.msra.mxu0 %v584
      %594 = vmatmul.bf16.gmra.mxu0 %v535
      %v595 = vpop.f32.mrf.mxu0
      %v596 = vadd.f32 %v451, %v595
      %v597 = vpop.f32.mrf.mxu0
      %v598 = vadd.f32 %v451, %v597
      %599 = vmatmul.bf16.gmra.mxu0 %v538
      %v600 = vpop.f32.mrf.mxu0
      %v601 = vadd.f32 %v451, %v600
      %v602 = vpop.f32.mrf.mxu0
      %v603 = vadd.f32 %v451, %v602
      %604 = vmatmul.bf16.gmra.mxu0 %v541
      %v605 = vpop.f32.mrf.mxu0
      %v606 = vadd.f32 %v451, %v605
      %v607 = vpop.f32.mrf.mxu0
      %v608 = vadd.f32 %v451, %v607
      %609 = vmatmul.bf16.gmra.mxu0 %v544
      %v610 = vpop.f32.mrf.mxu0
      %v611 = vadd.f32 %v451, %v610
      %v612 = vpop.f32.mrf.mxu0
      %v613 = vadd.f32 %v451, %v612
      %614 = vmatmul.bf16.gmra.mxu0 %v547
      %v615 = vpop.f32.mrf.mxu0
      %v616 = vadd.f32 %v451, %v615
      %v617 = vpop.f32.mrf.mxu0
      %v618 = vadd.f32 %v451, %v617
      %619 = vmatmul.bf16.gmra.mxu0 %v550
      %v620 = vpop.f32.mrf.mxu0
      %v621 = vadd.f32 %v451, %v620
      %v622 = vpop.f32.mrf.mxu0
      %v623 = vadd.f32 %v451, %v622
      %624 = vmatmul.bf16.gmra.mxu0 %v553
      %v625 = vpop.f32.mrf.mxu0
      %v626 = vadd.f32 %v451, %v625
      %v627 = vpop.f32.mrf.mxu0
      %v628 = vadd.f32 %v451, %v627
      %629 = vmatmul.bf16.gmra.mxu0 %v556
      %v630 = vpop.f32.mrf.mxu0
      %v631 = vadd.f32 %v451, %v630
      %v632 = vpop.f32.mrf.mxu0
      %v633 = vadd.f32 %v451, %v632
      %634 = vmatmul.bf16.gmra.mxu0 %v559
      %v635 = vpop.f32.mrf.mxu0
      %v636 = vadd.f32 %v451, %v635
      %v637 = vpop.f32.mrf.mxu0
      %v638 = vadd.f32 %v451, %v637
      %639 = vmatmul.bf16.gmra.mxu0 %v562
      %v640 = vpop.f32.mrf.mxu0
      %v641 = vadd.f32 %v451, %v640
      %v642 = vpop.f32.mrf.mxu0
      %v643 = vadd.f32 %v451, %v642
      %644 = vmatmul.bf16.gmra.mxu0 %v565
      %v645 = vpop.f32.mrf.mxu0
      %v646 = vadd.f32 %v451, %v645
      %v647 = vpop.f32.mrf.mxu0
      %v648 = vadd.f32 %v451, %v647
      %649 = vmatmul.bf16.gmra.mxu0 %v568
      %v650 = vpop.f32.mrf.mxu0
      %v651 = vadd.f32 %v451, %v650
      %v652 = vpop.f32.mrf.mxu0
      %v653 = vadd.f32 %v451, %v652
      %654 = vmatmul.bf16.gmra.mxu0 %v571
      %v655 = vpop.f32.mrf.mxu0
      %v656 = vadd.f32 %v451, %v655
      %v657 = vpop.f32.mrf.mxu0
      %v658 = vadd.f32 %v451, %v657
      %659 = vmatmul.bf16.gmra.mxu0 %v574
      %v660 = vpop.f32.mrf.mxu0
      %v661 = vadd.f32 %v451, %v660
      %v662 = vpop.f32.mrf.mxu0
      %v663 = vadd.f32 %v451, %v662
      %664 = vmatmul.bf16.gmra.mxu0 %v577
      %v665 = vpop.f32.mrf.mxu0
      %v666 = vadd.f32 %v451, %v665
      %v667 = vpop.f32.mrf.mxu0
      %v668 = vadd.f32 %v451, %v667
      %669 = vmatmul.bf16.gmra.mxu0 %v580
      %v670 = vpop.f32.mrf.mxu0
      %v671 = vadd.f32 %v451, %v670
      %v672 = vpop.f32.mrf.mxu0
      %v673 = vadd.f32 %v451, %v672
      %674 = vdwg.mxu0
      %v675 = vmax.f32 %v596, 0.0
      %v676 = vmax.f32 %v598, 0.0
      %v677 = vmax.f32 %v601, 0.0
      %v678 = vmax.f32 %v603, 0.0
      %v679 = vmax.f32 %v606, 0.0
      %v680 = vmax.f32 %v608, 0.0
      %v681 = vmax.f32 %v611, 0.0
      %v682 = vmax.f32 %v613, 0.0
      %v683 = vmax.f32 %v616, 0.0
      %v684 = vmax.f32 %v618, 0.0
      %v685 = vmax.f32 %v621, 0.0
      %v686 = vmax.f32 %v623, 0.0
      %v687 = vmax.f32 %v626, 0.0
      %v688 = vmax.f32 %v628, 0.0
      %v689 = vmax.f32 %v631, 0.0
      %v690 = vmax.f32 %v633, 0.0
      %v691 = vmax.f32 %v636, 0.0
      %v692 = vmax.f32 %v638, 0.0
      %v693 = vmax.f32 %v641, 0.0
      %v694 = vmax.f32 %v643, 0.0
      %v695 = vmax.f32 %v646, 0.0
      %v696 = vmax.f32 %v648, 0.0
      %v697 = vmax.f32 %v651, 0.0
      %v698 = vmax.f32 %v653, 0.0
      %v699 = vmax.f32 %v656, 0.0
      %v700 = vmax.f32 %v658, 0.0
      %v701 = vmax.f32 %v661, 0.0
      %v702 = vmax.f32 %v663, 0.0
      %v703 = vmax.f32 %v666, 0.0
      %v704 = vmax.f32 %v668, 0.0
      %v705 = vmax.f32 %v671, 0.0
      %v706 = vmax.f32 %v673, 0.0
      %v707 = vpack.c.bf16 %v596, %v596
      %v708 = vpack.c.bf16 %v598, %v598
      %v709 = vpack.c.bf16 %v601, %v601
      %v710 = vpack.c.bf16 %v603, %v603
      %v711 = vpack.c.bf16 %v606, %v606
      %v712 = vpack.c.bf16 %v608, %v608
      %v713 = vpack.c.bf16 %v611, %v611
      %v714 = vpack.c.bf16 %v613, %v613
      %v715 = vpack.c.bf16 %v616, %v616
      %v716 = vpack.c.bf16 %v618, %v618
      %v717 = vpack.c.bf16 %v621, %v621
      %v718 = vpack.c.bf16 %v623, %v623
      %v719 = vpack.c.bf16 %v626, %v626
      %v720 = vpack.c.bf16 %v628, %v628
      %v721 = vpack.c.bf16 %v631, %v631
      %v722 = vpack.c.bf16 %v633, %v633
      %v723 = vpack.c.bf16 %v636, %v636
      %v724 = vpack.c.bf16 %v638, %v638
      %v725 = vpack.c.bf16 %v641, %v641
      %v726 = vpack.c.bf16 %v643, %v643
      %v727 = vpack.c.bf16 %v646, %v646
      %v728 = vpack.c.bf16 %v648, %v648
      %v729 = vpack.c.bf16 %v651, %v651
      %v730 = vpack.c.bf16 %v653, %v653
      %v731 = vpack.c.bf16 %v656, %v656
      %v732 = vpack.c.bf16 %v658, %v658
      %v733 = vpack.c.bf16 %v661, %v661
      %v734 = vpack.c.bf16 %v663, %v663
      %v735 = vpack.c.bf16 %v666, %v666
      %v736 = vpack.c.bf16 %v668, %v668
      %v737 = vpack.c.bf16 %v671, %v671
      %v738 = vpack.c.bf16 %v673, %v673
      %vm771 = vcmask 1040384
      %vm772 = vcmask 1044484
      %vm773 = vmor %vm771, %vm772
      %v774 = vrot.slane %v707, 7
      %v775 = vrot.slane %v774, 4
      %v776 = vrot.slane %v708, 7
      %v777 = vsel %vm773, %v775, %v776
      %v778 = vrot.slane %v776, 4
      %v779 = vrot.slane %v709, 7
      %v780 = vrot.slane %v779, 4
      %v781 = vrot.slane %v710, 7
      %v782 = vsel %vm773, %v780, %v781
      %v783 = vrot.slane %v781, 4
      %v784 = vrot.slane %v711, 7
      %v785 = vrot.slane %v784, 4
      %v786 = vrot.slane %v712, 7
      %v787 = vsel %vm773, %v785, %v786
      %v788 = vrot.slane %v786, 4
      %v789 = vrot.slane %v713, 7
      %v790 = vrot.slane %v789, 4
      %v791 = vrot.slane %v714, 7
      %v792 = vsel %vm773, %v790, %v791
      %v793 = vrot.slane %v791, 4
      %v794 = vrot.slane %v715, 7
      %v795 = vrot.slane %v794, 4
      %v796 = vrot.slane %v716, 7
      %v797 = vsel %vm773, %v795, %v796
      %v798 = vrot.slane %v796, 4
      %v799 = vrot.slane %v717, 7
      %v800 = vrot.slane %v799, 4
      %v801 = vrot.slane %v718, 7
      %v802 = vsel %vm773, %v800, %v801
      %v803 = vrot.slane %v801, 4
      %v804 = vrot.slane %v719, 7
      %v805 = vrot.slane %v804, 4
      %v806 = vrot.slane %v720, 7
      %v807 = vsel %vm773, %v805, %v806
      %v808 = vrot.slane %v806, 4
      %v809 = vrot.slane %v721, 7
      %v810 = vrot.slane %v809, 4
      %v811 = vrot.slane %v722, 7
      %v812 = vsel %vm773, %v810, %v811
      %v813 = vrot.slane %v811, 4
      %v814 = vrot.slane %v723, 7
      %v815 = vrot.slane %v814, 4
      %v816 = vrot.slane %v724, 7
      %v817 = vsel %vm773, %v815, %v816
      %v818 = vrot.slane %v816, 4
      %v819 = vrot.slane %v725, 7
      %v820 = vrot.slane %v819, 4
      %v821 = vrot.slane %v726, 7
      %v822 = vsel %vm773, %v820, %v821
      %v823 = vrot.slane %v821, 4
      %v824 = vrot.slane %v727, 7
      %v825 = vrot.slane %v824, 4
      %v826 = vrot.slane %v728, 7
      %v827 = vsel %vm773, %v825, %v826
      %v828 = vrot.slane %v826, 4
      %v829 = vrot.slane %v729, 7
      %v830 = vrot.slane %v829, 4
      %v831 = vrot.slane %v730, 7
      %v832 = vsel %vm773, %v830, %v831
      %v833 = vrot.slane %v831, 4
      %v834 = vrot.slane %v731, 7
      %v835 = vrot.slane %v834, 4
      %v836 = vrot.slane %v732, 7
      %v837 = vsel %vm773, %v835, %v836
      %v838 = vrot.slane %v836, 4
      %v839 = vrot.slane %v733, 7
      %v840 = vrot.slane %v839, 4
      %v841 = vrot.slane %v734, 7
      %v842 = vsel %vm773, %v840, %v841
      %v843 = vrot.slane %v841, 4
      %v844 = vrot.slane %v735, 7
      %v845 = vrot.slane %v844, 4
      %v846 = vrot.slane %v736, 7
      %v847 = vsel %vm773, %v845, %v846
      %v848 = vrot.slane %v846, 4
      %v849 = vrot.slane %v737, 7
      %v850 = vrot.slane %v849, 4
      %v851 = vrot.slane %v738, 7
      %v852 = vsel %vm773, %v850, %v851
      %v853 = vrot.slane %v851, 4
      %854 = vrot.lane.b32.xlu0 %v774, 120
      %v855 = vpop.permute.xlu0 %854
      %856 = vrot.lane.b32.xlu0 %v777, 120
      %v857 = vpop.permute.xlu0 %856
      %858 = vrot.lane.b32.xlu0 %v778, 120
      %v859 = vpop.permute.xlu0 %858
      %860 = vrot.lane.b32.xlu0 %v779, 120
      %v861 = vpop.permute.xlu0 %860
      %862 = vrot.lane.b32.xlu0 %v782, 120
      %v863 = vpop.permute.xlu0 %862
      %864 = vrot.lane.b32.xlu0 %v783, 120
      %v865 = vpop.permute.xlu0 %864
      %866 = vrot.lane.b32.xlu0 %v784, 120
      %v867 = vpop.permute.xlu0 %866
      %868 = vrot.lane.b32.xlu0 %v787, 120
      %v869 = vpop.permute.xlu0 %868
      %870 = vrot.lane.b32.xlu0 %v788, 120
      %v871 = vpop.permute.xlu0 %870
      %872 = vrot.lane.b32.xlu0 %v789, 120
      %v873 = vpop.permute.xlu0 %872
      %874 = vrot.lane.b32.xlu0 %v792, 120
      %v875 = vpop.permute.xlu0 %874
      %876 = vrot.lane.b32.xlu0 %v793, 120
      %v877 = vpop.permute.xlu0 %876
      %878 = vrot.lane.b32.xlu0 %v794, 120
      %v879 = vpop.permute.xlu0 %878
      %880 = vrot.lane.b32.xlu0 %v797, 120
      %v881 = vpop.permute.xlu0 %880
      %882 = vrot.lane.b32.xlu0 %v798, 120
      %v883 = vpop.permute.xlu0 %882
      %884 = vrot.lane.b32.xlu0 %v799, 120
      %v885 = vpop.permute.xlu0 %884
      %886 = vrot.lane.b32.xlu0 %v802, 120
      %v887 = vpop.permute.xlu0 %886
      %888 = vrot.lane.b32.xlu0 %v803, 120
      %v889 = vpop.permute.xlu0 %888
      %890 = vrot.lane.b32.xlu0 %v804, 120
      %v891 = vpop.permute.xlu0 %890
      %892 = vrot.lane.b32.xlu0 %v807, 120
      %v893 = vpop.permute.xlu0 %892
      %894 = vrot.lane.b32.xlu0 %v808, 120
      %v895 = vpop.permute.xlu0 %894
      %896 = vrot.lane.b32.xlu0 %v809, 120
      %v897 = vpop.permute.xlu0 %896
      %898 = vrot.lane.b32.xlu0 %v812, 120
      %v899 = vpop.permute.xlu0 %898
      %900 = vrot.lane.b32.xlu0 %v813, 120
      %v901 = vpop.permute.xlu0 %900
      %902 = vrot.lane.b32.xlu0 %v814, 120
      %v903 = vpop.permute.xlu0 %902
      %904 = vrot.lane.b32.xlu0 %v817, 120
      %v905 = vpop.permute.xlu0 %904
      %906 = vrot.lane.b32.xlu0 %v818, 120
      %v907 = vpop.permute.xlu0 %906
      %908 = vrot.lane.b32.xlu0 %v819, 120
      %v909 = vpop.permute.xlu0 %908
      %910 = vrot.lane.b32.xlu0 %v822, 120
      %v911 = vpop.permute.xlu0 %910
      %912 = vrot.lane.b32.xlu0 %v823, 120
      %v913 = vpop.permute.xlu0 %912
      %914 = vrot.lane.b32.xlu0 %v824, 120
      %v915 = vpop.permute.xlu0 %914
      %916 = vrot.lane.b32.xlu0 %v827, 120
      %v917 = vpop.permute.xlu0 %916
      %918 = vrot.lane.b32.xlu0 %v828, 120
      %v919 = vpop.permute.xlu0 %918
      %920 = vrot.lane.b32.xlu0 %v829, 120
      %v921 = vpop.permute.xlu0 %920
      %922 = vrot.lane.b32.xlu0 %v832, 120
      %v923 = vpop.permute.xlu0 %922
      %924 = vrot.lane.b32.xlu0 %v833, 120
      %v925 = vpop.permute.xlu0 %924
      %926 = vrot.lane.b32.xlu0 %v834, 120
      %v927 = vpop.permute.xlu0 %926
      %928 = vrot.lane.b32.xlu0 %v837, 120
      %v929 = vpop.permute.xlu0 %928
      %930 = vrot.lane.b32.xlu0 %v838, 120
      %v931 = vpop.permute.xlu0 %930
      %932 = vrot.lane.b32.xlu0 %v839, 120
      %v933 = vpop.permute.xlu0 %932
      %934 = vrot.lane.b32.xlu0 %v842, 120
      %v935 = vpop.permute.xlu0 %934
      %936 = vrot.lane.b32.xlu0 %v843, 120
      %v937 = vpop.permute.xlu0 %936
      %938 = vrot.lane.b32.xlu0 %v844, 120
      %v939 = vpop.permute.xlu0 %938
      %940 = vrot.lane.b32.xlu0 %v847, 120
      %v941 = vpop.permute.xlu0 %940
      %942 = vrot.lane.b32.xlu0 %v848, 120
      %v943 = vpop.permute.xlu0 %942
      %944 = vrot.lane.b32.xlu0 %v849, 120
      %v945 = vpop.permute.xlu0 %944
      %946 = vrot.lane.b32.xlu0 %v852, 120
      %v947 = vpop.permute.xlu0 %946
      %948 = vrot.lane.b32.xlu0 %v853, 120
      %v949 = vpop.permute.xlu0 %948
      %vm998 = vcmask 60417
      %999 = vst.msk [vmem:[%s349] sm:$0xe] %vm998, %v855
      %1000 = vst.msk [vmem:[%s349 + $0x4] sm:$0xf] %vm334, %v857
      %1001 = vst.msk [vmem:[%s349 + $0x8] sm:$0x1] %vm350, %v859
      %1002 = vst.msk [vmem:[%s349 + $0xc] sm:$0xe] %vm998, %v861
      %1003 = vst.msk [vmem:[%s349 + $0x10] sm:$0xf] %vm334, %v863
      %1004 = vst.msk [vmem:[%s349 + $0x14] sm:$0x1] %vm350, %v865
      %1005 = vst.msk [vmem:[%s349 + $0x18] sm:$0xe] %vm998, %v867
      %1006 = vst.msk [vmem:[%s349 + $0x1c] sm:$0xf] %vm334, %v869
      %1007 = vst.msk [vmem:[%s349 + $0x20] sm:$0x1] %vm350, %v871
      %1008 = vst.msk [vmem:[%s349 + $0x24] sm:$0xe] %vm998, %v873
      %1009 = vst.msk [vmem:[%s349 + $0x28] sm:$0xf] %vm334, %v875
      %1010 = vst.msk [vmem:[%s349 + $0x2c] sm:$0x1] %vm350, %v877
      %1011 = vst.msk [vmem:[%s349 + $0x30] sm:$0xe] %vm998, %v879
      %1012 = vst.msk [vmem:[%s349 + $0x34] sm:$0xf] %vm334, %v881
      %1013 = vst.msk [vmem:[%s349 + $0x38] sm:$0x1] %vm350, %v883
      %1014 = vst.msk [vmem:[%s349 + $0x3c] sm:$0xe] %vm998, %v885
      %1015 = vst.msk [vmem:[%s349 + $0x40] sm:$0xf] %vm334, %v887
      %1016 = vst.msk [vmem:[%s349 + $0x44] sm:$0x1] %vm350, %v889
      %1017 = vst.msk [vmem:[%s349 + $0x48] sm:$0xe] %vm998, %v891
      %1018 = vst.msk [vmem:[%s349 + $0x4c] sm:$0xf] %vm334, %v893
      %1019 = vst.msk [vmem:[%s349 + $0x50] sm:$0x1] %vm350, %v895
      %1020 = vst.msk [vmem:[%s349 + $0x54] sm:$0xe] %vm998, %v897
      %1021 = vst.msk [vmem:[%s349 + $0x58] sm:$0xf] %vm334, %v899
      %1022 = vst.msk [vmem:[%s349 + $0x5c] sm:$0x1] %vm350, %v901
      %1023 = vst.msk [vmem:[%s349 + $0x60] sm:$0xe] %vm998, %v903
      %1024 = vst.msk [vmem:[%s349 + $0x64] sm:$0xf] %vm334, %v905
      %1025 = vst.msk [vmem:[%s349 + $0x68] sm:$0x1] %vm350, %v907
      %1026 = vst.msk [vmem:[%s349 + $0x6c] sm:$0xe] %vm998, %v909
      %1027 = vst.msk [vmem:[%s349 + $0x70] sm:$0xf] %vm334, %v911
      %1028 = vst.msk [vmem:[%s349 + $0x74] sm:$0x1] %vm350, %v913
      %1029 = vst.msk [vmem:[%s349 + $0x78] sm:$0xe] %vm998, %v915
      %1030 = vst.msk [vmem:[%s349 + $0x7c] sm:$0xf] %vm334, %v917
      %1031 = vst.msk [vmem:[%s349 + $0x80] sm:$0x1] %vm350, %v919
      %1032 = vst.msk [vmem:[%s349 + $0x84] sm:$0xe] %vm998, %v921
      %1033 = vst.msk [vmem:[%s349 + $0x88] sm:$0xf] %vm334, %v923
      %1034 = vst.msk [vmem:[%s349 + $0x8c] sm:$0x1] %vm350, %v925
      %1035 = vst.msk [vmem:[%s349 + $0x90] sm:$0xe] %vm998, %v927
      %1036 = vst.msk [vmem:[%s349 + $0x94] sm:$0xf] %vm334, %v929
      %1037 = vst.msk [vmem:[%s349 + $0x98] sm:$0x1] %vm350, %v931
      %1038 = vst.msk [vmem:[%s349 + $0x9c] sm:$0xe] %vm998, %v933
      %1039 = vst.msk [vmem:[%s349 + $0xa0] sm:$0xf] %vm334, %v935
      %1040 = vst.msk [vmem:[%s349 + $0xa4] sm:$0x1] %vm350, %v937
      %1041 = vst.msk [vmem:[%s349 + $0xa8] sm:$0xe] %vm998, %v939
      %1042 = vst.msk [vmem:[%s349 + $0xac] sm:$0xf] %vm334, %v941
      %1043 = vst.msk [vmem:[%s349 + $0xb0] sm:$0x1] %vm350, %v943
      %1044 = vst.msk [vmem:[%s349 + $0xb4] sm:$0xe] %vm998, %v945
      %1045 = vst.msk [vmem:[%s349 + $0xb8] sm:$0xf] %vm334, %v947
      %1046 = vst.msk [vmem:[%s349 + $0xbc] sm:$0x1] %vm350, %v949
      %v1047 = vld [vmem:[%s4] sm:$0x1]
      %v1049 = vperm.slane %v1047, 0
      %s1051 = scalar_lea.vmem [#allocation2], 12
      %v1052 = vld [vmem:[%s1051] sm:$0xf]
      %v1053 = vld [vmem:[%s1051 + $0x4] sm:$0xf]
      %v1054 = vld [vmem:[%s1051 + $0x8] sm:$0x3]
      %v1055 = vld [vmem:[%s1051 + $0xc] sm:$0xf]
      %v1056 = vld [vmem:[%s1051 + $0x10] sm:$0xf]
      %v1057 = vld [vmem:[%s1051 + $0x14] sm:$0x3]
      %v1058 = vld [vmem:[%s1051 + $0x18] sm:$0xf]
      %v1059 = vld [vmem:[%s1051 + $0x1c] sm:$0xf]
      %v1060 = vld [vmem:[%s1051 + $0x20] sm:$0x3]
      %v1061 = vld [vmem:[%s1051 + $0x24] sm:$0xf]
      %v1062 = vld [vmem:[%s1051 + $0x28] sm:$0xf]
      %v1063 = vld [vmem:[%s1051 + $0x2c] sm:$0x3]
      %v1064 = vld [vmem:[%s1051 + $0x30] sm:$0xf]
      %v1065 = vld [vmem:[%s1051 + $0x34] sm:$0xf]
      %v1066 = vld [vmem:[%s1051 + $0x38] sm:$0x3]
      %v1067 = vld [vmem:[%s1051 + $0x3c] sm:$0xf]
      %v1068 = vld [vmem:[%s1051 + $0x40] sm:$0xf]
      %v1069 = vld [vmem:[%s1051 + $0x44] sm:$0x3]
      %v1070 = vld [vmem:[%s1051 + $0x48] sm:$0xf]
      %v1071 = vld [vmem:[%s1051 + $0x4c] sm:$0xf]
      %v1072 = vld [vmem:[%s1051 + $0x50] sm:$0x3]
      %v1073 = vld [vmem:[%s1051 + $0x54] sm:$0xf]
      %v1074 = vld [vmem:[%s1051 + $0x58] sm:$0xf]
      %v1075 = vld [vmem:[%s1051 + $0x5c] sm:$0x3]
      %v1076 = vld [vmem:[%s1051 + $0x60] sm:$0xf]
      %v1077 = vld [vmem:[%s1051 + $0x64] sm:$0xf]
      %v1078 = vld [vmem:[%s1051 + $0x68] sm:$0x3]
      %v1079 = vld [vmem:[%s1051 + $0x6c] sm:$0xf]
      %v1080 = vld [vmem:[%s1051 + $0x70] sm:$0xf]
      %v1081 = vld [vmem:[%s1051 + $0x74] sm:$0x3]
      %v1082 = vld [vmem:[%s1051 + $0x78] sm:$0xf]
      %v1083 = vld [vmem:[%s1051 + $0x7c] sm:$0xf]
      %v1084 = vld [vmem:[%s1051 + $0x80] sm:$0x3]
      %v1085 = vld [vmem:[%s1051 + $0x84] sm:$0xf]
      %v1086 = vld [vmem:[%s1051 + $0x88] sm:$0xf]
      %v1087 = vld [vmem:[%s1051 + $0x8c] sm:$0x3]
      %v1088 = vld [vmem:[%s1051 + $0x90] sm:$0xf]
      %v1089 = vld [vmem:[%s1051 + $0x94] sm:$0xf]
      %v1090 = vld [vmem:[%s1051 + $0x98] sm:$0x3]
      %v1091 = vld [vmem:[%s1051 + $0x9c] sm:$0xf]
      %v1092 = vld [vmem:[%s1051 + $0xa0] sm:$0xf]
      %v1093 = vld [vmem:[%s1051 + $0xa4] sm:$0x3]
      %v1094 = vld [vmem:[%s1051 + $0xa8] sm:$0xf]
      %v1095 = vld [vmem:[%s1051 + $0xac] sm:$0xf]
      %v1096 = vld [vmem:[%s1051 + $0xb0] sm:$0x3]
      %v1097 = vld [vmem:[%s1051 + $0xb4] sm:$0xf]
      %v1098 = vld [vmem:[%s1051 + $0xb8] sm:$0xf]
      %v1099 = vld [vmem:[%s1051 + $0xbc] sm:$0x3]
      %v1148 = vunpack.c.l.b16 %v1052
      %v1149 = vunpack.c.l.b16 %v1053
      %v1150 = vunpack.c.l.b16 %v1054
      %v1151 = vunpack.c.l.b16 %v1055
      %v1152 = vunpack.c.l.b16 %v1056
      %v1153 = vunpack.c.l.b16 %v1057
      %v1154 = vunpack.c.l.b16 %v1058
      %v1155 = vunpack.c.l.b16 %v1059
      %v1156 = vunpack.c.l.b16 %v1060
      %v1157 = vunpack.c.l.b16 %v1061
      %v1158 = vunpack.c.l.b16 %v1062
      %v1159 = vunpack.c.l.b16 %v1063
      %v1160 = vunpack.c.l.b16 %v1064
      %v1161 = vunpack.c.l.b16 %v1065
      %v1162 = vunpack.c.l.b16 %v1066
      %v1163 = vunpack.c.l.b16 %v1067
      %v1164 = vunpack.c.l.b16 %v1068
      %v1165 = vunpack.c.l.b16 %v1069
      %v1166 = vunpack.c.l.b16 %v1070
      %v1167 = vunpack.c.l.b16 %v1071
      %v1168 = vunpack.c.l.b16 %v1072
      %v1169 = vunpack.c.l.b16 %v1073
      %v1170 = vunpack.c.l.b16 %v1074
      %v1171 = vunpack.c.l.b16 %v1075
      %v1172 = vunpack.c.l.b16 %v1076
      %v1173 = vunpack.c.l.b16 %v1077
      %v1174 = vunpack.c.l.b16 %v1078
      %v1175 = vunpack.c.l.b16 %v1079
      %v1176 = vunpack.c.l.b16 %v1080
      %v1177 = vunpack.c.l.b16 %v1081
      %v1178 = vunpack.c.l.b16 %v1082
      %v1179 = vunpack.c.l.b16 %v1083
      %v1180 = vunpack.c.l.b16 %v1084
      %v1181 = vunpack.c.l.b16 %v1085
      %v1182 = vunpack.c.l.b16 %v1086
      %v1183 = vunpack.c.l.b16 %v1087
      %v1184 = vunpack.c.l.b16 %v1088
      %v1185 = vunpack.c.l.b16 %v1089
      %v1186 = vunpack.c.l.b16 %v1090
      %v1187 = vunpack.c.l.b16 %v1091
      %v1188 = vunpack.c.l.b16 %v1092
      %v1189 = vunpack.c.l.b16 %v1093
      %v1190 = vunpack.c.l.b16 %v1094
      %v1191 = vunpack.c.l.b16 %v1095
      %v1192 = vunpack.c.l.b16 %v1096
      %v1193 = vunpack.c.l.b16 %v1097
      %v1194 = vunpack.c.l.b16 %v1098
      %v1195 = vunpack.c.l.b16 %v1099
      %v1196 = vpack.c.b16 %v1149, %v1148
      %v1197 = vpack.c.b16 %v1150, %v1150
      %v1198 = vpack.c.b16 %v1152, %v1151
      %v1199 = vpack.c.b16 %v1153, %v1153
      %v1200 = vpack.c.b16 %v1155, %v1154
      %v1201 = vpack.c.b16 %v1156, %v1156
      %v1202 = vpack.c.b16 %v1158, %v1157
      %v1203 = vpack.c.b16 %v1159, %v1159
      %v1204 = vpack.c.b16 %v1161, %v1160
      %v1205 = vpack.c.b16 %v1162, %v1162
      %v1206 = vpack.c.b16 %v1164, %v1163
      %v1207 = vpack.c.b16 %v1165, %v1165
      %v1208 = vpack.c.b16 %v1167, %v1166
      %v1209 = vpack.c.b16 %v1168, %v1168
      %v1210 = vpack.c.b16 %v1170, %v1169
      %v1211 = vpack.c.b16 %v1171, %v1171
      %v1212 = vpack.c.b16 %v1173, %v1172
      %v1213 = vpack.c.b16 %v1174, %v1174
      %v1214 = vpack.c.b16 %v1176, %v1175
      %v1215 = vpack.c.b16 %v1177, %v1177
      %v1216 = vpack.c.b16 %v1179, %v1178
      %v1217 = vpack.c.b16 %v1180, %v1180
      %v1218 = vpack.c.b16 %v1182, %v1181
      %v1219 = vpack.c.b16 %v1183, %v1183
      %v1220 = vpack.c.b16 %v1185, %v1184
      %v1221 = vpack.c.b16 %v1186, %v1186
      %v1222 = vpack.c.b16 %v1188, %v1187
      %v1223 = vpack.c.b16 %v1189, %v1189
      %v1224 = vpack.c.b16 %v1191, %v1190
      %v1225 = vpack.c.b16 %v1192, %v1192
      %v1226 = vpack.c.b16 %v1194, %v1193
      %v1227 = vpack.c.b16 %v1195, %v1195
      %vm1228 = vsmask.f32 7424
      %v1230 = vshrl.u32 %v1196, 16
      %v1232 = vshll.u32 %v1196, 16
      %v1234 = vrot.slane %v1232, 1
      %v1235 = vor.u32 %v1230, %v1234
      %v1237 = vshll.u32 %v1197, 16
      %v1239 = vrot.slane %v1237, 1
      %v1240 = vsel %vm1228, %v1235, %v1239
      %v1241 = vshrl.u32 %v1197, 16
      %v1244 = vshrl.u32 %v1198, 16
      %v1246 = vshll.u32 %v1198, 16
      %v1248 = vrot.slane %v1246, 1
      %v1249 = vor.u32 %v1244, %v1248
      %v1251 = vshll.u32 %v1199, 16
      %v1253 = vrot.slane %v1251, 1
      %v1254 = vsel %vm1228, %v1249, %v1253
      %v1255 = vshrl.u32 %v1199, 16
      %v1258 = vshrl.u32 %v1200, 16
      %v1260 = vshll.u32 %v1200, 16
      %v1262 = vrot.slane %v1260, 1
      %v1263 = vor.u32 %v1258, %v1262
      %v1265 = vshll.u32 %v1201, 16
      %v1267 = vrot.slane %v1265, 1
      %v1268 = vsel %vm1228, %v1263, %v1267
      %v1269 = vshrl.u32 %v1201, 16
      %v1272 = vshrl.u32 %v1202, 16
      %v1274 = vshll.u32 %v1202, 16
      %v1276 = vrot.slane %v1274, 1
      %v1277 = vor.u32 %v1272, %v1276
      %v1279 = vshll.u32 %v1203, 16
      %v1281 = vrot.slane %v1279, 1
      %v1282 = vsel %vm1228, %v1277, %v1281
      %v1283 = vshrl.u32 %v1203, 16
      %v1286 = vshrl.u32 %v1204, 16
      %v1288 = vshll.u32 %v1204, 16
      %v1290 = vrot.slane %v1288, 1
      %v1291 = vor.u32 %v1286, %v1290
      %v1293 = vshll.u32 %v1205, 16
      %v1295 = vrot.slane %v1293, 1
      %v1296 = vsel %vm1228, %v1291, %v1295
      %v1297 = vshrl.u32 %v1205, 16
      %v1300 = vshrl.u32 %v1206, 16
      %v1302 = vshll.u32 %v1206, 16
      %v1304 = vrot.slane %v1302, 1
      %v1305 = vor.u32 %v1300, %v1304
      %v1307 = vshll.u32 %v1207, 16
      %v1309 = vrot.slane %v1307, 1
      %v1310 = vsel %vm1228, %v1305, %v1309
      %v1311 = vshrl.u32 %v1207, 16
      %v1314 = vshrl.u32 %v1208, 16
      %v1316 = vshll.u32 %v1208, 16
      %v1318 = vrot.slane %v1316, 1
      %v1319 = vor.u32 %v1314, %v1318
      %v1321 = vshll.u32 %v1209, 16
      %v1323 = vrot.slane %v1321, 1
      %v1324 = vsel %vm1228, %v1319, %v1323
      %v1325 = vshrl.u32 %v1209, 16
      %v1328 = vshrl.u32 %v1210, 16
      %v1330 = vshll.u32 %v1210, 16
      %v1332 = vrot.slane %v1330, 1
      %v1333 = vor.u32 %v1328, %v1332
      %v1335 = vshll.u32 %v1211, 16
      %v1337 = vrot.slane %v1335, 1
      %v1338 = vsel %vm1228, %v1333, %v1337
      %v1339 = vshrl.u32 %v1211, 16
      %v1342 = vshrl.u32 %v1212, 16
      %v1344 = vshll.u32 %v1212, 16
      %v1346 = vrot.slane %v1344, 1
      %v1347 = vor.u32 %v1342, %v1346
      %v1349 = vshll.u32 %v1213, 16
      %v1351 = vrot.slane %v1349, 1
      %v1352 = vsel %vm1228, %v1347, %v1351
      %v1353 = vshrl.u32 %v1213, 16
      %v1356 = vshrl.u32 %v1214, 16
      %v1358 = vshll.u32 %v1214, 16
      %v1360 = vrot.slane %v1358, 1
      %v1361 = vor.u32 %v1356, %v1360
      %v1363 = vshll.u32 %v1215, 16
      %v1365 = vrot.slane %v1363, 1
      %v1366 = vsel %vm1228, %v1361, %v1365
      %v1367 = vshrl.u32 %v1215, 16
      %v1370 = vshrl.u32 %v1216, 16
      %v1372 = vshll.u32 %v1216, 16
      %v1374 = vrot.slane %v1372, 1
      %v1375 = vor.u32 %v1370, %v1374
      %v1377 = vshll.u32 %v1217, 16
      %v1379 = vrot.slane %v1377, 1
      %v1380 = vsel %vm1228, %v1375, %v1379
      %v1381 = vshrl.u32 %v1217, 16
      %v1384 = vshrl.u32 %v1218, 16
      %v1386 = vshll.u32 %v1218, 16
      %v1388 = vrot.slane %v1386, 1
      %v1389 = vor.u32 %v1384, %v1388
      %v1391 = vshll.u32 %v1219, 16
      %v1393 = vrot.slane %v1391, 1
      %v1394 = vsel %vm1228, %v1389, %v1393
      %v1395 = vshrl.u32 %v1219, 16
      %v1398 = vshrl.u32 %v1220, 16
      %v1400 = vshll.u32 %v1220, 16
      %v1402 = vrot.slane %v1400, 1
      %v1403 = vor.u32 %v1398, %v1402
      %v1405 = vshll.u32 %v1221, 16
      %v1407 = vrot.slane %v1405, 1
      %v1408 = vsel %vm1228, %v1403, %v1407
      %v1409 = vshrl.u32 %v1221, 16
      %v1412 = vshrl.u32 %v1222, 16
      %v1414 = vshll.u32 %v1222, 16
      %v1416 = vrot.slane %v1414, 1
      %v1417 = vor.u32 %v1412, %v1416
      %v1419 = vshll.u32 %v1223, 16
      %v1421 = vrot.slane %v1419, 1
      %v1422 = vsel %vm1228, %v1417, %v1421
      %v1423 = vshrl.u32 %v1223, 16
      %v1426 = vshrl.u32 %v1224, 16
      %v1428 = vshll.u32 %v1224, 16
      %v1430 = vrot.slane %v1428, 1
      %v1431 = vor.u32 %v1426, %v1430
      %v1433 = vshll.u32 %v1225, 16
      %v1435 = vrot.slane %v1433, 1
      %v1436 = vsel %vm1228, %v1431, %v1435
      %v1437 = vshrl.u32 %v1225, 16
      %v1440 = vshrl.u32 %v1226, 16
      %v1442 = vshll.u32 %v1226, 16
      %v1444 = vrot.slane %v1442, 1
      %v1445 = vor.u32 %v1440, %v1444
      %v1447 = vshll.u32 %v1227, 16
      %v1449 = vrot.slane %v1447, 1
      %v1450 = vsel %vm1228, %v1445, %v1449
      %v1451 = vshrl.u32 %v1227, 16
      %1453 = vrot.lane.b32.xlu0 %v1240, 8
      %v1454 = vpop.permute.xlu0 %1453
      %1455 = vrot.lane.b32.xlu0 %v1241, 8
      %v1456 = vpop.permute.xlu0 %1455
      %1457 = vrot.lane.b32.xlu0 %v1254, 8
      %v1458 = vpop.permute.xlu0 %1457
      %1459 = vrot.lane.b32.xlu0 %v1255, 8
      %v1460 = vpop.permute.xlu0 %1459
      %1461 = vrot.lane.b32.xlu0 %v1268, 8
      %v1462 = vpop.permute.xlu0 %1461
      %1463 = vrot.lane.b32.xlu0 %v1269, 8
      %v1464 = vpop.permute.xlu0 %1463
      %1465 = vrot.lane.b32.xlu0 %v1282, 8
      %v1466 = vpop.permute.xlu0 %1465
      %1467 = vrot.lane.b32.xlu0 %v1283, 8
      %v1468 = vpop.permute.xlu0 %1467
      %1469 = vrot.lane.b32.xlu0 %v1296, 8
      %v1470 = vpop.permute.xlu0 %1469
      %1471 = vrot.lane.b32.xlu0 %v1297, 8
      %v1472 = vpop.permute.xlu0 %1471
      %1473 = vrot.lane.b32.xlu0 %v1310, 8
      %v1474 = vpop.permute.xlu0 %1473
      %1475 = vrot.lane.b32.xlu0 %v1311, 8
      %v1476 = vpop.permute.xlu0 %1475
      %1477 = vrot.lane.b32.xlu0 %v1324, 8
      %v1478 = vpop.permute.xlu0 %1477
      %1479 = vrot.lane.b32.xlu0 %v1325, 8
      %v1480 = vpop.permute.xlu0 %1479
      %1481 = vrot.lane.b32.xlu0 %v1338, 8
      %v1482 = vpop.permute.xlu0 %1481
      %1483 = vrot.lane.b32.xlu0 %v1339, 8
      %v1484 = vpop.permute.xlu0 %1483
      %1485 = vrot.lane.b32.xlu0 %v1352, 8
      %v1486 = vpop.permute.xlu0 %1485
      %1487 = vrot.lane.b32.xlu0 %v1353, 8
      %v1488 = vpop.permute.xlu0 %1487
      %1489 = vrot.lane.b32.xlu0 %v1366, 8
      %v1490 = vpop.permute.xlu0 %1489
      %1491 = vrot.lane.b32.xlu0 %v1367, 8
      %v1492 = vpop.permute.xlu0 %1491
      %1493 = vrot.lane.b32.xlu0 %v1380, 8
      %v1494 = vpop.permute.xlu0 %1493
      %1495 = vrot.lane.b32.xlu0 %v1381, 8
      %v1496 = vpop.permute.xlu0 %1495
      %1497 = vrot.lane.b32.xlu0 %v1394, 8
      %v1498 = vpop.permute.xlu0 %1497
      %1499 = vrot.lane.b32.xlu0 %v1395, 8
      %v1500 = vpop.permute.xlu0 %1499
      %1501 = vrot.lane.b32.xlu0 %v1408, 8
      %v1502 = vpop.permute.xlu0 %1501
      %1503 = vrot.lane.b32.xlu0 %v1409, 8
      %v1504 = vpop.permute.xlu0 %1503
      %1505 = vrot.lane.b32.xlu0 %v1422, 8
      %v1506 = vpop.permute.xlu0 %1505
      %1507 = vrot.lane.b32.xlu0 %v1423, 8
      %v1508 = vpop.permute.xlu0 %1507
      %1509 = vrot.lane.b32.xlu0 %v1436, 8
      %v1510 = vpop.permute.xlu0 %1509
      %1511 = vrot.lane.b32.xlu0 %v1437, 8
      %v1512 = vpop.permute.xlu0 %1511
      %1513 = vrot.lane.b32.xlu0 %v1450, 8
      %v1514 = vpop.permute.xlu0 %1513
      %1515 = vrot.lane.b32.xlu0 %v1451, 8
      %v1516 = vpop.permute.xlu0 %1515
      %vm1517 = vcmask 1046528
      %v1518 = vrot.slane %v1196, 1
      %v1519 = vrot.slane %v1197, 1
      %v1520 = vsel %vm1517, %v1518, %v1519
      %v1521 = vrot.slane %v1198, 1
      %v1522 = vrot.slane %v1199, 1
      %v1523 = vsel %vm1517, %v1521, %v1522
      %v1524 = vrot.slane %v1200, 1
      %v1525 = vrot.slane %v1201, 1
      %v1526 = vsel %vm1517, %v1524, %v1525
      %v1527 = vrot.slane %v1202, 1
      %v1528 = vrot.slane %v1203, 1
      %v1529 = vsel %vm1517, %v1527, %v1528
      %v1530 = vrot.slane %v1204, 1
      %v1531 = vrot.slane %v1205, 1
      %v1532 = vsel %vm1517, %v1530, %v1531
      %v1533 = vrot.slane %v1206, 1
      %v1534 = vrot.slane %v1207, 1
      %v1535 = vsel %vm1517, %v1533, %v1534
      %v1536 = vrot.slane %v1208, 1
      %v1537 = vrot.slane %v1209, 1
      %v1538 = vsel %vm1517, %v1536, %v1537
      %v1539 = vrot.slane %v1210, 1
      %v1540 = vrot.slane %v1211, 1
      %v1541 = vsel %vm1517, %v1539, %v1540
      %v1542 = vrot.slane %v1212, 1
      %v1543 = vrot.slane %v1213, 1
      %v1544 = vsel %vm1517, %v1542, %v1543
      %v1545 = vrot.slane %v1214, 1
      %v1546 = vrot.slane %v1215, 1
      %v1547 = vsel %vm1517, %v1545, %v1546
      %v1548 = vrot.slane %v1216, 1
      %v1549 = vrot.slane %v1217, 1
      %v1550 = vsel %vm1517, %v1548, %v1549
      %v1551 = vrot.slane %v1218, 1
      %v1552 = vrot.slane %v1219, 1
      %v1553 = vsel %vm1517, %v1551, %v1552
      %v1554 = vrot.slane %v1220, 1
      %v1555 = vrot.slane %v1221, 1
      %v1556 = vsel %vm1517, %v1554, %v1555
      %v1557 = vrot.slane %v1222, 1
      %v1558 = vrot.slane %v1223, 1
      %v1559 = vsel %vm1517, %v1557, %v1558
      %v1560 = vrot.slane %v1224, 1
      %v1561 = vrot.slane %v1225, 1
      %v1562 = vsel %vm1517, %v1560, %v1561
      %v1563 = vrot.slane %v1226, 1
      %v1564 = vrot.slane %v1227, 1
      %v1565 = vsel %vm1517, %v1563, %v1564
      %1566 = vrot.lane.b32.xlu0 %v1520, 16
      %v1567 = vpop.permute.xlu0 %1566
      %1568 = vrot.lane.b32.xlu0 %v1519, 16
      %v1569 = vpop.permute.xlu0 %1568
      %1570 = vrot.lane.b32.xlu0 %v1523, 16
      %v1571 = vpop.permute.xlu0 %1570
      %1572 = vrot.lane.b32.xlu0 %v1522, 16
      %v1573 = vpop.permute.xlu0 %1572
      %1574 = vrot.lane.b32.xlu0 %v1526, 16
      %v1575 = vpop.permute.xlu0 %1574
      %1576 = vrot.lane.b32.xlu0 %v1525, 16
      %v1577 = vpop.permute.xlu0 %1576
      %1578 = vrot.lane.b32.xlu0 %v1529, 16
      %v1579 = vpop.permute.xlu0 %1578
      %1580 = vrot.lane.b32.xlu0 %v1528, 16
      %v1581 = vpop.permute.xlu0 %1580
      %1582 = vrot.lane.b32.xlu0 %v1532, 16
      %v1583 = vpop.permute.xlu0 %1582
      %1584 = vrot.lane.b32.xlu0 %v1531, 16
      %v1585 = vpop.permute.xlu0 %1584
      %1586 = vrot.lane.b32.xlu0 %v1535, 16
      %v1587 = vpop.permute.xlu0 %1586
      %1588 = vrot.lane.b32.xlu0 %v1534, 16
      %v1589 = vpop.permute.xlu0 %1588
      %1590 = vrot.lane.b32.xlu0 %v1538, 16
      %v1591 = vpop.permute.xlu0 %1590
      %1592 = vrot.lane.b32.xlu0 %v1537, 16
      %v1593 = vpop.permute.xlu0 %1592
      %1594 = vrot.lane.b32.xlu0 %v1541, 16
      %v1595 = vpop.permute.xlu0 %1594
      %1596 = vrot.lane.b32.xlu0 %v1540, 16
      %v1597 = vpop.permute.xlu0 %1596
      %1598 = vrot.lane.b32.xlu0 %v1544, 16
      %v1599 = vpop.permute.xlu0 %1598
      %1600 = vrot.lane.b32.xlu0 %v1543, 16
      %v1601 = vpop.permute.xlu0 %1600
      %1602 = vrot.lane.b32.xlu0 %v1547, 16
      %v1603 = vpop.permute.xlu0 %1602
      %1604 = vrot.lane.b32.xlu0 %v1546, 16
      %v1605 = vpop.permute.xlu0 %1604
      %1606 = vrot.lane.b32.xlu0 %v1550, 16
      %v1607 = vpop.permute.xlu0 %1606
      %1608 = vrot.lane.b32.xlu0 %v1549, 16
      %v1609 = vpop.permute.xlu0 %1608
      %1610 = vrot.lane.b32.xlu0 %v1553, 16
      %v1611 = vpop.permute.xlu0 %1610
      %1612 = vrot.lane.b32.xlu0 %v1552, 16
      %v1613 = vpop.permute.xlu0 %1612
      %1614 = vrot.lane.b32.xlu0 %v1556, 16
      %v1615 = vpop.permute.xlu0 %1614
      %1616 = vrot.lane.b32.xlu0 %v1555, 16
      %v1617 = vpop.permute.xlu0 %1616
      %1618 = vrot.lane.b32.xlu0 %v1559, 16
      %v1619 = vpop.permute.xlu0 %1618
      %1620 = vrot.lane.b32.xlu0 %v1558, 16
      %v1621 = vpop.permute.xlu0 %1620
      %1622 = vrot.lane.b32.xlu0 %v1562, 16
      %v1623 = vpop.permute.xlu0 %1622
      %1624 = vrot.lane.b32.xlu0 %v1561, 16
      %v1625 = vpop.permute.xlu0 %1624
      %1626 = vrot.lane.b32.xlu0 %v1565, 16
      %v1627 = vpop.permute.xlu0 %1626
      %1628 = vrot.lane.b32.xlu0 %v1564, 16
      %v1629 = vpop.permute.xlu0 %1628
      %vm1630 = vcmask 64512
      %v1632 = vsel %vm1630, %v1196, %v1454
      %v1634 = vsel %vm1630, %v1197, %v1456
      %v1636 = vsel %vm1630, %v1198, %v1458
      %v1638 = vsel %vm1630, %v1199, %v1460
      %v1640 = vsel %vm1630, %v1200, %v1462
      %v1642 = vsel %vm1630, %v1201, %v1464
      %v1644 = vsel %vm1630, %v1202, %v1466
      %v1646 = vsel %vm1630, %v1203, %v1468
      %v1648 = vsel %vm1630, %v1204, %v1470
      %v1650 = vsel %vm1630, %v1205, %v1472
      %v1652 = vsel %vm1630, %v1206, %v1474
      %v1654 = vsel %vm1630, %v1207, %v1476
      %v1656 = vsel %vm1630, %v1208, %v1478
      %v1658 = vsel %vm1630, %v1209, %v1480
      %v1660 = vsel %vm1630, %v1210, %v1482
      %v1662 = vsel %vm1630, %v1211, %v1484
      %v1664 = vsel %vm1630, %v1212, %v1486
      %v1666 = vsel %vm1630, %v1213, %v1488
      %v1668 = vsel %vm1630, %v1214, %v1490
      %v1670 = vsel %vm1630, %v1215, %v1492
      %v1672 = vsel %vm1630, %v1216, %v1494
      %v1674 = vsel %vm1630, %v1217, %v1496
      %v1676 = vsel %vm1630, %v1218, %v1498
      %v1678 = vsel %vm1630, %v1219, %v1500
      %v1680 = vsel %vm1630, %v1220, %v1502
      %v1682 = vsel %vm1630, %v1221, %v1504
      %v1684 = vsel %vm1630, %v1222, %v1506
      %v1686 = vsel %vm1630, %v1223, %v1508
      %v1688 = vsel %vm1630, %v1224, %v1510
      %v1690 = vsel %vm1630, %v1225, %v1512
      %v1692 = vsel %vm1630, %v1226, %v1514
      %v1694 = vsel %vm1630, %v1227, %v1516
      %vm1695 = vcmask 130048
      %v1697 = vsel %vm1695, %v1632, %v1567
      %v1699 = vsel %vm1695, %v1634, %v1569
      %v1701 = vsel %vm1695, %v1636, %v1571
      %v1703 = vsel %vm1695, %v1638, %v1573
      %v1705 = vsel %vm1695, %v1640, %v1575
      %v1707 = vsel %vm1695, %v1642, %v1577
      %v1709 = vsel %vm1695, %v1644, %v1579
      %v1711 = vsel %vm1695, %v1646, %v1581
      %v1713 = vsel %vm1695, %v1648, %v1583
      %v1715 = vsel %vm1695, %v1650, %v1585
      %v1717 = vsel %vm1695, %v1652, %v1587
      %v1719 = vsel %vm1695, %v1654, %v1589
      %v1721 = vsel %vm1695, %v1656, %v1591
      %v1723 = vsel %vm1695, %v1658, %v1593
      %v1725 = vsel %vm1695, %v1660, %v1595
      %v1727 = vsel %vm1695, %v1662, %v1597
      %v1729 = vsel %vm1695, %v1664, %v1599
      %v1731 = vsel %vm1695, %v1666, %v1601
      %v1733 = vsel %vm1695, %v1668, %v1603
      %v1735 = vsel %vm1695, %v1670, %v1605
      %v1737 = vsel %vm1695, %v1672, %v1607
      %v1739 = vsel %vm1695, %v1674, %v1609
      %v1741 = vsel %vm1695, %v1676, %v1611
      %v1743 = vsel %vm1695, %v1678, %v1613
      %v1745 = vsel %vm1695, %v1680, %v1615
      %v1747 = vsel %vm1695, %v1682, %v1617
      %v1749 = vsel %vm1695, %v1684, %v1619
      %v1751 = vsel %vm1695, %v1686, %v1621
      %v1753 = vsel %vm1695, %v1688, %v1623
      %v1755 = vsel %vm1695, %v1690, %v1625
      %v1757 = vsel %vm1695, %v1692, %v1627
      %v1759 = vsel %vm1695, %v1694, %v1629
      %v1760 = vshrl.u32 %v1697, 16
      %v1762 = vshll.u32 %v1697, 16
      %v1764 = vrot.slane %v1762, 1
      %v1765 = vor.u32 %v1760, %v1764
      %v1766 = vshll.u32 %v1699, 16
      %v1768 = vrot.slane %v1766, 1
      %v1769 = vsel %vm1228, %v1765, %v1768
      %v1770 = vshrl.u32 %v1701, 16
      %v1772 = vshll.u32 %v1701, 16
      %v1774 = vrot.slane %v1772, 1
      %v1775 = vor.u32 %v1770, %v1774
      %v1776 = vshll.u32 %v1703, 16
      %v1778 = vrot.slane %v1776, 1
      %v1779 = vsel %vm1228, %v1775, %v1778
      %v1780 = vshrl.u32 %v1705, 16
      %v1782 = vshll.u32 %v1705, 16
      %v1784 = vrot.slane %v1782, 1
      %v1785 = vor.u32 %v1780, %v1784
      %v1786 = vshll.u32 %v1707, 16
      %v1788 = vrot.slane %v1786, 1
      %v1789 = vsel %vm1228, %v1785, %v1788
      %v1790 = vshrl.u32 %v1709, 16
      %v1792 = vshll.u32 %v1709, 16
      %v1794 = vrot.slane %v1792, 1
      %v1795 = vor.u32 %v1790, %v1794
      %v1796 = vshll.u32 %v1711, 16
      %v1798 = vrot.slane %v1796, 1
      %v1799 = vsel %vm1228, %v1795, %v1798
      %v1800 = vshrl.u32 %v1713, 16
      %v1802 = vshll.u32 %v1713, 16
      %v1804 = vrot.slane %v1802, 1
      %v1805 = vor.u32 %v1800, %v1804
      %v1806 = vshll.u32 %v1715, 16
      %v1808 = vrot.slane %v1806, 1
      %v1809 = vsel %vm1228, %v1805, %v1808
      %v1810 = vshrl.u32 %v1717, 16
      %v1812 = vshll.u32 %v1717, 16
      %v1814 = vrot.slane %v1812, 1
      %v1815 = vor.u32 %v1810, %v1814
      %v1816 = vshll.u32 %v1719, 16
      %v1818 = vrot.slane %v1816, 1
      %v1819 = vsel %vm1228, %v1815, %v1818
      %v1820 = vshrl.u32 %v1721, 16
      %v1822 = vshll.u32 %v1721, 16
      %v1824 = vrot.slane %v1822, 1
      %v1825 = vor.u32 %v1820, %v1824
      %v1826 = vshll.u32 %v1723, 16
      %v1828 = vrot.slane %v1826, 1
      %v1829 = vsel %vm1228, %v1825, %v1828
      %v1830 = vshrl.u32 %v1725, 16
      %v1832 = vshll.u32 %v1725, 16
      %v1834 = vrot.slane %v1832, 1
      %v1835 = vor.u32 %v1830, %v1834
      %v1836 = vshll.u32 %v1727, 16
      %v1838 = vrot.slane %v1836, 1
      %v1839 = vsel %vm1228, %v1835, %v1838
      %v1840 = vshrl.u32 %v1729, 16
      %v1842 = vshll.u32 %v1729, 16
      %v1844 = vrot.slane %v1842, 1
      %v1845 = vor.u32 %v1840, %v1844
      %v1846 = vshll.u32 %v1731, 16
      %v1848 = vrot.slane %v1846, 1
      %v1849 = vsel %vm1228, %v1845, %v1848
      %v1850 = vshrl.u32 %v1733, 16
      %v1852 = vshll.u32 %v1733, 16
      %v1854 = vrot.slane %v1852, 1
      %v1855 = vor.u32 %v1850, %v1854
      %v1856 = vshll.u32 %v1735, 16
      %v1858 = vrot.slane %v1856, 1
      %v1859 = vsel %vm1228, %v1855, %v1858
      %v1860 = vshrl.u32 %v1737, 16
      %v1862 = vshll.u32 %v1737, 16
      %v1864 = vrot.slane %v1862, 1
      %v1865 = vor.u32 %v1860, %v1864
      %v1866 = vshll.u32 %v1739, 16
      %v1868 = vrot.slane %v1866, 1
      %v1869 = vsel %vm1228, %v1865, %v1868
      %v1870 = vshrl.u32 %v1741, 16
      %v1872 = vshll.u32 %v1741, 16
      %v1874 = vrot.slane %v1872, 1
      %v1875 = vor.u32 %v1870, %v1874
      %v1876 = vshll.u32 %v1743, 16
      %v1878 = vrot.slane %v1876, 1
      %v1879 = vsel %vm1228, %v1875, %v1878
      %v1880 = vshrl.u32 %v1745, 16
      %v1882 = vshll.u32 %v1745, 16
      %v1884 = vrot.slane %v1882, 1
      %v1885 = vor.u32 %v1880, %v1884
      %v1886 = vshll.u32 %v1747, 16
      %v1888 = vrot.slane %v1886, 1
      %v1889 = vsel %vm1228, %v1885, %v1888
      %v1890 = vshrl.u32 %v1749, 16
      %v1892 = vshll.u32 %v1749, 16
      %v1894 = vrot.slane %v1892, 1
      %v1895 = vor.u32 %v1890, %v1894
      %v1896 = vshll.u32 %v1751, 16
      %v1898 = vrot.slane %v1896, 1
      %v1899 = vsel %vm1228, %v1895, %v1898
      %v1900 = vshrl.u32 %v1753, 16
      %v1902 = vshll.u32 %v1753, 16
      %v1904 = vrot.slane %v1902, 1
      %v1905 = vor.u32 %v1900, %v1904
      %v1906 = vshll.u32 %v1755, 16
      %v1908 = vrot.slane %v1906, 1
      %v1909 = vsel %vm1228, %v1905, %v1908
      %v1910 = vshrl.u32 %v1757, 16
      %v1912 = vshll.u32 %v1757, 16
      %v1914 = vrot.slane %v1912, 1
      %v1915 = vor.u32 %v1910, %v1914
      %v1916 = vshll.u32 %v1759, 16
      %v1918 = vrot.slane %v1916, 1
      %v1919 = vsel %vm1228, %v1915, %v1918
      %v1920 = vld [vmem:[%s3] sm:$0xf]
      %v1921 = vld [vmem:[%s3 + $0x4] sm:$0xf]
      %v1922 = vld [vmem:[%s3 + $0x8] sm:$0xf]
      %v1926 = vunpack.c.l.b16 %v1920
      %v1927 = vunpack.c.l.b16 %v1921
      %v1928 = vunpack.c.l.b16 %v1922
      %v1929 = vpack.c.b16 %v1927, %v1926
      %v1930 = vpack.c.b16 %v1928, %v1928
      %vm1932 = vcmask 195584
      %v1934 = vsel %vm1932, %v1769, 0
      %v1937 = vsel %vm1932, %v1779, 0
      %v1940 = vsel %vm1932, %v1789, 0
      %v1943 = vsel %vm1932, %v1799, 0
      %v1946 = vsel %vm1932, %v1809, 0
      %v1949 = vsel %vm1932, %v1819, 0
      %v1952 = vsel %vm1932, %v1829, 0
      %v1955 = vsel %vm1932, %v1839, 0
      %v1958 = vsel %vm1932, %v1849, 0
      %v1961 = vsel %vm1932, %v1859, 0
      %v1964 = vsel %vm1932, %v1869, 0
      %v1967 = vsel %vm1932, %v1879, 0
      %v1970 = vsel %vm1932, %v1889, 0
      %v1973 = vsel %vm1932, %v1899, 0
      %v1976 = vsel %vm1932, %v1909, 0
      %v1979 = vsel %vm1932, %v1919, 0
      %vm1981 = vcmask 1043456
      %v1983 = vsel %vm1981, %v1930, 0
      %1985 = vmatpush.bf16.msra.mxu0 0
      %1986 = vmatpush.bf16.msra.mxu0 0
      %1987 = vmatpush.bf16.msra.mxu0 0
      %1988 = vmatpush.bf16.msra.mxu0 0
      %1989 = vmatpush.bf16.msra.mxu0 0
      %1990 = vmatpush.bf16.msra.mxu0 0
      %1991 = vmatpush.bf16.msra.mxu0 %v1983
      %1992 = vmatpush.bf16.msra.mxu0 %v1929
      %1993 = vmatmul.bf16.gmra.mxu0 %v1934
      %v1994 = vpop.f32.mrf.mxu0
      %v1995 = vadd.f32 0.0, %v1994
      %v1996 = vpop.f32.mrf.mxu0
      %v1997 = vadd.f32 0.0, %v1996
      %1998 = vmatmul.bf16.gmra.mxu0 %v1937
      %v1999 = vpop.f32.mrf.mxu0
      %v2000 = vadd.f32 0.0, %v1999
      %v2001 = vpop.f32.mrf.mxu0
      %v2002 = vadd.f32 0.0, %v2001
      %2003 = vmatmul.bf16.gmra.mxu0 %v1940
      %v2004 = vpop.f32.mrf.mxu0
      %v2005 = vadd.f32 0.0, %v2004
      %v2006 = vpop.f32.mrf.mxu0
      %v2007 = vadd.f32 0.0, %v2006
      %2008 = vmatmul.bf16.gmra.mxu0 %v1943
      %v2009 = vpop.f32.mrf.mxu0
      %v2010 = vadd.f32 0.0, %v2009
      %v2011 = vpop.f32.mrf.mxu0
      %v2012 = vadd.f32 0.0, %v2011
      %2013 = vmatmul.bf16.gmra.mxu0 %v1946
      %v2014 = vpop.f32.mrf.mxu0
      %v2015 = vadd.f32 0.0, %v2014
      %v2016 = vpop.f32.mrf.mxu0
      %v2017 = vadd.f32 0.0, %v2016
      %2018 = vmatmul.bf16.gmra.mxu0 %v1949
      %v2019 = vpop.f32.mrf.mxu0
      %v2020 = vadd.f32 0.0, %v2019
      %v2021 = vpop.f32.mrf.mxu0
      %v2022 = vadd.f32 0.0, %v2021
      %2023 = vmatmul.bf16.gmra.mxu0 %v1952
      %v2024 = vpop.f32.mrf.mxu0
      %v2025 = vadd.f32 0.0, %v2024
      %v2026 = vpop.f32.mrf.mxu0
      %v2027 = vadd.f32 0.0, %v2026
      %2028 = vmatmul.bf16.gmra.mxu0 %v1955
      %v2029 = vpop.f32.mrf.mxu0
      %v2030 = vadd.f32 0.0, %v2029
      %v2031 = vpop.f32.mrf.mxu0
      %v2032 = vadd.f32 0.0, %v2031
      %2033 = vmatmul.bf16.gmra.mxu0 %v1958
      %v2034 = vpop.f32.mrf.mxu0
      %v2035 = vadd.f32 0.0, %v2034
      %v2036 = vpop.f32.mrf.mxu0
      %v2037 = vadd.f32 0.0, %v2036
      %2038 = vmatmul.bf16.gmra.mxu0 %v1961
      %v2039 = vpop.f32.mrf.mxu0
      %v2040 = vadd.f32 0.0, %v2039
      %v2041 = vpop.f32.mrf.mxu0
      %v2042 = vadd.f32 0.0, %v2041
      %2043 = vmatmul.bf16.gmra.mxu0 %v1964
      %v2044 = vpop.f32.mrf.mxu0
      %v2045 = vadd.f32 0.0, %v2044
      %v2046 = vpop.f32.mrf.mxu0
      %v2047 = vadd.f32 0.0, %v2046
      %2048 = vmatmul.bf16.gmra.mxu0 %v1967
      %v2049 = vpop.f32.mrf.mxu0
      %v2050 = vadd.f32 0.0, %v2049
      %v2051 = vpop.f32.mrf.mxu0
      %v2052 = vadd.f32 0.0, %v2051
      %2053 = vmatmul.bf16.gmra.mxu0 %v1970
      %v2054 = vpop.f32.mrf.mxu0
      %v2055 = vadd.f32 0.0, %v2054
      %v2056 = vpop.f32.mrf.mxu0
      %v2057 = vadd.f32 0.0, %v2056
      %2058 = vmatmul.bf16.gmra.mxu0 %v1973
      %v2059 = vpop.f32.mrf.mxu0
      %v2060 = vadd.f32 0.0, %v2059
      %v2061 = vpop.f32.mrf.mxu0
      %v2062 = vadd.f32 0.0, %v2061
      %2063 = vmatmul.bf16.gmra.mxu0 %v1976
      %v2064 = vpop.f32.mrf.mxu0
      %v2065 = vadd.f32 0.0, %v2064
      %v2066 = vpop.f32.mrf.mxu0
      %v2067 = vadd.f32 0.0, %v2066
      %2068 = vmatmul.bf16.gmra.mxu0 %v1979
      %v2069 = vpop.f32.mrf.mxu0
      %v2070 = vadd.f32 0.0, %v2069
      %v2071 = vpop.f32.mrf.mxu0
      %v2072 = vadd.f32 0.0, %v2071
      %2073 = vdwg.mxu0
      %v2074 = vadd.f32 %v1049, %v1995
      %v2075 = vadd.f32 %v1049, %v1997
      %v2076 = vadd.f32 %v1049, %v2000
      %v2077 = vadd.f32 %v1049, %v2002
      %v2078 = vadd.f32 %v1049, %v2005
      %v2079 = vadd.f32 %v1049, %v2007
      %v2080 = vadd.f32 %v1049, %v2010
      %v2081 = vadd.f32 %v1049, %v2012
      %v2082 = vadd.f32 %v1049, %v2015
      %v2083 = vadd.f32 %v1049, %v2017
      %v2084 = vadd.f32 %v1049, %v2020
      %v2085 = vadd.f32 %v1049, %v2022
      %v2086 = vadd.f32 %v1049, %v2025
      %v2087 = vadd.f32 %v1049, %v2027
      %v2088 = vadd.f32 %v1049, %v2030
      %v2089 = vadd.f32 %v1049, %v2032
      %v2090 = vadd.f32 %v1049, %v2035
      %v2091 = vadd.f32 %v1049, %v2037
      %v2092 = vadd.f32 %v1049, %v2040
      %v2093 = vadd.f32 %v1049, %v2042
      %v2094 = vadd.f32 %v1049, %v2045
      %v2095 = vadd.f32 %v1049, %v2047
      %v2096 = vadd.f32 %v1049, %v2050
      %v2097 = vadd.f32 %v1049, %v2052
      %v2098 = vadd.f32 %v1049, %v2055
      %v2099 = vadd.f32 %v1049, %v2057
      %v2100 = vadd.f32 %v1049, %v2060
      %v2101 = vadd.f32 %v1049, %v2062
      %v2102 = vadd.f32 %v1049, %v2065
      %v2103 = vadd.f32 %v1049, %v2067
      %v2104 = vadd.f32 %v1049, %v2070
      %v2105 = vadd.f32 %v1049, %v2072
      %v2106 = vld [vmem:[%s349] sm:$0xf]
      %v2107 = vld [vmem:[%s349 + $0x4] sm:$0xf]
      %v2108 = vld [vmem:[%s349 + $0x8] sm:$0x3]
      %v2109 = vld [vmem:[%s349 + $0xc] sm:$0xf]
      %v2110 = vld [vmem:[%s349 + $0x10] sm:$0xf]
      %v2111 = vld [vmem:[%s349 + $0x14] sm:$0x3]
      %v2112 = vld [vmem:[%s349 + $0x18] sm:$0xf]
      %v2113 = vld [vmem:[%s349 + $0x1c] sm:$0xf]
      %v2114 = vld [vmem:[%s349 + $0x20] sm:$0x3]
      %v2115 = vld [vmem:[%s349 + $0x24] sm:$0xf]
      %v2116 = vld [vmem:[%s349 + $0x28] sm:$0xf]
      %v2117 = vld [vmem:[%s349 + $0x2c] sm:$0x3]
      %v2118 = vld [vmem:[%s349 + $0x30] sm:$0xf]
      %v2119 = vld [vmem:[%s349 + $0x34] sm:$0xf]
      %v2120 = vld [vmem:[%s349 + $0x38] sm:$0x3]
      %v2121 = vld [vmem:[%s349 + $0x3c] sm:$0xf]
      %v2122 = vld [vmem:[%s349 + $0x40] sm:$0xf]
      %v2123 = vld [vmem:[%s349 + $0x44] sm:$0x3]
      %v2124 = vld [vmem:[%s349 + $0x48] sm:$0xf]
      %v2125 = vld [vmem:[%s349 + $0x4c] sm:$0xf]
      %v2126 = vld [vmem:[%s349 + $0x50] sm:$0x3]
      %v2127 = vld [vmem:[%s349 + $0x54] sm:$0xf]
      %v2128 = vld [vmem:[%s349 + $0x58] sm:$0xf]
      %v2129 = vld [vmem:[%s349 + $0x5c] sm:$0x3]
      %v2130 = vld [vmem:[%s349 + $0x60] sm:$0xf]
      %v2131 = vld [vmem:[%s349 + $0x64] sm:$0xf]
      %v2132 = vld [vmem:[%s349 + $0x68] sm:$0x3]
      %v2133 = vld [vmem:[%s349 + $0x6c] sm:$0xf]
      %v2134 = vld [vmem:[%s349 + $0x70] sm:$0xf]
      %v2135 = vld [vmem:[%s349 + $0x74] sm:$0x3]
      %v2136 = vld [vmem:[%s349 + $0x78] sm:$0xf]
      %v2137 = vld [vmem:[%s349 + $0x7c] sm:$0xf]
      %v2138 = vld [vmem:[%s349 + $0x80] sm:$0x3]
      %v2139 = vld [vmem:[%s349 + $0x84] sm:$0xf]
      %v2140 = vld [vmem:[%s349 + $0x88] sm:$0xf]
      %v2141 = vld [vmem:[%s349 + $0x8c] sm:$0x3]
      %v2142 = vld [vmem:[%s349 + $0x90] sm:$0xf]
      %v2143 = vld [vmem:[%s349 + $0x94] sm:$0xf]
      %v2144 = vld [vmem:[%s349 + $0x98] sm:$0x3]
      %v2145 = vld [vmem:[%s349 + $0x9c] sm:$0xf]
      %v2146 = vld [vmem:[%s349 + $0xa0] sm:$0xf]
      %v2147 = vld [vmem:[%s349 + $0xa4] sm:$0x3]
      %v2148 = vld [vmem:[%s349 + $0xa8] sm:$0xf]
      %v2149 = vld [vmem:[%s349 + $0xac] sm:$0xf]
      %v2150 = vld [vmem:[%s349 + $0xb0] sm:$0x3]
      %v2151 = vld [vmem:[%s349 + $0xb4] sm:$0xf]
      %v2152 = vld [vmem:[%s349 + $0xb8] sm:$0xf]
      %v2153 = vld [vmem:[%s349 + $0xbc] sm:$0x3]
      %v2202 = vunpack.c.l.b16 %v2106
      %v2203 = vunpack.c.l.b16 %v2107
      %v2204 = vunpack.c.l.b16 %v2108
      %v2205 = vunpack.c.l.b16 %v2109
      %v2206 = vunpack.c.l.b16 %v2110
      %v2207 = vunpack.c.l.b16 %v2111
      %v2208 = vunpack.c.l.b16 %v2112
      %v2209 = vunpack.c.l.b16 %v2113
      %v2210 = vunpack.c.l.b16 %v2114
      %v2211 = vunpack.c.l.b16 %v2115
      %v2212 = vunpack.c.l.b16 %v2116
      %v2213 = vunpack.c.l.b16 %v2117
      %v2214 = vunpack.c.l.b16 %v2118
      %v2215 = vunpack.c.l.b16 %v2119
      %v2216 = vunpack.c.l.b16 %v2120
      %v2217 = vunpack.c.l.b16 %v2121
      %v2218 = vunpack.c.l.b16 %v2122
      %v2219 = vunpack.c.l.b16 %v2123
      %v2220 = vunpack.c.l.b16 %v2124
      %v2221 = vunpack.c.l.b16 %v2125
      %v2222 = vunpack.c.l.b16 %v2126
      %v2223 = vunpack.c.l.b16 %v2127
      %v2224 = vunpack.c.l.b16 %v2128
      %v2225 = vunpack.c.l.b16 %v2129
      %v2226 = vunpack.c.l.b16 %v2130
      %v2227 = vunpack.c.l.b16 %v2131
      %v2228 = vunpack.c.l.b16 %v2132
      %v2229 = vunpack.c.l.b16 %v2133
      %v2230 = vunpack.c.l.b16 %v2134
      %v2231 = vunpack.c.l.b16 %v2135
      %v2232 = vunpack.c.l.b16 %v2136
      %v2233 = vunpack.c.l.b16 %v2137
      %v2234 = vunpack.c.l.b16 %v2138
      %v2235 = vunpack.c.l.b16 %v2139
      %v2236 = vunpack.c.l.b16 %v2140
      %v2237 = vunpack.c.l.b16 %v2141
      %v2238 = vunpack.c.l.b16 %v2142
      %v2239 = vunpack.c.l.b16 %v2143
      %v2240 = vunpack.c.l.b16 %v2144
      %v2241 = vunpack.c.l.b16 %v2145
      %v2242 = vunpack.c.l.b16 %v2146
      %v2243 = vunpack.c.l.b16 %v2147
      %v2244 = vunpack.c.l.b16 %v2148
      %v2245 = vunpack.c.l.b16 %v2149
      %v2246 = vunpack.c.l.b16 %v2150
      %v2247 = vunpack.c.l.b16 %v2151
      %v2248 = vunpack.c.l.b16 %v2152
      %v2249 = vunpack.c.l.b16 %v2153
      %v2250 = vpack.c.b16 %v2203, %v2202
      %v2251 = vpack.c.b16 %v2204, %v2204
      %v2252 = vpack.c.b16 %v2206, %v2205
      %v2253 = vpack.c.b16 %v2207, %v2207
      %v2254 = vpack.c.b16 %v2209, %v2208
      %v2255 = vpack.c.b16 %v2210, %v2210
      %v2256 = vpack.c.b16 %v2212, %v2211
      %v2257 = vpack.c.b16 %v2213, %v2213
      %v2258 = vpack.c.b16 %v2215, %v2214
      %v2259 = vpack.c.b16 %v2216, %v2216
      %v2260 = vpack.c.b16 %v2218, %v2217
      %v2261 = vpack.c.b16 %v2219, %v2219
      %v2262 = vpack.c.b16 %v2221, %v2220
      %v2263 = vpack.c.b16 %v2222, %v2222
      %v2264 = vpack.c.b16 %v2224, %v2223
      %v2265 = vpack.c.b16 %v2225, %v2225
      %v2266 = vpack.c.b16 %v2227, %v2226
      %v2267 = vpack.c.b16 %v2228, %v2228
      %v2268 = vpack.c.b16 %v2230, %v2229
      %v2269 = vpack.c.b16 %v2231, %v2231
      %v2270 = vpack.c.b16 %v2233, %v2232
      %v2271 = vpack.c.b16 %v2234, %v2234
      %v2272 = vpack.c.b16 %v2236, %v2235
      %v2273 = vpack.c.b16 %v2237, %v2237
      %v2274 = vpack.c.b16 %v2239, %v2238
      %v2275 = vpack.c.b16 %v2240, %v2240
      %v2276 = vpack.c.b16 %v2242, %v2241
      %v2277 = vpack.c.b16 %v2243, %v2243
      %v2278 = vpack.c.b16 %v2245, %v2244
      %v2279 = vpack.c.b16 %v2246, %v2246
      %v2280 = vpack.c.b16 %v2248, %v2247
      %v2281 = vpack.c.b16 %v2249, %v2249
      %v2283 = vshrl.u32 %v2250, 16
      %v2285 = vshll.u32 %v2250, 16
      %v2287 = vrot.slane %v2285, 1
      %v2288 = vor.u32 %v2283, %v2287
      %v2290 = vshll.u32 %v2251, 16
      %v2292 = vrot.slane %v2290, 1
      %v2293 = vsel %vm1228, %v2288, %v2292
      %v2294 = vshrl.u32 %v2251, 16
      %v2297 = vshrl.u32 %v2252, 16
      %v2299 = vshll.u32 %v2252, 16
      %v2301 = vrot.slane %v2299, 1
      %v2302 = vor.u32 %v2297, %v2301
      %v2304 = vshll.u32 %v2253, 16
      %v2306 = vrot.slane %v2304, 1
      %v2307 = vsel %vm1228, %v2302, %v2306
      %v2308 = vshrl.u32 %v2253, 16
      %v2311 = vshrl.u32 %v2254, 16
      %v2313 = vshll.u32 %v2254, 16
      %v2315 = vrot.slane %v2313, 1
      %v2316 = vor.u32 %v2311, %v2315
      %v2318 = vshll.u32 %v2255, 16
      %v2320 = vrot.slane %v2318, 1
      %v2321 = vsel %vm1228, %v2316, %v2320
      %v2322 = vshrl.u32 %v2255, 16
      %v2325 = vshrl.u32 %v2256, 16
      %v2327 = vshll.u32 %v2256, 16
      %v2329 = vrot.slane %v2327, 1
      %v2330 = vor.u32 %v2325, %v2329
      %v2332 = vshll.u32 %v2257, 16
      %v2334 = vrot.slane %v2332, 1
      %v2335 = vsel %vm1228, %v2330, %v2334
      %v2336 = vshrl.u32 %v2257, 16
      %v2339 = vshrl.u32 %v2258, 16
      %v2341 = vshll.u32 %v2258, 16
      %v2343 = vrot.slane %v2341, 1
      %v2344 = vor.u32 %v2339, %v2343
      %v2346 = vshll.u32 %v2259, 16
      %v2348 = vrot.slane %v2346, 1
      %v2349 = vsel %vm1228, %v2344, %v2348
      %v2350 = vshrl.u32 %v2259, 16
      %v2353 = vshrl.u32 %v2260, 16
      %v2355 = vshll.u32 %v2260, 16
      %v2357 = vrot.slane %v2355, 1
      %v2358 = vor.u32 %v2353, %v2357
      %v2360 = vshll.u32 %v2261, 16
      %v2362 = vrot.slane %v2360, 1
      %v2363 = vsel %vm1228, %v2358, %v2362
      %v2364 = vshrl.u32 %v2261, 16
      %v2367 = vshrl.u32 %v2262, 16
      %v2369 = vshll.u32 %v2262, 16
      %v2371 = vrot.slane %v2369, 1
      %v2372 = vor.u32 %v2367, %v2371
      %v2374 = vshll.u32 %v2263, 16
      %v2376 = vrot.slane %v2374, 1
      %v2377 = vsel %vm1228, %v2372, %v2376
      %v2378 = vshrl.u32 %v2263, 16
      %v2381 = vshrl.u32 %v2264, 16
      %v2383 = vshll.u32 %v2264, 16
      %v2385 = vrot.slane %v2383, 1
      %v2386 = vor.u32 %v2381, %v2385
      %v2388 = vshll.u32 %v2265, 16
      %v2390 = vrot.slane %v2388, 1
      %v2391 = vsel %vm1228, %v2386, %v2390
      %v2392 = vshrl.u32 %v2265, 16
      %v2395 = vshrl.u32 %v2266, 16
      %v2397 = vshll.u32 %v2266, 16
      %v2399 = vrot.slane %v2397, 1
      %v2400 = vor.u32 %v2395, %v2399
      %v2402 = vshll.u32 %v2267, 16
      %v2404 = vrot.slane %v2402, 1
      %v2405 = vsel %vm1228, %v2400, %v2404
      %v2406 = vshrl.u32 %v2267, 16
      %v2409 = vshrl.u32 %v2268, 16
      %v2411 = vshll.u32 %v2268, 16
      %v2413 = vrot.slane %v2411, 1
      %v2414 = vor.u32 %v2409, %v2413
      %v2416 = vshll.u32 %v2269, 16
      %v2418 = vrot.slane %v2416, 1
      %v2419 = vsel %vm1228, %v2414, %v2418
      %v2420 = vshrl.u32 %v2269, 16
      %v2423 = vshrl.u32 %v2270, 16
      %v2425 = vshll.u32 %v2270, 16
      %v2427 = vrot.slane %v2425, 1
      %v2428 = vor.u32 %v2423, %v2427
      %v2430 = vshll.u32 %v2271, 16
      %v2432 = vrot.slane %v2430, 1
      %v2433 = vsel %vm1228, %v2428, %v2432
      %v2434 = vshrl.u32 %v2271, 16
      %v2437 = vshrl.u32 %v2272, 16
      %v2439 = vshll.u32 %v2272, 16
      %v2441 = vrot.slane %v2439, 1
      %v2442 = vor.u32 %v2437, %v2441
      %v2444 = vshll.u32 %v2273, 16
      %v2446 = vrot.slane %v2444, 1
      %v2447 = vsel %vm1228, %v2442, %v2446
      %v2448 = vshrl.u32 %v2273, 16
      %v2451 = vshrl.u32 %v2274, 16
      %v2453 = vshll.u32 %v2274, 16
      %v2455 = vrot.slane %v2453, 1
      %v2456 = vor.u32 %v2451, %v2455
      %v2458 = vshll.u32 %v2275, 16
      %v2460 = vrot.slane %v2458, 1
      %v2461 = vsel %vm1228, %v2456, %v2460
      %v2462 = vshrl.u32 %v2275, 16
      %v2465 = vshrl.u32 %v2276, 16
      %v2467 = vshll.u32 %v2276, 16
      %v2469 = vrot.slane %v2467, 1
      %v2470 = vor.u32 %v2465, %v2469
      %v2472 = vshll.u32 %v2277, 16
      %v2474 = vrot.slane %v2472, 1
      %v2475 = vsel %vm1228, %v2470, %v2474
      %v2476 = vshrl.u32 %v2277, 16
      %v2479 = vshrl.u32 %v2278, 16
      %v2481 = vshll.u32 %v2278, 16
      %v2483 = vrot.slane %v2481, 1
      %v2484 = vor.u32 %v2479, %v2483
      %v2486 = vshll.u32 %v2279, 16
      %v2488 = vrot.slane %v2486, 1
      %v2489 = vsel %vm1228, %v2484, %v2488
      %v2490 = vshrl.u32 %v2279, 16
      %v2493 = vshrl.u32 %v2280, 16
      %v2495 = vshll.u32 %v2280, 16
      %v2497 = vrot.slane %v2495, 1
      %v2498 = vor.u32 %v2493, %v2497
      %v2500 = vshll.u32 %v2281, 16
      %v2502 = vrot.slane %v2500, 1
      %v2503 = vsel %vm1228, %v2498, %v2502
      %v2504 = vshrl.u32 %v2281, 16
      %2506 = vrot.lane.b32.xlu0 %v2293, 8
      %v2507 = vpop.permute.xlu0 %2506
      %2508 = vrot.lane.b32.xlu0 %v2294, 8
      %v2509 = vpop.permute.xlu0 %2508
      %2510 = vrot.lane.b32.xlu0 %v2307, 8
      %v2511 = vpop.permute.xlu0 %2510
      %2512 = vrot.lane.b32.xlu0 %v2308, 8
      %v2513 = vpop.permute.xlu0 %2512
      %2514 = vrot.lane.b32.xlu0 %v2321, 8
      %v2515 = vpop.permute.xlu0 %2514
      %2516 = vrot.lane.b32.xlu0 %v2322, 8
      %v2517 = vpop.permute.xlu0 %2516
      %2518 = vrot.lane.b32.xlu0 %v2335, 8
      %v2519 = vpop.permute.xlu0 %2518
      %2520 = vrot.lane.b32.xlu0 %v2336, 8
      %v2521 = vpop.permute.xlu0 %2520
      %2522 = vrot.lane.b32.xlu0 %v2349, 8
      %v2523 = vpop.permute.xlu0 %2522
      %2524 = vrot.lane.b32.xlu0 %v2350, 8
      %v2525 = vpop.permute.xlu0 %2524
      %2526 = vrot.lane.b32.xlu0 %v2363, 8
      %v2527 = vpop.permute.xlu0 %2526
      %2528 = vrot.lane.b32.xlu0 %v2364, 8
      %v2529 = vpop.permute.xlu0 %2528
      %2530 = vrot.lane.b32.xlu0 %v2377, 8
      %v2531 = vpop.permute.xlu0 %2530
      %2532 = vrot.lane.b32.xlu0 %v2378, 8
      %v2533 = vpop.permute.xlu0 %2532
      %2534 = vrot.lane.b32.xlu0 %v2391, 8
      %v2535 = vpop.permute.xlu0 %2534
      %2536 = vrot.lane.b32.xlu0 %v2392, 8
      %v2537 = vpop.permute.xlu0 %2536
      %2538 = vrot.lane.b32.xlu0 %v2405, 8
      %v2539 = vpop.permute.xlu0 %2538
      %2540 = vrot.lane.b32.xlu0 %v2406, 8
      %v2541 = vpop.permute.xlu0 %2540
      %2542 = vrot.lane.b32.xlu0 %v2419, 8
      %v2543 = vpop.permute.xlu0 %2542
      %2544 = vrot.lane.b32.xlu0 %v2420, 8
      %v2545 = vpop.permute.xlu0 %2544
      %2546 = vrot.lane.b32.xlu0 %v2433, 8
      %v2547 = vpop.permute.xlu0 %2546
      %2548 = vrot.lane.b32.xlu0 %v2434, 8
      %v2549 = vpop.permute.xlu0 %2548
      %2550 = vrot.lane.b32.xlu0 %v2447, 8
      %v2551 = vpop.permute.xlu0 %2550
      %2552 = vrot.lane.b32.xlu0 %v2448, 8
      %v2553 = vpop.permute.xlu0 %2552
      %2554 = vrot.lane.b32.xlu0 %v2461, 8
      %v2555 = vpop.permute.xlu0 %2554
      %2556 = vrot.lane.b32.xlu0 %v2462, 8
      %v2557 = vpop.permute.xlu0 %2556
      %2558 = vrot.lane.b32.xlu0 %v2475, 8
      %v2559 = vpop.permute.xlu0 %2558
      %2560 = vrot.lane.b32.xlu0 %v2476, 8
      %v2561 = vpop.permute.xlu0 %2560
      %2562 = vrot.lane.b32.xlu0 %v2489, 8
      %v2563 = vpop.permute.xlu0 %2562
      %2564 = vrot.lane.b32.xlu0 %v2490, 8
      %v2565 = vpop.permute.xlu0 %2564
      %2566 = vrot.lane.b32.xlu0 %v2503, 8
      %v2567 = vpop.permute.xlu0 %2566
      %2568 = vrot.lane.b32.xlu0 %v2504, 8
      %v2569 = vpop.permute.xlu0 %2568
      %v2570 = vrot.slane %v2250, 1
      %v2571 = vrot.slane %v2251, 1
      %v2572 = vsel %vm1517, %v2570, %v2571
      %v2573 = vrot.slane %v2252, 1
      %v2574 = vrot.slane %v2253, 1
      %v2575 = vsel %vm1517, %v2573, %v2574
      %v2576 = vrot.slane %v2254, 1
      %v2577 = vrot.slane %v2255, 1
      %v2578 = vsel %vm1517, %v2576, %v2577
      %v2579 = vrot.slane %v2256, 1
      %v2580 = vrot.slane %v2257, 1
      %v2581 = vsel %vm1517, %v2579, %v2580
      %v2582 = vrot.slane %v2258, 1
      %v2583 = vrot.slane %v2259, 1
      %v2584 = vsel %vm1517, %v2582, %v2583
      %v2585 = vrot.slane %v2260, 1
      %v2586 = vrot.slane %v2261, 1
      %v2587 = vsel %vm1517, %v2585, %v2586
      %v2588 = vrot.slane %v2262, 1
      %v2589 = vrot.slane %v2263, 1
      %v2590 = vsel %vm1517, %v2588, %v2589
      %v2591 = vrot.slane %v2264, 1
      %v2592 = vrot.slane %v2265, 1
      %v2593 = vsel %vm1517, %v2591, %v2592
      %v2594 = vrot.slane %v2266, 1
      %v2595 = vrot.slane %v2267, 1
      %v2596 = vsel %vm1517, %v2594, %v2595
      %v2597 = vrot.slane %v2268, 1
      %v2598 = vrot.slane %v2269, 1
      %v2599 = vsel %vm1517, %v2597, %v2598
      %v2600 = vrot.slane %v2270, 1
      %v2601 = vrot.slane %v2271, 1
      %v2602 = vsel %vm1517, %v2600, %v2601
      %v2603 = vrot.slane %v2272, 1
      %v2604 = vrot.slane %v2273, 1
      %v2605 = vsel %vm1517, %v2603, %v2604
      %v2606 = vrot.slane %v2274, 1
      %v2607 = vrot.slane %v2275, 1
      %v2608 = vsel %vm1517, %v2606, %v2607
      %v2609 = vrot.slane %v2276, 1
      %v2610 = vrot.slane %v2277, 1
      %v2611 = vsel %vm1517, %v2609, %v2610
      %v2612 = vrot.slane %v2278, 1
      %v2613 = vrot.slane %v2279, 1
      %v2614 = vsel %vm1517, %v2612, %v2613
      %v2615 = vrot.slane %v2280, 1
      %v2616 = vrot.slane %v2281, 1
      %v2617 = vsel %vm1517, %v2615, %v2616
      %2618 = vrot.lane.b32.xlu0 %v2572, 16
      %v2619 = vpop.permute.xlu0 %2618
      %2620 = vrot.lane.b32.xlu0 %v2571, 16
      %v2621 = vpop.permute.xlu0 %2620
      %2622 = vrot.lane.b32.xlu0 %v2575, 16
      %v2623 = vpop.permute.xlu0 %2622
      %2624 = vrot.lane.b32.xlu0 %v2574, 16
      %v2625 = vpop.permute.xlu0 %2624
      %2626 = vrot.lane.b32.xlu0 %v2578, 16
      %v2627 = vpop.permute.xlu0 %2626
      %2628 = vrot.lane.b32.xlu0 %v2577, 16
      %v2629 = vpop.permute.xlu0 %2628
      %2630 = vrot.lane.b32.xlu0 %v2581, 16
      %v2631 = vpop.permute.xlu0 %2630
      %2632 = vrot.lane.b32.xlu0 %v2580, 16
      %v2633 = vpop.permute.xlu0 %2632
      %2634 = vrot.lane.b32.xlu0 %v2584, 16
      %v2635 = vpop.permute.xlu0 %2634
      %2636 = vrot.lane.b32.xlu0 %v2583, 16
      %v2637 = vpop.permute.xlu0 %2636
      %2638 = vrot.lane.b32.xlu0 %v2587, 16
      %v2639 = vpop.permute.xlu0 %2638
      %2640 = vrot.lane.b32.xlu0 %v2586, 16
      %v2641 = vpop.permute.xlu0 %2640
      %2642 = vrot.lane.b32.xlu0 %v2590, 16
      %v2643 = vpop.permute.xlu0 %2642
      %2644 = vrot.lane.b32.xlu0 %v2589, 16
      %v2645 = vpop.permute.xlu0 %2644
      %2646 = vrot.lane.b32.xlu0 %v2593, 16
      %v2647 = vpop.permute.xlu0 %2646
      %2648 = vrot.lane.b32.xlu0 %v2592, 16
      %v2649 = vpop.permute.xlu0 %2648
      %2650 = vrot.lane.b32.xlu0 %v2596, 16
      %v2651 = vpop.permute.xlu0 %2650
      %2652 = vrot.lane.b32.xlu0 %v2595, 16
      %v2653 = vpop.permute.xlu0 %2652
      %2654 = vrot.lane.b32.xlu0 %v2599, 16
      %v2655 = vpop.permute.xlu0 %2654
      %2656 = vrot.lane.b32.xlu0 %v2598, 16
      %v2657 = vpop.permute.xlu0 %2656
      %2658 = vrot.lane.b32.xlu0 %v2602, 16
      %v2659 = vpop.permute.xlu0 %2658
      %2660 = vrot.lane.b32.xlu0 %v2601, 16
      %v2661 = vpop.permute.xlu0 %2660
      %2662 = vrot.lane.b32.xlu0 %v2605, 16
      %v2663 = vpop.permute.xlu0 %2662
      %2664 = vrot.lane.b32.xlu0 %v2604, 16
      %v2665 = vpop.permute.xlu0 %2664
      %2666 = vrot.lane.b32.xlu0 %v2608, 16
      %v2667 = vpop.permute.xlu0 %2666
      %2668 = vrot.lane.b32.xlu0 %v2607, 16
      %v2669 = vpop.permute.xlu0 %2668
      %2670 = vrot.lane.b32.xlu0 %v2611, 16
      %v2671 = vpop.permute.xlu0 %2670
      %2672 = vrot.lane.b32.xlu0 %v2610, 16
      %v2673 = vpop.permute.xlu0 %2672
      %2674 = vrot.lane.b32.xlu0 %v2614, 16
      %v2675 = vpop.permute.xlu0 %2674
      %2676 = vrot.lane.b32.xlu0 %v2613, 16
      %v2677 = vpop.permute.xlu0 %2676
      %2678 = vrot.lane.b32.xlu0 %v2617, 16
      %v2679 = vpop.permute.xlu0 %2678
      %2680 = vrot.lane.b32.xlu0 %v2616, 16
      %v2681 = vpop.permute.xlu0 %2680
      %v2683 = vsel %vm1630, %v2250, %v2507
      %v2685 = vsel %vm1630, %v2251, %v2509
      %v2687 = vsel %vm1630, %v2252, %v2511
      %v2689 = vsel %vm1630, %v2253, %v2513
      %v2691 = vsel %vm1630, %v2254, %v2515
      %v2693 = vsel %vm1630, %v2255, %v2517
      %v2695 = vsel %vm1630, %v2256, %v2519
      %v2697 = vsel %vm1630, %v2257, %v2521
      %v2699 = vsel %vm1630, %v2258, %v2523
      %v2701 = vsel %vm1630, %v2259, %v2525
      %v2703 = vsel %vm1630, %v2260, %v2527
      %v2705 = vsel %vm1630, %v2261, %v2529
      %v2707 = vsel %vm1630, %v2262, %v2531
      %v2709 = vsel %vm1630, %v2263, %v2533
      %v2711 = vsel %vm1630, %v2264, %v2535
      %v2713 = vsel %vm1630, %v2265, %v2537
      %v2715 = vsel %vm1630, %v2266, %v2539
      %v2717 = vsel %vm1630, %v2267, %v2541
      %v2719 = vsel %vm1630, %v2268, %v2543
      %v2721 = vsel %vm1630, %v2269, %v2545
      %v2723 = vsel %vm1630, %v2270, %v2547
      %v2725 = vsel %vm1630, %v2271, %v2549
      %v2727 = vsel %vm1630, %v2272, %v2551
      %v2729 = vsel %vm1630, %v2273, %v2553
      %v2731 = vsel %vm1630, %v2274, %v2555
      %v2733 = vsel %vm1630, %v2275, %v2557
      %v2735 = vsel %vm1630, %v2276, %v2559
      %v2737 = vsel %vm1630, %v2277, %v2561
      %v2739 = vsel %vm1630, %v2278, %v2563
      %v2741 = vsel %vm1630, %v2279, %v2565
      %v2743 = vsel %vm1630, %v2280, %v2567
      %v2745 = vsel %vm1630, %v2281, %v2569
      %v2747 = vsel %vm1695, %v2683, %v2619
      %v2749 = vsel %vm1695, %v2685, %v2621
      %v2751 = vsel %vm1695, %v2687, %v2623
      %v2753 = vsel %vm1695, %v2689, %v2625
      %v2755 = vsel %vm1695, %v2691, %v2627
      %v2757 = vsel %vm1695, %v2693, %v2629
      %v2759 = vsel %vm1695, %v2695, %v2631
      %v2761 = vsel %vm1695, %v2697, %v2633
      %v2763 = vsel %vm1695, %v2699, %v2635
      %v2765 = vsel %vm1695, %v2701, %v2637
      %v2767 = vsel %vm1695, %v2703, %v2639
      %v2769 = vsel %vm1695, %v2705, %v2641
      %v2771 = vsel %vm1695, %v2707, %v2643
      %v2773 = vsel %vm1695, %v2709, %v2645
      %v2775 = vsel %vm1695, %v2711, %v2647
      %v2777 = vsel %vm1695, %v2713, %v2649
      %v2779 = vsel %vm1695, %v2715, %v2651
      %v2781 = vsel %vm1695, %v2717, %v2653
      %v2783 = vsel %vm1695, %v2719, %v2655
      %v2785 = vsel %vm1695, %v2721, %v2657
      %v2787 = vsel %vm1695, %v2723, %v2659
      %v2789 = vsel %vm1695, %v2725, %v2661
      %v2791 = vsel %vm1695, %v2727, %v2663
      %v2793 = vsel %vm1695, %v2729, %v2665
      %v2795 = vsel %vm1695, %v2731, %v2667
      %v2797 = vsel %vm1695, %v2733, %v2669
      %v2799 = vsel %vm1695, %v2735, %v2671
      %v2801 = vsel %vm1695, %v2737, %v2673
      %v2803 = vsel %vm1695, %v2739, %v2675
      %v2805 = vsel %vm1695, %v2741, %v2677
      %v2807 = vsel %vm1695, %v2743, %v2679
      %v2809 = vsel %vm1695, %v2745, %v2681
      %v2810 = vshrl.u32 %v2747, 16
      %v2812 = vshll.u32 %v2747, 16
      %v2814 = vrot.slane %v2812, 1
      %v2815 = vor.u32 %v2810, %v2814
      %v2816 = vshll.u32 %v2749, 16
      %v2818 = vrot.slane %v2816, 1
      %v2819 = vsel %vm1228, %v2815, %v2818
      %v2820 = vshrl.u32 %v2751, 16
      %v2822 = vshll.u32 %v2751, 16
      %v2824 = vrot.slane %v2822, 1
      %v2825 = vor.u32 %v2820, %v2824
      %v2826 = vshll.u32 %v2753, 16
      %v2828 = vrot.slane %v2826, 1
      %v2829 = vsel %vm1228, %v2825, %v2828
      %v2830 = vshrl.u32 %v2755, 16
      %v2832 = vshll.u32 %v2755, 16
      %v2834 = vrot.slane %v2832, 1
      %v2835 = vor.u32 %v2830, %v2834
      %v2836 = vshll.u32 %v2757, 16
      %v2838 = vrot.slane %v2836, 1
      %v2839 = vsel %vm1228, %v2835, %v2838
      %v2840 = vshrl.u32 %v2759, 16
      %v2842 = vshll.u32 %v2759, 16
      %v2844 = vrot.slane %v2842, 1
      %v2845 = vor.u32 %v2840, %v2844
      %v2846 = vshll.u32 %v2761, 16
      %v2848 = vrot.slane %v2846, 1
      %v2849 = vsel %vm1228, %v2845, %v2848
      %v2850 = vshrl.u32 %v2763, 16
      %v2852 = vshll.u32 %v2763, 16
      %v2854 = vrot.slane %v2852, 1
      %v2855 = vor.u32 %v2850, %v2854
      %v2856 = vshll.u32 %v2765, 16
      %v2858 = vrot.slane %v2856, 1
      %v2859 = vsel %vm1228, %v2855, %v2858
      %v2860 = vshrl.u32 %v2767, 16
      %v2862 = vshll.u32 %v2767, 16
      %v2864 = vrot.slane %v2862, 1
      %v2865 = vor.u32 %v2860, %v2864
      %v2866 = vshll.u32 %v2769, 16
      %v2868 = vrot.slane %v2866, 1
      %v2869 = vsel %vm1228, %v2865, %v2868
      %v2870 = vshrl.u32 %v2771, 16
      %v2872 = vshll.u32 %v2771, 16
      %v2874 = vrot.slane %v2872, 1
      %v2875 = vor.u32 %v2870, %v2874
      %v2876 = vshll.u32 %v2773, 16
      %v2878 = vrot.slane %v2876, 1
      %v2879 = vsel %vm1228, %v2875, %v2878
      %v2880 = vshrl.u32 %v2775, 16
      %v2882 = vshll.u32 %v2775, 16
      %v2884 = vrot.slane %v2882, 1
      %v2885 = vor.u32 %v2880, %v2884
      %v2886 = vshll.u32 %v2777, 16
      %v2888 = vrot.slane %v2886, 1
      %v2889 = vsel %vm1228, %v2885, %v2888
      %v2890 = vshrl.u32 %v2779, 16
      %v2892 = vshll.u32 %v2779, 16
      %v2894 = vrot.slane %v2892, 1
      %v2895 = vor.u32 %v2890, %v2894
      %v2896 = vshll.u32 %v2781, 16
      %v2898 = vrot.slane %v2896, 1
      %v2899 = vsel %vm1228, %v2895, %v2898
      %v2900 = vshrl.u32 %v2783, 16
      %v2902 = vshll.u32 %v2783, 16
      %v2904 = vrot.slane %v2902, 1
      %v2905 = vor.u32 %v2900, %v2904
      %v2906 = vshll.u32 %v2785, 16
      %v2908 = vrot.slane %v2906, 1
      %v2909 = vsel %vm1228, %v2905, %v2908
      %v2910 = vshrl.u32 %v2787, 16
      %v2912 = vshll.u32 %v2787, 16
      %v2914 = vrot.slane %v2912, 1
      %v2915 = vor.u32 %v2910, %v2914
      %v2916 = vshll.u32 %v2789, 16
      %v2918 = vrot.slane %v2916, 1
      %v2919 = vsel %vm1228, %v2915, %v2918
      %v2920 = vshrl.u32 %v2791, 16
      %v2922 = vshll.u32 %v2791, 16
      %v2924 = vrot.slane %v2922, 1
      %v2925 = vor.u32 %v2920, %v2924
      %v2926 = vshll.u32 %v2793, 16
      %v2928 = vrot.slane %v2926, 1
      %v2929 = vsel %vm1228, %v2925, %v2928
      %v2930 = vshrl.u32 %v2795, 16
      %v2932 = vshll.u32 %v2795, 16
      %v2934 = vrot.slane %v2932, 1
      %v2935 = vor.u32 %v2930, %v2934
      %v2936 = vshll.u32 %v2797, 16
      %v2938 = vrot.slane %v2936, 1
      %v2939 = vsel %vm1228, %v2935, %v2938
      %v2940 = vshrl.u32 %v2799, 16
      %v2942 = vshll.u32 %v2799, 16
      %v2944 = vrot.slane %v2942, 1
      %v2945 = vor.u32 %v2940, %v2944
      %v2946 = vshll.u32 %v2801, 16
      %v2948 = vrot.slane %v2946, 1
      %v2949 = vsel %vm1228, %v2945, %v2948
      %v2950 = vshrl.u32 %v2803, 16
      %v2952 = vshll.u32 %v2803, 16
      %v2954 = vrot.slane %v2952, 1
      %v2955 = vor.u32 %v2950, %v2954
      %v2956 = vshll.u32 %v2805, 16
      %v2958 = vrot.slane %v2956, 1
      %v2959 = vsel %vm1228, %v2955, %v2958
      %v2960 = vshrl.u32 %v2807, 16
      %v2962 = vshll.u32 %v2807, 16
      %v2964 = vrot.slane %v2962, 1
      %v2965 = vor.u32 %v2960, %v2964
      %v2966 = vshll.u32 %v2809, 16
      %v2968 = vrot.slane %v2966, 1
      %v2969 = vsel %vm1228, %v2965, %v2968
      %s2970 = scalar_lea.vmem %s3, 12
      %v2971 = vld [vmem:[%s2970] sm:$0xf]
      %v2972 = vld [vmem:[%s2970 + $0x4] sm:$0xf]
      %v2973 = vld [vmem:[%s2970 + $0x8] sm:$0xf]
      %v2977 = vunpack.c.l.b16 %v2971
      %v2978 = vunpack.c.l.b16 %v2972
      %v2979 = vunpack.c.l.b16 %v2973
      %v2980 = vpack.c.b16 %v2978, %v2977
      %v2981 = vpack.c.b16 %v2979, %v2979
      %v2984 = vsel %vm1932, %v2819, 0
      %v2987 = vsel %vm1932, %v2829, 0
      %v2990 = vsel %vm1932, %v2839, 0
      %v2993 = vsel %vm1932, %v2849, 0
      %v2996 = vsel %vm1932, %v2859, 0
      %v2999 = vsel %vm1932, %v2869, 0
      %v3002 = vsel %vm1932, %v2879, 0
      %v3005 = vsel %vm1932, %v2889, 0
      %v3008 = vsel %vm1932, %v2899, 0
      %v3011 = vsel %vm1932, %v2909, 0
      %v3014 = vsel %vm1932, %v2919, 0
      %v3017 = vsel %vm1932, %v2929, 0
      %v3020 = vsel %vm1932, %v2939, 0
      %v3023 = vsel %vm1932, %v2949, 0
      %v3026 = vsel %vm1932, %v2959, 0
      %v3029 = vsel %vm1932, %v2969, 0
      %v3032 = vsel %vm1981, %v2981, 0
      %3034 = vmatpush.bf16.msra.mxu0 0
      %3035 = vmatpush.bf16.msra.mxu0 0
      %3036 = vmatpush.bf16.msra.mxu0 0
      %3037 = vmatpush.bf16.msra.mxu0 0
      %3038 = vmatpush.bf16.msra.mxu0 0
      %3039 = vmatpush.bf16.msra.mxu0 0
      %3040 = vmatpush.bf16.msra.mxu0 %v3032
      %3041 = vmatpush.bf16.msra.mxu0 %v2980
      %3042 = vmatmul.bf16.gmra.mxu0 %v2984
      %v3043 = vpop.f32.mrf.mxu0
      %v3044 = vadd.f32 0.0, %v3043
      %v3045 = vpop.f32.mrf.mxu0
      %v3046 = vadd.f32 0.0, %v3045
      %3047 = vmatmul.bf16.gmra.mxu0 %v2987
      %v3048 = vpop.f32.mrf.mxu0
      %v3049 = vadd.f32 0.0, %v3048
      %v3050 = vpop.f32.mrf.mxu0
      %v3051 = vadd.f32 0.0, %v3050
      %3052 = vmatmul.bf16.gmra.mxu0 %v2990
      %v3053 = vpop.f32.mrf.mxu0
      %v3054 = vadd.f32 0.0, %v3053
      %v3055 = vpop.f32.mrf.mxu0
      %v3056 = vadd.f32 0.0, %v3055
      %3057 = vmatmul.bf16.gmra.mxu0 %v2993
      %v3058 = vpop.f32.mrf.mxu0
      %v3059 = vadd.f32 0.0, %v3058
      %v3060 = vpop.f32.mrf.mxu0
      %v3061 = vadd.f32 0.0, %v3060
      %3062 = vmatmul.bf16.gmra.mxu0 %v2996
      %v3063 = vpop.f32.mrf.mxu0
      %v3064 = vadd.f32 0.0, %v3063
      %v3065 = vpop.f32.mrf.mxu0
      %v3066 = vadd.f32 0.0, %v3065
      %3067 = vmatmul.bf16.gmra.mxu0 %v2999
      %v3068 = vpop.f32.mrf.mxu0
      %v3069 = vadd.f32 0.0, %v3068
      %v3070 = vpop.f32.mrf.mxu0
      %v3071 = vadd.f32 0.0, %v3070
      %3072 = vmatmul.bf16.gmra.mxu0 %v3002
      %v3073 = vpop.f32.mrf.mxu0
      %v3074 = vadd.f32 0.0, %v3073
      %v3075 = vpop.f32.mrf.mxu0
      %v3076 = vadd.f32 0.0, %v3075
      %3077 = vmatmul.bf16.gmra.mxu0 %v3005
      %v3078 = vpop.f32.mrf.mxu0
      %v3079 = vadd.f32 0.0, %v3078
      %v3080 = vpop.f32.mrf.mxu0
      %v3081 = vadd.f32 0.0, %v3080
      %3082 = vmatmul.bf16.gmra.mxu0 %v3008
      %v3083 = vpop.f32.mrf.mxu0
      %v3084 = vadd.f32 0.0, %v3083
      %v3085 = vpop.f32.mrf.mxu0
      %v3086 = vadd.f32 0.0, %v3085
      %3087 = vmatmul.bf16.gmra.mxu0 %v3011
      %v3088 = vpop.f32.mrf.mxu0
      %v3089 = vadd.f32 0.0, %v3088
      %v3090 = vpop.f32.mrf.mxu0
      %v3091 = vadd.f32 0.0, %v3090
      %3092 = vmatmul.bf16.gmra.mxu0 %v3014
      %v3093 = vpop.f32.mrf.mxu0
      %v3094 = vadd.f32 0.0, %v3093
      %v3095 = vpop.f32.mrf.mxu0
      %v3096 = vadd.f32 0.0, %v3095
      %3097 = vmatmul.bf16.gmra.mxu0 %v3017
      %v3098 = vpop.f32.mrf.mxu0
      %v3099 = vadd.f32 0.0, %v3098
      %v3100 = vpop.f32.mrf.mxu0
      %v3101 = vadd.f32 0.0, %v3100
      %3102 = vmatmul.bf16.gmra.mxu0 %v3020
      %v3103 = vpop.f32.mrf.mxu0
      %v3104 = vadd.f32 0.0, %v3103
      %v3105 = vpop.f32.mrf.mxu0
      %v3106 = vadd.f32 0.0, %v3105
      %3107 = vmatmul.bf16.gmra.mxu0 %v3023
      %v3108 = vpop.f32.mrf.mxu0
      %v3109 = vadd.f32 0.0, %v3108
      %v3110 = vpop.f32.mrf.mxu0
      %v3111 = vadd.f32 0.0, %v3110
      %3112 = vmatmul.bf16.gmra.mxu0 %v3026
      %v3113 = vpop.f32.mrf.mxu0
      %v3114 = vadd.f32 0.0, %v3113
      %v3115 = vpop.f32.mrf.mxu0
      %v3116 = vadd.f32 0.0, %v3115
      %3117 = vmatmul.bf16.gmra.mxu0 %v3029
      %v3118 = vpop.f32.mrf.mxu0
      %v3119 = vadd.f32 0.0, %v3118
      %v3120 = vpop.f32.mrf.mxu0
      %v3121 = vadd.f32 0.0, %v3120
      %3122 = vdwg.mxu0
      %v3123 = vadd.f32 %v2074, %v3044
      %v3124 = vadd.f32 %v2075, %v3046
      %v3125 = vadd.f32 %v2076, %v3049
      %v3126 = vadd.f32 %v2077, %v3051
      %v3127 = vadd.f32 %v2078, %v3054
      %v3128 = vadd.f32 %v2079, %v3056
      %v3129 = vadd.f32 %v2080, %v3059
      %v3130 = vadd.f32 %v2081, %v3061
      %v3131 = vadd.f32 %v2082, %v3064
      %v3132 = vadd.f32 %v2083, %v3066
      %v3133 = vadd.f32 %v2084, %v3069
      %v3134 = vadd.f32 %v2085, %v3071
      %v3135 = vadd.f32 %v2086, %v3074
      %v3136 = vadd.f32 %v2087, %v3076
      %v3137 = vadd.f32 %v2088, %v3079
      %v3138 = vadd.f32 %v2089, %v3081
      %v3139 = vadd.f32 %v2090, %v3084
      %v3140 = vadd.f32 %v2091, %v3086
      %v3141 = vadd.f32 %v2092, %v3089
      %v3142 = vadd.f32 %v2093, %v3091
      %v3143 = vadd.f32 %v2094, %v3094
      %v3144 = vadd.f32 %v2095, %v3096
      %v3145 = vadd.f32 %v2096, %v3099
      %v3146 = vadd.f32 %v2097, %v3101
      %v3147 = vadd.f32 %v2098, %v3104
      %v3148 = vadd.f32 %v2099, %v3106
      %v3149 = vadd.f32 %v2100, %v3109
      %v3150 = vadd.f32 %v2101, %v3111
      %v3151 = vadd.f32 %v2102, %v3114
      %v3152 = vadd.f32 %v2103, %v3116
      %v3153 = vadd.f32 %v2104, %v3119
      %v3154 = vadd.f32 %v2105, %v3121
      %s3155 = scalar_lea.vmem [#allocation2], 36
      %v3156 = vld [vmem:[%s3155] sm:$0xf]
      %v3157 = vld [vmem:[%s3155 + $0x4] sm:$0xf]
      %v3158 = vld [vmem:[%s3155 + $0x8] sm:$0x3]
      %v3159 = vld [vmem:[%s3155 + $0xc] sm:$0xf]
      %v3160 = vld [vmem:[%s3155 + $0x10] sm:$0xf]
      %v3161 = vld [vmem:[%s3155 + $0x14] sm:$0x3]
      %v3162 = vld [vmem:[%s3155 + $0x18] sm:$0xf]
      %v3163 = vld [vmem:[%s3155 + $0x1c] sm:$0xf]
      %v3164 = vld [vmem:[%s3155 + $0x20] sm:$0x3]
      %v3165 = vld [vmem:[%s3155 + $0x24] sm:$0xf]
      %v3166 = vld [vmem:[%s3155 + $0x28] sm:$0xf]
      %v3167 = vld [vmem:[%s3155 + $0x2c] sm:$0x3]
      %v3168 = vld [vmem:[%s3155 + $0x30] sm:$0xf]
      %v3169 = vld [vmem:[%s3155 + $0x34] sm:$0xf]
      %v3170 = vld [vmem:[%s3155 + $0x38] sm:$0x3]
      %v3171 = vld [vmem:[%s3155 + $0x3c] sm:$0xf]
      %v3172 = vld [vmem:[%s3155 + $0x40] sm:$0xf]
      %v3173 = vld [vmem:[%s3155 + $0x44] sm:$0x3]
      %v3174 = vld [vmem:[%s3155 + $0x48] sm:$0xf]
      %v3175 = vld [vmem:[%s3155 + $0x4c] sm:$0xf]
      %v3176 = vld [vmem:[%s3155 + $0x50] sm:$0x3]
      %v3177 = vld [vmem:[%s3155 + $0x54] sm:$0xf]
      %v3178 = vld [vmem:[%s3155 + $0x58] sm:$0xf]
      %v3179 = vld [vmem:[%s3155 + $0x5c] sm:$0x3]
      %v3180 = vld [vmem:[%s3155 + $0x60] sm:$0xf]
      %v3181 = vld [vmem:[%s3155 + $0x64] sm:$0xf]
      %v3182 = vld [vmem:[%s3155 + $0x68] sm:$0x3]
      %v3183 = vld [vmem:[%s3155 + $0x6c] sm:$0xf]
      %v3184 = vld [vmem:[%s3155 + $0x70] sm:$0xf]
      %v3185 = vld [vmem:[%s3155 + $0x74] sm:$0x3]
      %v3186 = vld [vmem:[%s3155 + $0x78] sm:$0xf]
      %v3187 = vld [vmem:[%s3155 + $0x7c] sm:$0xf]
      %v3188 = vld [vmem:[%s3155 + $0x80] sm:$0x3]
      %v3189 = vld [vmem:[%s3155 + $0x84] sm:$0xf]
      %v3190 = vld [vmem:[%s3155 + $0x88] sm:$0xf]
      %v3191 = vld [vmem:[%s3155 + $0x8c] sm:$0x3]
      %v3192 = vld [vmem:[%s3155 + $0x90] sm:$0xf]
      %v3193 = vld [vmem:[%s3155 + $0x94] sm:$0xf]
      %v3194 = vld [vmem:[%s3155 + $0x98] sm:$0x3]
      %v3195 = vld [vmem:[%s3155 + $0x9c] sm:$0xf]
      %v3196 = vld [vmem:[%s3155 + $0xa0] sm:$0xf]
      %v3197 = vld [vmem:[%s3155 + $0xa4] sm:$0x3]
      %v3198 = vld [vmem:[%s3155 + $0xa8] sm:$0xf]
      %v3199 = vld [vmem:[%s3155 + $0xac] sm:$0xf]
      %v3200 = vld [vmem:[%s3155 + $0xb0] sm:$0x3]
      %v3201 = vld [vmem:[%s3155 + $0xb4] sm:$0xf]
      %v3202 = vld [vmem:[%s3155 + $0xb8] sm:$0xf]
      %v3203 = vld [vmem:[%s3155 + $0xbc] sm:$0x3]
      %v3252 = vunpack.c.l.b16 %v3156
      %v3253 = vunpack.c.l.b16 %v3157
      %v3254 = vunpack.c.l.b16 %v3158
      %v3255 = vunpack.c.l.b16 %v3159
      %v3256 = vunpack.c.l.b16 %v3160
      %v3257 = vunpack.c.l.b16 %v3161
      %v3258 = vunpack.c.l.b16 %v3162
      %v3259 = vunpack.c.l.b16 %v3163
      %v3260 = vunpack.c.l.b16 %v3164
      %v3261 = vunpack.c.l.b16 %v3165
      %v3262 = vunpack.c.l.b16 %v3166
      %v3263 = vunpack.c.l.b16 %v3167
      %v3264 = vunpack.c.l.b16 %v3168
      %v3265 = vunpack.c.l.b16 %v3169
      %v3266 = vunpack.c.l.b16 %v3170
      %v3267 = vunpack.c.l.b16 %v3171
      %v3268 = vunpack.c.l.b16 %v3172
      %v3269 = vunpack.c.l.b16 %v3173
      %v3270 = vunpack.c.l.b16 %v3174
      %v3271 = vunpack.c.l.b16 %v3175
      %v3272 = vunpack.c.l.b16 %v3176
      %v3273 = vunpack.c.l.b16 %v3177
      %v3274 = vunpack.c.l.b16 %v3178
      %v3275 = vunpack.c.l.b16 %v3179
      %v3276 = vunpack.c.l.b16 %v3180
      %v3277 = vunpack.c.l.b16 %v3181
      %v3278 = vunpack.c.l.b16 %v3182
      %v3279 = vunpack.c.l.b16 %v3183
      %v3280 = vunpack.c.l.b16 %v3184
      %v3281 = vunpack.c.l.b16 %v3185
      %v3282 = vunpack.c.l.b16 %v3186
      %v3283 = vunpack.c.l.b16 %v3187
      %v3284 = vunpack.c.l.b16 %v3188
      %v3285 = vunpack.c.l.b16 %v3189
      %v3286 = vunpack.c.l.b16 %v3190
      %v3287 = vunpack.c.l.b16 %v3191
      %v3288 = vunpack.c.l.b16 %v3192
      %v3289 = vunpack.c.l.b16 %v3193
      %v3290 = vunpack.c.l.b16 %v3194
      %v3291 = vunpack.c.l.b16 %v3195
      %v3292 = vunpack.c.l.b16 %v3196
      %v3293 = vunpack.c.l.b16 %v3197
      %v3294 = vunpack.c.l.b16 %v3198
      %v3295 = vunpack.c.l.b16 %v3199
      %v3296 = vunpack.c.l.b16 %v3200
      %v3297 = vunpack.c.l.b16 %v3201
      %v3298 = vunpack.c.l.b16 %v3202
      %v3299 = vunpack.c.l.b16 %v3203
      %v3300 = vpack.c.b16 %v3253, %v3252
      %v3301 = vpack.c.b16 %v3254, %v3254
      %v3302 = vpack.c.b16 %v3256, %v3255
      %v3303 = vpack.c.b16 %v3257, %v3257
      %v3304 = vpack.c.b16 %v3259, %v3258
      %v3305 = vpack.c.b16 %v3260, %v3260
      %v3306 = vpack.c.b16 %v3262, %v3261
      %v3307 = vpack.c.b16 %v3263, %v3263
      %v3308 = vpack.c.b16 %v3265, %v3264
      %v3309 = vpack.c.b16 %v3266, %v3266
      %v3310 = vpack.c.b16 %v3268, %v3267
      %v3311 = vpack.c.b16 %v3269, %v3269
      %v3312 = vpack.c.b16 %v3271, %v3270
      %v3313 = vpack.c.b16 %v3272, %v3272
      %v3314 = vpack.c.b16 %v3274, %v3273
      %v3315 = vpack.c.b16 %v3275, %v3275
      %v3316 = vpack.c.b16 %v3277, %v3276
      %v3317 = vpack.c.b16 %v3278, %v3278
      %v3318 = vpack.c.b16 %v3280, %v3279
      %v3319 = vpack.c.b16 %v3281, %v3281
      %v3320 = vpack.c.b16 %v3283, %v3282
      %v3321 = vpack.c.b16 %v3284, %v3284
      %v3322 = vpack.c.b16 %v3286, %v3285
      %v3323 = vpack.c.b16 %v3287, %v3287
      %v3324 = vpack.c.b16 %v3289, %v3288
      %v3325 = vpack.c.b16 %v3290, %v3290
      %v3326 = vpack.c.b16 %v3292, %v3291
      %v3327 = vpack.c.b16 %v3293, %v3293
      %v3328 = vpack.c.b16 %v3295, %v3294
      %v3329 = vpack.c.b16 %v3296, %v3296
      %v3330 = vpack.c.b16 %v3298, %v3297
      %v3331 = vpack.c.b16 %v3299, %v3299
      %v3333 = vshrl.u32 %v3300, 16
      %v3335 = vshll.u32 %v3300, 16
      %v3337 = vrot.slane %v3335, 1
      %v3338 = vor.u32 %v3333, %v3337
      %v3340 = vshll.u32 %v3301, 16
      %v3342 = vrot.slane %v3340, 1
      %v3343 = vsel %vm1228, %v3338, %v3342
      %v3344 = vshrl.u32 %v3301, 16
      %v3347 = vshrl.u32 %v3302, 16
      %v3349 = vshll.u32 %v3302, 16
      %v3351 = vrot.slane %v3349, 1
      %v3352 = vor.u32 %v3347, %v3351
      %v3354 = vshll.u32 %v3303, 16
      %v3356 = vrot.slane %v3354, 1
      %v3357 = vsel %vm1228, %v3352, %v3356
      %v3358 = vshrl.u32 %v3303, 16
      %v3361 = vshrl.u32 %v3304, 16
      %v3363 = vshll.u32 %v3304, 16
      %v3365 = vrot.slane %v3363, 1
      %v3366 = vor.u32 %v3361, %v3365
      %v3368 = vshll.u32 %v3305, 16
      %v3370 = vrot.slane %v3368, 1
      %v3371 = vsel %vm1228, %v3366, %v3370
      %v3372 = vshrl.u32 %v3305, 16
      %v3375 = vshrl.u32 %v3306, 16
      %v3377 = vshll.u32 %v3306, 16
      %v3379 = vrot.slane %v3377, 1
      %v3380 = vor.u32 %v3375, %v3379
      %v3382 = vshll.u32 %v3307, 16
      %v3384 = vrot.slane %v3382, 1
      %v3385 = vsel %vm1228, %v3380, %v3384
      %v3386 = vshrl.u32 %v3307, 16
      %v3389 = vshrl.u32 %v3308, 16
      %v3391 = vshll.u32 %v3308, 16
      %v3393 = vrot.slane %v3391, 1
      %v3394 = vor.u32 %v3389, %v3393
      %v3396 = vshll.u32 %v3309, 16
      %v3398 = vrot.slane %v3396, 1
      %v3399 = vsel %vm1228, %v3394, %v3398
      %v3400 = vshrl.u32 %v3309, 16
      %v3403 = vshrl.u32 %v3310, 16
      %v3405 = vshll.u32 %v3310, 16
      %v3407 = vrot.slane %v3405, 1
      %v3408 = vor.u32 %v3403, %v3407
      %v3410 = vshll.u32 %v3311, 16
      %v3412 = vrot.slane %v3410, 1
      %v3413 = vsel %vm1228, %v3408, %v3412
      %v3414 = vshrl.u32 %v3311, 16
      %v3417 = vshrl.u32 %v3312, 16
      %v3419 = vshll.u32 %v3312, 16
      %v3421 = vrot.slane %v3419, 1
      %v3422 = vor.u32 %v3417, %v3421
      %v3424 = vshll.u32 %v3313, 16
      %v3426 = vrot.slane %v3424, 1
      %v3427 = vsel %vm1228, %v3422, %v3426
      %v3428 = vshrl.u32 %v3313, 16
      %v3431 = vshrl.u32 %v3314, 16
      %v3433 = vshll.u32 %v3314, 16
      %v3435 = vrot.slane %v3433, 1
      %v3436 = vor.u32 %v3431, %v3435
      %v3438 = vshll.u32 %v3315, 16
      %v3440 = vrot.slane %v3438, 1
      %v3441 = vsel %vm1228, %v3436, %v3440
      %v3442 = vshrl.u32 %v3315, 16
      %v3445 = vshrl.u32 %v3316, 16
      %v3447 = vshll.u32 %v3316, 16
      %v3449 = vrot.slane %v3447, 1
      %v3450 = vor.u32 %v3445, %v3449
      %v3452 = vshll.u32 %v3317, 16
      %v3454 = vrot.slane %v3452, 1
      %v3455 = vsel %vm1228, %v3450, %v3454
      %v3456 = vshrl.u32 %v3317, 16
      %v3459 = vshrl.u32 %v3318, 16
      %v3461 = vshll.u32 %v3318, 16
      %v3463 = vrot.slane %v3461, 1
      %v3464 = vor.u32 %v3459, %v3463
      %v3466 = vshll.u32 %v3319, 16
      %v3468 = vrot.slane %v3466, 1
      %v3469 = vsel %vm1228, %v3464, %v3468
      %v3470 = vshrl.u32 %v3319, 16
      %v3473 = vshrl.u32 %v3320, 16
      %v3475 = vshll.u32 %v3320, 16
      %v3477 = vrot.slane %v3475, 1
      %v3478 = vor.u32 %v3473, %v3477
      %v3480 = vshll.u32 %v3321, 16
      %v3482 = vrot.slane %v3480, 1
      %v3483 = vsel %vm1228, %v3478, %v3482
      %v3484 = vshrl.u32 %v3321, 16
      %v3487 = vshrl.u32 %v3322, 16
      %v3489 = vshll.u32 %v3322, 16
      %v3491 = vrot.slane %v3489, 1
      %v3492 = vor.u32 %v3487, %v3491
      %v3494 = vshll.u32 %v3323, 16
      %v3496 = vrot.slane %v3494, 1
      %v3497 = vsel %vm1228, %v3492, %v3496
      %v3498 = vshrl.u32 %v3323, 16
      %v3501 = vshrl.u32 %v3324, 16
      %v3503 = vshll.u32 %v3324, 16
      %v3505 = vrot.slane %v3503, 1
      %v3506 = vor.u32 %v3501, %v3505
      %v3508 = vshll.u32 %v3325, 16
      %v3510 = vrot.slane %v3508, 1
      %v3511 = vsel %vm1228, %v3506, %v3510
      %v3512 = vshrl.u32 %v3325, 16
      %v3515 = vshrl.u32 %v3326, 16
      %v3517 = vshll.u32 %v3326, 16
      %v3519 = vrot.slane %v3517, 1
      %v3520 = vor.u32 %v3515, %v3519
      %v3522 = vshll.u32 %v3327, 16
      %v3524 = vrot.slane %v3522, 1
      %v3525 = vsel %vm1228, %v3520, %v3524
      %v3526 = vshrl.u32 %v3327, 16
      %v3529 = vshrl.u32 %v3328, 16
      %v3531 = vshll.u32 %v3328, 16
      %v3533 = vrot.slane %v3531, 1
      %v3534 = vor.u32 %v3529, %v3533
      %v3536 = vshll.u32 %v3329, 16
      %v3538 = vrot.slane %v3536, 1
      %v3539 = vsel %vm1228, %v3534, %v3538
      %v3540 = vshrl.u32 %v3329, 16
      %v3543 = vshrl.u32 %v3330, 16
      %v3545 = vshll.u32 %v3330, 16
      %v3547 = vrot.slane %v3545, 1
      %v3548 = vor.u32 %v3543, %v3547
      %v3550 = vshll.u32 %v3331, 16
      %v3552 = vrot.slane %v3550, 1
      %v3553 = vsel %vm1228, %v3548, %v3552
      %v3554 = vshrl.u32 %v3331, 16
      %3556 = vrot.lane.b32.xlu0 %v3343, 8
      %v3557 = vpop.permute.xlu0 %3556
      %3558 = vrot.lane.b32.xlu0 %v3344, 8
      %v3559 = vpop.permute.xlu0 %3558
      %3560 = vrot.lane.b32.xlu0 %v3357, 8
      %v3561 = vpop.permute.xlu0 %3560
      %3562 = vrot.lane.b32.xlu0 %v3358, 8
      %v3563 = vpop.permute.xlu0 %3562
      %3564 = vrot.lane.b32.xlu0 %v3371, 8
      %v3565 = vpop.permute.xlu0 %3564
      %3566 = vrot.lane.b32.xlu0 %v3372, 8
      %v3567 = vpop.permute.xlu0 %3566
      %3568 = vrot.lane.b32.xlu0 %v3385, 8
      %v3569 = vpop.permute.xlu0 %3568
      %3570 = vrot.lane.b32.xlu0 %v3386, 8
      %v3571 = vpop.permute.xlu0 %3570
      %3572 = vrot.lane.b32.xlu0 %v3399, 8
      %v3573 = vpop.permute.xlu0 %3572
      %3574 = vrot.lane.b32.xlu0 %v3400, 8
      %v3575 = vpop.permute.xlu0 %3574
      %3576 = vrot.lane.b32.xlu0 %v3413, 8
      %v3577 = vpop.permute.xlu0 %3576
      %3578 = vrot.lane.b32.xlu0 %v3414, 8
      %v3579 = vpop.permute.xlu0 %3578
      %3580 = vrot.lane.b32.xlu0 %v3427, 8
      %v3581 = vpop.permute.xlu0 %3580
      %3582 = vrot.lane.b32.xlu0 %v3428, 8
      %v3583 = vpop.permute.xlu0 %3582
      %3584 = vrot.lane.b32.xlu0 %v3441, 8
      %v3585 = vpop.permute.xlu0 %3584
      %3586 = vrot.lane.b32.xlu0 %v3442, 8
      %v3587 = vpop.permute.xlu0 %3586
      %3588 = vrot.lane.b32.xlu0 %v3455, 8
      %v3589 = vpop.permute.xlu0 %3588
      %3590 = vrot.lane.b32.xlu0 %v3456, 8
      %v3591 = vpop.permute.xlu0 %3590
      %3592 = vrot.lane.b32.xlu0 %v3469, 8
      %v3593 = vpop.permute.xlu0 %3592
      %3594 = vrot.lane.b32.xlu0 %v3470, 8
      %v3595 = vpop.permute.xlu0 %3594
      %3596 = vrot.lane.b32.xlu0 %v3483, 8
      %v3597 = vpop.permute.xlu0 %3596
      %3598 = vrot.lane.b32.xlu0 %v3484, 8
      %v3599 = vpop.permute.xlu0 %3598
      %3600 = vrot.lane.b32.xlu0 %v3497, 8
      %v3601 = vpop.permute.xlu0 %3600
      %3602 = vrot.lane.b32.xlu0 %v3498, 8
      %v3603 = vpop.permute.xlu0 %3602
      %3604 = vrot.lane.b32.xlu0 %v3511, 8
      %v3605 = vpop.permute.xlu0 %3604
      %3606 = vrot.lane.b32.xlu0 %v3512, 8
      %v3607 = vpop.permute.xlu0 %3606
      %3608 = vrot.lane.b32.xlu0 %v3525, 8
      %v3609 = vpop.permute.xlu0 %3608
      %3610 = vrot.lane.b32.xlu0 %v3526, 8
      %v3611 = vpop.permute.xlu0 %3610
      %3612 = vrot.lane.b32.xlu0 %v3539, 8
      %v3613 = vpop.permute.xlu0 %3612
      %3614 = vrot.lane.b32.xlu0 %v3540, 8
      %v3615 = vpop.permute.xlu0 %3614
      %3616 = vrot.lane.b32.xlu0 %v3553, 8
      %v3617 = vpop.permute.xlu0 %3616
      %3618 = vrot.lane.b32.xlu0 %v3554, 8
      %v3619 = vpop.permute.xlu0 %3618
      %v3620 = vrot.slane %v3300, 1
      %v3621 = vrot.slane %v3301, 1
      %v3622 = vsel %vm1517, %v3620, %v3621
      %v3623 = vrot.slane %v3302, 1
      %v3624 = vrot.slane %v3303, 1
      %v3625 = vsel %vm1517, %v3623, %v3624
      %v3626 = vrot.slane %v3304, 1
      %v3627 = vrot.slane %v3305, 1
      %v3628 = vsel %vm1517, %v3626, %v3627
      %v3629 = vrot.slane %v3306, 1
      %v3630 = vrot.slane %v3307, 1
      %v3631 = vsel %vm1517, %v3629, %v3630
      %v3632 = vrot.slane %v3308, 1
      %v3633 = vrot.slane %v3309, 1
      %v3634 = vsel %vm1517, %v3632, %v3633
      %v3635 = vrot.slane %v3310, 1
      %v3636 = vrot.slane %v3311, 1
      %v3637 = vsel %vm1517, %v3635, %v3636
      %v3638 = vrot.slane %v3312, 1
      %v3639 = vrot.slane %v3313, 1
      %v3640 = vsel %vm1517, %v3638, %v3639
      %v3641 = vrot.slane %v3314, 1
      %v3642 = vrot.slane %v3315, 1
      %v3643 = vsel %vm1517, %v3641, %v3642
      %v3644 = vrot.slane %v3316, 1
      %v3645 = vrot.slane %v3317, 1
      %v3646 = vsel %vm1517, %v3644, %v3645
      %v3647 = vrot.slane %v3318, 1
      %v3648 = vrot.slane %v3319, 1
      %v3649 = vsel %vm1517, %v3647, %v3648
      %v3650 = vrot.slane %v3320, 1
      %v3651 = vrot.slane %v3321, 1
      %v3652 = vsel %vm1517, %v3650, %v3651
      %v3653 = vrot.slane %v3322, 1
      %v3654 = vrot.slane %v3323, 1
      %v3655 = vsel %vm1517, %v3653, %v3654
      %v3656 = vrot.slane %v3324, 1
      %v3657 = vrot.slane %v3325, 1
      %v3658 = vsel %vm1517, %v3656, %v3657
      %v3659 = vrot.slane %v3326, 1
      %v3660 = vrot.slane %v3327, 1
      %v3661 = vsel %vm1517, %v3659, %v3660
      %v3662 = vrot.slane %v3328, 1
      %v3663 = vrot.slane %v3329, 1
      %v3664 = vsel %vm1517, %v3662, %v3663
      %v3665 = vrot.slane %v3330, 1
      %v3666 = vrot.slane %v3331, 1
      %v3667 = vsel %vm1517, %v3665, %v3666
      %3668 = vrot.lane.b32.xlu0 %v3622, 16
      %v3669 = vpop.permute.xlu0 %3668
      %3670 = vrot.lane.b32.xlu0 %v3621, 16
      %v3671 = vpop.permute.xlu0 %3670
      %3672 = vrot.lane.b32.xlu0 %v3625, 16
      %v3673 = vpop.permute.xlu0 %3672
      %3674 = vrot.lane.b32.xlu0 %v3624, 16
      %v3675 = vpop.permute.xlu0 %3674
      %3676 = vrot.lane.b32.xlu0 %v3628, 16
      %v3677 = vpop.permute.xlu0 %3676
      %3678 = vrot.lane.b32.xlu0 %v3627, 16
      %v3679 = vpop.permute.xlu0 %3678
      %3680 = vrot.lane.b32.xlu0 %v3631, 16
      %v3681 = vpop.permute.xlu0 %3680
      %3682 = vrot.lane.b32.xlu0 %v3630, 16
      %v3683 = vpop.permute.xlu0 %3682
      %3684 = vrot.lane.b32.xlu0 %v3634, 16
      %v3685 = vpop.permute.xlu0 %3684
      %3686 = vrot.lane.b32.xlu0 %v3633, 16
      %v3687 = vpop.permute.xlu0 %3686
      %3688 = vrot.lane.b32.xlu0 %v3637, 16
      %v3689 = vpop.permute.xlu0 %3688
      %3690 = vrot.lane.b32.xlu0 %v3636, 16
      %v3691 = vpop.permute.xlu0 %3690
      %3692 = vrot.lane.b32.xlu0 %v3640, 16
      %v3693 = vpop.permute.xlu0 %3692
      %3694 = vrot.lane.b32.xlu0 %v3639, 16
      %v3695 = vpop.permute.xlu0 %3694
      %3696 = vrot.lane.b32.xlu0 %v3643, 16
      %v3697 = vpop.permute.xlu0 %3696
      %3698 = vrot.lane.b32.xlu0 %v3642, 16
      %v3699 = vpop.permute.xlu0 %3698
      %3700 = vrot.lane.b32.xlu0 %v3646, 16
      %v3701 = vpop.permute.xlu0 %3700
      %3702 = vrot.lane.b32.xlu0 %v3645, 16
      %v3703 = vpop.permute.xlu0 %3702
      %3704 = vrot.lane.b32.xlu0 %v3649, 16
      %v3705 = vpop.permute.xlu0 %3704
      %3706 = vrot.lane.b32.xlu0 %v3648, 16
      %v3707 = vpop.permute.xlu0 %3706
      %3708 = vrot.lane.b32.xlu0 %v3652, 16
      %v3709 = vpop.permute.xlu0 %3708
      %3710 = vrot.lane.b32.xlu0 %v3651, 16
      %v3711 = vpop.permute.xlu0 %3710
      %3712 = vrot.lane.b32.xlu0 %v3655, 16
      %v3713 = vpop.permute.xlu0 %3712
      %3714 = vrot.lane.b32.xlu0 %v3654, 16
      %v3715 = vpop.permute.xlu0 %3714
      %3716 = vrot.lane.b32.xlu0 %v3658, 16
      %v3717 = vpop.permute.xlu0 %3716
      %3718 = vrot.lane.b32.xlu0 %v3657, 16
      %v3719 = vpop.permute.xlu0 %3718
      %3720 = vrot.lane.b32.xlu0 %v3661, 16
      %v3721 = vpop.permute.xlu0 %3720
      %3722 = vrot.lane.b32.xlu0 %v3660, 16
      %v3723 = vpop.permute.xlu0 %3722
      %3724 = vrot.lane.b32.xlu0 %v3664, 16
      %v3725 = vpop.permute.xlu0 %3724
      %3726 = vrot.lane.b32.xlu0 %v3663, 16
      %v3727 = vpop.permute.xlu0 %3726
      %3728 = vrot.lane.b32.xlu0 %v3667, 16
      %v3729 = vpop.permute.xlu0 %3728
      %3730 = vrot.lane.b32.xlu0 %v3666, 16
      %v3731 = vpop.permute.xlu0 %3730
      %v3733 = vsel %vm1630, %v3300, %v3557
      %v3735 = vsel %vm1630, %v3301, %v3559
      %v3737 = vsel %vm1630, %v3302, %v3561
      %v3739 = vsel %vm1630, %v3303, %v3563
      %v3741 = vsel %vm1630, %v3304, %v3565
      %v3743 = vsel %vm1630, %v3305, %v3567
      %v3745 = vsel %vm1630, %v3306, %v3569
      %v3747 = vsel %vm1630, %v3307, %v3571
      %v3749 = vsel %vm1630, %v3308, %v3573
      %v3751 = vsel %vm1630, %v3309, %v3575
      %v3753 = vsel %vm1630, %v3310, %v3577
      %v3755 = vsel %vm1630, %v3311, %v3579
      %v3757 = vsel %vm1630, %v3312, %v3581
      %v3759 = vsel %vm1630, %v3313, %v3583
      %v3761 = vsel %vm1630, %v3314, %v3585
      %v3763 = vsel %vm1630, %v3315, %v3587
      %v3765 = vsel %vm1630, %v3316, %v3589
      %v3767 = vsel %vm1630, %v3317, %v3591
      %v3769 = vsel %vm1630, %v3318, %v3593
      %v3771 = vsel %vm1630, %v3319, %v3595
      %v3773 = vsel %vm1630, %v3320, %v3597
      %v3775 = vsel %vm1630, %v3321, %v3599
      %v3777 = vsel %vm1630, %v3322, %v3601
      %v3779 = vsel %vm1630, %v3323, %v3603
      %v3781 = vsel %vm1630, %v3324, %v3605
      %v3783 = vsel %vm1630, %v3325, %v3607
      %v3785 = vsel %vm1630, %v3326, %v3609
      %v3787 = vsel %vm1630, %v3327, %v3611
      %v3789 = vsel %vm1630, %v3328, %v3613
      %v3791 = vsel %vm1630, %v3329, %v3615
      %v3793 = vsel %vm1630, %v3330, %v3617
      %v3795 = vsel %vm1630, %v3331, %v3619
      %v3797 = vsel %vm1695, %v3733, %v3669
      %v3799 = vsel %vm1695, %v3735, %v3671
      %v3801 = vsel %vm1695, %v3737, %v3673
      %v3803 = vsel %vm1695, %v3739, %v3675
      %v3805 = vsel %vm1695, %v3741, %v3677
      %v3807 = vsel %vm1695, %v3743, %v3679
      %v3809 = vsel %vm1695, %v3745, %v3681
      %v3811 = vsel %vm1695, %v3747, %v3683
      %v3813 = vsel %vm1695, %v3749, %v3685
      %v3815 = vsel %vm1695, %v3751, %v3687
      %v3817 = vsel %vm1695, %v3753, %v3689
      %v3819 = vsel %vm1695, %v3755, %v3691
      %v3821 = vsel %vm1695, %v3757, %v3693
      %v3823 = vsel %vm1695, %v3759, %v3695
      %v3825 = vsel %vm1695, %v3761, %v3697
      %v3827 = vsel %vm1695, %v3763, %v3699
      %v3829 = vsel %vm1695, %v3765, %v3701
      %v3831 = vsel %vm1695, %v3767, %v3703
      %v3833 = vsel %vm1695, %v3769, %v3705
      %v3835 = vsel %vm1695, %v3771, %v3707
      %v3837 = vsel %vm1695, %v3773, %v3709
      %v3839 = vsel %vm1695, %v3775, %v3711
      %v3841 = vsel %vm1695, %v3777, %v3713
      %v3843 = vsel %vm1695, %v3779, %v3715
      %v3845 = vsel %vm1695, %v3781, %v3717
      %v3847 = vsel %vm1695, %v3783, %v3719
      %v3849 = vsel %vm1695, %v3785, %v3721
      %v3851 = vsel %vm1695, %v3787, %v3723
      %v3853 = vsel %vm1695, %v3789, %v3725
      %v3855 = vsel %vm1695, %v3791, %v3727
      %v3857 = vsel %vm1695, %v3793, %v3729
      %v3859 = vsel %vm1695, %v3795, %v3731
      %v3860 = vshrl.u32 %v3797, 16
      %v3862 = vshll.u32 %v3797, 16
      %v3864 = vrot.slane %v3862, 1
      %v3865 = vor.u32 %v3860, %v3864
      %v3866 = vshll.u32 %v3799, 16
      %v3868 = vrot.slane %v3866, 1
      %v3869 = vsel %vm1228, %v3865, %v3868
      %v3870 = vshrl.u32 %v3801, 16
      %v3872 = vshll.u32 %v3801, 16
      %v3874 = vrot.slane %v3872, 1
      %v3875 = vor.u32 %v3870, %v3874
      %v3876 = vshll.u32 %v3803, 16
      %v3878 = vrot.slane %v3876, 1
      %v3879 = vsel %vm1228, %v3875, %v3878
      %v3880 = vshrl.u32 %v3805, 16
      %v3882 = vshll.u32 %v3805, 16
      %v3884 = vrot.slane %v3882, 1
      %v3885 = vor.u32 %v3880, %v3884
      %v3886 = vshll.u32 %v3807, 16
      %v3888 = vrot.slane %v3886, 1
      %v3889 = vsel %vm1228, %v3885, %v3888
      %v3890 = vshrl.u32 %v3809, 16
      %v3892 = vshll.u32 %v3809, 16
      %v3894 = vrot.slane %v3892, 1
      %v3895 = vor.u32 %v3890, %v3894
      %v3896 = vshll.u32 %v3811, 16
      %v3898 = vrot.slane %v3896, 1
      %v3899 = vsel %vm1228, %v3895, %v3898
      %v3900 = vshrl.u32 %v3813, 16
      %v3902 = vshll.u32 %v3813, 16
      %v3904 = vrot.slane %v3902, 1
      %v3905 = vor.u32 %v3900, %v3904
      %v3906 = vshll.u32 %v3815, 16
      %v3908 = vrot.slane %v3906, 1
      %v3909 = vsel %vm1228, %v3905, %v3908
      %v3910 = vshrl.u32 %v3817, 16
      %v3912 = vshll.u32 %v3817, 16
      %v3914 = vrot.slane %v3912, 1
      %v3915 = vor.u32 %v3910, %v3914
      %v3916 = vshll.u32 %v3819, 16
      %v3918 = vrot.slane %v3916, 1
      %v3919 = vsel %vm1228, %v3915, %v3918
      %v3920 = vshrl.u32 %v3821, 16
      %v3922 = vshll.u32 %v3821, 16
      %v3924 = vrot.slane %v3922, 1
      %v3925 = vor.u32 %v3920, %v3924
      %v3926 = vshll.u32 %v3823, 16
      %v3928 = vrot.slane %v3926, 1
      %v3929 = vsel %vm1228, %v3925, %v3928
      %v3930 = vshrl.u32 %v3825, 16
      %v3932 = vshll.u32 %v3825, 16
      %v3934 = vrot.slane %v3932, 1
      %v3935 = vor.u32 %v3930, %v3934
      %v3936 = vshll.u32 %v3827, 16
      %v3938 = vrot.slane %v3936, 1
      %v3939 = vsel %vm1228, %v3935, %v3938
      %v3940 = vshrl.u32 %v3829, 16
      %v3942 = vshll.u32 %v3829, 16
      %v3944 = vrot.slane %v3942, 1
      %v3945 = vor.u32 %v3940, %v3944
      %v3946 = vshll.u32 %v3831, 16
      %v3948 = vrot.slane %v3946, 1
      %v3949 = vsel %vm1228, %v3945, %v3948
      %v3950 = vshrl.u32 %v3833, 16
      %v3952 = vshll.u32 %v3833, 16
      %v3954 = vrot.slane %v3952, 1
      %v3955 = vor.u32 %v3950, %v3954
      %v3956 = vshll.u32 %v3835, 16
      %v3958 = vrot.slane %v3956, 1
      %v3959 = vsel %vm1228, %v3955, %v3958
      %v3960 = vshrl.u32 %v3837, 16
      %v3962 = vshll.u32 %v3837, 16
      %v3964 = vrot.slane %v3962, 1
      %v3965 = vor.u32 %v3960, %v3964
      %v3966 = vshll.u32 %v3839, 16
      %v3968 = vrot.slane %v3966, 1
      %v3969 = vsel %vm1228, %v3965, %v3968
      %v3970 = vshrl.u32 %v3841, 16
      %v3972 = vshll.u32 %v3841, 16
      %v3974 = vrot.slane %v3972, 1
      %v3975 = vor.u32 %v3970, %v3974
      %v3976 = vshll.u32 %v3843, 16
      %v3978 = vrot.slane %v3976, 1
      %v3979 = vsel %vm1228, %v3975, %v3978
      %v3980 = vshrl.u32 %v3845, 16
      %v3982 = vshll.u32 %v3845, 16
      %v3984 = vrot.slane %v3982, 1
      %v3985 = vor.u32 %v3980, %v3984
      %v3986 = vshll.u32 %v3847, 16
      %v3988 = vrot.slane %v3986, 1
      %v3989 = vsel %vm1228, %v3985, %v3988
      %v3990 = vshrl.u32 %v3849, 16
      %v3992 = vshll.u32 %v3849, 16
      %v3994 = vrot.slane %v3992, 1
      %v3995 = vor.u32 %v3990, %v3994
      %v3996 = vshll.u32 %v3851, 16
      %v3998 = vrot.slane %v3996, 1
      %v3999 = vsel %vm1228, %v3995, %v3998
      %v4000 = vshrl.u32 %v3853, 16
      %v4002 = vshll.u32 %v3853, 16
      %v4004 = vrot.slane %v4002, 1
      %v4005 = vor.u32 %v4000, %v4004
      %v4006 = vshll.u32 %v3855, 16
      %v4008 = vrot.slane %v4006, 1
      %v4009 = vsel %vm1228, %v4005, %v4008
      %v4010 = vshrl.u32 %v3857, 16
      %v4012 = vshll.u32 %v3857, 16
      %v4014 = vrot.slane %v4012, 1
      %v4015 = vor.u32 %v4010, %v4014
      %v4016 = vshll.u32 %v3859, 16
      %v4018 = vrot.slane %v4016, 1
      %v4019 = vsel %vm1228, %v4015, %v4018
      %s4020 = scalar_lea.vmem %s3, 24
      %v4021 = vld [vmem:[%s4020] sm:$0xf]
      %v4022 = vld [vmem:[%s4020 + $0x4] sm:$0xf]
      %v4023 = vld [vmem:[%s4020 + $0x8] sm:$0xf]
      %v4027 = vunpack.c.l.b16 %v4021
      %v4028 = vunpack.c.l.b16 %v4022
      %v4029 = vunpack.c.l.b16 %v4023
      %v4030 = vpack.c.b16 %v4028, %v4027
      %v4031 = vpack.c.b16 %v4029, %v4029
      %v4034 = vsel %vm1932, %v3869, 0
      %v4037 = vsel %vm1932, %v3879, 0
      %v4040 = vsel %vm1932, %v3889, 0
      %v4043 = vsel %vm1932, %v3899, 0
      %v4046 = vsel %vm1932, %v3909, 0
      %v4049 = vsel %vm1932, %v3919, 0
      %v4052 = vsel %vm1932, %v3929, 0
      %v4055 = vsel %vm1932, %v3939, 0
      %v4058 = vsel %vm1932, %v3949, 0
      %v4061 = vsel %vm1932, %v3959, 0
      %v4064 = vsel %vm1932, %v3969, 0
      %v4067 = vsel %vm1932, %v3979, 0
      %v4070 = vsel %vm1932, %v3989, 0
      %v4073 = vsel %vm1932, %v3999, 0
      %v4076 = vsel %vm1932, %v4009, 0
      %v4079 = vsel %vm1932, %v4019, 0
      %v4082 = vsel %vm1981, %v4031, 0
      %4084 = vmatpush.bf16.msra.mxu0 0
      %4085 = vmatpush.bf16.msra.mxu0 0
      %4086 = vmatpush.bf16.msra.mxu0 0
      %4087 = vmatpush.bf16.msra.mxu0 0
      %4088 = vmatpush.bf16.msra.mxu0 0
      %4089 = vmatpush.bf16.msra.mxu0 0
      %4090 = vmatpush.bf16.msra.mxu0 %v4082
      %4091 = vmatpush.bf16.msra.mxu0 %v4030
      %4092 = vmatmul.bf16.gmra.mxu0 %v4034
      %v4093 = vpop.f32.mrf.mxu0
      %v4094 = vadd.f32 0.0, %v4093
      %v4095 = vpop.f32.mrf.mxu0
      %v4096 = vadd.f32 0.0, %v4095
      %4097 = vmatmul.bf16.gmra.mxu0 %v4037
      %v4098 = vpop.f32.mrf.mxu0
      %v4099 = vadd.f32 0.0, %v4098
      %v4100 = vpop.f32.mrf.mxu0
      %v4101 = vadd.f32 0.0, %v4100
      %4102 = vmatmul.bf16.gmra.mxu0 %v4040
      %v4103 = vpop.f32.mrf.mxu0
      %v4104 = vadd.f32 0.0, %v4103
      %v4105 = vpop.f32.mrf.mxu0
      %v4106 = vadd.f32 0.0, %v4105
      %4107 = vmatmul.bf16.gmra.mxu0 %v4043
      %v4108 = vpop.f32.mrf.mxu0
      %v4109 = vadd.f32 0.0, %v4108
      %v4110 = vpop.f32.mrf.mxu0
      %v4111 = vadd.f32 0.0, %v4110
      %4112 = vmatmul.bf16.gmra.mxu0 %v4046
      %v4113 = vpop.f32.mrf.mxu0
      %v4114 = vadd.f32 0.0, %v4113
      %v4115 = vpop.f32.mrf.mxu0
      %v4116 = vadd.f32 0.0, %v4115
      %4117 = vmatmul.bf16.gmra.mxu0 %v4049
      %v4118 = vpop.f32.mrf.mxu0
      %v4119 = vadd.f32 0.0, %v4118
      %v4120 = vpop.f32.mrf.mxu0
      %v4121 = vadd.f32 0.0, %v4120
      %4122 = vmatmul.bf16.gmra.mxu0 %v4052
      %v4123 = vpop.f32.mrf.mxu0
      %v4124 = vadd.f32 0.0, %v4123
      %v4125 = vpop.f32.mrf.mxu0
      %v4126 = vadd.f32 0.0, %v4125
      %4127 = vmatmul.bf16.gmra.mxu0 %v4055
      %v4128 = vpop.f32.mrf.mxu0
      %v4129 = vadd.f32 0.0, %v4128
      %v4130 = vpop.f32.mrf.mxu0
      %v4131 = vadd.f32 0.0, %v4130
      %4132 = vmatmul.bf16.gmra.mxu0 %v4058
      %v4133 = vpop.f32.mrf.mxu0
      %v4134 = vadd.f32 0.0, %v4133
      %v4135 = vpop.f32.mrf.mxu0
      %v4136 = vadd.f32 0.0, %v4135
      %4137 = vmatmul.bf16.gmra.mxu0 %v4061
      %v4138 = vpop.f32.mrf.mxu0
      %v4139 = vadd.f32 0.0, %v4138
      %v4140 = vpop.f32.mrf.mxu0
      %v4141 = vadd.f32 0.0, %v4140
      %4142 = vmatmul.bf16.gmra.mxu0 %v4064
      %v4143 = vpop.f32.mrf.mxu0
      %v4144 = vadd.f32 0.0, %v4143
      %v4145 = vpop.f32.mrf.mxu0
      %v4146 = vadd.f32 0.0, %v4145
      %4147 = vmatmul.bf16.gmra.mxu0 %v4067
      %v4148 = vpop.f32.mrf.mxu0
      %v4149 = vadd.f32 0.0, %v4148
      %v4150 = vpop.f32.mrf.mxu0
      %v4151 = vadd.f32 0.0, %v4150
      %4152 = vmatmul.bf16.gmra.mxu0 %v4070
      %v4153 = vpop.f32.mrf.mxu0
      %v4154 = vadd.f32 0.0, %v4153
      %v4155 = vpop.f32.mrf.mxu0
      %v4156 = vadd.f32 0.0, %v4155
      %4157 = vmatmul.bf16.gmra.mxu0 %v4073
      %v4158 = vpop.f32.mrf.mxu0
      %v4159 = vadd.f32 0.0, %v4158
      %v4160 = vpop.f32.mrf.mxu0
      %v4161 = vadd.f32 0.0, %v4160
      %4162 = vmatmul.bf16.gmra.mxu0 %v4076
      %v4163 = vpop.f32.mrf.mxu0
      %v4164 = vadd.f32 0.0, %v4163
      %v4165 = vpop.f32.mrf.mxu0
      %v4166 = vadd.f32 0.0, %v4165
      %4167 = vmatmul.bf16.gmra.mxu0 %v4079
      %v4168 = vpop.f32.mrf.mxu0
      %v4169 = vadd.f32 0.0, %v4168
      %v4170 = vpop.f32.mrf.mxu0
      %v4171 = vadd.f32 0.0, %v4170
      %4172 = vdwg.mxu0
      %v4173 = vadd.f32 %v3123, %v4094
      %v4174 = vadd.f32 %v3124, %v4096
      %v4175 = vadd.f32 %v3125, %v4099
      %v4176 = vadd.f32 %v3126, %v4101
      %v4177 = vadd.f32 %v3127, %v4104
      %v4178 = vadd.f32 %v3128, %v4106
      %v4179 = vadd.f32 %v3129, %v4109
      %v4180 = vadd.f32 %v3130, %v4111
      %v4181 = vadd.f32 %v3131, %v4114
      %v4182 = vadd.f32 %v3132, %v4116
      %v4183 = vadd.f32 %v3133, %v4119
      %v4184 = vadd.f32 %v3134, %v4121
      %v4185 = vadd.f32 %v3135, %v4124
      %v4186 = vadd.f32 %v3136, %v4126
      %v4187 = vadd.f32 %v3137, %v4129
      %v4188 = vadd.f32 %v3138, %v4131
      %v4189 = vadd.f32 %v3139, %v4134
      %v4190 = vadd.f32 %v3140, %v4136
      %v4191 = vadd.f32 %v3141, %v4139
      %v4192 = vadd.f32 %v3142, %v4141
      %v4193 = vadd.f32 %v3143, %v4144
      %v4194 = vadd.f32 %v3144, %v4146
      %v4195 = vadd.f32 %v3145, %v4149
      %v4196 = vadd.f32 %v3146, %v4151
      %v4197 = vadd.f32 %v3147, %v4154
      %v4198 = vadd.f32 %v3148, %v4156
      %v4199 = vadd.f32 %v3149, %v4159
      %v4200 = vadd.f32 %v3150, %v4161
      %v4201 = vadd.f32 %v3151, %v4164
      %v4202 = vadd.f32 %v3152, %v4166
      %v4203 = vadd.f32 %v3153, %v4169
      %v4204 = vadd.f32 %v3154, %v4171
      %v4205 = vmax.f32 %v4173, 0.0
      %v4206 = vmax.f32 %v4174, 0.0
      %v4207 = vmax.f32 %v4175, 0.0
      %v4208 = vmax.f32 %v4176, 0.0
      %v4209 = vmax.f32 %v4177, 0.0
      %v4210 = vmax.f32 %v4178, 0.0
      %v4211 = vmax.f32 %v4179, 0.0
      %v4212 = vmax.f32 %v4180, 0.0
      %v4213 = vmax.f32 %v4181, 0.0
      %v4214 = vmax.f32 %v4182, 0.0
      %v4215 = vmax.f32 %v4183, 0.0
      %v4216 = vmax.f32 %v4184, 0.0
      %v4217 = vmax.f32 %v4185, 0.0
      %v4218 = vmax.f32 %v4186, 0.0
      %v4219 = vmax.f32 %v4187, 0.0
      %v4220 = vmax.f32 %v4188, 0.0
      %v4221 = vmax.f32 %v4189, 0.0
      %v4222 = vmax.f32 %v4190, 0.0
      %v4223 = vmax.f32 %v4191, 0.0
      %v4224 = vmax.f32 %v4192, 0.0
      %v4225 = vmax.f32 %v4193, 0.0
      %v4226 = vmax.f32 %v4194, 0.0
      %v4227 = vmax.f32 %v4195, 0.0
      %v4228 = vmax.f32 %v4196, 0.0
      %v4229 = vmax.f32 %v4197, 0.0
      %v4230 = vmax.f32 %v4198, 0.0
      %v4231 = vmax.f32 %v4199, 0.0
      %v4232 = vmax.f32 %v4200, 0.0
      %v4233 = vmax.f32 %v4201, 0.0
      %v4234 = vmax.f32 %v4202, 0.0
      %v4235 = vmax.f32 %v4203, 0.0
      %v4236 = vmax.f32 %v4204, 0.0
      %4237 = vrot.lane.b32.xlu0 %v774, 112
      %v4238 = vpop.permute.xlu0 %4237
      %4239 = vrot.lane.b32.xlu0 %v777, 112
      %v4240 = vpop.permute.xlu0 %4239
      %4241 = vrot.lane.b32.xlu0 %v778, 112
      %v4242 = vpop.permute.xlu0 %4241
      %4243 = vrot.lane.b32.xlu0 %v779, 112
      %v4244 = vpop.permute.xlu0 %4243
      %4245 = vrot.lane.b32.xlu0 %v782, 112
      %v4246 = vpop.permute.xlu0 %4245
      %4247 = vrot.lane.b32.xlu0 %v783, 112
      %v4248 = vpop.permute.xlu0 %4247
      %4249 = vrot.lane.b32.xlu0 %v784, 112
      %v4250 = vpop.permute.xlu0 %4249
      %4251 = vrot.lane.b32.xlu0 %v787, 112
      %v4252 = vpop.permute.xlu0 %4251
      %4253 = vrot.lane.b32.xlu0 %v788, 112
      %v4254 = vpop.permute.xlu0 %4253
      %4255 = vrot.lane.b32.xlu0 %v789, 112
      %v4256 = vpop.permute.xlu0 %4255
      %4257 = vrot.lane.b32.xlu0 %v792, 112
      %v4258 = vpop.permute.xlu0 %4257
      %4259 = vrot.lane.b32.xlu0 %v793, 112
      %v4260 = vpop.permute.xlu0 %4259
      %4261 = vrot.lane.b32.xlu0 %v794, 112
      %v4262 = vpop.permute.xlu0 %4261
      %4263 = vrot.lane.b32.xlu0 %v797, 112
      %v4264 = vpop.permute.xlu0 %4263
      %4265 = vrot.lane.b32.xlu0 %v798, 112
      %v4266 = vpop.permute.xlu0 %4265
      %4267 = vrot.lane.b32.xlu0 %v799, 112
      %v4268 = vpop.permute.xlu0 %4267
      %4269 = vrot.lane.b32.xlu0 %v802, 112
      %v4270 = vpop.permute.xlu0 %4269
      %4271 = vrot.lane.b32.xlu0 %v803, 112
      %v4272 = vpop.permute.xlu0 %4271
      %4273 = vrot.lane.b32.xlu0 %v804, 112
      %v4274 = vpop.permute.xlu0 %4273
      %4275 = vrot.lane.b32.xlu0 %v807, 112
      %v4276 = vpop.permute.xlu0 %4275
      %4277 = vrot.lane.b32.xlu0 %v808, 112
      %v4278 = vpop.permute.xlu0 %4277
      %4279 = vrot.lane.b32.xlu0 %v809, 112
      %v4280 = vpop.permute.xlu0 %4279
      %4281 = vrot.lane.b32.xlu0 %v812, 112
      %v4282 = vpop.permute.xlu0 %4281
      %4283 = vrot.lane.b32.xlu0 %v813, 112
      %v4284 = vpop.permute.xlu0 %4283
      %4285 = vrot.lane.b32.xlu0 %v814, 112
      %v4286 = vpop.permute.xlu0 %4285
      %4287 = vrot.lane.b32.xlu0 %v817, 112
      %v4288 = vpop.permute.xlu0 %4287
      %4289 = vrot.lane.b32.xlu0 %v818, 112
      %v4290 = vpop.permute.xlu0 %4289
      %4291 = vrot.lane.b32.xlu0 %v819, 112
      %v4292 = vpop.permute.xlu0 %4291
      %4293 = vrot.lane.b32.xlu0 %v822, 112
      %v4294 = vpop.permute.xlu0 %4293
      %4295 = vrot.lane.b32.xlu0 %v823, 112
      %v4296 = vpop.permute.xlu0 %4295
      %4297 = vrot.lane.b32.xlu0 %v824, 112
      %v4298 = vpop.permute.xlu0 %4297
      %4299 = vrot.lane.b32.xlu0 %v827, 112
      %v4300 = vpop.permute.xlu0 %4299
      %4301 = vrot.lane.b32.xlu0 %v828, 112
      %v4302 = vpop.permute.xlu0 %4301
      %4303 = vrot.lane.b32.xlu0 %v829, 112
      %v4304 = vpop.permute.xlu0 %4303
      %4305 = vrot.lane.b32.xlu0 %v832, 112
      %v4306 = vpop.permute.xlu0 %4305
      %4307 = vrot.lane.b32.xlu0 %v833, 112
      %v4308 = vpop.permute.xlu0 %4307
      %4309 = vrot.lane.b32.xlu0 %v834, 112
      %v4310 = vpop.permute.xlu0 %4309
      %4311 = vrot.lane.b32.xlu0 %v837, 112
      %v4312 = vpop.permute.xlu0 %4311
      %4313 = vrot.lane.b32.xlu0 %v838, 112
      %v4314 = vpop.permute.xlu0 %4313
      %4315 = vrot.lane.b32.xlu0 %v839, 112
      %v4316 = vpop.permute.xlu0 %4315
      %4317 = vrot.lane.b32.xlu0 %v842, 112
      %v4318 = vpop.permute.xlu0 %4317
      %4319 = vrot.lane.b32.xlu0 %v843, 112
      %v4320 = vpop.permute.xlu0 %4319
      %4321 = vrot.lane.b32.xlu0 %v844, 112
      %v4322 = vpop.permute.xlu0 %4321
      %4323 = vrot.lane.b32.xlu0 %v847, 112
      %v4324 = vpop.permute.xlu0 %4323
      %4325 = vrot.lane.b32.xlu0 %v848, 112
      %v4326 = vpop.permute.xlu0 %4325
      %4327 = vrot.lane.b32.xlu0 %v849, 112
      %v4328 = vpop.permute.xlu0 %4327
      %4329 = vrot.lane.b32.xlu0 %v852, 112
      %v4330 = vpop.permute.xlu0 %4329
      %4331 = vrot.lane.b32.xlu0 %v853, 112
      %v4332 = vpop.permute.xlu0 %4331
      %4381 = vst.msk [vmem:[%s349] sm:$0xe] %vm998, %v4238
      %4382 = vst.msk [vmem:[%s349 + $0x4] sm:$0xf] %vm334, %v4240
      %4383 = vst.msk [vmem:[%s349 + $0x8] sm:$0x1] %vm350, %v4242
      %4384 = vst.msk [vmem:[%s349 + $0xc] sm:$0xe] %vm998, %v4244
      %4385 = vst.msk [vmem:[%s349 + $0x10] sm:$0xf] %vm334, %v4246
      %4386 = vst.msk [vmem:[%s349 + $0x14] sm:$0x1] %vm350, %v4248
      %4387 = vst.msk [vmem:[%s349 + $0x18] sm:$0xe] %vm998, %v4250
      %4388 = vst.msk [vmem:[%s349 + $0x1c] sm:$0xf] %vm334, %v4252
      %4389 = vst.msk [vmem:[%s349 + $0x20] sm:$0x1] %vm350, %v4254
      %4390 = vst.msk [vmem:[%s349 + $0x24] sm:$0xe] %vm998, %v4256
      %4391 = vst.msk [vmem:[%s349 + $0x28] sm:$0xf] %vm334, %v4258
      %4392 = vst.msk [vmem:[%s349 + $0x2c] sm:$0x1] %vm350, %v4260
      %4393 = vst.msk [vmem:[%s349 + $0x30] sm:$0xe] %vm998, %v4262
      %4394 = vst.msk [vmem:[%s349 + $0x34] sm:$0xf] %vm334, %v4264
      %4395 = vst.msk [vmem:[%s349 + $0x38] sm:$0x1] %vm350, %v4266
      %4396 = vst.msk [vmem:[%s349 + $0x3c] sm:$0xe] %vm998, %v4268
      %4397 = vst.msk [vmem:[%s349 + $0x40] sm:$0xf] %vm334, %v4270
      %4398 = vst.msk [vmem:[%s349 + $0x44] sm:$0x1] %vm350, %v4272
      %4399 = vst.msk [vmem:[%s349 + $0x48] sm:$0xe] %vm998, %v4274
      %4400 = vst.msk [vmem:[%s349 + $0x4c] sm:$0xf] %vm334, %v4276
      %4401 = vst.msk [vmem:[%s349 + $0x50] sm:$0x1] %vm350, %v4278
      %4402 = vst.msk [vmem:[%s349 + $0x54] sm:$0xe] %vm998, %v4280
      %4403 = vst.msk [vmem:[%s349 + $0x58] sm:$0xf] %vm334, %v4282
      %4404 = vst.msk [vmem:[%s349 + $0x5c] sm:$0x1] %vm350, %v4284
      %4405 = vst.msk [vmem:[%s349 + $0x60] sm:$0xe] %vm998, %v4286
      %4406 = vst.msk [vmem:[%s349 + $0x64] sm:$0xf] %vm334, %v4288
      %4407 = vst.msk [vmem:[%s349 + $0x68] sm:$0x1] %vm350, %v4290
      %4408 = vst.msk [vmem:[%s349 + $0x6c] sm:$0xe] %vm998, %v4292
      %4409 = vst.msk [vmem:[%s349 + $0x70] sm:$0xf] %vm334, %v4294
      %4410 = vst.msk [vmem:[%s349 + $0x74] sm:$0x1] %vm350, %v4296
      %4411 = vst.msk [vmem:[%s349 + $0x78] sm:$0xe] %vm998, %v4298
      %4412 = vst.msk [vmem:[%s349 + $0x7c] sm:$0xf] %vm334, %v4300
      %4413 = vst.msk [vmem:[%s349 + $0x80] sm:$0x1] %vm350, %v4302
      %4414 = vst.msk [vmem:[%s349 + $0x84] sm:$0xe] %vm998, %v4304
      %4415 = vst.msk [vmem:[%s349 + $0x88] sm:$0xf] %vm334, %v4306
      %4416 = vst.msk [vmem:[%s349 + $0x8c] sm:$0x1] %vm350, %v4308
      %4417 = vst.msk [vmem:[%s349 + $0x90] sm:$0xe] %vm998, %v4310
      %4418 = vst.msk [vmem:[%s349 + $0x94] sm:$0xf] %vm334, %v4312
      %4419 = vst.msk [vmem:[%s349 + $0x98] sm:$0x1] %vm350, %v4314
      %4420 = vst.msk [vmem:[%s349 + $0x9c] sm:$0xe] %vm998, %v4316
      %4421 = vst.msk [vmem:[%s349 + $0xa0] sm:$0xf] %vm334, %v4318
      %4422 = vst.msk [vmem:[%s349 + $0xa4] sm:$0x1] %vm350, %v4320
      %4423 = vst.msk [vmem:[%s349 + $0xa8] sm:$0xe] %vm998, %v4322
      %4424 = vst.msk [vmem:[%s349 + $0xac] sm:$0xf] %vm334, %v4324
      %4425 = vst.msk [vmem:[%s349 + $0xb0] sm:$0x1] %vm350, %v4326
      %4426 = vst.msk [vmem:[%s349 + $0xb4] sm:$0xe] %vm998, %v4328
      %4427 = vst.msk [vmem:[%s349 + $0xb8] sm:$0xf] %vm334, %v4330
      %4428 = vst.msk [vmem:[%s349 + $0xbc] sm:$0x1] %vm350, %v4332
      %v4429 = vld [vmem:[%s6] sm:$0x1]
      %v4431 = vperm.slane %v4429, 0
      %v4433 = vld [vmem:[#allocation2] sm:$0xf]
      %v4434 = vld [vmem:[#allocation2 + $0x4] sm:$0xf]
      %v4435 = vld [vmem:[#allocation2 + $0x8] sm:$0x3]
      %v4436 = vld [vmem:[#allocation2 + $0xc] sm:$0xf]
      %v4437 = vld [vmem:[#allocation2 + $0x10] sm:$0xf]
      %v4438 = vld [vmem:[#allocation2 + $0x14] sm:$0x3]
      %v4439 = vld [vmem:[#allocation2 + $0x18] sm:$0xf]
      %v4440 = vld [vmem:[#allocation2 + $0x1c] sm:$0xf]
      %v4441 = vld [vmem:[#allocation2 + $0x20] sm:$0x3]
      %v4442 = vld [vmem:[#allocation2 + $0x24] sm:$0xf]
      %v4443 = vld [vmem:[#allocation2 + $0x28] sm:$0xf]
      %v4444 = vld [vmem:[#allocation2 + $0x2c] sm:$0x3]
      %v4445 = vld [vmem:[#allocation2 + $0x30] sm:$0xf]
      %v4446 = vld [vmem:[#allocation2 + $0x34] sm:$0xf]
      %v4447 = vld [vmem:[#allocation2 + $0x38] sm:$0x3]
      %v4448 = vld [vmem:[#allocation2 + $0x3c] sm:$0xf]
      %v4449 = vld [vmem:[#allocation2 + $0x40] sm:$0xf]
      %v4450 = vld [vmem:[#allocation2 + $0x44] sm:$0x3]
      %v4451 = vld [vmem:[#allocation2 + $0x48] sm:$0xf]
      %v4452 = vld [vmem:[#allocation2 + $0x4c] sm:$0xf]
      %v4453 = vld [vmem:[#allocation2 + $0x50] sm:$0x3]
      %v4454 = vld [vmem:[#allocation2 + $0x54] sm:$0xf]
      %v4455 = vld [vmem:[#allocation2 + $0x58] sm:$0xf]
      %v4456 = vld [vmem:[#allocation2 + $0x5c] sm:$0x3]
      %v4457 = vld [vmem:[#allocation2 + $0x60] sm:$0xf]
      %v4458 = vld [vmem:[#allocation2 + $0x64] sm:$0xf]
      %v4459 = vld [vmem:[#allocation2 + $0x68] sm:$0x3]
      %v4460 = vld [vmem:[#allocation2 + $0x6c] sm:$0xf]
      %v4461 = vld [vmem:[#allocation2 + $0x70] sm:$0xf]
      %v4462 = vld [vmem:[#allocation2 + $0x74] sm:$0x3]
      %v4463 = vld [vmem:[#allocation2 + $0x78] sm:$0xf]
      %v4464 = vld [vmem:[#allocation2 + $0x7c] sm:$0xf]
      %v4465 = vld [vmem:[#allocation2 + $0x80] sm:$0x3]
      %v4466 = vld [vmem:[#allocation2 + $0x84] sm:$0xf]
      %v4467 = vld [vmem:[#allocation2 + $0x88] sm:$0xf]
      %v4468 = vld [vmem:[#allocation2 + $0x8c] sm:$0x3]
      %v4469 = vld [vmem:[#allocation2 + $0x90] sm:$0xf]
      %v4470 = vld [vmem:[#allocation2 + $0x94] sm:$0xf]
      %v4471 = vld [vmem:[#allocation2 + $0x98] sm:$0x3]
      %v4472 = vld [vmem:[#allocation2 + $0x9c] sm:$0xf]
      %v4473 = vld [vmem:[#allocation2 + $0xa0] sm:$0xf]
      %v4474 = vld [vmem:[#allocation2 + $0xa4] sm:$0x3]
      %v4475 = vld [vmem:[#allocation2 + $0xa8] sm:$0xf]
      %v4476 = vld [vmem:[#allocation2 + $0xac] sm:$0xf]
      %v4477 = vld [vmem:[#allocation2 + $0xb0] sm:$0x3]
      %v4478 = vld [vmem:[#allocation2 + $0xb4] sm:$0xf]
      %v4479 = vld [vmem:[#allocation2 + $0xb8] sm:$0xf]
      %v4480 = vld [vmem:[#allocation2 + $0xbc] sm:$0x3]
      %v4513 = vunpack.c.l.b16 %v4433
      %v4514 = vunpack.c.l.b16 %v4434
      %v4515 = vunpack.c.l.b16 %v4436
      %v4516 = vunpack.c.l.b16 %v4437
      %v4517 = vunpack.c.l.b16 %v4439
      %v4518 = vunpack.c.l.b16 %v4440
      %v4519 = vunpack.c.l.b16 %v4442
      %v4520 = vunpack.c.l.b16 %v4443
      %v4521 = vunpack.c.l.b16 %v4445
      %v4522 = vunpack.c.l.b16 %v4446
      %v4523 = vunpack.c.l.b16 %v4448
      %v4524 = vunpack.c.l.b16 %v4449
      %v4525 = vunpack.c.l.b16 %v4451
      %v4526 = vunpack.c.l.b16 %v4452
      %v4527 = vunpack.c.l.b16 %v4454
      %v4528 = vunpack.c.l.b16 %v4455
      %v4529 = vunpack.c.l.b16 %v4457
      %v4530 = vunpack.c.l.b16 %v4458
      %v4531 = vunpack.c.l.b16 %v4460
      %v4532 = vunpack.c.l.b16 %v4461
      %v4533 = vunpack.c.l.b16 %v4463
      %v4534 = vunpack.c.l.b16 %v4464
      %v4535 = vunpack.c.l.b16 %v4466
      %v4536 = vunpack.c.l.b16 %v4467
      %v4537 = vunpack.c.l.b16 %v4469
      %v4538 = vunpack.c.l.b16 %v4470
      %v4539 = vunpack.c.l.b16 %v4472
      %v4540 = vunpack.c.l.b16 %v4473
      %v4541 = vunpack.c.l.b16 %v4475
      %v4542 = vunpack.c.l.b16 %v4476
      %v4543 = vunpack.c.l.b16 %v4478
      %v4544 = vunpack.c.l.b16 %v4479
      %v4545 = vpack.c.b16 %v4514, %v4513
      %v4546 = vpack.c.b16 %v4516, %v4515
      %v4547 = vpack.c.b16 %v4518, %v4517
      %v4548 = vpack.c.b16 %v4520, %v4519
      %v4549 = vpack.c.b16 %v4522, %v4521
      %v4550 = vpack.c.b16 %v4524, %v4523
      %v4551 = vpack.c.b16 %v4526, %v4525
      %v4552 = vpack.c.b16 %v4528, %v4527
      %v4553 = vpack.c.b16 %v4530, %v4529
      %v4554 = vpack.c.b16 %v4532, %v4531
      %v4555 = vpack.c.b16 %v4534, %v4533
      %v4556 = vpack.c.b16 %v4536, %v4535
      %v4557 = vpack.c.b16 %v4538, %v4537
      %v4558 = vpack.c.b16 %v4540, %v4539
      %v4559 = vpack.c.b16 %v4542, %v4541
      %v4560 = vpack.c.b16 %v4544, %v4543
      %v4577 = vunpack.c.l.b16 %v4435
      %v4578 = vunpack.c.l.b16 %v4438
      %v4579 = vunpack.c.l.b16 %v4441
      %v4580 = vunpack.c.l.b16 %v4444
      %v4581 = vunpack.c.l.b16 %v4447
      %v4582 = vunpack.c.l.b16 %v4450
      %v4583 = vunpack.c.l.b16 %v4453
      %v4584 = vunpack.c.l.b16 %v4456
      %v4585 = vunpack.c.l.b16 %v4459
      %v4586 = vunpack.c.l.b16 %v4462
      %v4587 = vunpack.c.l.b16 %v4465
      %v4588 = vunpack.c.l.b16 %v4468
      %v4589 = vunpack.c.l.b16 %v4471
      %v4590 = vunpack.c.l.b16 %v4474
      %v4591 = vunpack.c.l.b16 %v4477
      %v4592 = vunpack.c.l.b16 %v4480
      %v4593 = vpack.c.b16 %v4577, %v4577
      %v4594 = vpack.c.b16 %v4578, %v4578
      %v4595 = vpack.c.b16 %v4579, %v4579
      %v4596 = vpack.c.b16 %v4580, %v4580
      %v4597 = vpack.c.b16 %v4581, %v4581
      %v4598 = vpack.c.b16 %v4582, %v4582
      %v4599 = vpack.c.b16 %v4583, %v4583
      %v4600 = vpack.c.b16 %v4584, %v4584
      %v4601 = vpack.c.b16 %v4585, %v4585
      %v4602 = vpack.c.b16 %v4586, %v4586
      %v4603 = vpack.c.b16 %v4587, %v4587
      %v4604 = vpack.c.b16 %v4588, %v4588
      %v4605 = vpack.c.b16 %v4589, %v4589
      %v4606 = vpack.c.b16 %v4590, %v4590
      %v4607 = vpack.c.b16 %v4591, %v4591
      %v4608 = vpack.c.b16 %v4592, %v4592
      %v4610 = vshrl.u32 %v4545, 16
      %v4612 = vshll.u32 %v4545, 16
      %v4614 = vrot.slane %v4612, 1
      %v4615 = vor.u32 %v4610, %v4614
      %v4617 = vshll.u32 %v4593, 16
      %v4619 = vrot.slane %v4617, 1
      %v4620 = vsel %vm1228, %v4615, %v4619
      %v4622 = vshrl.u32 %v4546, 16
      %v4624 = vshll.u32 %v4546, 16
      %v4626 = vrot.slane %v4624, 1
      %v4627 = vor.u32 %v4622, %v4626
      %v4629 = vshll.u32 %v4594, 16
      %v4631 = vrot.slane %v4629, 1
      %v4632 = vsel %vm1228, %v4627, %v4631
      %v4634 = vshrl.u32 %v4547, 16
      %v4636 = vshll.u32 %v4547, 16
      %v4638 = vrot.slane %v4636, 1
      %v4639 = vor.u32 %v4634, %v4638
      %v4641 = vshll.u32 %v4595, 16
      %v4643 = vrot.slane %v4641, 1
      %v4644 = vsel %vm1228, %v4639, %v4643
      %v4646 = vshrl.u32 %v4548, 16
      %v4648 = vshll.u32 %v4548, 16
      %v4650 = vrot.slane %v4648, 1
      %v4651 = vor.u32 %v4646, %v4650
      %v4653 = vshll.u32 %v4596, 16
      %v4655 = vrot.slane %v4653, 1
      %v4656 = vsel %vm1228, %v4651, %v4655
      %v4658 = vshrl.u32 %v4549, 16
      %v4660 = vshll.u32 %v4549, 16
      %v4662 = vrot.slane %v4660, 1
      %v4663 = vor.u32 %v4658, %v4662
      %v4665 = vshll.u32 %v4597, 16
      %v4667 = vrot.slane %v4665, 1
      %v4668 = vsel %vm1228, %v4663, %v4667
      %v4670 = vshrl.u32 %v4550, 16
      %v4672 = vshll.u32 %v4550, 16
      %v4674 = vrot.slane %v4672, 1
      %v4675 = vor.u32 %v4670, %v4674
      %v4677 = vshll.u32 %v4598, 16
      %v4679 = vrot.slane %v4677, 1
      %v4680 = vsel %vm1228, %v4675, %v4679
      %v4682 = vshrl.u32 %v4551, 16
      %v4684 = vshll.u32 %v4551, 16
      %v4686 = vrot.slane %v4684, 1
      %v4687 = vor.u32 %v4682, %v4686
      %v4689 = vshll.u32 %v4599, 16
      %v4691 = vrot.slane %v4689, 1
      %v4692 = vsel %vm1228, %v4687, %v4691
      %v4694 = vshrl.u32 %v4552, 16
      %v4696 = vshll.u32 %v4552, 16
      %v4698 = vrot.slane %v4696, 1
      %v4699 = vor.u32 %v4694, %v4698
      %v4701 = vshll.u32 %v4600, 16
      %v4703 = vrot.slane %v4701, 1
      %v4704 = vsel %vm1228, %v4699, %v4703
      %v4706 = vshrl.u32 %v4553, 16
      %v4708 = vshll.u32 %v4553, 16
      %v4710 = vrot.slane %v4708, 1
      %v4711 = vor.u32 %v4706, %v4710
      %v4713 = vshll.u32 %v4601, 16
      %v4715 = vrot.slane %v4713, 1
      %v4716 = vsel %vm1228, %v4711, %v4715
      %v4718 = vshrl.u32 %v4554, 16
      %v4720 = vshll.u32 %v4554, 16
      %v4722 = vrot.slane %v4720, 1
      %v4723 = vor.u32 %v4718, %v4722
      %v4725 = vshll.u32 %v4602, 16
      %v4727 = vrot.slane %v4725, 1
      %v4728 = vsel %vm1228, %v4723, %v4727
      %v4730 = vshrl.u32 %v4555, 16
      %v4732 = vshll.u32 %v4555, 16
      %v4734 = vrot.slane %v4732, 1
      %v4735 = vor.u32 %v4730, %v4734
      %v4737 = vshll.u32 %v4603, 16
      %v4739 = vrot.slane %v4737, 1
      %v4740 = vsel %vm1228, %v4735, %v4739
      %v4742 = vshrl.u32 %v4556, 16
      %v4744 = vshll.u32 %v4556, 16
      %v4746 = vrot.slane %v4744, 1
      %v4747 = vor.u32 %v4742, %v4746
      %v4749 = vshll.u32 %v4604, 16
      %v4751 = vrot.slane %v4749, 1
      %v4752 = vsel %vm1228, %v4747, %v4751
      %v4754 = vshrl.u32 %v4557, 16
      %v4756 = vshll.u32 %v4557, 16
      %v4758 = vrot.slane %v4756, 1
      %v4759 = vor.u32 %v4754, %v4758
      %v4761 = vshll.u32 %v4605, 16
      %v4763 = vrot.slane %v4761, 1
      %v4764 = vsel %vm1228, %v4759, %v4763
      %v4766 = vshrl.u32 %v4558, 16
      %v4768 = vshll.u32 %v4558, 16
      %v4770 = vrot.slane %v4768, 1
      %v4771 = vor.u32 %v4766, %v4770
      %v4773 = vshll.u32 %v4606, 16
      %v4775 = vrot.slane %v4773, 1
      %v4776 = vsel %vm1228, %v4771, %v4775
      %v4778 = vshrl.u32 %v4559, 16
      %v4780 = vshll.u32 %v4559, 16
      %v4782 = vrot.slane %v4780, 1
      %v4783 = vor.u32 %v4778, %v4782
      %v4785 = vshll.u32 %v4607, 16
      %v4787 = vrot.slane %v4785, 1
      %v4788 = vsel %vm1228, %v4783, %v4787
      %v4790 = vshrl.u32 %v4560, 16
      %v4792 = vshll.u32 %v4560, 16
      %v4794 = vrot.slane %v4792, 1
      %v4795 = vor.u32 %v4790, %v4794
      %v4797 = vshll.u32 %v4608, 16
      %v4799 = vrot.slane %v4797, 1
      %v4800 = vsel %vm1228, %v4795, %v4799
      %4801 = vrot.lane.b32.xlu0 %v4620, 8
      %v4802 = vpop.permute.xlu0 %4801
      %4803 = vrot.lane.b32.xlu0 %v4632, 8
      %v4804 = vpop.permute.xlu0 %4803
      %4805 = vrot.lane.b32.xlu0 %v4644, 8
      %v4806 = vpop.permute.xlu0 %4805
      %4807 = vrot.lane.b32.xlu0 %v4656, 8
      %v4808 = vpop.permute.xlu0 %4807
      %4809 = vrot.lane.b32.xlu0 %v4668, 8
      %v4810 = vpop.permute.xlu0 %4809
      %4811 = vrot.lane.b32.xlu0 %v4680, 8
      %v4812 = vpop.permute.xlu0 %4811
      %4813 = vrot.lane.b32.xlu0 %v4692, 8
      %v4814 = vpop.permute.xlu0 %4813
      %4815 = vrot.lane.b32.xlu0 %v4704, 8
      %v4816 = vpop.permute.xlu0 %4815
      %4817 = vrot.lane.b32.xlu0 %v4716, 8
      %v4818 = vpop.permute.xlu0 %4817
      %4819 = vrot.lane.b32.xlu0 %v4728, 8
      %v4820 = vpop.permute.xlu0 %4819
      %4821 = vrot.lane.b32.xlu0 %v4740, 8
      %v4822 = vpop.permute.xlu0 %4821
      %4823 = vrot.lane.b32.xlu0 %v4752, 8
      %v4824 = vpop.permute.xlu0 %4823
      %4825 = vrot.lane.b32.xlu0 %v4764, 8
      %v4826 = vpop.permute.xlu0 %4825
      %4827 = vrot.lane.b32.xlu0 %v4776, 8
      %v4828 = vpop.permute.xlu0 %4827
      %4829 = vrot.lane.b32.xlu0 %v4788, 8
      %v4830 = vpop.permute.xlu0 %4829
      %4831 = vrot.lane.b32.xlu0 %v4800, 8
      %v4832 = vpop.permute.xlu0 %4831
      %v4833 = vrot.slane %v4545, 1
      %v4834 = vrot.slane %v4593, 1
      %v4835 = vsel %vm1517, %v4833, %v4834
      %v4836 = vrot.slane %v4546, 1
      %v4837 = vrot.slane %v4594, 1
      %v4838 = vsel %vm1517, %v4836, %v4837
      %v4839 = vrot.slane %v4547, 1
      %v4840 = vrot.slane %v4595, 1
      %v4841 = vsel %vm1517, %v4839, %v4840
      %v4842 = vrot.slane %v4548, 1
      %v4843 = vrot.slane %v4596, 1
      %v4844 = vsel %vm1517, %v4842, %v4843
      %v4845 = vrot.slane %v4549, 1
      %v4846 = vrot.slane %v4597, 1
      %v4847 = vsel %vm1517, %v4845, %v4846
      %v4848 = vrot.slane %v4550, 1
      %v4849 = vrot.slane %v4598, 1
      %v4850 = vsel %vm1517, %v4848, %v4849
      %v4851 = vrot.slane %v4551, 1
      %v4852 = vrot.slane %v4599, 1
      %v4853 = vsel %vm1517, %v4851, %v4852
      %v4854 = vrot.slane %v4552, 1
      %v4855 = vrot.slane %v4600, 1
      %v4856 = vsel %vm1517, %v4854, %v4855
      %v4857 = vrot.slane %v4553, 1
      %v4858 = vrot.slane %v4601, 1
      %v4859 = vsel %vm1517, %v4857, %v4858
      %v4860 = vrot.slane %v4554, 1
      %v4861 = vrot.slane %v4602, 1
      %v4862 = vsel %vm1517, %v4860, %v4861
      %v4863 = vrot.slane %v4555, 1
      %v4864 = vrot.slane %v4603, 1
      %v4865 = vsel %vm1517, %v4863, %v4864
      %v4866 = vrot.slane %v4556, 1
      %v4867 = vrot.slane %v4604, 1
      %v4868 = vsel %vm1517, %v4866, %v4867
      %v4869 = vrot.slane %v4557, 1
      %v4870 = vrot.slane %v4605, 1
      %v4871 = vsel %vm1517, %v4869, %v4870
      %v4872 = vrot.slane %v4558, 1
      %v4873 = vrot.slane %v4606, 1
      %v4874 = vsel %vm1517, %v4872, %v4873
      %v4875 = vrot.slane %v4559, 1
      %v4876 = vrot.slane %v4607, 1
      %v4877 = vsel %vm1517, %v4875, %v4876
      %v4878 = vrot.slane %v4560, 1
      %v4879 = vrot.slane %v4608, 1
      %v4880 = vsel %vm1517, %v4878, %v4879
      %4881 = vrot.lane.b32.xlu0 %v4835, 16
      %v4882 = vpop.permute.xlu0 %4881
      %4883 = vrot.lane.b32.xlu0 %v4838, 16
      %v4884 = vpop.permute.xlu0 %4883
      %4885 = vrot.lane.b32.xlu0 %v4841, 16
      %v4886 = vpop.permute.xlu0 %4885
      %4887 = vrot.lane.b32.xlu0 %v4844, 16
      %v4888 = vpop.permute.xlu0 %4887
      %4889 = vrot.lane.b32.xlu0 %v4847, 16
      %v4890 = vpop.permute.xlu0 %4889
      %4891 = vrot.lane.b32.xlu0 %v4850, 16
      %v4892 = vpop.permute.xlu0 %4891
      %4893 = vrot.lane.b32.xlu0 %v4853, 16
      %v4894 = vpop.permute.xlu0 %4893
      %4895 = vrot.lane.b32.xlu0 %v4856, 16
      %v4896 = vpop.permute.xlu0 %4895
      %4897 = vrot.lane.b32.xlu0 %v4859, 16
      %v4898 = vpop.permute.xlu0 %4897
      %4899 = vrot.lane.b32.xlu0 %v4862, 16
      %v4900 = vpop.permute.xlu0 %4899
      %4901 = vrot.lane.b32.xlu0 %v4865, 16
      %v4902 = vpop.permute.xlu0 %4901
      %4903 = vrot.lane.b32.xlu0 %v4868, 16
      %v4904 = vpop.permute.xlu0 %4903
      %4905 = vrot.lane.b32.xlu0 %v4871, 16
      %v4906 = vpop.permute.xlu0 %4905
      %4907 = vrot.lane.b32.xlu0 %v4874, 16
      %v4908 = vpop.permute.xlu0 %4907
      %4909 = vrot.lane.b32.xlu0 %v4877, 16
      %v4910 = vpop.permute.xlu0 %4909
      %4911 = vrot.lane.b32.xlu0 %v4880, 16
      %v4912 = vpop.permute.xlu0 %4911
      %vm4913 = vsmask.f32 6400
      %v4914 = vrot.slane %v4610, 1
      %v4915 = vrot.slane %v4612, 2
      %v4916 = vor.u32 %v4914, %v4915
      %v4917 = vshrl.u32 %v4593, 16
      %v4919 = vrot.slane %v4917, 1
      %v4920 = vrot.slane %v4617, 2
      %v4921 = vor.u32 %v4919, %v4920
      %v4922 = vsel %vm4913, %v4916, %v4921
      %v4923 = vrot.slane %v4622, 1
      %v4924 = vrot.slane %v4624, 2
      %v4925 = vor.u32 %v4923, %v4924
      %v4926 = vshrl.u32 %v4594, 16
      %v4928 = vrot.slane %v4926, 1
      %v4929 = vrot.slane %v4629, 2
      %v4930 = vor.u32 %v4928, %v4929
      %v4931 = vsel %vm4913, %v4925, %v4930
      %v4932 = vrot.slane %v4634, 1
      %v4933 = vrot.slane %v4636, 2
      %v4934 = vor.u32 %v4932, %v4933
      %v4935 = vshrl.u32 %v4595, 16
      %v4937 = vrot.slane %v4935, 1
      %v4938 = vrot.slane %v4641, 2
      %v4939 = vor.u32 %v4937, %v4938
      %v4940 = vsel %vm4913, %v4934, %v4939
      %v4941 = vrot.slane %v4646, 1
      %v4942 = vrot.slane %v4648, 2
      %v4943 = vor.u32 %v4941, %v4942
      %v4944 = vshrl.u32 %v4596, 16
      %v4946 = vrot.slane %v4944, 1
      %v4947 = vrot.slane %v4653, 2
      %v4948 = vor.u32 %v4946, %v4947
      %v4949 = vsel %vm4913, %v4943, %v4948
      %v4950 = vrot.slane %v4658, 1
      %v4951 = vrot.slane %v4660, 2
      %v4952 = vor.u32 %v4950, %v4951
      %v4953 = vshrl.u32 %v4597, 16
      %v4955 = vrot.slane %v4953, 1
      %v4956 = vrot.slane %v4665, 2
      %v4957 = vor.u32 %v4955, %v4956
      %v4958 = vsel %vm4913, %v4952, %v4957
      %v4959 = vrot.slane %v4670, 1
      %v4960 = vrot.slane %v4672, 2
      %v4961 = vor.u32 %v4959, %v4960
      %v4962 = vshrl.u32 %v4598, 16
      %v4964 = vrot.slane %v4962, 1
      %v4965 = vrot.slane %v4677, 2
      %v4966 = vor.u32 %v4964, %v4965
      %v4967 = vsel %vm4913, %v4961, %v4966
      %v4968 = vrot.slane %v4682, 1
      %v4969 = vrot.slane %v4684, 2
      %v4970 = vor.u32 %v4968, %v4969
      %v4971 = vshrl.u32 %v4599, 16
      %v4973 = vrot.slane %v4971, 1
      %v4974 = vrot.slane %v4689, 2
      %v4975 = vor.u32 %v4973, %v4974
      %v4976 = vsel %vm4913, %v4970, %v4975
      %v4977 = vrot.slane %v4694, 1
      %v4978 = vrot.slane %v4696, 2
      %v4979 = vor.u32 %v4977, %v4978
      %v4980 = vshrl.u32 %v4600, 16
      %v4982 = vrot.slane %v4980, 1
      %v4983 = vrot.slane %v4701, 2
      %v4984 = vor.u32 %v4982, %v4983
      %v4985 = vsel %vm4913, %v4979, %v4984
      %v4986 = vrot.slane %v4706, 1
      %v4987 = vrot.slane %v4708, 2
      %v4988 = vor.u32 %v4986, %v4987
      %v4989 = vshrl.u32 %v4601, 16
      %v4991 = vrot.slane %v4989, 1
      %v4992 = vrot.slane %v4713, 2
      %v4993 = vor.u32 %v4991, %v4992
      %v4994 = vsel %vm4913, %v4988, %v4993
      %v4995 = vrot.slane %v4718, 1
      %v4996 = vrot.slane %v4720, 2
      %v4997 = vor.u32 %v4995, %v4996
      %v4998 = vshrl.u32 %v4602, 16
      %v5000 = vrot.slane %v4998, 1
      %v5001 = vrot.slane %v4725, 2
      %v5002 = vor.u32 %v5000, %v5001
      %v5003 = vsel %vm4913, %v4997, %v5002
      %v5004 = vrot.slane %v4730, 1
      %v5005 = vrot.slane %v4732, 2
      %v5006 = vor.u32 %v5004, %v5005
      %v5007 = vshrl.u32 %v4603, 16
      %v5009 = vrot.slane %v5007, 1
      %v5010 = vrot.slane %v4737, 2
      %v5011 = vor.u32 %v5009, %v5010
      %v5012 = vsel %vm4913, %v5006, %v5011
      %v5013 = vrot.slane %v4742, 1
      %v5014 = vrot.slane %v4744, 2
      %v5015 = vor.u32 %v5013, %v5014
      %v5016 = vshrl.u32 %v4604, 16
      %v5018 = vrot.slane %v5016, 1
      %v5019 = vrot.slane %v4749, 2
      %v5020 = vor.u32 %v5018, %v5019
      %v5021 = vsel %vm4913, %v5015, %v5020
      %v5022 = vrot.slane %v4754, 1
      %v5023 = vrot.slane %v4756, 2
      %v5024 = vor.u32 %v5022, %v5023
      %v5025 = vshrl.u32 %v4605, 16
      %v5027 = vrot.slane %v5025, 1
      %v5028 = vrot.slane %v4761, 2
      %v5029 = vor.u32 %v5027, %v5028
      %v5030 = vsel %vm4913, %v5024, %v5029
      %v5031 = vrot.slane %v4766, 1
      %v5032 = vrot.slane %v4768, 2
      %v5033 = vor.u32 %v5031, %v5032
      %v5034 = vshrl.u32 %v4606, 16
      %v5036 = vrot.slane %v5034, 1
      %v5037 = vrot.slane %v4773, 2
      %v5038 = vor.u32 %v5036, %v5037
      %v5039 = vsel %vm4913, %v5033, %v5038
      %v5040 = vrot.slane %v4778, 1
      %v5041 = vrot.slane %v4780, 2
      %v5042 = vor.u32 %v5040, %v5041
      %v5043 = vshrl.u32 %v4607, 16
      %v5045 = vrot.slane %v5043, 1
      %v5046 = vrot.slane %v4785, 2
      %v5047 = vor.u32 %v5045, %v5046
      %v5048 = vsel %vm4913, %v5042, %v5047
      %v5049 = vrot.slane %v4790, 1
      %v5050 = vrot.slane %v4792, 2
      %v5051 = vor.u32 %v5049, %v5050
      %v5052 = vshrl.u32 %v4608, 16
      %v5054 = vrot.slane %v5052, 1
      %v5055 = vrot.slane %v4797, 2
      %v5056 = vor.u32 %v5054, %v5055
      %v5057 = vsel %vm4913, %v5051, %v5056
      %5058 = vrot.lane.b32.xlu0 %v4922, 24
      %v5059 = vpop.permute.xlu0 %5058
      %5060 = vrot.lane.b32.xlu0 %v4931, 24
      %v5061 = vpop.permute.xlu0 %5060
      %5062 = vrot.lane.b32.xlu0 %v4940, 24
      %v5063 = vpop.permute.xlu0 %5062
      %5064 = vrot.lane.b32.xlu0 %v4949, 24
      %v5065 = vpop.permute.xlu0 %5064
      %5066 = vrot.lane.b32.xlu0 %v4958, 24
      %v5067 = vpop.permute.xlu0 %5066
      %5068 = vrot.lane.b32.xlu0 %v4967, 24
      %v5069 = vpop.permute.xlu0 %5068
      %5070 = vrot.lane.b32.xlu0 %v4976, 24
      %v5071 = vpop.permute.xlu0 %5070
      %5072 = vrot.lane.b32.xlu0 %v4985, 24
      %v5073 = vpop.permute.xlu0 %5072
      %5074 = vrot.lane.b32.xlu0 %v4994, 24
      %v5075 = vpop.permute.xlu0 %5074
      %5076 = vrot.lane.b32.xlu0 %v5003, 24
      %v5077 = vpop.permute.xlu0 %5076
      %5078 = vrot.lane.b32.xlu0 %v5012, 24
      %v5079 = vpop.permute.xlu0 %5078
      %5080 = vrot.lane.b32.xlu0 %v5021, 24
      %v5081 = vpop.permute.xlu0 %5080
      %5082 = vrot.lane.b32.xlu0 %v5030, 24
      %v5083 = vpop.permute.xlu0 %5082
      %5084 = vrot.lane.b32.xlu0 %v5039, 24
      %v5085 = vpop.permute.xlu0 %5084
      %5086 = vrot.lane.b32.xlu0 %v5048, 24
      %v5087 = vpop.permute.xlu0 %5086
      %5088 = vrot.lane.b32.xlu0 %v5057, 24
      %v5089 = vpop.permute.xlu0 %5088
      %vm5090 = vcmask 1045504
      %v5091 = vrot.slane %v4545, 2
      %v5092 = vrot.slane %v4593, 2
      %v5093 = vsel %vm5090, %v5091, %v5092
      %v5094 = vrot.slane %v4546, 2
      %v5095 = vrot.slane %v4594, 2
      %v5096 = vsel %vm5090, %v5094, %v5095
      %v5097 = vrot.slane %v4547, 2
      %v5098 = vrot.slane %v4595, 2
      %v5099 = vsel %vm5090, %v5097, %v5098
      %v5100 = vrot.slane %v4548, 2
      %v5101 = vrot.slane %v4596, 2
      %v5102 = vsel %vm5090, %v5100, %v5101
      %v5103 = vrot.slane %v4549, 2
      %v5104 = vrot.slane %v4597, 2
      %v5105 = vsel %vm5090, %v5103, %v5104
      %v5106 = vrot.slane %v4550, 2
      %v5107 = vrot.slane %v4598, 2
      %v5108 = vsel %vm5090, %v5106, %v5107
      %v5109 = vrot.slane %v4551, 2
      %v5110 = vrot.slane %v4599, 2
      %v5111 = vsel %vm5090, %v5109, %v5110
      %v5112 = vrot.slane %v4552, 2
      %v5113 = vrot.slane %v4600, 2
      %v5114 = vsel %vm5090, %v5112, %v5113
      %v5115 = vrot.slane %v4553, 2
      %v5116 = vrot.slane %v4601, 2
      %v5117 = vsel %vm5090, %v5115, %v5116
      %v5118 = vrot.slane %v4554, 2
      %v5119 = vrot.slane %v4602, 2
      %v5120 = vsel %vm5090, %v5118, %v5119
      %v5121 = vrot.slane %v4555, 2
      %v5122 = vrot.slane %v4603, 2
      %v5123 = vsel %vm5090, %v5121, %v5122
      %v5124 = vrot.slane %v4556, 2
      %v5125 = vrot.slane %v4604, 2
      %v5126 = vsel %vm5090, %v5124, %v5125
      %v5127 = vrot.slane %v4557, 2
      %v5128 = vrot.slane %v4605, 2
      %v5129 = vsel %vm5090, %v5127, %v5128
      %v5130 = vrot.slane %v4558, 2
      %v5131 = vrot.slane %v4606, 2
      %v5132 = vsel %vm5090, %v5130, %v5131
      %v5133 = vrot.slane %v4559, 2
      %v5134 = vrot.slane %v4607, 2
      %v5135 = vsel %vm5090, %v5133, %v5134
      %v5136 = vrot.slane %v4560, 2
      %v5137 = vrot.slane %v4608, 2
      %v5138 = vsel %vm5090, %v5136, %v5137
      %5139 = vrot.lane.b32.xlu0 %v5093, 32
      %v5140 = vpop.permute.xlu0 %5139
      %5141 = vrot.lane.b32.xlu0 %v5096, 32
      %v5142 = vpop.permute.xlu0 %5141
      %5143 = vrot.lane.b32.xlu0 %v5099, 32
      %v5144 = vpop.permute.xlu0 %5143
      %5145 = vrot.lane.b32.xlu0 %v5102, 32
      %v5146 = vpop.permute.xlu0 %5145
      %5147 = vrot.lane.b32.xlu0 %v5105, 32
      %v5148 = vpop.permute.xlu0 %5147
      %5149 = vrot.lane.b32.xlu0 %v5108, 32
      %v5150 = vpop.permute.xlu0 %5149
      %5151 = vrot.lane.b32.xlu0 %v5111, 32
      %v5152 = vpop.permute.xlu0 %5151
      %5153 = vrot.lane.b32.xlu0 %v5114, 32
      %v5154 = vpop.permute.xlu0 %5153
      %5155 = vrot.lane.b32.xlu0 %v5117, 32
      %v5156 = vpop.permute.xlu0 %5155
      %5157 = vrot.lane.b32.xlu0 %v5120, 32
      %v5158 = vpop.permute.xlu0 %5157
      %5159 = vrot.lane.b32.xlu0 %v5123, 32
      %v5160 = vpop.permute.xlu0 %5159
      %5161 = vrot.lane.b32.xlu0 %v5126, 32
      %v5162 = vpop.permute.xlu0 %5161
      %5163 = vrot.lane.b32.xlu0 %v5129, 32
      %v5164 = vpop.permute.xlu0 %5163
      %5165 = vrot.lane.b32.xlu0 %v5132, 32
      %v5166 = vpop.permute.xlu0 %5165
      %5167 = vrot.lane.b32.xlu0 %v5135, 32
      %v5168 = vpop.permute.xlu0 %5167
      %5169 = vrot.lane.b32.xlu0 %v5138, 32
      %v5170 = vpop.permute.xlu0 %5169
      %v5172 = vsel %vm1630, %v4545, %v4802
      %v5174 = vsel %vm1630, %v4546, %v4804
      %v5176 = vsel %vm1630, %v4547, %v4806
      %v5178 = vsel %vm1630, %v4548, %v4808
      %v5180 = vsel %vm1630, %v4549, %v4810
      %v5182 = vsel %vm1630, %v4550, %v4812
      %v5184 = vsel %vm1630, %v4551, %v4814
      %v5186 = vsel %vm1630, %v4552, %v4816
      %v5188 = vsel %vm1630, %v4553, %v4818
      %v5190 = vsel %vm1630, %v4554, %v4820
      %v5192 = vsel %vm1630, %v4555, %v4822
      %v5194 = vsel %vm1630, %v4556, %v4824
      %v5196 = vsel %vm1630, %v4557, %v4826
      %v5198 = vsel %vm1630, %v4558, %v4828
      %v5200 = vsel %vm1630, %v4559, %v4830
      %v5202 = vsel %vm1630, %v4560, %v4832
      %v5204 = vsel %vm1695, %v5172, %v4882
      %v5206 = vsel %vm1695, %v5174, %v4884
      %v5208 = vsel %vm1695, %v5176, %v4886
      %v5210 = vsel %vm1695, %v5178, %v4888
      %v5212 = vsel %vm1695, %v5180, %v4890
      %v5214 = vsel %vm1695, %v5182, %v4892
      %v5216 = vsel %vm1695, %v5184, %v4894
      %v5218 = vsel %vm1695, %v5186, %v4896
      %v5220 = vsel %vm1695, %v5188, %v4898
      %v5222 = vsel %vm1695, %v5190, %v4900
      %v5224 = vsel %vm1695, %v5192, %v4902
      %v5226 = vsel %vm1695, %v5194, %v4904
      %v5228 = vsel %vm1695, %v5196, %v4906
      %v5230 = vsel %vm1695, %v5198, %v4908
      %v5232 = vsel %vm1695, %v5200, %v4910
      %v5234 = vsel %vm1695, %v5202, %v4912
      %v5236 = vsel %vm1932, %v5204, %v5059
      %v5238 = vsel %vm1932, %v5206, %v5061
      %v5240 = vsel %vm1932, %v5208, %v5063
      %v5242 = vsel %vm1932, %v5210, %v5065
      %v5244 = vsel %vm1932, %v5212, %v5067
      %v5246 = vsel %vm1932, %v5214, %v5069
      %v5248 = vsel %vm1932, %v5216, %v5071
      %v5250 = vsel %vm1932, %v5218, %v5073
      %v5252 = vsel %vm1932, %v5220, %v5075
      %v5254 = vsel %vm1932, %v5222, %v5077
      %v5256 = vsel %vm1932, %v5224, %v5079
      %v5258 = vsel %vm1932, %v5226, %v5081
      %v5260 = vsel %vm1932, %v5228, %v5083
      %v5262 = vsel %vm1932, %v5230, %v5085
      %v5264 = vsel %vm1932, %v5232, %v5087
      %v5266 = vsel %vm1932, %v5234, %v5089
      %vm5267 = vcmask 261120
      %v5269 = vsel %vm5267, %v5236, %v5140
      %v5271 = vsel %vm5267, %v5238, %v5142
      %v5273 = vsel %vm5267, %v5240, %v5144
      %v5275 = vsel %vm5267, %v5242, %v5146
      %v5277 = vsel %vm5267, %v5244, %v5148
      %v5279 = vsel %vm5267, %v5246, %v5150
      %v5281 = vsel %vm5267, %v5248, %v5152
      %v5283 = vsel %vm5267, %v5250, %v5154
      %v5285 = vsel %vm5267, %v5252, %v5156
      %v5287 = vsel %vm5267, %v5254, %v5158
      %v5289 = vsel %vm5267, %v5256, %v5160
      %v5291 = vsel %vm5267, %v5258, %v5162
      %v5293 = vsel %vm5267, %v5260, %v5164
      %v5295 = vsel %vm5267, %v5262, %v5166
      %v5297 = vsel %vm5267, %v5264, %v5168
      %v5299 = vsel %vm5267, %v5266, %v5170
      %v5300 = vld [vmem:[%s5] sm:$0xf]
      %v5301 = vld [vmem:[%s5 + $0x4] sm:$0xf]
      %v5302 = vld [vmem:[%s5 + $0x8] sm:$0xf]
      %v5303 = vld [vmem:[%s5 + $0xc] sm:$0xf]
      %v5304 = vld [vmem:[%s5 + $0x10] sm:$0xf]
      %v5310 = vunpack.c.l.b16 %v5300
      %v5311 = vunpack.c.l.b16 %v5301
      %v5312 = vunpack.c.l.b16 %v5302
      %v5313 = vunpack.c.l.b16 %v5303
      %v5314 = vunpack.c.l.b16 %v5304
      %v5315 = vpack.c.b16 %v5311, %v5310
      %v5316 = vpack.c.b16 %v5313, %v5312
      %v5317 = vpack.c.b16 %v5314, %v5314
      %vm5320 = vcmask 326656
      %v5321 = vsel %vm5320, %v5269, 0
      %v5323 = vsel %vm5320, %v5271, 0
      %v5325 = vsel %vm5320, %v5273, 0
      %v5327 = vsel %vm5320, %v5275, 0
      %v5329 = vsel %vm5320, %v5277, 0
      %v5331 = vsel %vm5320, %v5279, 0
      %v5333 = vsel %vm5320, %v5281, 0
      %v5335 = vsel %vm5320, %v5283, 0
      %v5337 = vsel %vm5320, %v5285, 0
      %v5339 = vsel %vm5320, %v5287, 0
      %v5341 = vsel %vm5320, %v5289, 0
      %v5343 = vsel %vm5320, %v5291, 0
      %v5345 = vsel %vm5320, %v5293, 0
      %v5347 = vsel %vm5320, %v5295, 0
      %v5349 = vsel %vm5320, %v5297, 0
      %v5351 = vsel %vm5320, %v5299, 0
      %v5354 = vsel %vm1981, %v5317, 0
      %5356 = vmatpush.bf16.msra.mxu0 0
      %5357 = vmatpush.bf16.msra.mxu0 0
      %5358 = vmatpush.bf16.msra.mxu0 0
      %5359 = vmatpush.bf16.msra.mxu0 0
      %5360 = vmatpush.bf16.msra.mxu0 0
      %5361 = vmatpush.bf16.msra.mxu0 %v5354
      %5362 = vmatpush.bf16.msra.mxu0 %v5316
      %5363 = vmatpush.bf16.msra.mxu0 %v5315
      %5364 = vmatmul.bf16.gmra.mxu0 %v5321
      %v5365 = vpop.f32.mrf.mxu0
      %v5366 = vadd.f32 0.0, %v5365
      %v5367 = vpop.f32.mrf.mxu0
      %v5368 = vadd.f32 0.0, %v5367
      %5369 = vmatmul.bf16.gmra.mxu0 %v5323
      %v5370 = vpop.f32.mrf.mxu0
      %v5371 = vadd.f32 0.0, %v5370
      %v5372 = vpop.f32.mrf.mxu0
      %v5373 = vadd.f32 0.0, %v5372
      %5374 = vmatmul.bf16.gmra.mxu0 %v5325
      %v5375 = vpop.f32.mrf.mxu0
      %v5376 = vadd.f32 0.0, %v5375
      %v5377 = vpop.f32.mrf.mxu0
      %v5378 = vadd.f32 0.0, %v5377
      %5379 = vmatmul.bf16.gmra.mxu0 %v5327
      %v5380 = vpop.f32.mrf.mxu0
      %v5381 = vadd.f32 0.0, %v5380
      %v5382 = vpop.f32.mrf.mxu0
      %v5383 = vadd.f32 0.0, %v5382
      %5384 = vmatmul.bf16.gmra.mxu0 %v5329
      %v5385 = vpop.f32.mrf.mxu0
      %v5386 = vadd.f32 0.0, %v5385
      %v5387 = vpop.f32.mrf.mxu0
      %v5388 = vadd.f32 0.0, %v5387
      %5389 = vmatmul.bf16.gmra.mxu0 %v5331
      %v5390 = vpop.f32.mrf.mxu0
      %v5391 = vadd.f32 0.0, %v5390
      %v5392 = vpop.f32.mrf.mxu0
      %v5393 = vadd.f32 0.0, %v5392
      %5394 = vmatmul.bf16.gmra.mxu0 %v5333
      %v5395 = vpop.f32.mrf.mxu0
      %v5396 = vadd.f32 0.0, %v5395
      %v5397 = vpop.f32.mrf.mxu0
      %v5398 = vadd.f32 0.0, %v5397
      %5399 = vmatmul.bf16.gmra.mxu0 %v5335
      %v5400 = vpop.f32.mrf.mxu0
      %v5401 = vadd.f32 0.0, %v5400
      %v5402 = vpop.f32.mrf.mxu0
      %v5403 = vadd.f32 0.0, %v5402
      %5404 = vmatmul.bf16.gmra.mxu0 %v5337
      %v5405 = vpop.f32.mrf.mxu0
      %v5406 = vadd.f32 0.0, %v5405
      %v5407 = vpop.f32.mrf.mxu0
      %v5408 = vadd.f32 0.0, %v5407
      %5409 = vmatmul.bf16.gmra.mxu0 %v5339
      %v5410 = vpop.f32.mrf.mxu0
      %v5411 = vadd.f32 0.0, %v5410
      %v5412 = vpop.f32.mrf.mxu0
      %v5413 = vadd.f32 0.0, %v5412
      %5414 = vmatmul.bf16.gmra.mxu0 %v5341
      %v5415 = vpop.f32.mrf.mxu0
      %v5416 = vadd.f32 0.0, %v5415
      %v5417 = vpop.f32.mrf.mxu0
      %v5418 = vadd.f32 0.0, %v5417
      %5419 = vmatmul.bf16.gmra.mxu0 %v5343
      %v5420 = vpop.f32.mrf.mxu0
      %v5421 = vadd.f32 0.0, %v5420
      %v5422 = vpop.f32.mrf.mxu0
      %v5423 = vadd.f32 0.0, %v5422
      %5424 = vmatmul.bf16.gmra.mxu0 %v5345
      %v5425 = vpop.f32.mrf.mxu0
      %v5426 = vadd.f32 0.0, %v5425
      %v5427 = vpop.f32.mrf.mxu0
      %v5428 = vadd.f32 0.0, %v5427
      %5429 = vmatmul.bf16.gmra.mxu0 %v5347
      %v5430 = vpop.f32.mrf.mxu0
      %v5431 = vadd.f32 0.0, %v5430
      %v5432 = vpop.f32.mrf.mxu0
      %v5433 = vadd.f32 0.0, %v5432
      %5434 = vmatmul.bf16.gmra.mxu0 %v5349
      %v5435 = vpop.f32.mrf.mxu0
      %v5436 = vadd.f32 0.0, %v5435
      %v5437 = vpop.f32.mrf.mxu0
      %v5438 = vadd.f32 0.0, %v5437
      %5439 = vmatmul.bf16.gmra.mxu0 %v5351
      %v5440 = vpop.f32.mrf.mxu0
      %v5441 = vadd.f32 0.0, %v5440
      %v5442 = vpop.f32.mrf.mxu0
      %v5443 = vadd.f32 0.0, %v5442
      %5444 = vdwg.mxu0
      %v5445 = vadd.f32 %v4431, %v5366
      %v5446 = vadd.f32 %v4431, %v5368
      %v5447 = vadd.f32 %v4431, %v5371
      %v5448 = vadd.f32 %v4431, %v5373
      %v5449 = vadd.f32 %v4431, %v5376
      %v5450 = vadd.f32 %v4431, %v5378
      %v5451 = vadd.f32 %v4431, %v5381
      %v5452 = vadd.f32 %v4431, %v5383
      %v5453 = vadd.f32 %v4431, %v5386
      %v5454 = vadd.f32 %v4431, %v5388
      %v5455 = vadd.f32 %v4431, %v5391
      %v5456 = vadd.f32 %v4431, %v5393
      %v5457 = vadd.f32 %v4431, %v5396
      %v5458 = vadd.f32 %v4431, %v5398
      %v5459 = vadd.f32 %v4431, %v5401
      %v5460 = vadd.f32 %v4431, %v5403
      %v5461 = vadd.f32 %v4431, %v5406
      %v5462 = vadd.f32 %v4431, %v5408
      %v5463 = vadd.f32 %v4431, %v5411
      %v5464 = vadd.f32 %v4431, %v5413
      %v5465 = vadd.f32 %v4431, %v5416
      %v5466 = vadd.f32 %v4431, %v5418
      %v5467 = vadd.f32 %v4431, %v5421
      %v5468 = vadd.f32 %v4431, %v5423
      %v5469 = vadd.f32 %v4431, %v5426
      %v5470 = vadd.f32 %v4431, %v5428
      %v5471 = vadd.f32 %v4431, %v5431
      %v5472 = vadd.f32 %v4431, %v5433
      %v5473 = vadd.f32 %v4431, %v5436
      %v5474 = vadd.f32 %v4431, %v5438
      %v5475 = vadd.f32 %v4431, %v5441
      %v5476 = vadd.f32 %v4431, %v5443
      %v5477 = vld [vmem:[%s1051] sm:$0xf]
      %v5478 = vld [vmem:[%s1051 + $0x4] sm:$0xf]
      %v5479 = vld [vmem:[%s1051 + $0x8] sm:$0x3]
      %v5480 = vld [vmem:[%s1051 + $0xc] sm:$0xf]
      %v5481 = vld [vmem:[%s1051 + $0x10] sm:$0xf]
      %v5482 = vld [vmem:[%s1051 + $0x14] sm:$0x3]
      %v5483 = vld [vmem:[%s1051 + $0x18] sm:$0xf]
      %v5484 = vld [vmem:[%s1051 + $0x1c] sm:$0xf]
      %v5485 = vld [vmem:[%s1051 + $0x20] sm:$0x3]
      %v5486 = vld [vmem:[%s1051 + $0x24] sm:$0xf]
      %v5487 = vld [vmem:[%s1051 + $0x28] sm:$0xf]
      %v5488 = vld [vmem:[%s1051 + $0x2c] sm:$0x3]
      %v5489 = vld [vmem:[%s1051 + $0x30] sm:$0xf]
      %v5490 = vld [vmem:[%s1051 + $0x34] sm:$0xf]
      %v5491 = vld [vmem:[%s1051 + $0x38] sm:$0x3]
      %v5492 = vld [vmem:[%s1051 + $0x3c] sm:$0xf]
      %v5493 = vld [vmem:[%s1051 + $0x40] sm:$0xf]
      %v5494 = vld [vmem:[%s1051 + $0x44] sm:$0x3]
      %v5495 = vld [vmem:[%s1051 + $0x48] sm:$0xf]
      %v5496 = vld [vmem:[%s1051 + $0x4c] sm:$0xf]
      %v5497 = vld [vmem:[%s1051 + $0x50] sm:$0x3]
      %v5498 = vld [vmem:[%s1051 + $0x54] sm:$0xf]
      %v5499 = vld [vmem:[%s1051 + $0x58] sm:$0xf]
      %v5500 = vld [vmem:[%s1051 + $0x5c] sm:$0x3]
      %v5501 = vld [vmem:[%s1051 + $0x60] sm:$0xf]
      %v5502 = vld [vmem:[%s1051 + $0x64] sm:$0xf]
      %v5503 = vld [vmem:[%s1051 + $0x68] sm:$0x3]
      %v5504 = vld [vmem:[%s1051 + $0x6c] sm:$0xf]
      %v5505 = vld [vmem:[%s1051 + $0x70] sm:$0xf]
      %v5506 = vld [vmem:[%s1051 + $0x74] sm:$0x3]
      %v5507 = vld [vmem:[%s1051 + $0x78] sm:$0xf]
      %v5508 = vld [vmem:[%s1051 + $0x7c] sm:$0xf]
      %v5509 = vld [vmem:[%s1051 + $0x80] sm:$0x3]
      %v5510 = vld [vmem:[%s1051 + $0x84] sm:$0xf]
      %v5511 = vld [vmem:[%s1051 + $0x88] sm:$0xf]
      %v5512 = vld [vmem:[%s1051 + $0x8c] sm:$0x3]
      %v5513 = vld [vmem:[%s1051 + $0x90] sm:$0xf]
      %v5514 = vld [vmem:[%s1051 + $0x94] sm:$0xf]
      %v5515 = vld [vmem:[%s1051 + $0x98] sm:$0x3]
      %v5516 = vld [vmem:[%s1051 + $0x9c] sm:$0xf]
      %v5517 = vld [vmem:[%s1051 + $0xa0] sm:$0xf]
      %v5518 = vld [vmem:[%s1051 + $0xa4] sm:$0x3]
      %v5519 = vld [vmem:[%s1051 + $0xa8] sm:$0xf]
      %v5520 = vld [vmem:[%s1051 + $0xac] sm:$0xf]
      %v5521 = vld [vmem:[%s1051 + $0xb0] sm:$0x3]
      %v5522 = vld [vmem:[%s1051 + $0xb4] sm:$0xf]
      %v5523 = vld [vmem:[%s1051 + $0xb8] sm:$0xf]
      %v5524 = vld [vmem:[%s1051 + $0xbc] sm:$0x3]
      %v5557 = vunpack.c.l.b16 %v5477
      %v5558 = vunpack.c.l.b16 %v5478
      %v5559 = vunpack.c.l.b16 %v5480
      %v5560 = vunpack.c.l.b16 %v5481
      %v5561 = vunpack.c.l.b16 %v5483
      %v5562 = vunpack.c.l.b16 %v5484
      %v5563 = vunpack.c.l.b16 %v5486
      %v5564 = vunpack.c.l.b16 %v5487
      %v5565 = vunpack.c.l.b16 %v5489
      %v5566 = vunpack.c.l.b16 %v5490
      %v5567 = vunpack.c.l.b16 %v5492
      %v5568 = vunpack.c.l.b16 %v5493
      %v5569 = vunpack.c.l.b16 %v5495
      %v5570 = vunpack.c.l.b16 %v5496
      %v5571 = vunpack.c.l.b16 %v5498
      %v5572 = vunpack.c.l.b16 %v5499
      %v5573 = vunpack.c.l.b16 %v5501
      %v5574 = vunpack.c.l.b16 %v5502
      %v5575 = vunpack.c.l.b16 %v5504
      %v5576 = vunpack.c.l.b16 %v5505
      %v5577 = vunpack.c.l.b16 %v5507
      %v5578 = vunpack.c.l.b16 %v5508
      %v5579 = vunpack.c.l.b16 %v5510
      %v5580 = vunpack.c.l.b16 %v5511
      %v5581 = vunpack.c.l.b16 %v5513
      %v5582 = vunpack.c.l.b16 %v5514
      %v5583 = vunpack.c.l.b16 %v5516
      %v5584 = vunpack.c.l.b16 %v5517
      %v5585 = vunpack.c.l.b16 %v5519
      %v5586 = vunpack.c.l.b16 %v5520
      %v5587 = vunpack.c.l.b16 %v5522
      %v5588 = vunpack.c.l.b16 %v5523
      %v5589 = vpack.c.b16 %v5558, %v5557
      %v5590 = vpack.c.b16 %v5560, %v5559
      %v5591 = vpack.c.b16 %v5562, %v5561
      %v5592 = vpack.c.b16 %v5564, %v5563
      %v5593 = vpack.c.b16 %v5566, %v5565
      %v5594 = vpack.c.b16 %v5568, %v5567
      %v5595 = vpack.c.b16 %v5570, %v5569
      %v5596 = vpack.c.b16 %v5572, %v5571
      %v5597 = vpack.c.b16 %v5574, %v5573
      %v5598 = vpack.c.b16 %v5576, %v5575
      %v5599 = vpack.c.b16 %v5578, %v5577
      %v5600 = vpack.c.b16 %v5580, %v5579
      %v5601 = vpack.c.b16 %v5582, %v5581
      %v5602 = vpack.c.b16 %v5584, %v5583
      %v5603 = vpack.c.b16 %v5586, %v5585
      %v5604 = vpack.c.b16 %v5588, %v5587
      %v5621 = vunpack.c.l.b16 %v5479
      %v5622 = vunpack.c.l.b16 %v5482
      %v5623 = vunpack.c.l.b16 %v5485
      %v5624 = vunpack.c.l.b16 %v5488
      %v5625 = vunpack.c.l.b16 %v5491
      %v5626 = vunpack.c.l.b16 %v5494
      %v5627 = vunpack.c.l.b16 %v5497
      %v5628 = vunpack.c.l.b16 %v5500
      %v5629 = vunpack.c.l.b16 %v5503
      %v5630 = vunpack.c.l.b16 %v5506
      %v5631 = vunpack.c.l.b16 %v5509
      %v5632 = vunpack.c.l.b16 %v5512
      %v5633 = vunpack.c.l.b16 %v5515
      %v5634 = vunpack.c.l.b16 %v5518
      %v5635 = vunpack.c.l.b16 %v5521
      %v5636 = vunpack.c.l.b16 %v5524
      %v5637 = vpack.c.b16 %v5621, %v5621
      %v5638 = vpack.c.b16 %v5622, %v5622
      %v5639 = vpack.c.b16 %v5623, %v5623
      %v5640 = vpack.c.b16 %v5624, %v5624
      %v5641 = vpack.c.b16 %v5625, %v5625
      %v5642 = vpack.c.b16 %v5626, %v5626
      %v5643 = vpack.c.b16 %v5627, %v5627
      %v5644 = vpack.c.b16 %v5628, %v5628
      %v5645 = vpack.c.b16 %v5629, %v5629
      %v5646 = vpack.c.b16 %v5630, %v5630
      %v5647 = vpack.c.b16 %v5631, %v5631
      %v5648 = vpack.c.b16 %v5632, %v5632
      %v5649 = vpack.c.b16 %v5633, %v5633
      %v5650 = vpack.c.b16 %v5634, %v5634
      %v5651 = vpack.c.b16 %v5635, %v5635
      %v5652 = vpack.c.b16 %v5636, %v5636
      %v5654 = vshrl.u32 %v5589, 16
      %v5656 = vshll.u32 %v5589, 16
      %v5658 = vrot.slane %v5656, 1
      %v5659 = vor.u32 %v5654, %v5658
      %v5661 = vshll.u32 %v5637, 16
      %v5663 = vrot.slane %v5661, 1
      %v5664 = vsel %vm1228, %v5659, %v5663
      %v5666 = vshrl.u32 %v5590, 16
      %v5668 = vshll.u32 %v5590, 16
      %v5670 = vrot.slane %v5668, 1
      %v5671 = vor.u32 %v5666, %v5670
      %v5673 = vshll.u32 %v5638, 16
      %v5675 = vrot.slane %v5673, 1
      %v5676 = vsel %vm1228, %v5671, %v5675
      %v5678 = vshrl.u32 %v5591, 16
      %v5680 = vshll.u32 %v5591, 16
      %v5682 = vrot.slane %v5680, 1
      %v5683 = vor.u32 %v5678, %v5682
      %v5685 = vshll.u32 %v5639, 16
      %v5687 = vrot.slane %v5685, 1
      %v5688 = vsel %vm1228, %v5683, %v5687
      %v5690 = vshrl.u32 %v5592, 16
      %v5692 = vshll.u32 %v5592, 16
      %v5694 = vrot.slane %v5692, 1
      %v5695 = vor.u32 %v5690, %v5694
      %v5697 = vshll.u32 %v5640, 16
      %v5699 = vrot.slane %v5697, 1
      %v5700 = vsel %vm1228, %v5695, %v5699
      %v5702 = vshrl.u32 %v5593, 16
      %v5704 = vshll.u32 %v5593, 16
      %v5706 = vrot.slane %v5704, 1
      %v5707 = vor.u32 %v5702, %v5706
      %v5709 = vshll.u32 %v5641, 16
      %v5711 = vrot.slane %v5709, 1
      %v5712 = vsel %vm1228, %v5707, %v5711
      %v5714 = vshrl.u32 %v5594, 16
      %v5716 = vshll.u32 %v5594, 16
      %v5718 = vrot.slane %v5716, 1
      %v5719 = vor.u32 %v5714, %v5718
      %v5721 = vshll.u32 %v5642, 16
      %v5723 = vrot.slane %v5721, 1
      %v5724 = vsel %vm1228, %v5719, %v5723
      %v5726 = vshrl.u32 %v5595, 16
      %v5728 = vshll.u32 %v5595, 16
      %v5730 = vrot.slane %v5728, 1
      %v5731 = vor.u32 %v5726, %v5730
      %v5733 = vshll.u32 %v5643, 16
      %v5735 = vrot.slane %v5733, 1
      %v5736 = vsel %vm1228, %v5731, %v5735
      %v5738 = vshrl.u32 %v5596, 16
      %v5740 = vshll.u32 %v5596, 16
      %v5742 = vrot.slane %v5740, 1
      %v5743 = vor.u32 %v5738, %v5742
      %v5745 = vshll.u32 %v5644, 16
      %v5747 = vrot.slane %v5745, 1
      %v5748 = vsel %vm1228, %v5743, %v5747
      %v5750 = vshrl.u32 %v5597, 16
      %v5752 = vshll.u32 %v5597, 16
      %v5754 = vrot.slane %v5752, 1
      %v5755 = vor.u32 %v5750, %v5754
      %v5757 = vshll.u32 %v5645, 16
      %v5759 = vrot.slane %v5757, 1
      %v5760 = vsel %vm1228, %v5755, %v5759
      %v5762 = vshrl.u32 %v5598, 16
      %v5764 = vshll.u32 %v5598, 16
      %v5766 = vrot.slane %v5764, 1
      %v5767 = vor.u32 %v5762, %v5766
      %v5769 = vshll.u32 %v5646, 16
      %v5771 = vrot.slane %v5769, 1
      %v5772 = vsel %vm1228, %v5767, %v5771
      %v5774 = vshrl.u32 %v5599, 16
      %v5776 = vshll.u32 %v5599, 16
      %v5778 = vrot.slane %v5776, 1
      %v5779 = vor.u32 %v5774, %v5778
      %v5781 = vshll.u32 %v5647, 16
      %v5783 = vrot.slane %v5781, 1
      %v5784 = vsel %vm1228, %v5779, %v5783
      %v5786 = vshrl.u32 %v5600, 16
      %v5788 = vshll.u32 %v5600, 16
      %v5790 = vrot.slane %v5788, 1
      %v5791 = vor.u32 %v5786, %v5790
      %v5793 = vshll.u32 %v5648, 16
      %v5795 = vrot.slane %v5793, 1
      %v5796 = vsel %vm1228, %v5791, %v5795
      %v5798 = vshrl.u32 %v5601, 16
      %v5800 = vshll.u32 %v5601, 16
      %v5802 = vrot.slane %v5800, 1
      %v5803 = vor.u32 %v5798, %v5802
      %v5805 = vshll.u32 %v5649, 16
      %v5807 = vrot.slane %v5805, 1
      %v5808 = vsel %vm1228, %v5803, %v5807
      %v5810 = vshrl.u32 %v5602, 16
      %v5812 = vshll.u32 %v5602, 16
      %v5814 = vrot.slane %v5812, 1
      %v5815 = vor.u32 %v5810, %v5814
      %v5817 = vshll.u32 %v5650, 16
      %v5819 = vrot.slane %v5817, 1
      %v5820 = vsel %vm1228, %v5815, %v5819
      %v5822 = vshrl.u32 %v5603, 16
      %v5824 = vshll.u32 %v5603, 16
      %v5826 = vrot.slane %v5824, 1
      %v5827 = vor.u32 %v5822, %v5826
      %v5829 = vshll.u32 %v5651, 16
      %v5831 = vrot.slane %v5829, 1
      %v5832 = vsel %vm1228, %v5827, %v5831
      %v5834 = vshrl.u32 %v5604, 16
      %v5836 = vshll.u32 %v5604, 16
      %v5838 = vrot.slane %v5836, 1
      %v5839 = vor.u32 %v5834, %v5838
      %v5841 = vshll.u32 %v5652, 16
      %v5843 = vrot.slane %v5841, 1
      %v5844 = vsel %vm1228, %v5839, %v5843
      %5845 = vrot.lane.b32.xlu0 %v5664, 8
      %v5846 = vpop.permute.xlu0 %5845
      %5847 = vrot.lane.b32.xlu0 %v5676, 8
      %v5848 = vpop.permute.xlu0 %5847
      %5849 = vrot.lane.b32.xlu0 %v5688, 8
      %v5850 = vpop.permute.xlu0 %5849
      %5851 = vrot.lane.b32.xlu0 %v5700, 8
      %v5852 = vpop.permute.xlu0 %5851
      %5853 = vrot.lane.b32.xlu0 %v5712, 8
      %v5854 = vpop.permute.xlu0 %5853
      %5855 = vrot.lane.b32.xlu0 %v5724, 8
      %v5856 = vpop.permute.xlu0 %5855
      %5857 = vrot.lane.b32.xlu0 %v5736, 8
      %v5858 = vpop.permute.xlu0 %5857
      %5859 = vrot.lane.b32.xlu0 %v5748, 8
      %v5860 = vpop.permute.xlu0 %5859
      %5861 = vrot.lane.b32.xlu0 %v5760, 8
      %v5862 = vpop.permute.xlu0 %5861
      %5863 = vrot.lane.b32.xlu0 %v5772, 8
      %v5864 = vpop.permute.xlu0 %5863
      %5865 = vrot.lane.b32.xlu0 %v5784, 8
      %v5866 = vpop.permute.xlu0 %5865
      %5867 = vrot.lane.b32.xlu0 %v5796, 8
      %v5868 = vpop.permute.xlu0 %5867
      %5869 = vrot.lane.b32.xlu0 %v5808, 8
      %v5870 = vpop.permute.xlu0 %5869
      %5871 = vrot.lane.b32.xlu0 %v5820, 8
      %v5872 = vpop.permute.xlu0 %5871
      %5873 = vrot.lane.b32.xlu0 %v5832, 8
      %v5874 = vpop.permute.xlu0 %5873
      %5875 = vrot.lane.b32.xlu0 %v5844, 8
      %v5876 = vpop.permute.xlu0 %5875
      %v5877 = vrot.slane %v5589, 1
      %v5878 = vrot.slane %v5637, 1
      %v5879 = vsel %vm1517, %v5877, %v5878
      %v5880 = vrot.slane %v5590, 1
      %v5881 = vrot.slane %v5638, 1
      %v5882 = vsel %vm1517, %v5880, %v5881
      %v5883 = vrot.slane %v5591, 1
      %v5884 = vrot.slane %v5639, 1
      %v5885 = vsel %vm1517, %v5883, %v5884
      %v5886 = vrot.slane %v5592, 1
      %v5887 = vrot.slane %v5640, 1
      %v5888 = vsel %vm1517, %v5886, %v5887
      %v5889 = vrot.slane %v5593, 1
      %v5890 = vrot.slane %v5641, 1
      %v5891 = vsel %vm1517, %v5889, %v5890
      %v5892 = vrot.slane %v5594, 1
      %v5893 = vrot.slane %v5642, 1
      %v5894 = vsel %vm1517, %v5892, %v5893
      %v5895 = vrot.slane %v5595, 1
      %v5896 = vrot.slane %v5643, 1
      %v5897 = vsel %vm1517, %v5895, %v5896
      %v5898 = vrot.slane %v5596, 1
      %v5899 = vrot.slane %v5644, 1
      %v5900 = vsel %vm1517, %v5898, %v5899
      %v5901 = vrot.slane %v5597, 1
      %v5902 = vrot.slane %v5645, 1
      %v5903 = vsel %vm1517, %v5901, %v5902
      %v5904 = vrot.slane %v5598, 1
      %v5905 = vrot.slane %v5646, 1
      %v5906 = vsel %vm1517, %v5904, %v5905
      %v5907 = vrot.slane %v5599, 1
      %v5908 = vrot.slane %v5647, 1
      %v5909 = vsel %vm1517, %v5907, %v5908
      %v5910 = vrot.slane %v5600, 1
      %v5911 = vrot.slane %v5648, 1
      %v5912 = vsel %vm1517, %v5910, %v5911
      %v5913 = vrot.slane %v5601, 1
      %v5914 = vrot.slane %v5649, 1
      %v5915 = vsel %vm1517, %v5913, %v5914
      %v5916 = vrot.slane %v5602, 1
      %v5917 = vrot.slane %v5650, 1
      %v5918 = vsel %vm1517, %v5916, %v5917
      %v5919 = vrot.slane %v5603, 1
      %v5920 = vrot.slane %v5651, 1
      %v5921 = vsel %vm1517, %v5919, %v5920
      %v5922 = vrot.slane %v5604, 1
      %v5923 = vrot.slane %v5652, 1
      %v5924 = vsel %vm1517, %v5922, %v5923
      %5925 = vrot.lane.b32.xlu0 %v5879, 16
      %v5926 = vpop.permute.xlu0 %5925
      %5927 = vrot.lane.b32.xlu0 %v5882, 16
      %v5928 = vpop.permute.xlu0 %5927
      %5929 = vrot.lane.b32.xlu0 %v5885, 16
      %v5930 = vpop.permute.xlu0 %5929
      %5931 = vrot.lane.b32.xlu0 %v5888, 16
      %v5932 = vpop.permute.xlu0 %5931
      %5933 = vrot.lane.b32.xlu0 %v5891, 16
      %v5934 = vpop.permute.xlu0 %5933
      %5935 = vrot.lane.b32.xlu0 %v5894, 16
      %v5936 = vpop.permute.xlu0 %5935
      %5937 = vrot.lane.b32.xlu0 %v5897, 16
      %v5938 = vpop.permute.xlu0 %5937
      %5939 = vrot.lane.b32.xlu0 %v5900, 16
      %v5940 = vpop.permute.xlu0 %5939
      %5941 = vrot.lane.b32.xlu0 %v5903, 16
      %v5942 = vpop.permute.xlu0 %5941
      %5943 = vrot.lane.b32.xlu0 %v5906, 16
      %v5944 = vpop.permute.xlu0 %5943
      %5945 = vrot.lane.b32.xlu0 %v5909, 16
      %v5946 = vpop.permute.xlu0 %5945
      %5947 = vrot.lane.b32.xlu0 %v5912, 16
      %v5948 = vpop.permute.xlu0 %5947
      %5949 = vrot.lane.b32.xlu0 %v5915, 16
      %v5950 = vpop.permute.xlu0 %5949
      %5951 = vrot.lane.b32.xlu0 %v5918, 16
      %v5952 = vpop.permute.xlu0 %5951
      %5953 = vrot.lane.b32.xlu0 %v5921, 16
      %v5954 = vpop.permute.xlu0 %5953
      %5955 = vrot.lane.b32.xlu0 %v5924, 16
      %v5956 = vpop.permute.xlu0 %5955
      %v5957 = vrot.slane %v5654, 1
      %v5958 = vrot.slane %v5656, 2
      %v5959 = vor.u32 %v5957, %v5958
      %v5960 = vshrl.u32 %v5637, 16
      %v5962 = vrot.slane %v5960, 1
      %v5963 = vrot.slane %v5661, 2
      %v5964 = vor.u32 %v5962, %v5963
      %v5965 = vsel %vm4913, %v5959, %v5964
      %v5966 = vrot.slane %v5666, 1
      %v5967 = vrot.slane %v5668, 2
      %v5968 = vor.u32 %v5966, %v5967
      %v5969 = vshrl.u32 %v5638, 16
      %v5971 = vrot.slane %v5969, 1
      %v5972 = vrot.slane %v5673, 2
      %v5973 = vor.u32 %v5971, %v5972
      %v5974 = vsel %vm4913, %v5968, %v5973
      %v5975 = vrot.slane %v5678, 1
      %v5976 = vrot.slane %v5680, 2
      %v5977 = vor.u32 %v5975, %v5976
      %v5978 = vshrl.u32 %v5639, 16
      %v5980 = vrot.slane %v5978, 1
      %v5981 = vrot.slane %v5685, 2
      %v5982 = vor.u32 %v5980, %v5981
      %v5983 = vsel %vm4913, %v5977, %v5982
      %v5984 = vrot.slane %v5690, 1
      %v5985 = vrot.slane %v5692, 2
      %v5986 = vor.u32 %v5984, %v5985
      %v5987 = vshrl.u32 %v5640, 16
      %v5989 = vrot.slane %v5987, 1
      %v5990 = vrot.slane %v5697, 2
      %v5991 = vor.u32 %v5989, %v5990
      %v5992 = vsel %vm4913, %v5986, %v5991
      %v5993 = vrot.slane %v5702, 1
      %v5994 = vrot.slane %v5704, 2
      %v5995 = vor.u32 %v5993, %v5994
      %v5996 = vshrl.u32 %v5641, 16
      %v5998 = vrot.slane %v5996, 1
      %v5999 = vrot.slane %v5709, 2
      %v6000 = vor.u32 %v5998, %v5999
      %v6001 = vsel %vm4913, %v5995, %v6000
      %v6002 = vrot.slane %v5714, 1
      %v6003 = vrot.slane %v5716, 2
      %v6004 = vor.u32 %v6002, %v6003
      %v6005 = vshrl.u32 %v5642, 16
      %v6007 = vrot.slane %v6005, 1
      %v6008 = vrot.slane %v5721, 2
      %v6009 = vor.u32 %v6007, %v6008
      %v6010 = vsel %vm4913, %v6004, %v6009
      %v6011 = vrot.slane %v5726, 1
      %v6012 = vrot.slane %v5728, 2
      %v6013 = vor.u32 %v6011, %v6012
      %v6014 = vshrl.u32 %v5643, 16
      %v6016 = vrot.slane %v6014, 1
      %v6017 = vrot.slane %v5733, 2
      %v6018 = vor.u32 %v6016, %v6017
      %v6019 = vsel %vm4913, %v6013, %v6018
      %v6020 = vrot.slane %v5738, 1
      %v6021 = vrot.slane %v5740, 2
      %v6022 = vor.u32 %v6020, %v6021
      %v6023 = vshrl.u32 %v5644, 16
      %v6025 = vrot.slane %v6023, 1
      %v6026 = vrot.slane %v5745, 2
      %v6027 = vor.u32 %v6025, %v6026
      %v6028 = vsel %vm4913, %v6022, %v6027
      %v6029 = vrot.slane %v5750, 1
      %v6030 = vrot.slane %v5752, 2
      %v6031 = vor.u32 %v6029, %v6030
      %v6032 = vshrl.u32 %v5645, 16
      %v6034 = vrot.slane %v6032, 1
      %v6035 = vrot.slane %v5757, 2
      %v6036 = vor.u32 %v6034, %v6035
      %v6037 = vsel %vm4913, %v6031, %v6036
      %v6038 = vrot.slane %v5762, 1
      %v6039 = vrot.slane %v5764, 2
      %v6040 = vor.u32 %v6038, %v6039
      %v6041 = vshrl.u32 %v5646, 16
      %v6043 = vrot.slane %v6041, 1
      %v6044 = vrot.slane %v5769, 2
      %v6045 = vor.u32 %v6043, %v6044
      %v6046 = vsel %vm4913, %v6040, %v6045
      %v6047 = vrot.slane %v5774, 1
      %v6048 = vrot.slane %v5776, 2
      %v6049 = vor.u32 %v6047, %v6048
      %v6050 = vshrl.u32 %v5647, 16
      %v6052 = vrot.slane %v6050, 1
      %v6053 = vrot.slane %v5781, 2
      %v6054 = vor.u32 %v6052, %v6053
      %v6055 = vsel %vm4913, %v6049, %v6054
      %v6056 = vrot.slane %v5786, 1
      %v6057 = vrot.slane %v5788, 2
      %v6058 = vor.u32 %v6056, %v6057
      %v6059 = vshrl.u32 %v5648, 16
      %v6061 = vrot.slane %v6059, 1
      %v6062 = vrot.slane %v5793, 2
      %v6063 = vor.u32 %v6061, %v6062
      %v6064 = vsel %vm4913, %v6058, %v6063
      %v6065 = vrot.slane %v5798, 1
      %v6066 = vrot.slane %v5800, 2
      %v6067 = vor.u32 %v6065, %v6066
      %v6068 = vshrl.u32 %v5649, 16
      %v6070 = vrot.slane %v6068, 1
      %v6071 = vrot.slane %v5805, 2
      %v6072 = vor.u32 %v6070, %v6071
      %v6073 = vsel %vm4913, %v6067, %v6072
      %v6074 = vrot.slane %v5810, 1
      %v6075 = vrot.slane %v5812, 2
      %v6076 = vor.u32 %v6074, %v6075
      %v6077 = vshrl.u32 %v5650, 16
      %v6079 = vrot.slane %v6077, 1
      %v6080 = vrot.slane %v5817, 2
      %v6081 = vor.u32 %v6079, %v6080
      %v6082 = vsel %vm4913, %v6076, %v6081
      %v6083 = vrot.slane %v5822, 1
      %v6084 = vrot.slane %v5824, 2
      %v6085 = vor.u32 %v6083, %v6084
      %v6086 = vshrl.u32 %v5651, 16
      %v6088 = vrot.slane %v6086, 1
      %v6089 = vrot.slane %v5829, 2
      %v6090 = vor.u32 %v6088, %v6089
      %v6091 = vsel %vm4913, %v6085, %v6090
      %v6092 = vrot.slane %v5834, 1
      %v6093 = vrot.slane %v5836, 2
      %v6094 = vor.u32 %v6092, %v6093
      %v6095 = vshrl.u32 %v5652, 16
      %v6097 = vrot.slane %v6095, 1
      %v6098 = vrot.slane %v5841, 2
      %v6099 = vor.u32 %v6097, %v6098
      %v6100 = vsel %vm4913, %v6094, %v6099
      %6101 = vrot.lane.b32.xlu0 %v5965, 24
      %v6102 = vpop.permute.xlu0 %6101
      %6103 = vrot.lane.b32.xlu0 %v5974, 24
      %v6104 = vpop.permute.xlu0 %6103
      %6105 = vrot.lane.b32.xlu0 %v5983, 24
      %v6106 = vpop.permute.xlu0 %6105
      %6107 = vrot.lane.b32.xlu0 %v5992, 24
      %v6108 = vpop.permute.xlu0 %6107
      %6109 = vrot.lane.b32.xlu0 %v6001, 24
      %v6110 = vpop.permute.xlu0 %6109
      %6111 = vrot.lane.b32.xlu0 %v6010, 24
      %v6112 = vpop.permute.xlu0 %6111
      %6113 = vrot.lane.b32.xlu0 %v6019, 24
      %v6114 = vpop.permute.xlu0 %6113
      %6115 = vrot.lane.b32.xlu0 %v6028, 24
      %v6116 = vpop.permute.xlu0 %6115
      %6117 = vrot.lane.b32.xlu0 %v6037, 24
      %v6118 = vpop.permute.xlu0 %6117
      %6119 = vrot.lane.b32.xlu0 %v6046, 24
      %v6120 = vpop.permute.xlu0 %6119
      %6121 = vrot.lane.b32.xlu0 %v6055, 24
      %v6122 = vpop.permute.xlu0 %6121
      %6123 = vrot.lane.b32.xlu0 %v6064, 24
      %v6124 = vpop.permute.xlu0 %6123
      %6125 = vrot.lane.b32.xlu0 %v6073, 24
      %v6126 = vpop.permute.xlu0 %6125
      %6127 = vrot.lane.b32.xlu0 %v6082, 24
      %v6128 = vpop.permute.xlu0 %6127
      %6129 = vrot.lane.b32.xlu0 %v6091, 24
      %v6130 = vpop.permute.xlu0 %6129
      %6131 = vrot.lane.b32.xlu0 %v6100, 24
      %v6132 = vpop.permute.xlu0 %6131
      %v6133 = vrot.slane %v5589, 2
      %v6134 = vrot.slane %v5637, 2
      %v6135 = vsel %vm5090, %v6133, %v6134
      %v6136 = vrot.slane %v5590, 2
      %v6137 = vrot.slane %v5638, 2
      %v6138 = vsel %vm5090, %v6136, %v6137
      %v6139 = vrot.slane %v5591, 2
      %v6140 = vrot.slane %v5639, 2
      %v6141 = vsel %vm5090, %v6139, %v6140
      %v6142 = vrot.slane %v5592, 2
      %v6143 = vrot.slane %v5640, 2
      %v6144 = vsel %vm5090, %v6142, %v6143
      %v6145 = vrot.slane %v5593, 2
      %v6146 = vrot.slane %v5641, 2
      %v6147 = vsel %vm5090, %v6145, %v6146
      %v6148 = vrot.slane %v5594, 2
      %v6149 = vrot.slane %v5642, 2
      %v6150 = vsel %vm5090, %v6148, %v6149
      %v6151 = vrot.slane %v5595, 2
      %v6152 = vrot.slane %v5643, 2
      %v6153 = vsel %vm5090, %v6151, %v6152
      %v6154 = vrot.slane %v5596, 2
      %v6155 = vrot.slane %v5644, 2
      %v6156 = vsel %vm5090, %v6154, %v6155
      %v6157 = vrot.slane %v5597, 2
      %v6158 = vrot.slane %v5645, 2
      %v6159 = vsel %vm5090, %v6157, %v6158
      %v6160 = vrot.slane %v5598, 2
      %v6161 = vrot.slane %v5646, 2
      %v6162 = vsel %vm5090, %v6160, %v6161
      %v6163 = vrot.slane %v5599, 2
      %v6164 = vrot.slane %v5647, 2
      %v6165 = vsel %vm5090, %v6163, %v6164
      %v6166 = vrot.slane %v5600, 2
      %v6167 = vrot.slane %v5648, 2
      %v6168 = vsel %vm5090, %v6166, %v6167
      %v6169 = vrot.slane %v5601, 2
      %v6170 = vrot.slane %v5649, 2
      %v6171 = vsel %vm5090, %v6169, %v6170
      %v6172 = vrot.slane %v5602, 2
      %v6173 = vrot.slane %v5650, 2
      %v6174 = vsel %vm5090, %v6172, %v6173
      %v6175 = vrot.slane %v5603, 2
      %v6176 = vrot.slane %v5651, 2
      %v6177 = vsel %vm5090, %v6175, %v6176
      %v6178 = vrot.slane %v5604, 2
      %v6179 = vrot.slane %v5652, 2
      %v6180 = vsel %vm5090, %v6178, %v6179
      %6181 = vrot.lane.b32.xlu0 %v6135, 32
      %v6182 = vpop.permute.xlu0 %6181
      %6183 = vrot.lane.b32.xlu0 %v6138, 32
      %v6184 = vpop.permute.xlu0 %6183
      %6185 = vrot.lane.b32.xlu0 %v6141, 32
      %v6186 = vpop.permute.xlu0 %6185
      %6187 = vrot.lane.b32.xlu0 %v6144, 32
      %v6188 = vpop.permute.xlu0 %6187
      %6189 = vrot.lane.b32.xlu0 %v6147, 32
      %v6190 = vpop.permute.xlu0 %6189
      %6191 = vrot.lane.b32.xlu0 %v6150, 32
      %v6192 = vpop.permute.xlu0 %6191
      %6193 = vrot.lane.b32.xlu0 %v6153, 32
      %v6194 = vpop.permute.xlu0 %6193
      %6195 = vrot.lane.b32.xlu0 %v6156, 32
      %v6196 = vpop.permute.xlu0 %6195
      %6197 = vrot.lane.b32.xlu0 %v6159, 32
      %v6198 = vpop.permute.xlu0 %6197
      %6199 = vrot.lane.b32.xlu0 %v6162, 32
      %v6200 = vpop.permute.xlu0 %6199
      %6201 = vrot.lane.b32.xlu0 %v6165, 32
      %v6202 = vpop.permute.xlu0 %6201
      %6203 = vrot.lane.b32.xlu0 %v6168, 32
      %v6204 = vpop.permute.xlu0 %6203
      %6205 = vrot.lane.b32.xlu0 %v6171, 32
      %v6206 = vpop.permute.xlu0 %6205
      %6207 = vrot.lane.b32.xlu0 %v6174, 32
      %v6208 = vpop.permute.xlu0 %6207
      %6209 = vrot.lane.b32.xlu0 %v6177, 32
      %v6210 = vpop.permute.xlu0 %6209
      %6211 = vrot.lane.b32.xlu0 %v6180, 32
      %v6212 = vpop.permute.xlu0 %6211
      %v6214 = vsel %vm1630, %v5589, %v5846
      %v6216 = vsel %vm1630, %v5590, %v5848
      %v6218 = vsel %vm1630, %v5591, %v5850
      %v6220 = vsel %vm1630, %v5592, %v5852
      %v6222 = vsel %vm1630, %v5593, %v5854
      %v6224 = vsel %vm1630, %v5594, %v5856
      %v6226 = vsel %vm1630, %v5595, %v5858
      %v6228 = vsel %vm1630, %v5596, %v5860
      %v6230 = vsel %vm1630, %v5597, %v5862
      %v6232 = vsel %vm1630, %v5598, %v5864
      %v6234 = vsel %vm1630, %v5599, %v5866
      %v6236 = vsel %vm1630, %v5600, %v5868
      %v6238 = vsel %vm1630, %v5601, %v5870
      %v6240 = vsel %vm1630, %v5602, %v5872
      %v6242 = vsel %vm1630, %v5603, %v5874
      %v6244 = vsel %vm1630, %v5604, %v5876
      %v6246 = vsel %vm1695, %v6214, %v5926
      %v6248 = vsel %vm1695, %v6216, %v5928
      %v6250 = vsel %vm1695, %v6218, %v5930
      %v6252 = vsel %vm1695, %v6220, %v5932
      %v6254 = vsel %vm1695, %v6222, %v5934
      %v6256 = vsel %vm1695, %v6224, %v5936
      %v6258 = vsel %vm1695, %v6226, %v5938
      %v6260 = vsel %vm1695, %v6228, %v5940
      %v6262 = vsel %vm1695, %v6230, %v5942
      %v6264 = vsel %vm1695, %v6232, %v5944
      %v6266 = vsel %vm1695, %v6234, %v5946
      %v6268 = vsel %vm1695, %v6236, %v5948
      %v6270 = vsel %vm1695, %v6238, %v5950
      %v6272 = vsel %vm1695, %v6240, %v5952
      %v6274 = vsel %vm1695, %v6242, %v5954
      %v6276 = vsel %vm1695, %v6244, %v5956
      %v6278 = vsel %vm1932, %v6246, %v6102
      %v6280 = vsel %vm1932, %v6248, %v6104
      %v6282 = vsel %vm1932, %v6250, %v6106
      %v6284 = vsel %vm1932, %v6252, %v6108
      %v6286 = vsel %vm1932, %v6254, %v6110
      %v6288 = vsel %vm1932, %v6256, %v6112
      %v6290 = vsel %vm1932, %v6258, %v6114
      %v6292 = vsel %vm1932, %v6260, %v6116
      %v6294 = vsel %vm1932, %v6262, %v6118
      %v6296 = vsel %vm1932, %v6264, %v6120
      %v6298 = vsel %vm1932, %v6266, %v6122
      %v6300 = vsel %vm1932, %v6268, %v6124
      %v6302 = vsel %vm1932, %v6270, %v6126
      %v6304 = vsel %vm1932, %v6272, %v6128
      %v6306 = vsel %vm1932, %v6274, %v6130
      %v6308 = vsel %vm1932, %v6276, %v6132
      %v6310 = vsel %vm5267, %v6278, %v6182
      %v6312 = vsel %vm5267, %v6280, %v6184
      %v6314 = vsel %vm5267, %v6282, %v6186
      %v6316 = vsel %vm5267, %v6284, %v6188
      %v6318 = vsel %vm5267, %v6286, %v6190
      %v6320 = vsel %vm5267, %v6288, %v6192
      %v6322 = vsel %vm5267, %v6290, %v6194
      %v6324 = vsel %vm5267, %v6292, %v6196
      %v6326 = vsel %vm5267, %v6294, %v6198
      %v6328 = vsel %vm5267, %v6296, %v6200
      %v6330 = vsel %vm5267, %v6298, %v6202
      %v6332 = vsel %vm5267, %v6300, %v6204
      %v6334 = vsel %vm5267, %v6302, %v6206
      %v6336 = vsel %vm5267, %v6304, %v6208
      %v6338 = vsel %vm5267, %v6306, %v6210
      %v6340 = vsel %vm5267, %v6308, %v6212
      %s6341 = scalar_lea.vmem %s5, 20
      %v6342 = vld [vmem:[%s6341] sm:$0xf]
      %v6343 = vld [vmem:[%s6341 + $0x4] sm:$0xf]
      %v6344 = vld [vmem:[%s6341 + $0x8] sm:$0xf]
      %v6345 = vld [vmem:[%s6341 + $0xc] sm:$0xf]
      %v6346 = vld [vmem:[%s6341 + $0x10] sm:$0xf]
      %v6352 = vunpack.c.l.b16 %v6342
      %v6353 = vunpack.c.l.b16 %v6343
      %v6354 = vunpack.c.l.b16 %v6344
      %v6355 = vunpack.c.l.b16 %v6345
      %v6356 = vunpack.c.l.b16 %v6346
      %v6357 = vpack.c.b16 %v6353, %v6352
      %v6358 = vpack.c.b16 %v6355, %v6354
      %v6359 = vpack.c.b16 %v6356, %v6356
      %v6362 = vsel %vm5320, %v6310, 0
      %v6364 = vsel %vm5320, %v6312, 0
      %v6366 = vsel %vm5320, %v6314, 0
      %v6368 = vsel %vm5320, %v6316, 0
      %v6370 = vsel %vm5320, %v6318, 0
      %v6372 = vsel %vm5320, %v6320, 0
      %v6374 = vsel %vm5320, %v6322, 0
      %v6376 = vsel %vm5320, %v6324, 0
      %v6378 = vsel %vm5320, %v6326, 0
      %v6380 = vsel %vm5320, %v6328, 0
      %v6382 = vsel %vm5320, %v6330, 0
      %v6384 = vsel %vm5320, %v6332, 0
      %v6386 = vsel %vm5320, %v6334, 0
      %v6388 = vsel %vm5320, %v6336, 0
      %v6390 = vsel %vm5320, %v6338, 0
      %v6392 = vsel %vm5320, %v6340, 0
      %v6395 = vsel %vm1981, %v6359, 0
      %6397 = vmatpush.bf16.msra.mxu0 0
      %6398 = vmatpush.bf16.msra.mxu0 0
      %6399 = vmatpush.bf16.msra.mxu0 0
      %6400 = vmatpush.bf16.msra.mxu0 0
      %6401 = vmatpush.bf16.msra.mxu0 0
      %6402 = vmatpush.bf16.msra.mxu0 %v6395
      %6403 = vmatpush.bf16.msra.mxu0 %v6358
      %6404 = vmatpush.bf16.msra.mxu0 %v6357
      %6405 = vmatmul.bf16.gmra.mxu0 %v6362
      %v6406 = vpop.f32.mrf.mxu0
      %v6407 = vadd.f32 0.0, %v6406
      %v6408 = vpop.f32.mrf.mxu0
      %v6409 = vadd.f32 0.0, %v6408
      %6410 = vmatmul.bf16.gmra.mxu0 %v6364
      %v6411 = vpop.f32.mrf.mxu0
      %v6412 = vadd.f32 0.0, %v6411
      %v6413 = vpop.f32.mrf.mxu0
      %v6414 = vadd.f32 0.0, %v6413
      %6415 = vmatmul.bf16.gmra.mxu0 %v6366
      %v6416 = vpop.f32.mrf.mxu0
      %v6417 = vadd.f32 0.0, %v6416
      %v6418 = vpop.f32.mrf.mxu0
      %v6419 = vadd.f32 0.0, %v6418
      %6420 = vmatmul.bf16.gmra.mxu0 %v6368
      %v6421 = vpop.f32.mrf.mxu0
      %v6422 = vadd.f32 0.0, %v6421
      %v6423 = vpop.f32.mrf.mxu0
      %v6424 = vadd.f32 0.0, %v6423
      %6425 = vmatmul.bf16.gmra.mxu0 %v6370
      %v6426 = vpop.f32.mrf.mxu0
      %v6427 = vadd.f32 0.0, %v6426
      %v6428 = vpop.f32.mrf.mxu0
      %v6429 = vadd.f32 0.0, %v6428
      %6430 = vmatmul.bf16.gmra.mxu0 %v6372
      %v6431 = vpop.f32.mrf.mxu0
      %v6432 = vadd.f32 0.0, %v6431
      %v6433 = vpop.f32.mrf.mxu0
      %v6434 = vadd.f32 0.0, %v6433
      %6435 = vmatmul.bf16.gmra.mxu0 %v6374
      %v6436 = vpop.f32.mrf.mxu0
      %v6437 = vadd.f32 0.0, %v6436
      %v6438 = vpop.f32.mrf.mxu0
      %v6439 = vadd.f32 0.0, %v6438
      %6440 = vmatmul.bf16.gmra.mxu0 %v6376
      %v6441 = vpop.f32.mrf.mxu0
      %v6442 = vadd.f32 0.0, %v6441
      %v6443 = vpop.f32.mrf.mxu0
      %v6444 = vadd.f32 0.0, %v6443
      %6445 = vmatmul.bf16.gmra.mxu0 %v6378
      %v6446 = vpop.f32.mrf.mxu0
      %v6447 = vadd.f32 0.0, %v6446
      %v6448 = vpop.f32.mrf.mxu0
      %v6449 = vadd.f32 0.0, %v6448
      %6450 = vmatmul.bf16.gmra.mxu0 %v6380
      %v6451 = vpop.f32.mrf.mxu0
      %v6452 = vadd.f32 0.0, %v6451
      %v6453 = vpop.f32.mrf.mxu0
      %v6454 = vadd.f32 0.0, %v6453
      %6455 = vmatmul.bf16.gmra.mxu0 %v6382
      %v6456 = vpop.f32.mrf.mxu0
      %v6457 = vadd.f32 0.0, %v6456
      %v6458 = vpop.f32.mrf.mxu0
      %v6459 = vadd.f32 0.0, %v6458
      %6460 = vmatmul.bf16.gmra.mxu0 %v6384
      %v6461 = vpop.f32.mrf.mxu0
      %v6462 = vadd.f32 0.0, %v6461
      %v6463 = vpop.f32.mrf.mxu0
      %v6464 = vadd.f32 0.0, %v6463
      %6465 = vmatmul.bf16.gmra.mxu0 %v6386
      %v6466 = vpop.f32.mrf.mxu0
      %v6467 = vadd.f32 0.0, %v6466
      %v6468 = vpop.f32.mrf.mxu0
      %v6469 = vadd.f32 0.0, %v6468
      %6470 = vmatmul.bf16.gmra.mxu0 %v6388
      %v6471 = vpop.f32.mrf.mxu0
      %v6472 = vadd.f32 0.0, %v6471
      %v6473 = vpop.f32.mrf.mxu0
      %v6474 = vadd.f32 0.0, %v6473
      %6475 = vmatmul.bf16.gmra.mxu0 %v6390
      %v6476 = vpop.f32.mrf.mxu0
      %v6477 = vadd.f32 0.0, %v6476
      %v6478 = vpop.f32.mrf.mxu0
      %v6479 = vadd.f32 0.0, %v6478
      %6480 = vmatmul.bf16.gmra.mxu0 %v6392
      %v6481 = vpop.f32.mrf.mxu0
      %v6482 = vadd.f32 0.0, %v6481
      %v6483 = vpop.f32.mrf.mxu0
      %v6484 = vadd.f32 0.0, %v6483
      %6485 = vdwg.mxu0
      %v6486 = vadd.f32 %v5445, %v6407
      %v6487 = vadd.f32 %v5446, %v6409
      %v6488 = vadd.f32 %v5447, %v6412
      %v6489 = vadd.f32 %v5448, %v6414
      %v6490 = vadd.f32 %v5449, %v6417
      %v6491 = vadd.f32 %v5450, %v6419
      %v6492 = vadd.f32 %v5451, %v6422
      %v6493 = vadd.f32 %v5452, %v6424
      %v6494 = vadd.f32 %v5453, %v6427
      %v6495 = vadd.f32 %v5454, %v6429
      %v6496 = vadd.f32 %v5455, %v6432
      %v6497 = vadd.f32 %v5456, %v6434
      %v6498 = vadd.f32 %v5457, %v6437
      %v6499 = vadd.f32 %v5458, %v6439
      %v6500 = vadd.f32 %v5459, %v6442
      %v6501 = vadd.f32 %v5460, %v6444
      %v6502 = vadd.f32 %v5461, %v6447
      %v6503 = vadd.f32 %v5462, %v6449
      %v6504 = vadd.f32 %v5463, %v6452
      %v6505 = vadd.f32 %v5464, %v6454
      %v6506 = vadd.f32 %v5465, %v6457
      %v6507 = vadd.f32 %v5466, %v6459
      %v6508 = vadd.f32 %v5467, %v6462
      %v6509 = vadd.f32 %v5468, %v6464
      %v6510 = vadd.f32 %v5469, %v6467
      %v6511 = vadd.f32 %v5470, %v6469
      %v6512 = vadd.f32 %v5471, %v6472
      %v6513 = vadd.f32 %v5472, %v6474
      %v6514 = vadd.f32 %v5473, %v6477
      %v6515 = vadd.f32 %v5474, %v6479
      %v6516 = vadd.f32 %v5475, %v6482
      %v6517 = vadd.f32 %v5476, %v6484
      %v6518 = vld [vmem:[%s349] sm:$0xf]
      %v6519 = vld [vmem:[%s349 + $0x4] sm:$0xf]
      %v6520 = vld [vmem:[%s349 + $0x8] sm:$0x3]
      %v6521 = vld [vmem:[%s349 + $0xc] sm:$0xf]
      %v6522 = vld [vmem:[%s349 + $0x10] sm:$0xf]
      %v6523 = vld [vmem:[%s349 + $0x14] sm:$0x3]
      %v6524 = vld [vmem:[%s349 + $0x18] sm:$0xf]
      %v6525 = vld [vmem:[%s349 + $0x1c] sm:$0xf]
      %v6526 = vld [vmem:[%s349 + $0x20] sm:$0x3]
      %v6527 = vld [vmem:[%s349 + $0x24] sm:$0xf]
      %v6528 = vld [vmem:[%s349 + $0x28] sm:$0xf]
      %v6529 = vld [vmem:[%s349 + $0x2c] sm:$0x3]
      %v6530 = vld [vmem:[%s349 + $0x30] sm:$0xf]
      %v6531 = vld [vmem:[%s349 + $0x34] sm:$0xf]
      %v6532 = vld [vmem:[%s349 + $0x38] sm:$0x3]
      %v6533 = vld [vmem:[%s349 + $0x3c] sm:$0xf]
      %v6534 = vld [vmem:[%s349 + $0x40] sm:$0xf]
      %v6535 = vld [vmem:[%s349 + $0x44] sm:$0x3]
      %v6536 = vld [vmem:[%s349 + $0x48] sm:$0xf]
      %v6537 = vld [vmem:[%s349 + $0x4c] sm:$0xf]
      %v6538 = vld [vmem:[%s349 + $0x50] sm:$0x3]
      %v6539 = vld [vmem:[%s349 + $0x54] sm:$0xf]
      %v6540 = vld [vmem:[%s349 + $0x58] sm:$0xf]
      %v6541 = vld [vmem:[%s349 + $0x5c] sm:$0x3]
      %v6542 = vld [vmem:[%s349 + $0x60] sm:$0xf]
      %v6543 = vld [vmem:[%s349 + $0x64] sm:$0xf]
      %v6544 = vld [vmem:[%s349 + $0x68] sm:$0x3]
      %v6545 = vld [vmem:[%s349 + $0x6c] sm:$0xf]
      %v6546 = vld [vmem:[%s349 + $0x70] sm:$0xf]
      %v6547 = vld [vmem:[%s349 + $0x74] sm:$0x3]
      %v6548 = vld [vmem:[%s349 + $0x78] sm:$0xf]
      %v6549 = vld [vmem:[%s349 + $0x7c] sm:$0xf]
      %v6550 = vld [vmem:[%s349 + $0x80] sm:$0x3]
      %v6551 = vld [vmem:[%s349 + $0x84] sm:$0xf]
      %v6552 = vld [vmem:[%s349 + $0x88] sm:$0xf]
      %v6553 = vld [vmem:[%s349 + $0x8c] sm:$0x3]
      %v6554 = vld [vmem:[%s349 + $0x90] sm:$0xf]
      %v6555 = vld [vmem:[%s349 + $0x94] sm:$0xf]
      %v6556 = vld [vmem:[%s349 + $0x98] sm:$0x3]
      %v6557 = vld [vmem:[%s349 + $0x9c] sm:$0xf]
      %v6558 = vld [vmem:[%s349 + $0xa0] sm:$0xf]
      %v6559 = vld [vmem:[%s349 + $0xa4] sm:$0x3]
      %v6560 = vld [vmem:[%s349 + $0xa8] sm:$0xf]
      %v6561 = vld [vmem:[%s349 + $0xac] sm:$0xf]
      %v6562 = vld [vmem:[%s349 + $0xb0] sm:$0x3]
      %v6563 = vld [vmem:[%s349 + $0xb4] sm:$0xf]
      %v6564 = vld [vmem:[%s349 + $0xb8] sm:$0xf]
      %v6565 = vld [vmem:[%s349 + $0xbc] sm:$0x3]
      %v6598 = vunpack.c.l.b16 %v6518
      %v6599 = vunpack.c.l.b16 %v6519
      %v6600 = vunpack.c.l.b16 %v6521
      %v6601 = vunpack.c.l.b16 %v6522
      %v6602 = vunpack.c.l.b16 %v6524
      %v6603 = vunpack.c.l.b16 %v6525
      %v6604 = vunpack.c.l.b16 %v6527
      %v6605 = vunpack.c.l.b16 %v6528
      %v6606 = vunpack.c.l.b16 %v6530
      %v6607 = vunpack.c.l.b16 %v6531
      %v6608 = vunpack.c.l.b16 %v6533
      %v6609 = vunpack.c.l.b16 %v6534
      %v6610 = vunpack.c.l.b16 %v6536
      %v6611 = vunpack.c.l.b16 %v6537
      %v6612 = vunpack.c.l.b16 %v6539
      %v6613 = vunpack.c.l.b16 %v6540
      %v6614 = vunpack.c.l.b16 %v6542
      %v6615 = vunpack.c.l.b16 %v6543
      %v6616 = vunpack.c.l.b16 %v6545
      %v6617 = vunpack.c.l.b16 %v6546
      %v6618 = vunpack.c.l.b16 %v6548
      %v6619 = vunpack.c.l.b16 %v6549
      %v6620 = vunpack.c.l.b16 %v6551
      %v6621 = vunpack.c.l.b16 %v6552
      %v6622 = vunpack.c.l.b16 %v6554
      %v6623 = vunpack.c.l.b16 %v6555
      %v6624 = vunpack.c.l.b16 %v6557
      %v6625 = vunpack.c.l.b16 %v6558
      %v6626 = vunpack.c.l.b16 %v6560
      %v6627 = vunpack.c.l.b16 %v6561
      %v6628 = vunpack.c.l.b16 %v6563
      %v6629 = vunpack.c.l.b16 %v6564
      %v6630 = vpack.c.b16 %v6599, %v6598
      %v6631 = vpack.c.b16 %v6601, %v6600
      %v6632 = vpack.c.b16 %v6603, %v6602
      %v6633 = vpack.c.b16 %v6605, %v6604
      %v6634 = vpack.c.b16 %v6607, %v6606
      %v6635 = vpack.c.b16 %v6609, %v6608
      %v6636 = vpack.c.b16 %v6611, %v6610
      %v6637 = vpack.c.b16 %v6613, %v6612
      %v6638 = vpack.c.b16 %v6615, %v6614
      %v6639 = vpack.c.b16 %v6617, %v6616
      %v6640 = vpack.c.b16 %v6619, %v6618
      %v6641 = vpack.c.b16 %v6621, %v6620
      %v6642 = vpack.c.b16 %v6623, %v6622
      %v6643 = vpack.c.b16 %v6625, %v6624
      %v6644 = vpack.c.b16 %v6627, %v6626
      %v6645 = vpack.c.b16 %v6629, %v6628
      %v6662 = vunpack.c.l.b16 %v6520
      %v6663 = vunpack.c.l.b16 %v6523
      %v6664 = vunpack.c.l.b16 %v6526
      %v6665 = vunpack.c.l.b16 %v6529
      %v6666 = vunpack.c.l.b16 %v6532
      %v6667 = vunpack.c.l.b16 %v6535
      %v6668 = vunpack.c.l.b16 %v6538
      %v6669 = vunpack.c.l.b16 %v6541
      %v6670 = vunpack.c.l.b16 %v6544
      %v6671 = vunpack.c.l.b16 %v6547
      %v6672 = vunpack.c.l.b16 %v6550
      %v6673 = vunpack.c.l.b16 %v6553
      %v6674 = vunpack.c.l.b16 %v6556
      %v6675 = vunpack.c.l.b16 %v6559
      %v6676 = vunpack.c.l.b16 %v6562
      %v6677 = vunpack.c.l.b16 %v6565
      %v6678 = vpack.c.b16 %v6662, %v6662
      %v6679 = vpack.c.b16 %v6663, %v6663
      %v6680 = vpack.c.b16 %v6664, %v6664
      %v6681 = vpack.c.b16 %v6665, %v6665
      %v6682 = vpack.c.b16 %v6666, %v6666
      %v6683 = vpack.c.b16 %v6667, %v6667
      %v6684 = vpack.c.b16 %v6668, %v6668
      %v6685 = vpack.c.b16 %v6669, %v6669
      %v6686 = vpack.c.b16 %v6670, %v6670
      %v6687 = vpack.c.b16 %v6671, %v6671
      %v6688 = vpack.c.b16 %v6672, %v6672
      %v6689 = vpack.c.b16 %v6673, %v6673
      %v6690 = vpack.c.b16 %v6674, %v6674
      %v6691 = vpack.c.b16 %v6675, %v6675
      %v6692 = vpack.c.b16 %v6676, %v6676
      %v6693 = vpack.c.b16 %v6677, %v6677
      %v6695 = vshrl.u32 %v6630, 16
      %v6697 = vshll.u32 %v6630, 16
      %v6699 = vrot.slane %v6697, 1
      %v6700 = vor.u32 %v6695, %v6699
      %v6702 = vshll.u32 %v6678, 16
      %v6704 = vrot.slane %v6702, 1
      %v6705 = vsel %vm1228, %v6700, %v6704
      %v6707 = vshrl.u32 %v6631, 16
      %v6709 = vshll.u32 %v6631, 16
      %v6711 = vrot.slane %v6709, 1
      %v6712 = vor.u32 %v6707, %v6711
      %v6714 = vshll.u32 %v6679, 16
      %v6716 = vrot.slane %v6714, 1
      %v6717 = vsel %vm1228, %v6712, %v6716
      %v6719 = vshrl.u32 %v6632, 16
      %v6721 = vshll.u32 %v6632, 16
      %v6723 = vrot.slane %v6721, 1
      %v6724 = vor.u32 %v6719, %v6723
      %v6726 = vshll.u32 %v6680, 16
      %v6728 = vrot.slane %v6726, 1
      %v6729 = vsel %vm1228, %v6724, %v6728
      %v6731 = vshrl.u32 %v6633, 16
      %v6733 = vshll.u32 %v6633, 16
      %v6735 = vrot.slane %v6733, 1
      %v6736 = vor.u32 %v6731, %v6735
      %v6738 = vshll.u32 %v6681, 16
      %v6740 = vrot.slane %v6738, 1
      %v6741 = vsel %vm1228, %v6736, %v6740
      %v6743 = vshrl.u32 %v6634, 16
      %v6745 = vshll.u32 %v6634, 16
      %v6747 = vrot.slane %v6745, 1
      %v6748 = vor.u32 %v6743, %v6747
      %v6750 = vshll.u32 %v6682, 16
      %v6752 = vrot.slane %v6750, 1
      %v6753 = vsel %vm1228, %v6748, %v6752
      %v6755 = vshrl.u32 %v6635, 16
      %v6757 = vshll.u32 %v6635, 16
      %v6759 = vrot.slane %v6757, 1
      %v6760 = vor.u32 %v6755, %v6759
      %v6762 = vshll.u32 %v6683, 16
      %v6764 = vrot.slane %v6762, 1
      %v6765 = vsel %vm1228, %v6760, %v6764
      %v6767 = vshrl.u32 %v6636, 16
      %v6769 = vshll.u32 %v6636, 16
      %v6771 = vrot.slane %v6769, 1
      %v6772 = vor.u32 %v6767, %v6771
      %v6774 = vshll.u32 %v6684, 16
      %v6776 = vrot.slane %v6774, 1
      %v6777 = vsel %vm1228, %v6772, %v6776
      %v6779 = vshrl.u32 %v6637, 16
      %v6781 = vshll.u32 %v6637, 16
      %v6783 = vrot.slane %v6781, 1
      %v6784 = vor.u32 %v6779, %v6783
      %v6786 = vshll.u32 %v6685, 16
      %v6788 = vrot.slane %v6786, 1
      %v6789 = vsel %vm1228, %v6784, %v6788
      %v6791 = vshrl.u32 %v6638, 16
      %v6793 = vshll.u32 %v6638, 16
      %v6795 = vrot.slane %v6793, 1
      %v6796 = vor.u32 %v6791, %v6795
      %v6798 = vshll.u32 %v6686, 16
      %v6800 = vrot.slane %v6798, 1
      %v6801 = vsel %vm1228, %v6796, %v6800
      %v6803 = vshrl.u32 %v6639, 16
      %v6805 = vshll.u32 %v6639, 16
      %v6807 = vrot.slane %v6805, 1
      %v6808 = vor.u32 %v6803, %v6807
      %v6810 = vshll.u32 %v6687, 16
      %v6812 = vrot.slane %v6810, 1
      %v6813 = vsel %vm1228, %v6808, %v6812
      %v6815 = vshrl.u32 %v6640, 16
      %v6817 = vshll.u32 %v6640, 16
      %v6819 = vrot.slane %v6817, 1
      %v6820 = vor.u32 %v6815, %v6819
      %v6822 = vshll.u32 %v6688, 16
      %v6824 = vrot.slane %v6822, 1
      %v6825 = vsel %vm1228, %v6820, %v6824
      %v6827 = vshrl.u32 %v6641, 16
      %v6829 = vshll.u32 %v6641, 16
      %v6831 = vrot.slane %v6829, 1
      %v6832 = vor.u32 %v6827, %v6831
      %v6834 = vshll.u32 %v6689, 16
      %v6836 = vrot.slane %v6834, 1
      %v6837 = vsel %vm1228, %v6832, %v6836
      %v6839 = vshrl.u32 %v6642, 16
      %v6841 = vshll.u32 %v6642, 16
      %v6843 = vrot.slane %v6841, 1
      %v6844 = vor.u32 %v6839, %v6843
      %v6846 = vshll.u32 %v6690, 16
      %v6848 = vrot.slane %v6846, 1
      %v6849 = vsel %vm1228, %v6844, %v6848
      %v6851 = vshrl.u32 %v6643, 16
      %v6853 = vshll.u32 %v6643, 16
      %v6855 = vrot.slane %v6853, 1
      %v6856 = vor.u32 %v6851, %v6855
      %v6858 = vshll.u32 %v6691, 16
      %v6860 = vrot.slane %v6858, 1
      %v6861 = vsel %vm1228, %v6856, %v6860
      %v6863 = vshrl.u32 %v6644, 16
      %v6865 = vshll.u32 %v6644, 16
      %v6867 = vrot.slane %v6865, 1
      %v6868 = vor.u32 %v6863, %v6867
      %v6870 = vshll.u32 %v6692, 16
      %v6872 = vrot.slane %v6870, 1
      %v6873 = vsel %vm1228, %v6868, %v6872
      %v6875 = vshrl.u32 %v6645, 16
      %v6877 = vshll.u32 %v6645, 16
      %v6879 = vrot.slane %v6877, 1
      %v6880 = vor.u32 %v6875, %v6879
      %v6882 = vshll.u32 %v6693, 16
      %v6884 = vrot.slane %v6882, 1
      %v6885 = vsel %vm1228, %v6880, %v6884
      %6886 = vrot.lane.b32.xlu0 %v6705, 8
      %v6887 = vpop.permute.xlu0 %6886
      %6888 = vrot.lane.b32.xlu0 %v6717, 8
      %v6889 = vpop.permute.xlu0 %6888
      %6890 = vrot.lane.b32.xlu0 %v6729, 8
      %v6891 = vpop.permute.xlu0 %6890
      %6892 = vrot.lane.b32.xlu0 %v6741, 8
      %v6893 = vpop.permute.xlu0 %6892
      %6894 = vrot.lane.b32.xlu0 %v6753, 8
      %v6895 = vpop.permute.xlu0 %6894
      %6896 = vrot.lane.b32.xlu0 %v6765, 8
      %v6897 = vpop.permute.xlu0 %6896
      %6898 = vrot.lane.b32.xlu0 %v6777, 8
      %v6899 = vpop.permute.xlu0 %6898
      %6900 = vrot.lane.b32.xlu0 %v6789, 8
      %v6901 = vpop.permute.xlu0 %6900
      %6902 = vrot.lane.b32.xlu0 %v6801, 8
      %v6903 = vpop.permute.xlu0 %6902
      %6904 = vrot.lane.b32.xlu0 %v6813, 8
      %v6905 = vpop.permute.xlu0 %6904
      %6906 = vrot.lane.b32.xlu0 %v6825, 8
      %v6907 = vpop.permute.xlu0 %6906
      %6908 = vrot.lane.b32.xlu0 %v6837, 8
      %v6909 = vpop.permute.xlu0 %6908
      %6910 = vrot.lane.b32.xlu0 %v6849, 8
      %v6911 = vpop.permute.xlu0 %6910
      %6912 = vrot.lane.b32.xlu0 %v6861, 8
      %v6913 = vpop.permute.xlu0 %6912
      %6914 = vrot.lane.b32.xlu0 %v6873, 8
      %v6915 = vpop.permute.xlu0 %6914
      %6916 = vrot.lane.b32.xlu0 %v6885, 8
      %v6917 = vpop.permute.xlu0 %6916
      %v6918 = vrot.slane %v6630, 1
      %v6919 = vrot.slane %v6678, 1
      %v6920 = vsel %vm1517, %v6918, %v6919
      %v6921 = vrot.slane %v6631, 1
      %v6922 = vrot.slane %v6679, 1
      %v6923 = vsel %vm1517, %v6921, %v6922
      %v6924 = vrot.slane %v6632, 1
      %v6925 = vrot.slane %v6680, 1
      %v6926 = vsel %vm1517, %v6924, %v6925
      %v6927 = vrot.slane %v6633, 1
      %v6928 = vrot.slane %v6681, 1
      %v6929 = vsel %vm1517, %v6927, %v6928
      %v6930 = vrot.slane %v6634, 1
      %v6931 = vrot.slane %v6682, 1
      %v6932 = vsel %vm1517, %v6930, %v6931
      %v6933 = vrot.slane %v6635, 1
      %v6934 = vrot.slane %v6683, 1
      %v6935 = vsel %vm1517, %v6933, %v6934
      %v6936 = vrot.slane %v6636, 1
      %v6937 = vrot.slane %v6684, 1
      %v6938 = vsel %vm1517, %v6936, %v6937
      %v6939 = vrot.slane %v6637, 1
      %v6940 = vrot.slane %v6685, 1
      %v6941 = vsel %vm1517, %v6939, %v6940
      %v6942 = vrot.slane %v6638, 1
      %v6943 = vrot.slane %v6686, 1
      %v6944 = vsel %vm1517, %v6942, %v6943
      %v6945 = vrot.slane %v6639, 1
      %v6946 = vrot.slane %v6687, 1
      %v6947 = vsel %vm1517, %v6945, %v6946
      %v6948 = vrot.slane %v6640, 1
      %v6949 = vrot.slane %v6688, 1
      %v6950 = vsel %vm1517, %v6948, %v6949
      %v6951 = vrot.slane %v6641, 1
      %v6952 = vrot.slane %v6689, 1
      %v6953 = vsel %vm1517, %v6951, %v6952
      %v6954 = vrot.slane %v6642, 1
      %v6955 = vrot.slane %v6690, 1
      %v6956 = vsel %vm1517, %v6954, %v6955
      %v6957 = vrot.slane %v6643, 1
      %v6958 = vrot.slane %v6691, 1
      %v6959 = vsel %vm1517, %v6957, %v6958
      %v6960 = vrot.slane %v6644, 1
      %v6961 = vrot.slane %v6692, 1
      %v6962 = vsel %vm1517, %v6960, %v6961
      %v6963 = vrot.slane %v6645, 1
      %v6964 = vrot.slane %v6693, 1
      %v6965 = vsel %vm1517, %v6963, %v6964
      %6966 = vrot.lane.b32.xlu0 %v6920, 16
      %v6967 = vpop.permute.xlu0 %6966
      %6968 = vrot.lane.b32.xlu0 %v6923, 16
      %v6969 = vpop.permute.xlu0 %6968
      %6970 = vrot.lane.b32.xlu0 %v6926, 16
      %v6971 = vpop.permute.xlu0 %6970
      %6972 = vrot.lane.b32.xlu0 %v6929, 16
      %v6973 = vpop.permute.xlu0 %6972
      %6974 = vrot.lane.b32.xlu0 %v6932, 16
      %v6975 = vpop.permute.xlu0 %6974
      %6976 = vrot.lane.b32.xlu0 %v6935, 16
      %v6977 = vpop.permute.xlu0 %6976
      %6978 = vrot.lane.b32.xlu0 %v6938, 16
      %v6979 = vpop.permute.xlu0 %6978
      %6980 = vrot.lane.b32.xlu0 %v6941, 16
      %v6981 = vpop.permute.xlu0 %6980
      %6982 = vrot.lane.b32.xlu0 %v6944, 16
      %v6983 = vpop.permute.xlu0 %6982
      %6984 = vrot.lane.b32.xlu0 %v6947, 16
      %v6985 = vpop.permute.xlu0 %6984
      %6986 = vrot.lane.b32.xlu0 %v6950, 16
      %v6987 = vpop.permute.xlu0 %6986
      %6988 = vrot.lane.b32.xlu0 %v6953, 16
      %v6989 = vpop.permute.xlu0 %6988
      %6990 = vrot.lane.b32.xlu0 %v6956, 16
      %v6991 = vpop.permute.xlu0 %6990
      %6992 = vrot.lane.b32.xlu0 %v6959, 16
      %v6993 = vpop.permute.xlu0 %6992
      %6994 = vrot.lane.b32.xlu0 %v6962, 16
      %v6995 = vpop.permute.xlu0 %6994
      %6996 = vrot.lane.b32.xlu0 %v6965, 16
      %v6997 = vpop.permute.xlu0 %6996
      %v6998 = vrot.slane %v6695, 1
      %v6999 = vrot.slane %v6697, 2
      %v7000 = vor.u32 %v6998, %v6999
      %v7001 = vshrl.u32 %v6678, 16
      %v7003 = vrot.slane %v7001, 1
      %v7004 = vrot.slane %v6702, 2
      %v7005 = vor.u32 %v7003, %v7004
      %v7006 = vsel %vm4913, %v7000, %v7005
      %v7007 = vrot.slane %v6707, 1
      %v7008 = vrot.slane %v6709, 2
      %v7009 = vor.u32 %v7007, %v7008
      %v7010 = vshrl.u32 %v6679, 16
      %v7012 = vrot.slane %v7010, 1
      %v7013 = vrot.slane %v6714, 2
      %v7014 = vor.u32 %v7012, %v7013
      %v7015 = vsel %vm4913, %v7009, %v7014
      %v7016 = vrot.slane %v6719, 1
      %v7017 = vrot.slane %v6721, 2
      %v7018 = vor.u32 %v7016, %v7017
      %v7019 = vshrl.u32 %v6680, 16
      %v7021 = vrot.slane %v7019, 1
      %v7022 = vrot.slane %v6726, 2
      %v7023 = vor.u32 %v7021, %v7022
      %v7024 = vsel %vm4913, %v7018, %v7023
      %v7025 = vrot.slane %v6731, 1
      %v7026 = vrot.slane %v6733, 2
      %v7027 = vor.u32 %v7025, %v7026
      %v7028 = vshrl.u32 %v6681, 16
      %v7030 = vrot.slane %v7028, 1
      %v7031 = vrot.slane %v6738, 2
      %v7032 = vor.u32 %v7030, %v7031
      %v7033 = vsel %vm4913, %v7027, %v7032
      %v7034 = vrot.slane %v6743, 1
      %v7035 = vrot.slane %v6745, 2
      %v7036 = vor.u32 %v7034, %v7035
      %v7037 = vshrl.u32 %v6682, 16
      %v7039 = vrot.slane %v7037, 1
      %v7040 = vrot.slane %v6750, 2
      %v7041 = vor.u32 %v7039, %v7040
      %v7042 = vsel %vm4913, %v7036, %v7041
      %v7043 = vrot.slane %v6755, 1
      %v7044 = vrot.slane %v6757, 2
      %v7045 = vor.u32 %v7043, %v7044
      %v7046 = vshrl.u32 %v6683, 16
      %v7048 = vrot.slane %v7046, 1
      %v7049 = vrot.slane %v6762, 2
      %v7050 = vor.u32 %v7048, %v7049
      %v7051 = vsel %vm4913, %v7045, %v7050
      %v7052 = vrot.slane %v6767, 1
      %v7053 = vrot.slane %v6769, 2
      %v7054 = vor.u32 %v7052, %v7053
      %v7055 = vshrl.u32 %v6684, 16
      %v7057 = vrot.slane %v7055, 1
      %v7058 = vrot.slane %v6774, 2
      %v7059 = vor.u32 %v7057, %v7058
      %v7060 = vsel %vm4913, %v7054, %v7059
      %v7061 = vrot.slane %v6779, 1
      %v7062 = vrot.slane %v6781, 2
      %v7063 = vor.u32 %v7061, %v7062
      %v7064 = vshrl.u32 %v6685, 16
      %v7066 = vrot.slane %v7064, 1
      %v7067 = vrot.slane %v6786, 2
      %v7068 = vor.u32 %v7066, %v7067
      %v7069 = vsel %vm4913, %v7063, %v7068
      %v7070 = vrot.slane %v6791, 1
      %v7071 = vrot.slane %v6793, 2
      %v7072 = vor.u32 %v7070, %v7071
      %v7073 = vshrl.u32 %v6686, 16
      %v7075 = vrot.slane %v7073, 1
      %v7076 = vrot.slane %v6798, 2
      %v7077 = vor.u32 %v7075, %v7076
      %v7078 = vsel %vm4913, %v7072, %v7077
      %v7079 = vrot.slane %v6803, 1
      %v7080 = vrot.slane %v6805, 2
      %v7081 = vor.u32 %v7079, %v7080
      %v7082 = vshrl.u32 %v6687, 16
      %v7084 = vrot.slane %v7082, 1
      %v7085 = vrot.slane %v6810, 2
      %v7086 = vor.u32 %v7084, %v7085
      %v7087 = vsel %vm4913, %v7081, %v7086
      %v7088 = vrot.slane %v6815, 1
      %v7089 = vrot.slane %v6817, 2
      %v7090 = vor.u32 %v7088, %v7089
      %v7091 = vshrl.u32 %v6688, 16
      %v7093 = vrot.slane %v7091, 1
      %v7094 = vrot.slane %v6822, 2
      %v7095 = vor.u32 %v7093, %v7094
      %v7096 = vsel %vm4913, %v7090, %v7095
      %v7097 = vrot.slane %v6827, 1
      %v7098 = vrot.slane %v6829, 2
      %v7099 = vor.u32 %v7097, %v7098
      %v7100 = vshrl.u32 %v6689, 16
      %v7102 = vrot.slane %v7100, 1
      %v7103 = vrot.slane %v6834, 2
      %v7104 = vor.u32 %v7102, %v7103
      %v7105 = vsel %vm4913, %v7099, %v7104
      %v7106 = vrot.slane %v6839, 1
      %v7107 = vrot.slane %v6841, 2
      %v7108 = vor.u32 %v7106, %v7107
      %v7109 = vshrl.u32 %v6690, 16
      %v7111 = vrot.slane %v7109, 1
      %v7112 = vrot.slane %v6846, 2
      %v7113 = vor.u32 %v7111, %v7112
      %v7114 = vsel %vm4913, %v7108, %v7113
      %v7115 = vrot.slane %v6851, 1
      %v7116 = vrot.slane %v6853, 2
      %v7117 = vor.u32 %v7115, %v7116
      %v7118 = vshrl.u32 %v6691, 16
      %v7120 = vrot.slane %v7118, 1
      %v7121 = vrot.slane %v6858, 2
      %v7122 = vor.u32 %v7120, %v7121
      %v7123 = vsel %vm4913, %v7117, %v7122
      %v7124 = vrot.slane %v6863, 1
      %v7125 = vrot.slane %v6865, 2
      %v7126 = vor.u32 %v7124, %v7125
      %v7127 = vshrl.u32 %v6692, 16
      %v7129 = vrot.slane %v7127, 1
      %v7130 = vrot.slane %v6870, 2
      %v7131 = vor.u32 %v7129, %v7130
      %v7132 = vsel %vm4913, %v7126, %v7131
      %v7133 = vrot.slane %v6875, 1
      %v7134 = vrot.slane %v6877, 2
      %v7135 = vor.u32 %v7133, %v7134
      %v7136 = vshrl.u32 %v6693, 16
      %v7138 = vrot.slane %v7136, 1
      %v7139 = vrot.slane %v6882, 2
      %v7140 = vor.u32 %v7138, %v7139
      %v7141 = vsel %vm4913, %v7135, %v7140
      %7142 = vrot.lane.b32.xlu0 %v7006, 24
      %v7143 = vpop.permute.xlu0 %7142
      %7144 = vrot.lane.b32.xlu0 %v7015, 24
      %v7145 = vpop.permute.xlu0 %7144
      %7146 = vrot.lane.b32.xlu0 %v7024, 24
      %v7147 = vpop.permute.xlu0 %7146
      %7148 = vrot.lane.b32.xlu0 %v7033, 24
      %v7149 = vpop.permute.xlu0 %7148
      %7150 = vrot.lane.b32.xlu0 %v7042, 24
      %v7151 = vpop.permute.xlu0 %7150
      %7152 = vrot.lane.b32.xlu0 %v7051, 24
      %v7153 = vpop.permute.xlu0 %7152
      %7154 = vrot.lane.b32.xlu0 %v7060, 24
      %v7155 = vpop.permute.xlu0 %7154
      %7156 = vrot.lane.b32.xlu0 %v7069, 24
      %v7157 = vpop.permute.xlu0 %7156
      %7158 = vrot.lane.b32.xlu0 %v7078, 24
      %v7159 = vpop.permute.xlu0 %7158
      %7160 = vrot.lane.b32.xlu0 %v7087, 24
      %v7161 = vpop.permute.xlu0 %7160
      %7162 = vrot.lane.b32.xlu0 %v7096, 24
      %v7163 = vpop.permute.xlu0 %7162
      %7164 = vrot.lane.b32.xlu0 %v7105, 24
      %v7165 = vpop.permute.xlu0 %7164
      %7166 = vrot.lane.b32.xlu0 %v7114, 24
      %v7167 = vpop.permute.xlu0 %7166
      %7168 = vrot.lane.b32.xlu0 %v7123, 24
      %v7169 = vpop.permute.xlu0 %7168
      %7170 = vrot.lane.b32.xlu0 %v7132, 24
      %v7171 = vpop.permute.xlu0 %7170
      %7172 = vrot.lane.b32.xlu0 %v7141, 24
      %v7173 = vpop.permute.xlu0 %7172
      %v7174 = vrot.slane %v6630, 2
      %v7175 = vrot.slane %v6678, 2
      %v7176 = vsel %vm5090, %v7174, %v7175
      %v7177 = vrot.slane %v6631, 2
      %v7178 = vrot.slane %v6679, 2
      %v7179 = vsel %vm5090, %v7177, %v7178
      %v7180 = vrot.slane %v6632, 2
      %v7181 = vrot.slane %v6680, 2
      %v7182 = vsel %vm5090, %v7180, %v7181
      %v7183 = vrot.slane %v6633, 2
      %v7184 = vrot.slane %v6681, 2
      %v7185 = vsel %vm5090, %v7183, %v7184
      %v7186 = vrot.slane %v6634, 2
      %v7187 = vrot.slane %v6682, 2
      %v7188 = vsel %vm5090, %v7186, %v7187
      %v7189 = vrot.slane %v6635, 2
      %v7190 = vrot.slane %v6683, 2
      %v7191 = vsel %vm5090, %v7189, %v7190
      %v7192 = vrot.slane %v6636, 2
      %v7193 = vrot.slane %v6684, 2
      %v7194 = vsel %vm5090, %v7192, %v7193
      %v7195 = vrot.slane %v6637, 2
      %v7196 = vrot.slane %v6685, 2
      %v7197 = vsel %vm5090, %v7195, %v7196
      %v7198 = vrot.slane %v6638, 2
      %v7199 = vrot.slane %v6686, 2
      %v7200 = vsel %vm5090, %v7198, %v7199
      %v7201 = vrot.slane %v6639, 2
      %v7202 = vrot.slane %v6687, 2
      %v7203 = vsel %vm5090, %v7201, %v7202
      %v7204 = vrot.slane %v6640, 2
      %v7205 = vrot.slane %v6688, 2
      %v7206 = vsel %vm5090, %v7204, %v7205
      %v7207 = vrot.slane %v6641, 2
      %v7208 = vrot.slane %v6689, 2
      %v7209 = vsel %vm5090, %v7207, %v7208
      %v7210 = vrot.slane %v6642, 2
      %v7211 = vrot.slane %v6690, 2
      %v7212 = vsel %vm5090, %v7210, %v7211
      %v7213 = vrot.slane %v6643, 2
      %v7214 = vrot.slane %v6691, 2
      %v7215 = vsel %vm5090, %v7213, %v7214
      %v7216 = vrot.slane %v6644, 2
      %v7217 = vrot.slane %v6692, 2
      %v7218 = vsel %vm5090, %v7216, %v7217
      %v7219 = vrot.slane %v6645, 2
      %v7220 = vrot.slane %v6693, 2
      %v7221 = vsel %vm5090, %v7219, %v7220
      %7222 = vrot.lane.b32.xlu0 %v7176, 32
      %v7223 = vpop.permute.xlu0 %7222
      %7224 = vrot.lane.b32.xlu0 %v7179, 32
      %v7225 = vpop.permute.xlu0 %7224
      %7226 = vrot.lane.b32.xlu0 %v7182, 32
      %v7227 = vpop.permute.xlu0 %7226
      %7228 = vrot.lane.b32.xlu0 %v7185, 32
      %v7229 = vpop.permute.xlu0 %7228
      %7230 = vrot.lane.b32.xlu0 %v7188, 32
      %v7231 = vpop.permute.xlu0 %7230
      %7232 = vrot.lane.b32.xlu0 %v7191, 32
      %v7233 = vpop.permute.xlu0 %7232
      %7234 = vrot.lane.b32.xlu0 %v7194, 32
      %v7235 = vpop.permute.xlu0 %7234
      %7236 = vrot.lane.b32.xlu0 %v7197, 32
      %v7237 = vpop.permute.xlu0 %7236
      %7238 = vrot.lane.b32.xlu0 %v7200, 32
      %v7239 = vpop.permute.xlu0 %7238
      %7240 = vrot.lane.b32.xlu0 %v7203, 32
      %v7241 = vpop.permute.xlu0 %7240
      %7242 = vrot.lane.b32.xlu0 %v7206, 32
      %v7243 = vpop.permute.xlu0 %7242
      %7244 = vrot.lane.b32.xlu0 %v7209, 32
      %v7245 = vpop.permute.xlu0 %7244
      %7246 = vrot.lane.b32.xlu0 %v7212, 32
      %v7247 = vpop.permute.xlu0 %7246
      %7248 = vrot.lane.b32.xlu0 %v7215, 32
      %v7249 = vpop.permute.xlu0 %7248
      %7250 = vrot.lane.b32.xlu0 %v7218, 32
      %v7251 = vpop.permute.xlu0 %7250
      %7252 = vrot.lane.b32.xlu0 %v7221, 32
      %v7253 = vpop.permute.xlu0 %7252
      %v7255 = vsel %vm1630, %v6630, %v6887
      %v7257 = vsel %vm1630, %v6631, %v6889
      %v7259 = vsel %vm1630, %v6632, %v6891
      %v7261 = vsel %vm1630, %v6633, %v6893
      %v7263 = vsel %vm1630, %v6634, %v6895
      %v7265 = vsel %vm1630, %v6635, %v6897
      %v7267 = vsel %vm1630, %v6636, %v6899
      %v7269 = vsel %vm1630, %v6637, %v6901
      %v7271 = vsel %vm1630, %v6638, %v6903
      %v7273 = vsel %vm1630, %v6639, %v6905
      %v7275 = vsel %vm1630, %v6640, %v6907
      %v7277 = vsel %vm1630, %v6641, %v6909
      %v7279 = vsel %vm1630, %v6642, %v6911
      %v7281 = vsel %vm1630, %v6643, %v6913
      %v7283 = vsel %vm1630, %v6644, %v6915
      %v7285 = vsel %vm1630, %v6645, %v6917
      %v7287 = vsel %vm1695, %v7255, %v6967
      %v7289 = vsel %vm1695, %v7257, %v6969
      %v7291 = vsel %vm1695, %v7259, %v6971
      %v7293 = vsel %vm1695, %v7261, %v6973
      %v7295 = vsel %vm1695, %v7263, %v6975
      %v7297 = vsel %vm1695, %v7265, %v6977
      %v7299 = vsel %vm1695, %v7267, %v6979
      %v7301 = vsel %vm1695, %v7269, %v6981
      %v7303 = vsel %vm1695, %v7271, %v6983
      %v7305 = vsel %vm1695, %v7273, %v6985
      %v7307 = vsel %vm1695, %v7275, %v6987
      %v7309 = vsel %vm1695, %v7277, %v6989
      %v7311 = vsel %vm1695, %v7279, %v6991
      %v7313 = vsel %vm1695, %v7281, %v6993
      %v7315 = vsel %vm1695, %v7283, %v6995
      %v7317 = vsel %vm1695, %v7285, %v6997
      %v7319 = vsel %vm1932, %v7287, %v7143
      %v7321 = vsel %vm1932, %v7289, %v7145
      %v7323 = vsel %vm1932, %v7291, %v7147
      %v7325 = vsel %vm1932, %v7293, %v7149
      %v7327 = vsel %vm1932, %v7295, %v7151
      %v7329 = vsel %vm1932, %v7297, %v7153
      %v7331 = vsel %vm1932, %v7299, %v7155
      %v7333 = vsel %vm1932, %v7301, %v7157
      %v7335 = vsel %vm1932, %v7303, %v7159
      %v7337 = vsel %vm1932, %v7305, %v7161
      %v7339 = vsel %vm1932, %v7307, %v7163
      %v7341 = vsel %vm1932, %v7309, %v7165
      %v7343 = vsel %vm1932, %v7311, %v7167
      %v7345 = vsel %vm1932, %v7313, %v7169
      %v7347 = vsel %vm1932, %v7315, %v7171
      %v7349 = vsel %vm1932, %v7317, %v7173
      %v7351 = vsel %vm5267, %v7319, %v7223
      %v7353 = vsel %vm5267, %v7321, %v7225
      %v7355 = vsel %vm5267, %v7323, %v7227
      %v7357 = vsel %vm5267, %v7325, %v7229
      %v7359 = vsel %vm5267, %v7327, %v7231
      %v7361 = vsel %vm5267, %v7329, %v7233
      %v7363 = vsel %vm5267, %v7331, %v7235
      %v7365 = vsel %vm5267, %v7333, %v7237
      %v7367 = vsel %vm5267, %v7335, %v7239
      %v7369 = vsel %vm5267, %v7337, %v7241
      %v7371 = vsel %vm5267, %v7339, %v7243
      %v7373 = vsel %vm5267, %v7341, %v7245
      %v7375 = vsel %vm5267, %v7343, %v7247
      %v7377 = vsel %vm5267, %v7345, %v7249
      %v7379 = vsel %vm5267, %v7347, %v7251
      %v7381 = vsel %vm5267, %v7349, %v7253
      %s7382 = scalar_lea.vmem %s5, 40
      %v7383 = vld [vmem:[%s7382] sm:$0xf]
      %v7384 = vld [vmem:[%s7382 + $0x4] sm:$0xf]
      %v7385 = vld [vmem:[%s7382 + $0x8] sm:$0xf]
      %v7386 = vld [vmem:[%s7382 + $0xc] sm:$0xf]
      %v7387 = vld [vmem:[%s7382 + $0x10] sm:$0xf]
      %v7393 = vunpack.c.l.b16 %v7383
      %v7394 = vunpack.c.l.b16 %v7384
      %v7395 = vunpack.c.l.b16 %v7385
      %v7396 = vunpack.c.l.b16 %v7386
      %v7397 = vunpack.c.l.b16 %v7387
      %v7398 = vpack.c.b16 %v7394, %v7393
      %v7399 = vpack.c.b16 %v7396, %v7395
      %v7400 = vpack.c.b16 %v7397, %v7397
      %v7403 = vsel %vm5320, %v7351, 0
      %v7405 = vsel %vm5320, %v7353, 0
      %v7407 = vsel %vm5320, %v7355, 0
      %v7409 = vsel %vm5320, %v7357, 0
      %v7411 = vsel %vm5320, %v7359, 0
      %v7413 = vsel %vm5320, %v7361, 0
      %v7415 = vsel %vm5320, %v7363, 0
      %v7417 = vsel %vm5320, %v7365, 0
      %v7419 = vsel %vm5320, %v7367, 0
      %v7421 = vsel %vm5320, %v7369, 0
      %v7423 = vsel %vm5320, %v7371, 0
      %v7425 = vsel %vm5320, %v7373, 0
      %v7427 = vsel %vm5320, %v7375, 0
      %v7429 = vsel %vm5320, %v7377, 0
      %v7431 = vsel %vm5320, %v7379, 0
      %v7433 = vsel %vm5320, %v7381, 0
      %v7436 = vsel %vm1981, %v7400, 0
      %7438 = vmatpush.bf16.msra.mxu0 0
      %7439 = vmatpush.bf16.msra.mxu0 0
      %7440 = vmatpush.bf16.msra.mxu0 0
      %7441 = vmatpush.bf16.msra.mxu0 0
      %7442 = vmatpush.bf16.msra.mxu0 0
      %7443 = vmatpush.bf16.msra.mxu0 %v7436
      %7444 = vmatpush.bf16.msra.mxu0 %v7399
      %7445 = vmatpush.bf16.msra.mxu0 %v7398
      %7446 = vmatmul.bf16.gmra.mxu0 %v7403
      %v7447 = vpop.f32.mrf.mxu0
      %v7448 = vadd.f32 0.0, %v7447
      %v7449 = vpop.f32.mrf.mxu0
      %v7450 = vadd.f32 0.0, %v7449
      %7451 = vmatmul.bf16.gmra.mxu0 %v7405
      %v7452 = vpop.f32.mrf.mxu0
      %v7453 = vadd.f32 0.0, %v7452
      %v7454 = vpop.f32.mrf.mxu0
      %v7455 = vadd.f32 0.0, %v7454
      %7456 = vmatmul.bf16.gmra.mxu0 %v7407
      %v7457 = vpop.f32.mrf.mxu0
      %v7458 = vadd.f32 0.0, %v7457
      %v7459 = vpop.f32.mrf.mxu0
      %v7460 = vadd.f32 0.0, %v7459
      %7461 = vmatmul.bf16.gmra.mxu0 %v7409
      %v7462 = vpop.f32.mrf.mxu0
      %v7463 = vadd.f32 0.0, %v7462
      %v7464 = vpop.f32.mrf.mxu0
      %v7465 = vadd.f32 0.0, %v7464
      %7466 = vmatmul.bf16.gmra.mxu0 %v7411
      %v7467 = vpop.f32.mrf.mxu0
      %v7468 = vadd.f32 0.0, %v7467
      %v7469 = vpop.f32.mrf.mxu0
      %v7470 = vadd.f32 0.0, %v7469
      %7471 = vmatmul.bf16.gmra.mxu0 %v7413
      %v7472 = vpop.f32.mrf.mxu0
      %v7473 = vadd.f32 0.0, %v7472
      %v7474 = vpop.f32.mrf.mxu0
      %v7475 = vadd.f32 0.0, %v7474
      %7476 = vmatmul.bf16.gmra.mxu0 %v7415
      %v7477 = vpop.f32.mrf.mxu0
      %v7478 = vadd.f32 0.0, %v7477
      %v7479 = vpop.f32.mrf.mxu0
      %v7480 = vadd.f32 0.0, %v7479
      %7481 = vmatmul.bf16.gmra.mxu0 %v7417
      %v7482 = vpop.f32.mrf.mxu0
      %v7483 = vadd.f32 0.0, %v7482
      %v7484 = vpop.f32.mrf.mxu0
      %v7485 = vadd.f32 0.0, %v7484
      %7486 = vmatmul.bf16.gmra.mxu0 %v7419
      %v7487 = vpop.f32.mrf.mxu0
      %v7488 = vadd.f32 0.0, %v7487
      %v7489 = vpop.f32.mrf.mxu0
      %v7490 = vadd.f32 0.0, %v7489
      %7491 = vmatmul.bf16.gmra.mxu0 %v7421
      %v7492 = vpop.f32.mrf.mxu0
      %v7493 = vadd.f32 0.0, %v7492
      %v7494 = vpop.f32.mrf.mxu0
      %v7495 = vadd.f32 0.0, %v7494
      %7496 = vmatmul.bf16.gmra.mxu0 %v7423
      %v7497 = vpop.f32.mrf.mxu0
      %v7498 = vadd.f32 0.0, %v7497
      %v7499 = vpop.f32.mrf.mxu0
      %v7500 = vadd.f32 0.0, %v7499
      %7501 = vmatmul.bf16.gmra.mxu0 %v7425
      %v7502 = vpop.f32.mrf.mxu0
      %v7503 = vadd.f32 0.0, %v7502
      %v7504 = vpop.f32.mrf.mxu0
      %v7505 = vadd.f32 0.0, %v7504
      %7506 = vmatmul.bf16.gmra.mxu0 %v7427
      %v7507 = vpop.f32.mrf.mxu0
      %v7508 = vadd.f32 0.0, %v7507
      %v7509 = vpop.f32.mrf.mxu0
      %v7510 = vadd.f32 0.0, %v7509
      %7511 = vmatmul.bf16.gmra.mxu0 %v7429
      %v7512 = vpop.f32.mrf.mxu0
      %v7513 = vadd.f32 0.0, %v7512
      %v7514 = vpop.f32.mrf.mxu0
      %v7515 = vadd.f32 0.0, %v7514
      %7516 = vmatmul.bf16.gmra.mxu0 %v7431
      %v7517 = vpop.f32.mrf.mxu0
      %v7518 = vadd.f32 0.0, %v7517
      %v7519 = vpop.f32.mrf.mxu0
      %v7520 = vadd.f32 0.0, %v7519
      %7521 = vmatmul.bf16.gmra.mxu0 %v7433
      %v7522 = vpop.f32.mrf.mxu0
      %v7523 = vadd.f32 0.0, %v7522
      %v7524 = vpop.f32.mrf.mxu0
      %v7525 = vadd.f32 0.0, %v7524
      %7526 = vdwg.mxu0
      %v7527 = vadd.f32 %v6486, %v7448
      %v7528 = vadd.f32 %v6487, %v7450
      %v7529 = vadd.f32 %v6488, %v7453
      %v7530 = vadd.f32 %v6489, %v7455
      %v7531 = vadd.f32 %v6490, %v7458
      %v7532 = vadd.f32 %v6491, %v7460
      %v7533 = vadd.f32 %v6492, %v7463
      %v7534 = vadd.f32 %v6493, %v7465
      %v7535 = vadd.f32 %v6494, %v7468
      %v7536 = vadd.f32 %v6495, %v7470
      %v7537 = vadd.f32 %v6496, %v7473
      %v7538 = vadd.f32 %v6497, %v7475
      %v7539 = vadd.f32 %v6498, %v7478
      %v7540 = vadd.f32 %v6499, %v7480
      %v7541 = vadd.f32 %v6500, %v7483
      %v7542 = vadd.f32 %v6501, %v7485
      %v7543 = vadd.f32 %v6502, %v7488
      %v7544 = vadd.f32 %v6503, %v7490
      %v7545 = vadd.f32 %v6504, %v7493
      %v7546 = vadd.f32 %v6505, %v7495
      %v7547 = vadd.f32 %v6506, %v7498
      %v7548 = vadd.f32 %v6507, %v7500
      %v7549 = vadd.f32 %v6508, %v7503
      %v7550 = vadd.f32 %v6509, %v7505
      %v7551 = vadd.f32 %v6510, %v7508
      %v7552 = vadd.f32 %v6511, %v7510
      %v7553 = vadd.f32 %v6512, %v7513
      %v7554 = vadd.f32 %v6513, %v7515
      %v7555 = vadd.f32 %v6514, %v7518
      %v7556 = vadd.f32 %v6515, %v7520
      %v7557 = vadd.f32 %v6516, %v7523
      %v7558 = vadd.f32 %v6517, %v7525
      %v7559 = vld [vmem:[%s3155] sm:$0xf]
      %v7560 = vld [vmem:[%s3155 + $0x4] sm:$0xf]
      %v7561 = vld [vmem:[%s3155 + $0x8] sm:$0x3]
      %v7562 = vld [vmem:[%s3155 + $0xc] sm:$0xf]
      %v7563 = vld [vmem:[%s3155 + $0x10] sm:$0xf]
      %v7564 = vld [vmem:[%s3155 + $0x14] sm:$0x3]
      %v7565 = vld [vmem:[%s3155 + $0x18] sm:$0xf]
      %v7566 = vld [vmem:[%s3155 + $0x1c] sm:$0xf]
      %v7567 = vld [vmem:[%s3155 + $0x20] sm:$0x3]
      %v7568 = vld [vmem:[%s3155 + $0x24] sm:$0xf]
      %v7569 = vld [vmem:[%s3155 + $0x28] sm:$0xf]
      %v7570 = vld [vmem:[%s3155 + $0x2c] sm:$0x3]
      %v7571 = vld [vmem:[%s3155 + $0x30] sm:$0xf]
      %v7572 = vld [vmem:[%s3155 + $0x34] sm:$0xf]
      %v7573 = vld [vmem:[%s3155 + $0x38] sm:$0x3]
      %v7574 = vld [vmem:[%s3155 + $0x3c] sm:$0xf]
      %v7575 = vld [vmem:[%s3155 + $0x40] sm:$0xf]
      %v7576 = vld [vmem:[%s3155 + $0x44] sm:$0x3]
      %v7577 = vld [vmem:[%s3155 + $0x48] sm:$0xf]
      %v7578 = vld [vmem:[%s3155 + $0x4c] sm:$0xf]
      %v7579 = vld [vmem:[%s3155 + $0x50] sm:$0x3]
      %v7580 = vld [vmem:[%s3155 + $0x54] sm:$0xf]
      %v7581 = vld [vmem:[%s3155 + $0x58] sm:$0xf]
      %v7582 = vld [vmem:[%s3155 + $0x5c] sm:$0x3]
      %v7583 = vld [vmem:[%s3155 + $0x60] sm:$0xf]
      %v7584 = vld [vmem:[%s3155 + $0x64] sm:$0xf]
      %v7585 = vld [vmem:[%s3155 + $0x68] sm:$0x3]
      %v7586 = vld [vmem:[%s3155 + $0x6c] sm:$0xf]
      %v7587 = vld [vmem:[%s3155 + $0x70] sm:$0xf]
      %v7588 = vld [vmem:[%s3155 + $0x74] sm:$0x3]
      %v7589 = vld [vmem:[%s3155 + $0x78] sm:$0xf]
      %v7590 = vld [vmem:[%s3155 + $0x7c] sm:$0xf]
      %v7591 = vld [vmem:[%s3155 + $0x80] sm:$0x3]
      %v7592 = vld [vmem:[%s3155 + $0x84] sm:$0xf]
      %v7593 = vld [vmem:[%s3155 + $0x88] sm:$0xf]
      %v7594 = vld [vmem:[%s3155 + $0x8c] sm:$0x3]
      %v7595 = vld [vmem:[%s3155 + $0x90] sm:$0xf]
      %v7596 = vld [vmem:[%s3155 + $0x94] sm:$0xf]
      %v7597 = vld [vmem:[%s3155 + $0x98] sm:$0x3]
      %v7598 = vld [vmem:[%s3155 + $0x9c] sm:$0xf]
      %v7599 = vld [vmem:[%s3155 + $0xa0] sm:$0xf]
      %v7600 = vld [vmem:[%s3155 + $0xa4] sm:$0x3]
      %v7601 = vld [vmem:[%s3155 + $0xa8] sm:$0xf]
      %v7602 = vld [vmem:[%s3155 + $0xac] sm:$0xf]
      %v7603 = vld [vmem:[%s3155 + $0xb0] sm:$0x3]
      %v7604 = vld [vmem:[%s3155 + $0xb4] sm:$0xf]
      %v7605 = vld [vmem:[%s3155 + $0xb8] sm:$0xf]
      %v7606 = vld [vmem:[%s3155 + $0xbc] sm:$0x3]
      %v7639 = vunpack.c.l.b16 %v7559
      %v7640 = vunpack.c.l.b16 %v7560
      %v7641 = vunpack.c.l.b16 %v7562
      %v7642 = vunpack.c.l.b16 %v7563
      %v7643 = vunpack.c.l.b16 %v7565
      %v7644 = vunpack.c.l.b16 %v7566
      %v7645 = vunpack.c.l.b16 %v7568
      %v7646 = vunpack.c.l.b16 %v7569
      %v7647 = vunpack.c.l.b16 %v7571
      %v7648 = vunpack.c.l.b16 %v7572
      %v7649 = vunpack.c.l.b16 %v7574
      %v7650 = vunpack.c.l.b16 %v7575
      %v7651 = vunpack.c.l.b16 %v7577
      %v7652 = vunpack.c.l.b16 %v7578
      %v7653 = vunpack.c.l.b16 %v7580
      %v7654 = vunpack.c.l.b16 %v7581
      %v7655 = vunpack.c.l.b16 %v7583
      %v7656 = vunpack.c.l.b16 %v7584
      %v7657 = vunpack.c.l.b16 %v7586
      %v7658 = vunpack.c.l.b16 %v7587
      %v7659 = vunpack.c.l.b16 %v7589
      %v7660 = vunpack.c.l.b16 %v7590
      %v7661 = vunpack.c.l.b16 %v7592
      %v7662 = vunpack.c.l.b16 %v7593
      %v7663 = vunpack.c.l.b16 %v7595
      %v7664 = vunpack.c.l.b16 %v7596
      %v7665 = vunpack.c.l.b16 %v7598
      %v7666 = vunpack.c.l.b16 %v7599
      %v7667 = vunpack.c.l.b16 %v7601
      %v7668 = vunpack.c.l.b16 %v7602
      %v7669 = vunpack.c.l.b16 %v7604
      %v7670 = vunpack.c.l.b16 %v7605
      %v7671 = vpack.c.b16 %v7640, %v7639
      %v7672 = vpack.c.b16 %v7642, %v7641
      %v7673 = vpack.c.b16 %v7644, %v7643
      %v7674 = vpack.c.b16 %v7646, %v7645
      %v7675 = vpack.c.b16 %v7648, %v7647
      %v7676 = vpack.c.b16 %v7650, %v7649
      %v7677 = vpack.c.b16 %v7652, %v7651
      %v7678 = vpack.c.b16 %v7654, %v7653
      %v7679 = vpack.c.b16 %v7656, %v7655
      %v7680 = vpack.c.b16 %v7658, %v7657
      %v7681 = vpack.c.b16 %v7660, %v7659
      %v7682 = vpack.c.b16 %v7662, %v7661
      %v7683 = vpack.c.b16 %v7664, %v7663
      %v7684 = vpack.c.b16 %v7666, %v7665
      %v7685 = vpack.c.b16 %v7668, %v7667
      %v7686 = vpack.c.b16 %v7670, %v7669
      %v7703 = vunpack.c.l.b16 %v7561
      %v7704 = vunpack.c.l.b16 %v7564
      %v7705 = vunpack.c.l.b16 %v7567
      %v7706 = vunpack.c.l.b16 %v7570
      %v7707 = vunpack.c.l.b16 %v7573
      %v7708 = vunpack.c.l.b16 %v7576
      %v7709 = vunpack.c.l.b16 %v7579
      %v7710 = vunpack.c.l.b16 %v7582
      %v7711 = vunpack.c.l.b16 %v7585
      %v7712 = vunpack.c.l.b16 %v7588
      %v7713 = vunpack.c.l.b16 %v7591
      %v7714 = vunpack.c.l.b16 %v7594
      %v7715 = vunpack.c.l.b16 %v7597
      %v7716 = vunpack.c.l.b16 %v7600
      %v7717 = vunpack.c.l.b16 %v7603
      %v7718 = vunpack.c.l.b16 %v7606
      %v7719 = vpack.c.b16 %v7703, %v7703
      %v7720 = vpack.c.b16 %v7704, %v7704
      %v7721 = vpack.c.b16 %v7705, %v7705
      %v7722 = vpack.c.b16 %v7706, %v7706
      %v7723 = vpack.c.b16 %v7707, %v7707
      %v7724 = vpack.c.b16 %v7708, %v7708
      %v7725 = vpack.c.b16 %v7709, %v7709
      %v7726 = vpack.c.b16 %v7710, %v7710
      %v7727 = vpack.c.b16 %v7711, %v7711
      %v7728 = vpack.c.b16 %v7712, %v7712
      %v7729 = vpack.c.b16 %v7713, %v7713
      %v7730 = vpack.c.b16 %v7714, %v7714
      %v7731 = vpack.c.b16 %v7715, %v7715
      %v7732 = vpack.c.b16 %v7716, %v7716
      %v7733 = vpack.c.b16 %v7717, %v7717
      %v7734 = vpack.c.b16 %v7718, %v7718
      %v7736 = vshrl.u32 %v7671, 16
      %v7738 = vshll.u32 %v7671, 16
      %v7740 = vrot.slane %v7738, 1
      %v7741 = vor.u32 %v7736, %v7740
      %v7743 = vshll.u32 %v7719, 16
      %v7745 = vrot.slane %v7743, 1
      %v7746 = vsel %vm1228, %v7741, %v7745
      %v7748 = vshrl.u32 %v7672, 16
      %v7750 = vshll.u32 %v7672, 16
      %v7752 = vrot.slane %v7750, 1
      %v7753 = vor.u32 %v7748, %v7752
      %v7755 = vshll.u32 %v7720, 16
      %v7757 = vrot.slane %v7755, 1
      %v7758 = vsel %vm1228, %v7753, %v7757
      %v7760 = vshrl.u32 %v7673, 16
      %v7762 = vshll.u32 %v7673, 16
      %v7764 = vrot.slane %v7762, 1
      %v7765 = vor.u32 %v7760, %v7764
      %v7767 = vshll.u32 %v7721, 16
      %v7769 = vrot.slane %v7767, 1
      %v7770 = vsel %vm1228, %v7765, %v7769
      %v7772 = vshrl.u32 %v7674, 16
      %v7774 = vshll.u32 %v7674, 16
      %v7776 = vrot.slane %v7774, 1
      %v7777 = vor.u32 %v7772, %v7776
      %v7779 = vshll.u32 %v7722, 16
      %v7781 = vrot.slane %v7779, 1
      %v7782 = vsel %vm1228, %v7777, %v7781
      %v7784 = vshrl.u32 %v7675, 16
      %v7786 = vshll.u32 %v7675, 16
      %v7788 = vrot.slane %v7786, 1
      %v7789 = vor.u32 %v7784, %v7788
      %v7791 = vshll.u32 %v7723, 16
      %v7793 = vrot.slane %v7791, 1
      %v7794 = vsel %vm1228, %v7789, %v7793
      %v7796 = vshrl.u32 %v7676, 16
      %v7798 = vshll.u32 %v7676, 16
      %v7800 = vrot.slane %v7798, 1
      %v7801 = vor.u32 %v7796, %v7800
      %v7803 = vshll.u32 %v7724, 16
      %v7805 = vrot.slane %v7803, 1
      %v7806 = vsel %vm1228, %v7801, %v7805
      %v7808 = vshrl.u32 %v7677, 16
      %v7810 = vshll.u32 %v7677, 16
      %v7812 = vrot.slane %v7810, 1
      %v7813 = vor.u32 %v7808, %v7812
      %v7815 = vshll.u32 %v7725, 16
      %v7817 = vrot.slane %v7815, 1
      %v7818 = vsel %vm1228, %v7813, %v7817
      %v7820 = vshrl.u32 %v7678, 16
      %v7822 = vshll.u32 %v7678, 16
      %v7824 = vrot.slane %v7822, 1
      %v7825 = vor.u32 %v7820, %v7824
      %v7827 = vshll.u32 %v7726, 16
      %v7829 = vrot.slane %v7827, 1
      %v7830 = vsel %vm1228, %v7825, %v7829
      %v7832 = vshrl.u32 %v7679, 16
      %v7834 = vshll.u32 %v7679, 16
      %v7836 = vrot.slane %v7834, 1
      %v7837 = vor.u32 %v7832, %v7836
      %v7839 = vshll.u32 %v7727, 16
      %v7841 = vrot.slane %v7839, 1
      %v7842 = vsel %vm1228, %v7837, %v7841
      %v7844 = vshrl.u32 %v7680, 16
      %v7846 = vshll.u32 %v7680, 16
      %v7848 = vrot.slane %v7846, 1
      %v7849 = vor.u32 %v7844, %v7848
      %v7851 = vshll.u32 %v7728, 16
      %v7853 = vrot.slane %v7851, 1
      %v7854 = vsel %vm1228, %v7849, %v7853
      %v7856 = vshrl.u32 %v7681, 16
      %v7858 = vshll.u32 %v7681, 16
      %v7860 = vrot.slane %v7858, 1
      %v7861 = vor.u32 %v7856, %v7860
      %v7863 = vshll.u32 %v7729, 16
      %v7865 = vrot.slane %v7863, 1
      %v7866 = vsel %vm1228, %v7861, %v7865
      %v7868 = vshrl.u32 %v7682, 16
      %v7870 = vshll.u32 %v7682, 16
      %v7872 = vrot.slane %v7870, 1
      %v7873 = vor.u32 %v7868, %v7872
      %v7875 = vshll.u32 %v7730, 16
      %v7877 = vrot.slane %v7875, 1
      %v7878 = vsel %vm1228, %v7873, %v7877
      %v7880 = vshrl.u32 %v7683, 16
      %v7882 = vshll.u32 %v7683, 16
      %v7884 = vrot.slane %v7882, 1
      %v7885 = vor.u32 %v7880, %v7884
      %v7887 = vshll.u32 %v7731, 16
      %v7889 = vrot.slane %v7887, 1
      %v7890 = vsel %vm1228, %v7885, %v7889
      %v7892 = vshrl.u32 %v7684, 16
      %v7894 = vshll.u32 %v7684, 16
      %v7896 = vrot.slane %v7894, 1
      %v7897 = vor.u32 %v7892, %v7896
      %v7899 = vshll.u32 %v7732, 16
      %v7901 = vrot.slane %v7899, 1
      %v7902 = vsel %vm1228, %v7897, %v7901
      %v7904 = vshrl.u32 %v7685, 16
      %v7906 = vshll.u32 %v7685, 16
      %v7908 = vrot.slane %v7906, 1
      %v7909 = vor.u32 %v7904, %v7908
      %v7911 = vshll.u32 %v7733, 16
      %v7913 = vrot.slane %v7911, 1
      %v7914 = vsel %vm1228, %v7909, %v7913
      %v7916 = vshrl.u32 %v7686, 16
      %v7918 = vshll.u32 %v7686, 16
      %v7920 = vrot.slane %v7918, 1
      %v7921 = vor.u32 %v7916, %v7920
      %v7923 = vshll.u32 %v7734, 16
      %v7925 = vrot.slane %v7923, 1
      %v7926 = vsel %vm1228, %v7921, %v7925
      %7927 = vrot.lane.b32.xlu0 %v7746, 8
      %v7928 = vpop.permute.xlu0 %7927
      %7929 = vrot.lane.b32.xlu0 %v7758, 8
      %v7930 = vpop.permute.xlu0 %7929
      %7931 = vrot.lane.b32.xlu0 %v7770, 8
      %v7932 = vpop.permute.xlu0 %7931
      %7933 = vrot.lane.b32.xlu0 %v7782, 8
      %v7934 = vpop.permute.xlu0 %7933
      %7935 = vrot.lane.b32.xlu0 %v7794, 8
      %v7936 = vpop.permute.xlu0 %7935
      %7937 = vrot.lane.b32.xlu0 %v7806, 8
      %v7938 = vpop.permute.xlu0 %7937
      %7939 = vrot.lane.b32.xlu0 %v7818, 8
      %v7940 = vpop.permute.xlu0 %7939
      %7941 = vrot.lane.b32.xlu0 %v7830, 8
      %v7942 = vpop.permute.xlu0 %7941
      %7943 = vrot.lane.b32.xlu0 %v7842, 8
      %v7944 = vpop.permute.xlu0 %7943
      %7945 = vrot.lane.b32.xlu0 %v7854, 8
      %v7946 = vpop.permute.xlu0 %7945
      %7947 = vrot.lane.b32.xlu0 %v7866, 8
      %v7948 = vpop.permute.xlu0 %7947
      %7949 = vrot.lane.b32.xlu0 %v7878, 8
      %v7950 = vpop.permute.xlu0 %7949
      %7951 = vrot.lane.b32.xlu0 %v7890, 8
      %v7952 = vpop.permute.xlu0 %7951
      %7953 = vrot.lane.b32.xlu0 %v7902, 8
      %v7954 = vpop.permute.xlu0 %7953
      %7955 = vrot.lane.b32.xlu0 %v7914, 8
      %v7956 = vpop.permute.xlu0 %7955
      %7957 = vrot.lane.b32.xlu0 %v7926, 8
      %v7958 = vpop.permute.xlu0 %7957
      %v7959 = vrot.slane %v7671, 1
      %v7960 = vrot.slane %v7719, 1
      %v7961 = vsel %vm1517, %v7959, %v7960
      %v7962 = vrot.slane %v7672, 1
      %v7963 = vrot.slane %v7720, 1
      %v7964 = vsel %vm1517, %v7962, %v7963
      %v7965 = vrot.slane %v7673, 1
      %v7966 = vrot.slane %v7721, 1
      %v7967 = vsel %vm1517, %v7965, %v7966
      %v7968 = vrot.slane %v7674, 1
      %v7969 = vrot.slane %v7722, 1
      %v7970 = vsel %vm1517, %v7968, %v7969
      %v7971 = vrot.slane %v7675, 1
      %v7972 = vrot.slane %v7723, 1
      %v7973 = vsel %vm1517, %v7971, %v7972
      %v7974 = vrot.slane %v7676, 1
      %v7975 = vrot.slane %v7724, 1
      %v7976 = vsel %vm1517, %v7974, %v7975
      %v7977 = vrot.slane %v7677, 1
      %v7978 = vrot.slane %v7725, 1
      %v7979 = vsel %vm1517, %v7977, %v7978
      %v7980 = vrot.slane %v7678, 1
      %v7981 = vrot.slane %v7726, 1
      %v7982 = vsel %vm1517, %v7980, %v7981
      %v7983 = vrot.slane %v7679, 1
      %v7984 = vrot.slane %v7727, 1
      %v7985 = vsel %vm1517, %v7983, %v7984
      %v7986 = vrot.slane %v7680, 1
      %v7987 = vrot.slane %v7728, 1
      %v7988 = vsel %vm1517, %v7986, %v7987
      %v7989 = vrot.slane %v7681, 1
      %v7990 = vrot.slane %v7729, 1
      %v7991 = vsel %vm1517, %v7989, %v7990
      %v7992 = vrot.slane %v7682, 1
      %v7993 = vrot.slane %v7730, 1
      %v7994 = vsel %vm1517, %v7992, %v7993
      %v7995 = vrot.slane %v7683, 1
      %v7996 = vrot.slane %v7731, 1
      %v7997 = vsel %vm1517, %v7995, %v7996
      %v7998 = vrot.slane %v7684, 1
      %v7999 = vrot.slane %v7732, 1
      %v8000 = vsel %vm1517, %v7998, %v7999
      %v8001 = vrot.slane %v7685, 1
      %v8002 = vrot.slane %v7733, 1
      %v8003 = vsel %vm1517, %v8001, %v8002
      %v8004 = vrot.slane %v7686, 1
      %v8005 = vrot.slane %v7734, 1
      %v8006 = vsel %vm1517, %v8004, %v8005
      %8007 = vrot.lane.b32.xlu0 %v7961, 16
      %v8008 = vpop.permute.xlu0 %8007
      %8009 = vrot.lane.b32.xlu0 %v7964, 16
      %v8010 = vpop.permute.xlu0 %8009
      %8011 = vrot.lane.b32.xlu0 %v7967, 16
      %v8012 = vpop.permute.xlu0 %8011
      %8013 = vrot.lane.b32.xlu0 %v7970, 16
      %v8014 = vpop.permute.xlu0 %8013
      %8015 = vrot.lane.b32.xlu0 %v7973, 16
      %v8016 = vpop.permute.xlu0 %8015
      %8017 = vrot.lane.b32.xlu0 %v7976, 16
      %v8018 = vpop.permute.xlu0 %8017
      %8019 = vrot.lane.b32.xlu0 %v7979, 16
      %v8020 = vpop.permute.xlu0 %8019
      %8021 = vrot.lane.b32.xlu0 %v7982, 16
      %v8022 = vpop.permute.xlu0 %8021
      %8023 = vrot.lane.b32.xlu0 %v7985, 16
      %v8024 = vpop.permute.xlu0 %8023
      %8025 = vrot.lane.b32.xlu0 %v7988, 16
      %v8026 = vpop.permute.xlu0 %8025
      %8027 = vrot.lane.b32.xlu0 %v7991, 16
      %v8028 = vpop.permute.xlu0 %8027
      %8029 = vrot.lane.b32.xlu0 %v7994, 16
      %v8030 = vpop.permute.xlu0 %8029
      %8031 = vrot.lane.b32.xlu0 %v7997, 16
      %v8032 = vpop.permute.xlu0 %8031
      %8033 = vrot.lane.b32.xlu0 %v8000, 16
      %v8034 = vpop.permute.xlu0 %8033
      %8035 = vrot.lane.b32.xlu0 %v8003, 16
      %v8036 = vpop.permute.xlu0 %8035
      %8037 = vrot.lane.b32.xlu0 %v8006, 16
      %v8038 = vpop.permute.xlu0 %8037
      %v8039 = vrot.slane %v7736, 1
      %v8040 = vrot.slane %v7738, 2
      %v8041 = vor.u32 %v8039, %v8040
      %v8042 = vshrl.u32 %v7719, 16
      %v8044 = vrot.slane %v8042, 1
      %v8045 = vrot.slane %v7743, 2
      %v8046 = vor.u32 %v8044, %v8045
      %v8047 = vsel %vm4913, %v8041, %v8046
      %v8048 = vrot.slane %v7748, 1
      %v8049 = vrot.slane %v7750, 2
      %v8050 = vor.u32 %v8048, %v8049
      %v8051 = vshrl.u32 %v7720, 16
      %v8053 = vrot.slane %v8051, 1
      %v8054 = vrot.slane %v7755, 2
      %v8055 = vor.u32 %v8053, %v8054
      %v8056 = vsel %vm4913, %v8050, %v8055
      %v8057 = vrot.slane %v7760, 1
      %v8058 = vrot.slane %v7762, 2
      %v8059 = vor.u32 %v8057, %v8058
      %v8060 = vshrl.u32 %v7721, 16
      %v8062 = vrot.slane %v8060, 1
      %v8063 = vrot.slane %v7767, 2
      %v8064 = vor.u32 %v8062, %v8063
      %v8065 = vsel %vm4913, %v8059, %v8064
      %v8066 = vrot.slane %v7772, 1
      %v8067 = vrot.slane %v7774, 2
      %v8068 = vor.u32 %v8066, %v8067
      %v8069 = vshrl.u32 %v7722, 16
      %v8071 = vrot.slane %v8069, 1
      %v8072 = vrot.slane %v7779, 2
      %v8073 = vor.u32 %v8071, %v8072
      %v8074 = vsel %vm4913, %v8068, %v8073
      %v8075 = vrot.slane %v7784, 1
      %v8076 = vrot.slane %v7786, 2
      %v8077 = vor.u32 %v8075, %v8076
      %v8078 = vshrl.u32 %v7723, 16
      %v8080 = vrot.slane %v8078, 1
      %v8081 = vrot.slane %v7791, 2
      %v8082 = vor.u32 %v8080, %v8081
      %v8083 = vsel %vm4913, %v8077, %v8082
      %v8084 = vrot.slane %v7796, 1
      %v8085 = vrot.slane %v7798, 2
      %v8086 = vor.u32 %v8084, %v8085
      %v8087 = vshrl.u32 %v7724, 16
      %v8089 = vrot.slane %v8087, 1
      %v8090 = vrot.slane %v7803, 2
      %v8091 = vor.u32 %v8089, %v8090
      %v8092 = vsel %vm4913, %v8086, %v8091
      %v8093 = vrot.slane %v7808, 1
      %v8094 = vrot.slane %v7810, 2
      %v8095 = vor.u32 %v8093, %v8094
      %v8096 = vshrl.u32 %v7725, 16
      %v8098 = vrot.slane %v8096, 1
      %v8099 = vrot.slane %v7815, 2
      %v8100 = vor.u32 %v8098, %v8099
      %v8101 = vsel %vm4913, %v8095, %v8100
      %v8102 = vrot.slane %v7820, 1
      %v8103 = vrot.slane %v7822, 2
      %v8104 = vor.u32 %v8102, %v8103
      %v8105 = vshrl.u32 %v7726, 16
      %v8107 = vrot.slane %v8105, 1
      %v8108 = vrot.slane %v7827, 2
      %v8109 = vor.u32 %v8107, %v8108
      %v8110 = vsel %vm4913, %v8104, %v8109
      %v8111 = vrot.slane %v7832, 1
      %v8112 = vrot.slane %v7834, 2
      %v8113 = vor.u32 %v8111, %v8112
      %v8114 = vshrl.u32 %v7727, 16
      %v8116 = vrot.slane %v8114, 1
      %v8117 = vrot.slane %v7839, 2
      %v8118 = vor.u32 %v8116, %v8117
      %v8119 = vsel %vm4913, %v8113, %v8118
      %v8120 = vrot.slane %v7844, 1
      %v8121 = vrot.slane %v7846, 2
      %v8122 = vor.u32 %v8120, %v8121
      %v8123 = vshrl.u32 %v7728, 16
      %v8125 = vrot.slane %v8123, 1
      %v8126 = vrot.slane %v7851, 2
      %v8127 = vor.u32 %v8125, %v8126
      %v8128 = vsel %vm4913, %v8122, %v8127
      %v8129 = vrot.slane %v7856, 1
      %v8130 = vrot.slane %v7858, 2
      %v8131 = vor.u32 %v8129, %v8130
      %v8132 = vshrl.u32 %v7729, 16
      %v8134 = vrot.slane %v8132, 1
      %v8135 = vrot.slane %v7863, 2
      %v8136 = vor.u32 %v8134, %v8135
      %v8137 = vsel %vm4913, %v8131, %v8136
      %v8138 = vrot.slane %v7868, 1
      %v8139 = vrot.slane %v7870, 2
      %v8140 = vor.u32 %v8138, %v8139
      %v8141 = vshrl.u32 %v7730, 16
      %v8143 = vrot.slane %v8141, 1
      %v8144 = vrot.slane %v7875, 2
      %v8145 = vor.u32 %v8143, %v8144
      %v8146 = vsel %vm4913, %v8140, %v8145
      %v8147 = vrot.slane %v7880, 1
      %v8148 = vrot.slane %v7882, 2
      %v8149 = vor.u32 %v8147, %v8148
      %v8150 = vshrl.u32 %v7731, 16
      %v8152 = vrot.slane %v8150, 1
      %v8153 = vrot.slane %v7887, 2
      %v8154 = vor.u32 %v8152, %v8153
      %v8155 = vsel %vm4913, %v8149, %v8154
      %v8156 = vrot.slane %v7892, 1
      %v8157 = vrot.slane %v7894, 2
      %v8158 = vor.u32 %v8156, %v8157
      %v8159 = vshrl.u32 %v7732, 16
      %v8161 = vrot.slane %v8159, 1
      %v8162 = vrot.slane %v7899, 2
      %v8163 = vor.u32 %v8161, %v8162
      %v8164 = vsel %vm4913, %v8158, %v8163
      %v8165 = vrot.slane %v7904, 1
      %v8166 = vrot.slane %v7906, 2
      %v8167 = vor.u32 %v8165, %v8166
      %v8168 = vshrl.u32 %v7733, 16
      %v8170 = vrot.slane %v8168, 1
      %v8171 = vrot.slane %v7911, 2
      %v8172 = vor.u32 %v8170, %v8171
      %v8173 = vsel %vm4913, %v8167, %v8172
      %v8174 = vrot.slane %v7916, 1
      %v8175 = vrot.slane %v7918, 2
      %v8176 = vor.u32 %v8174, %v8175
      %v8177 = vshrl.u32 %v7734, 16
      %v8179 = vrot.slane %v8177, 1
      %v8180 = vrot.slane %v7923, 2
      %v8181 = vor.u32 %v8179, %v8180
      %v8182 = vsel %vm4913, %v8176, %v8181
      %8183 = vrot.lane.b32.xlu0 %v8047, 24
      %v8184 = vpop.permute.xlu0 %8183
      %8185 = vrot.lane.b32.xlu0 %v8056, 24
      %v8186 = vpop.permute.xlu0 %8185
      %8187 = vrot.lane.b32.xlu0 %v8065, 24
      %v8188 = vpop.permute.xlu0 %8187
      %8189 = vrot.lane.b32.xlu0 %v8074, 24
      %v8190 = vpop.permute.xlu0 %8189
      %8191 = vrot.lane.b32.xlu0 %v8083, 24
      %v8192 = vpop.permute.xlu0 %8191
      %8193 = vrot.lane.b32.xlu0 %v8092, 24
      %v8194 = vpop.permute.xlu0 %8193
      %8195 = vrot.lane.b32.xlu0 %v8101, 24
      %v8196 = vpop.permute.xlu0 %8195
      %8197 = vrot.lane.b32.xlu0 %v8110, 24
      %v8198 = vpop.permute.xlu0 %8197
      %8199 = vrot.lane.b32.xlu0 %v8119, 24
      %v8200 = vpop.permute.xlu0 %8199
      %8201 = vrot.lane.b32.xlu0 %v8128, 24
      %v8202 = vpop.permute.xlu0 %8201
      %8203 = vrot.lane.b32.xlu0 %v8137, 24
      %v8204 = vpop.permute.xlu0 %8203
      %8205 = vrot.lane.b32.xlu0 %v8146, 24
      %v8206 = vpop.permute.xlu0 %8205
      %8207 = vrot.lane.b32.xlu0 %v8155, 24
      %v8208 = vpop.permute.xlu0 %8207
      %8209 = vrot.lane.b32.xlu0 %v8164, 24
      %v8210 = vpop.permute.xlu0 %8209
      %8211 = vrot.lane.b32.xlu0 %v8173, 24
      %v8212 = vpop.permute.xlu0 %8211
      %8213 = vrot.lane.b32.xlu0 %v8182, 24
      %v8214 = vpop.permute.xlu0 %8213
      %v8215 = vrot.slane %v7671, 2
      %v8216 = vrot.slane %v7719, 2
      %v8217 = vsel %vm5090, %v8215, %v8216
      %v8218 = vrot.slane %v7672, 2
      %v8219 = vrot.slane %v7720, 2
      %v8220 = vsel %vm5090, %v8218, %v8219
      %v8221 = vrot.slane %v7673, 2
      %v8222 = vrot.slane %v7721, 2
      %v8223 = vsel %vm5090, %v8221, %v8222
      %v8224 = vrot.slane %v7674, 2
      %v8225 = vrot.slane %v7722, 2
      %v8226 = vsel %vm5090, %v8224, %v8225
      %v8227 = vrot.slane %v7675, 2
      %v8228 = vrot.slane %v7723, 2
      %v8229 = vsel %vm5090, %v8227, %v8228
      %v8230 = vrot.slane %v7676, 2
      %v8231 = vrot.slane %v7724, 2
      %v8232 = vsel %vm5090, %v8230, %v8231
      %v8233 = vrot.slane %v7677, 2
      %v8234 = vrot.slane %v7725, 2
      %v8235 = vsel %vm5090, %v8233, %v8234
      %v8236 = vrot.slane %v7678, 2
      %v8237 = vrot.slane %v7726, 2
      %v8238 = vsel %vm5090, %v8236, %v8237
      %v8239 = vrot.slane %v7679, 2
      %v8240 = vrot.slane %v7727, 2
      %v8241 = vsel %vm5090, %v8239, %v8240
      %v8242 = vrot.slane %v7680, 2
      %v8243 = vrot.slane %v7728, 2
      %v8244 = vsel %vm5090, %v8242, %v8243
      %v8245 = vrot.slane %v7681, 2
      %v8246 = vrot.slane %v7729, 2
      %v8247 = vsel %vm5090, %v8245, %v8246
      %v8248 = vrot.slane %v7682, 2
      %v8249 = vrot.slane %v7730, 2
      %v8250 = vsel %vm5090, %v8248, %v8249
      %v8251 = vrot.slane %v7683, 2
      %v8252 = vrot.slane %v7731, 2
      %v8253 = vsel %vm5090, %v8251, %v8252
      %v8254 = vrot.slane %v7684, 2
      %v8255 = vrot.slane %v7732, 2
      %v8256 = vsel %vm5090, %v8254, %v8255
      %v8257 = vrot.slane %v7685, 2
      %v8258 = vrot.slane %v7733, 2
      %v8259 = vsel %vm5090, %v8257, %v8258
      %v8260 = vrot.slane %v7686, 2
      %v8261 = vrot.slane %v7734, 2
      %v8262 = vsel %vm5090, %v8260, %v8261
      %8263 = vrot.lane.b32.xlu0 %v8217, 32
      %v8264 = vpop.permute.xlu0 %8263
      %8265 = vrot.lane.b32.xlu0 %v8220, 32
      %v8266 = vpop.permute.xlu0 %8265
      %8267 = vrot.lane.b32.xlu0 %v8223, 32
      %v8268 = vpop.permute.xlu0 %8267
      %8269 = vrot.lane.b32.xlu0 %v8226, 32
      %v8270 = vpop.permute.xlu0 %8269
      %8271 = vrot.lane.b32.xlu0 %v8229, 32
      %v8272 = vpop.permute.xlu0 %8271
      %8273 = vrot.lane.b32.xlu0 %v8232, 32
      %v8274 = vpop.permute.xlu0 %8273
      %8275 = vrot.lane.b32.xlu0 %v8235, 32
      %v8276 = vpop.permute.xlu0 %8275
      %8277 = vrot.lane.b32.xlu0 %v8238, 32
      %v8278 = vpop.permute.xlu0 %8277
      %8279 = vrot.lane.b32.xlu0 %v8241, 32
      %v8280 = vpop.permute.xlu0 %8279
      %8281 = vrot.lane.b32.xlu0 %v8244, 32
      %v8282 = vpop.permute.xlu0 %8281
      %8283 = vrot.lane.b32.xlu0 %v8247, 32
      %v8284 = vpop.permute.xlu0 %8283
      %8285 = vrot.lane.b32.xlu0 %v8250, 32
      %v8286 = vpop.permute.xlu0 %8285
      %8287 = vrot.lane.b32.xlu0 %v8253, 32
      %v8288 = vpop.permute.xlu0 %8287
      %8289 = vrot.lane.b32.xlu0 %v8256, 32
      %v8290 = vpop.permute.xlu0 %8289
      %8291 = vrot.lane.b32.xlu0 %v8259, 32
      %v8292 = vpop.permute.xlu0 %8291
      %8293 = vrot.lane.b32.xlu0 %v8262, 32
      %v8294 = vpop.permute.xlu0 %8293
      %v8296 = vsel %vm1630, %v7671, %v7928
      %v8298 = vsel %vm1630, %v7672, %v7930
      %v8300 = vsel %vm1630, %v7673, %v7932
      %v8302 = vsel %vm1630, %v7674, %v7934
      %v8304 = vsel %vm1630, %v7675, %v7936
      %v8306 = vsel %vm1630, %v7676, %v7938
      %v8308 = vsel %vm1630, %v7677, %v7940
      %v8310 = vsel %vm1630, %v7678, %v7942
      %v8312 = vsel %vm1630, %v7679, %v7944
      %v8314 = vsel %vm1630, %v7680, %v7946
      %v8316 = vsel %vm1630, %v7681, %v7948
      %v8318 = vsel %vm1630, %v7682, %v7950
      %v8320 = vsel %vm1630, %v7683, %v7952
      %v8322 = vsel %vm1630, %v7684, %v7954
      %v8324 = vsel %vm1630, %v7685, %v7956
      %v8326 = vsel %vm1630, %v7686, %v7958
      %v8328 = vsel %vm1695, %v8296, %v8008
      %v8330 = vsel %vm1695, %v8298, %v8010
      %v8332 = vsel %vm1695, %v8300, %v8012
      %v8334 = vsel %vm1695, %v8302, %v8014
      %v8336 = vsel %vm1695, %v8304, %v8016
      %v8338 = vsel %vm1695, %v8306, %v8018
      %v8340 = vsel %vm1695, %v8308, %v8020
      %v8342 = vsel %vm1695, %v8310, %v8022
      %v8344 = vsel %vm1695, %v8312, %v8024
      %v8346 = vsel %vm1695, %v8314, %v8026
      %v8348 = vsel %vm1695, %v8316, %v8028
      %v8350 = vsel %vm1695, %v8318, %v8030
      %v8352 = vsel %vm1695, %v8320, %v8032
      %v8354 = vsel %vm1695, %v8322, %v8034
      %v8356 = vsel %vm1695, %v8324, %v8036
      %v8358 = vsel %vm1695, %v8326, %v8038
      %v8360 = vsel %vm1932, %v8328, %v8184
      %v8362 = vsel %vm1932, %v8330, %v8186
      %v8364 = vsel %vm1932, %v8332, %v8188
      %v8366 = vsel %vm1932, %v8334, %v8190
      %v8368 = vsel %vm1932, %v8336, %v8192
      %v8370 = vsel %vm1932, %v8338, %v8194
      %v8372 = vsel %vm1932, %v8340, %v8196
      %v8374 = vsel %vm1932, %v8342, %v8198
      %v8376 = vsel %vm1932, %v8344, %v8200
      %v8378 = vsel %vm1932, %v8346, %v8202
      %v8380 = vsel %vm1932, %v8348, %v8204
      %v8382 = vsel %vm1932, %v8350, %v8206
      %v8384 = vsel %vm1932, %v8352, %v8208
      %v8386 = vsel %vm1932, %v8354, %v8210
      %v8388 = vsel %vm1932, %v8356, %v8212
      %v8390 = vsel %vm1932, %v8358, %v8214
      %v8392 = vsel %vm5267, %v8360, %v8264
      %v8394 = vsel %vm5267, %v8362, %v8266
      %v8396 = vsel %vm5267, %v8364, %v8268
      %v8398 = vsel %vm5267, %v8366, %v8270
      %v8400 = vsel %vm5267, %v8368, %v8272
      %v8402 = vsel %vm5267, %v8370, %v8274
      %v8404 = vsel %vm5267, %v8372, %v8276
      %v8406 = vsel %vm5267, %v8374, %v8278
      %v8408 = vsel %vm5267, %v8376, %v8280
      %v8410 = vsel %vm5267, %v8378, %v8282
      %v8412 = vsel %vm5267, %v8380, %v8284
      %v8414 = vsel %vm5267, %v8382, %v8286
      %v8416 = vsel %vm5267, %v8384, %v8288
      %v8418 = vsel %vm5267, %v8386, %v8290
      %v8420 = vsel %vm5267, %v8388, %v8292
      %v8422 = vsel %vm5267, %v8390, %v8294
      %s8423 = scalar_lea.vmem %s5, 60
      %v8424 = vld [vmem:[%s8423] sm:$0xf]
      %v8425 = vld [vmem:[%s8423 + $0x4] sm:$0xf]
      %v8426 = vld [vmem:[%s8423 + $0x8] sm:$0xf]
      %v8427 = vld [vmem:[%s8423 + $0xc] sm:$0xf]
      %v8428 = vld [vmem:[%s8423 + $0x10] sm:$0xf]
      %v8434 = vunpack.c.l.b16 %v8424
      %v8435 = vunpack.c.l.b16 %v8425
      %v8436 = vunpack.c.l.b16 %v8426
      %v8437 = vunpack.c.l.b16 %v8427
      %v8438 = vunpack.c.l.b16 %v8428
      %v8439 = vpack.c.b16 %v8435, %v8434
      %v8440 = vpack.c.b16 %v8437, %v8436
      %v8441 = vpack.c.b16 %v8438, %v8438
      %v8444 = vsel %vm5320, %v8392, 0
      %v8446 = vsel %vm5320, %v8394, 0
      %v8448 = vsel %vm5320, %v8396, 0
      %v8450 = vsel %vm5320, %v8398, 0
      %v8452 = vsel %vm5320, %v8400, 0
      %v8454 = vsel %vm5320, %v8402, 0
      %v8456 = vsel %vm5320, %v8404, 0
      %v8458 = vsel %vm5320, %v8406, 0
      %v8460 = vsel %vm5320, %v8408, 0
      %v8462 = vsel %vm5320, %v8410, 0
      %v8464 = vsel %vm5320, %v8412, 0
      %v8466 = vsel %vm5320, %v8414, 0
      %v8468 = vsel %vm5320, %v8416, 0
      %v8470 = vsel %vm5320, %v8418, 0
      %v8472 = vsel %vm5320, %v8420, 0
      %v8474 = vsel %vm5320, %v8422, 0
      %v8477 = vsel %vm1981, %v8441, 0
      %8479 = vmatpush.bf16.msra.mxu0 0
      %8480 = vmatpush.bf16.msra.mxu0 0
      %8481 = vmatpush.bf16.msra.mxu0 0
      %8482 = vmatpush.bf16.msra.mxu0 0
      %8483 = vmatpush.bf16.msra.mxu0 0
      %8484 = vmatpush.bf16.msra.mxu0 %v8477
      %8485 = vmatpush.bf16.msra.mxu0 %v8440
      %8486 = vmatpush.bf16.msra.mxu0 %v8439
      %8487 = vmatmul.bf16.gmra.mxu0 %v8444
      %v8488 = vpop.f32.mrf.mxu0
      %v8489 = vadd.f32 0.0, %v8488
      %v8490 = vpop.f32.mrf.mxu0
      %v8491 = vadd.f32 0.0, %v8490
      %8492 = vmatmul.bf16.gmra.mxu0 %v8446
      %v8493 = vpop.f32.mrf.mxu0
      %v8494 = vadd.f32 0.0, %v8493
      %v8495 = vpop.f32.mrf.mxu0
      %v8496 = vadd.f32 0.0, %v8495
      %8497 = vmatmul.bf16.gmra.mxu0 %v8448
      %v8498 = vpop.f32.mrf.mxu0
      %v8499 = vadd.f32 0.0, %v8498
      %v8500 = vpop.f32.mrf.mxu0
      %v8501 = vadd.f32 0.0, %v8500
      %8502 = vmatmul.bf16.gmra.mxu0 %v8450
      %v8503 = vpop.f32.mrf.mxu0
      %v8504 = vadd.f32 0.0, %v8503
      %v8505 = vpop.f32.mrf.mxu0
      %v8506 = vadd.f32 0.0, %v8505
      %8507 = vmatmul.bf16.gmra.mxu0 %v8452
      %v8508 = vpop.f32.mrf.mxu0
      %v8509 = vadd.f32 0.0, %v8508
      %v8510 = vpop.f32.mrf.mxu0
      %v8511 = vadd.f32 0.0, %v8510
      %8512 = vmatmul.bf16.gmra.mxu0 %v8454
      %v8513 = vpop.f32.mrf.mxu0
      %v8514 = vadd.f32 0.0, %v8513
      %v8515 = vpop.f32.mrf.mxu0
      %v8516 = vadd.f32 0.0, %v8515
      %8517 = vmatmul.bf16.gmra.mxu0 %v8456
      %v8518 = vpop.f32.mrf.mxu0
      %v8519 = vadd.f32 0.0, %v8518
      %v8520 = vpop.f32.mrf.mxu0
      %v8521 = vadd.f32 0.0, %v8520
      %8522 = vmatmul.bf16.gmra.mxu0 %v8458
      %v8523 = vpop.f32.mrf.mxu0
      %v8524 = vadd.f32 0.0, %v8523
      %v8525 = vpop.f32.mrf.mxu0
      %v8526 = vadd.f32 0.0, %v8525
      %8527 = vmatmul.bf16.gmra.mxu0 %v8460
      %v8528 = vpop.f32.mrf.mxu0
      %v8529 = vadd.f32 0.0, %v8528
      %v8530 = vpop.f32.mrf.mxu0
      %v8531 = vadd.f32 0.0, %v8530
      %8532 = vmatmul.bf16.gmra.mxu0 %v8462
      %v8533 = vpop.f32.mrf.mxu0
      %v8534 = vadd.f32 0.0, %v8533
      %v8535 = vpop.f32.mrf.mxu0
      %v8536 = vadd.f32 0.0, %v8535
      %8537 = vmatmul.bf16.gmra.mxu0 %v8464
      %v8538 = vpop.f32.mrf.mxu0
      %v8539 = vadd.f32 0.0, %v8538
      %v8540 = vpop.f32.mrf.mxu0
      %v8541 = vadd.f32 0.0, %v8540
      %8542 = vmatmul.bf16.gmra.mxu0 %v8466
      %v8543 = vpop.f32.mrf.mxu0
      %v8544 = vadd.f32 0.0, %v8543
      %v8545 = vpop.f32.mrf.mxu0
      %v8546 = vadd.f32 0.0, %v8545
      %8547 = vmatmul.bf16.gmra.mxu0 %v8468
      %v8548 = vpop.f32.mrf.mxu0
      %v8549 = vadd.f32 0.0, %v8548
      %v8550 = vpop.f32.mrf.mxu0
      %v8551 = vadd.f32 0.0, %v8550
      %8552 = vmatmul.bf16.gmra.mxu0 %v8470
      %v8553 = vpop.f32.mrf.mxu0
      %v8554 = vadd.f32 0.0, %v8553
      %v8555 = vpop.f32.mrf.mxu0
      %v8556 = vadd.f32 0.0, %v8555
      %8557 = vmatmul.bf16.gmra.mxu0 %v8472
      %v8558 = vpop.f32.mrf.mxu0
      %v8559 = vadd.f32 0.0, %v8558
      %v8560 = vpop.f32.mrf.mxu0
      %v8561 = vadd.f32 0.0, %v8560
      %8562 = vmatmul.bf16.gmra.mxu0 %v8474
      %v8563 = vpop.f32.mrf.mxu0
      %v8564 = vadd.f32 0.0, %v8563
      %v8565 = vpop.f32.mrf.mxu0
      %v8566 = vadd.f32 0.0, %v8565
      %8567 = vdwg.mxu0
      %v8568 = vadd.f32 %v7527, %v8489
      %v8569 = vadd.f32 %v7528, %v8491
      %v8570 = vadd.f32 %v7529, %v8494
      %v8571 = vadd.f32 %v7530, %v8496
      %v8572 = vadd.f32 %v7531, %v8499
      %v8573 = vadd.f32 %v7532, %v8501
      %v8574 = vadd.f32 %v7533, %v8504
      %v8575 = vadd.f32 %v7534, %v8506
      %v8576 = vadd.f32 %v7535, %v8509
      %v8577 = vadd.f32 %v7536, %v8511
      %v8578 = vadd.f32 %v7537, %v8514
      %v8579 = vadd.f32 %v7538, %v8516
      %v8580 = vadd.f32 %v7539, %v8519
      %v8581 = vadd.f32 %v7540, %v8521
      %v8582 = vadd.f32 %v7541, %v8524
      %v8583 = vadd.f32 %v7542, %v8526
      %v8584 = vadd.f32 %v7543, %v8529
      %v8585 = vadd.f32 %v7544, %v8531
      %v8586 = vadd.f32 %v7545, %v8534
      %v8587 = vadd.f32 %v7546, %v8536
      %v8588 = vadd.f32 %v7547, %v8539
      %v8589 = vadd.f32 %v7548, %v8541
      %v8590 = vadd.f32 %v7549, %v8544
      %v8591 = vadd.f32 %v7550, %v8546
      %v8592 = vadd.f32 %v7551, %v8549
      %v8593 = vadd.f32 %v7552, %v8551
      %v8594 = vadd.f32 %v7553, %v8554
      %v8595 = vadd.f32 %v7554, %v8556
      %v8596 = vadd.f32 %v7555, %v8559
      %v8597 = vadd.f32 %v7556, %v8561
      %v8598 = vadd.f32 %v7557, %v8564
      %v8599 = vadd.f32 %v7558, %v8566
      %s8600 = scalar_lea.vmem [#allocation2], 48
      %v8601 = vld [vmem:[%s8600] sm:$0xf]
      %v8602 = vld [vmem:[%s8600 + $0x4] sm:$0xf]
      %v8603 = vld [vmem:[%s8600 + $0x8] sm:$0x3]
      %v8604 = vld [vmem:[%s8600 + $0xc] sm:$0xf]
      %v8605 = vld [vmem:[%s8600 + $0x10] sm:$0xf]
      %v8606 = vld [vmem:[%s8600 + $0x14] sm:$0x3]
      %v8607 = vld [vmem:[%s8600 + $0x18] sm:$0xf]
      %v8608 = vld [vmem:[%s8600 + $0x1c] sm:$0xf]
      %v8609 = vld [vmem:[%s8600 + $0x20] sm:$0x3]
      %v8610 = vld [vmem:[%s8600 + $0x24] sm:$0xf]
      %v8611 = vld [vmem:[%s8600 + $0x28] sm:$0xf]
      %v8612 = vld [vmem:[%s8600 + $0x2c] sm:$0x3]
      %v8613 = vld [vmem:[%s8600 + $0x30] sm:$0xf]
      %v8614 = vld [vmem:[%s8600 + $0x34] sm:$0xf]
      %v8615 = vld [vmem:[%s8600 + $0x38] sm:$0x3]
      %v8616 = vld [vmem:[%s8600 + $0x3c] sm:$0xf]
      %v8617 = vld [vmem:[%s8600 + $0x40] sm:$0xf]
      %v8618 = vld [vmem:[%s8600 + $0x44] sm:$0x3]
      %v8619 = vld [vmem:[%s8600 + $0x48] sm:$0xf]
      %v8620 = vld [vmem:[%s8600 + $0x4c] sm:$0xf]
      %v8621 = vld [vmem:[%s8600 + $0x50] sm:$0x3]
      %v8622 = vld [vmem:[%s8600 + $0x54] sm:$0xf]
      %v8623 = vld [vmem:[%s8600 + $0x58] sm:$0xf]
      %v8624 = vld [vmem:[%s8600 + $0x5c] sm:$0x3]
      %v8625 = vld [vmem:[%s8600 + $0x60] sm:$0xf]
      %v8626 = vld [vmem:[%s8600 + $0x64] sm:$0xf]
      %v8627 = vld [vmem:[%s8600 + $0x68] sm:$0x3]
      %v8628 = vld [vmem:[%s8600 + $0x6c] sm:$0xf]
      %v8629 = vld [vmem:[%s8600 + $0x70] sm:$0xf]
      %v8630 = vld [vmem:[%s8600 + $0x74] sm:$0x3]
      %v8631 = vld [vmem:[%s8600 + $0x78] sm:$0xf]
      %v8632 = vld [vmem:[%s8600 + $0x7c] sm:$0xf]
      %v8633 = vld [vmem:[%s8600 + $0x80] sm:$0x3]
      %v8634 = vld [vmem:[%s8600 + $0x84] sm:$0xf]
      %v8635 = vld [vmem:[%s8600 + $0x88] sm:$0xf]
      %v8636 = vld [vmem:[%s8600 + $0x8c] sm:$0x3]
      %v8637 = vld [vmem:[%s8600 + $0x90] sm:$0xf]
      %v8638 = vld [vmem:[%s8600 + $0x94] sm:$0xf]
      %v8639 = vld [vmem:[%s8600 + $0x98] sm:$0x3]
      %v8640 = vld [vmem:[%s8600 + $0x9c] sm:$0xf]
      %v8641 = vld [vmem:[%s8600 + $0xa0] sm:$0xf]
      %v8642 = vld [vmem:[%s8600 + $0xa4] sm:$0x3]
      %v8643 = vld [vmem:[%s8600 + $0xa8] sm:$0xf]
      %v8644 = vld [vmem:[%s8600 + $0xac] sm:$0xf]
      %v8645 = vld [vmem:[%s8600 + $0xb0] sm:$0x3]
      %v8646 = vld [vmem:[%s8600 + $0xb4] sm:$0xf]
      %v8647 = vld [vmem:[%s8600 + $0xb8] sm:$0xf]
      %v8648 = vld [vmem:[%s8600 + $0xbc] sm:$0x3]
      %v8681 = vunpack.c.l.b16 %v8601
      %v8682 = vunpack.c.l.b16 %v8602
      %v8683 = vunpack.c.l.b16 %v8604
      %v8684 = vunpack.c.l.b16 %v8605
      %v8685 = vunpack.c.l.b16 %v8607
      %v8686 = vunpack.c.l.b16 %v8608
      %v8687 = vunpack.c.l.b16 %v8610
      %v8688 = vunpack.c.l.b16 %v8611
      %v8689 = vunpack.c.l.b16 %v8613
      %v8690 = vunpack.c.l.b16 %v8614
      %v8691 = vunpack.c.l.b16 %v8616
      %v8692 = vunpack.c.l.b16 %v8617
      %v8693 = vunpack.c.l.b16 %v8619
      %v8694 = vunpack.c.l.b16 %v8620
      %v8695 = vunpack.c.l.b16 %v8622
      %v8696 = vunpack.c.l.b16 %v8623
      %v8697 = vunpack.c.l.b16 %v8625
      %v8698 = vunpack.c.l.b16 %v8626
      %v8699 = vunpack.c.l.b16 %v8628
      %v8700 = vunpack.c.l.b16 %v8629
      %v8701 = vunpack.c.l.b16 %v8631
      %v8702 = vunpack.c.l.b16 %v8632
      %v8703 = vunpack.c.l.b16 %v8634
      %v8704 = vunpack.c.l.b16 %v8635
      %v8705 = vunpack.c.l.b16 %v8637
      %v8706 = vunpack.c.l.b16 %v8638
      %v8707 = vunpack.c.l.b16 %v8640
      %v8708 = vunpack.c.l.b16 %v8641
      %v8709 = vunpack.c.l.b16 %v8643
      %v8710 = vunpack.c.l.b16 %v8644
      %v8711 = vunpack.c.l.b16 %v8646
      %v8712 = vunpack.c.l.b16 %v8647
      %v8713 = vpack.c.b16 %v8682, %v8681
      %v8714 = vpack.c.b16 %v8684, %v8683
      %v8715 = vpack.c.b16 %v8686, %v8685
      %v8716 = vpack.c.b16 %v8688, %v8687
      %v8717 = vpack.c.b16 %v8690, %v8689
      %v8718 = vpack.c.b16 %v8692, %v8691
      %v8719 = vpack.c.b16 %v8694, %v8693
      %v8720 = vpack.c.b16 %v8696, %v8695
      %v8721 = vpack.c.b16 %v8698, %v8697
      %v8722 = vpack.c.b16 %v8700, %v8699
      %v8723 = vpack.c.b16 %v8702, %v8701
      %v8724 = vpack.c.b16 %v8704, %v8703
      %v8725 = vpack.c.b16 %v8706, %v8705
      %v8726 = vpack.c.b16 %v8708, %v8707
      %v8727 = vpack.c.b16 %v8710, %v8709
      %v8728 = vpack.c.b16 %v8712, %v8711
      %v8745 = vunpack.c.l.b16 %v8603
      %v8746 = vunpack.c.l.b16 %v8606
      %v8747 = vunpack.c.l.b16 %v8609
      %v8748 = vunpack.c.l.b16 %v8612
      %v8749 = vunpack.c.l.b16 %v8615
      %v8750 = vunpack.c.l.b16 %v8618
      %v8751 = vunpack.c.l.b16 %v8621
      %v8752 = vunpack.c.l.b16 %v8624
      %v8753 = vunpack.c.l.b16 %v8627
      %v8754 = vunpack.c.l.b16 %v8630
      %v8755 = vunpack.c.l.b16 %v8633
      %v8756 = vunpack.c.l.b16 %v8636
      %v8757 = vunpack.c.l.b16 %v8639
      %v8758 = vunpack.c.l.b16 %v8642
      %v8759 = vunpack.c.l.b16 %v8645
      %v8760 = vunpack.c.l.b16 %v8648
      %v8761 = vpack.c.b16 %v8745, %v8745
      %v8762 = vpack.c.b16 %v8746, %v8746
      %v8763 = vpack.c.b16 %v8747, %v8747
      %v8764 = vpack.c.b16 %v8748, %v8748
      %v8765 = vpack.c.b16 %v8749, %v8749
      %v8766 = vpack.c.b16 %v8750, %v8750
      %v8767 = vpack.c.b16 %v8751, %v8751
      %v8768 = vpack.c.b16 %v8752, %v8752
      %v8769 = vpack.c.b16 %v8753, %v8753
      %v8770 = vpack.c.b16 %v8754, %v8754
      %v8771 = vpack.c.b16 %v8755, %v8755
      %v8772 = vpack.c.b16 %v8756, %v8756
      %v8773 = vpack.c.b16 %v8757, %v8757
      %v8774 = vpack.c.b16 %v8758, %v8758
      %v8775 = vpack.c.b16 %v8759, %v8759
      %v8776 = vpack.c.b16 %v8760, %v8760
      %v8778 = vshrl.u32 %v8713, 16
      %v8780 = vshll.u32 %v8713, 16
      %v8782 = vrot.slane %v8780, 1
      %v8783 = vor.u32 %v8778, %v8782
      %v8785 = vshll.u32 %v8761, 16
      %v8787 = vrot.slane %v8785, 1
      %v8788 = vsel %vm1228, %v8783, %v8787
      %v8790 = vshrl.u32 %v8714, 16
      %v8792 = vshll.u32 %v8714, 16
      %v8794 = vrot.slane %v8792, 1
      %v8795 = vor.u32 %v8790, %v8794
      %v8797 = vshll.u32 %v8762, 16
      %v8799 = vrot.slane %v8797, 1
      %v8800 = vsel %vm1228, %v8795, %v8799
      %v8802 = vshrl.u32 %v8715, 16
      %v8804 = vshll.u32 %v8715, 16
      %v8806 = vrot.slane %v8804, 1
      %v8807 = vor.u32 %v8802, %v8806
      %v8809 = vshll.u32 %v8763, 16
      %v8811 = vrot.slane %v8809, 1
      %v8812 = vsel %vm1228, %v8807, %v8811
      %v8814 = vshrl.u32 %v8716, 16
      %v8816 = vshll.u32 %v8716, 16
      %v8818 = vrot.slane %v8816, 1
      %v8819 = vor.u32 %v8814, %v8818
      %v8821 = vshll.u32 %v8764, 16
      %v8823 = vrot.slane %v8821, 1
      %v8824 = vsel %vm1228, %v8819, %v8823
      %v8826 = vshrl.u32 %v8717, 16
      %v8828 = vshll.u32 %v8717, 16
      %v8830 = vrot.slane %v8828, 1
      %v8831 = vor.u32 %v8826, %v8830
      %v8833 = vshll.u32 %v8765, 16
      %v8835 = vrot.slane %v8833, 1
      %v8836 = vsel %vm1228, %v8831, %v8835
      %v8838 = vshrl.u32 %v8718, 16
      %v8840 = vshll.u32 %v8718, 16
      %v8842 = vrot.slane %v8840, 1
      %v8843 = vor.u32 %v8838, %v8842
      %v8845 = vshll.u32 %v8766, 16
      %v8847 = vrot.slane %v8845, 1
      %v8848 = vsel %vm1228, %v8843, %v8847
      %v8850 = vshrl.u32 %v8719, 16
      %v8852 = vshll.u32 %v8719, 16
      %v8854 = vrot.slane %v8852, 1
      %v8855 = vor.u32 %v8850, %v8854
      %v8857 = vshll.u32 %v8767, 16
      %v8859 = vrot.slane %v8857, 1
      %v8860 = vsel %vm1228, %v8855, %v8859
      %v8862 = vshrl.u32 %v8720, 16
      %v8864 = vshll.u32 %v8720, 16
      %v8866 = vrot.slane %v8864, 1
      %v8867 = vor.u32 %v8862, %v8866
      %v8869 = vshll.u32 %v8768, 16
      %v8871 = vrot.slane %v8869, 1
      %v8872 = vsel %vm1228, %v8867, %v8871
      %v8874 = vshrl.u32 %v8721, 16
      %v8876 = vshll.u32 %v8721, 16
      %v8878 = vrot.slane %v8876, 1
      %v8879 = vor.u32 %v8874, %v8878
      %v8881 = vshll.u32 %v8769, 16
      %v8883 = vrot.slane %v8881, 1
      %v8884 = vsel %vm1228, %v8879, %v8883
      %v8886 = vshrl.u32 %v8722, 16
      %v8888 = vshll.u32 %v8722, 16
      %v8890 = vrot.slane %v8888, 1
      %v8891 = vor.u32 %v8886, %v8890
      %v8893 = vshll.u32 %v8770, 16
      %v8895 = vrot.slane %v8893, 1
      %v8896 = vsel %vm1228, %v8891, %v8895
      %v8898 = vshrl.u32 %v8723, 16
      %v8900 = vshll.u32 %v8723, 16
      %v8902 = vrot.slane %v8900, 1
      %v8903 = vor.u32 %v8898, %v8902
      %v8905 = vshll.u32 %v8771, 16
      %v8907 = vrot.slane %v8905, 1
      %v8908 = vsel %vm1228, %v8903, %v8907
      %v8910 = vshrl.u32 %v8724, 16
      %v8912 = vshll.u32 %v8724, 16
      %v8914 = vrot.slane %v8912, 1
      %v8915 = vor.u32 %v8910, %v8914
      %v8917 = vshll.u32 %v8772, 16
      %v8919 = vrot.slane %v8917, 1
      %v8920 = vsel %vm1228, %v8915, %v8919
      %v8922 = vshrl.u32 %v8725, 16
      %v8924 = vshll.u32 %v8725, 16
      %v8926 = vrot.slane %v8924, 1
      %v8927 = vor.u32 %v8922, %v8926
      %v8929 = vshll.u32 %v8773, 16
      %v8931 = vrot.slane %v8929, 1
      %v8932 = vsel %vm1228, %v8927, %v8931
      %v8934 = vshrl.u32 %v8726, 16
      %v8936 = vshll.u32 %v8726, 16
      %v8938 = vrot.slane %v8936, 1
      %v8939 = vor.u32 %v8934, %v8938
      %v8941 = vshll.u32 %v8774, 16
      %v8943 = vrot.slane %v8941, 1
      %v8944 = vsel %vm1228, %v8939, %v8943
      %v8946 = vshrl.u32 %v8727, 16
      %v8948 = vshll.u32 %v8727, 16
      %v8950 = vrot.slane %v8948, 1
      %v8951 = vor.u32 %v8946, %v8950
      %v8953 = vshll.u32 %v8775, 16
      %v8955 = vrot.slane %v8953, 1
      %v8956 = vsel %vm1228, %v8951, %v8955
      %v8958 = vshrl.u32 %v8728, 16
      %v8960 = vshll.u32 %v8728, 16
      %v8962 = vrot.slane %v8960, 1
      %v8963 = vor.u32 %v8958, %v8962
      %v8965 = vshll.u32 %v8776, 16
      %v8967 = vrot.slane %v8965, 1
      %v8968 = vsel %vm1228, %v8963, %v8967
      %8969 = vrot.lane.b32.xlu0 %v8788, 8
      %v8970 = vpop.permute.xlu0 %8969
      %8971 = vrot.lane.b32.xlu0 %v8800, 8
      %v8972 = vpop.permute.xlu0 %8971
      %8973 = vrot.lane.b32.xlu0 %v8812, 8
      %v8974 = vpop.permute.xlu0 %8973
      %8975 = vrot.lane.b32.xlu0 %v8824, 8
      %v8976 = vpop.permute.xlu0 %8975
      %8977 = vrot.lane.b32.xlu0 %v8836, 8
      %v8978 = vpop.permute.xlu0 %8977
      %8979 = vrot.lane.b32.xlu0 %v8848, 8
      %v8980 = vpop.permute.xlu0 %8979
      %8981 = vrot.lane.b32.xlu0 %v8860, 8
      %v8982 = vpop.permute.xlu0 %8981
      %8983 = vrot.lane.b32.xlu0 %v8872, 8
      %v8984 = vpop.permute.xlu0 %8983
      %8985 = vrot.lane.b32.xlu0 %v8884, 8
      %v8986 = vpop.permute.xlu0 %8985
      %8987 = vrot.lane.b32.xlu0 %v8896, 8
      %v8988 = vpop.permute.xlu0 %8987
      %8989 = vrot.lane.b32.xlu0 %v8908, 8
      %v8990 = vpop.permute.xlu0 %8989
      %8991 = vrot.lane.b32.xlu0 %v8920, 8
      %v8992 = vpop.permute.xlu0 %8991
      %8993 = vrot.lane.b32.xlu0 %v8932, 8
      %v8994 = vpop.permute.xlu0 %8993
      %8995 = vrot.lane.b32.xlu0 %v8944, 8
      %v8996 = vpop.permute.xlu0 %8995
      %8997 = vrot.lane.b32.xlu0 %v8956, 8
      %v8998 = vpop.permute.xlu0 %8997
      %8999 = vrot.lane.b32.xlu0 %v8968, 8
      %v9000 = vpop.permute.xlu0 %8999
      %v9001 = vrot.slane %v8713, 1
      %v9002 = vrot.slane %v8761, 1
      %v9003 = vsel %vm1517, %v9001, %v9002
      %v9004 = vrot.slane %v8714, 1
      %v9005 = vrot.slane %v8762, 1
      %v9006 = vsel %vm1517, %v9004, %v9005
      %v9007 = vrot.slane %v8715, 1
      %v9008 = vrot.slane %v8763, 1
      %v9009 = vsel %vm1517, %v9007, %v9008
      %v9010 = vrot.slane %v8716, 1
      %v9011 = vrot.slane %v8764, 1
      %v9012 = vsel %vm1517, %v9010, %v9011
      %v9013 = vrot.slane %v8717, 1
      %v9014 = vrot.slane %v8765, 1
      %v9015 = vsel %vm1517, %v9013, %v9014
      %v9016 = vrot.slane %v8718, 1
      %v9017 = vrot.slane %v8766, 1
      %v9018 = vsel %vm1517, %v9016, %v9017
      %v9019 = vrot.slane %v8719, 1
      %v9020 = vrot.slane %v8767, 1
      %v9021 = vsel %vm1517, %v9019, %v9020
      %v9022 = vrot.slane %v8720, 1
      %v9023 = vrot.slane %v8768, 1
      %v9024 = vsel %vm1517, %v9022, %v9023
      %v9025 = vrot.slane %v8721, 1
      %v9026 = vrot.slane %v8769, 1
      %v9027 = vsel %vm1517, %v9025, %v9026
      %v9028 = vrot.slane %v8722, 1
      %v9029 = vrot.slane %v8770, 1
      %v9030 = vsel %vm1517, %v9028, %v9029
      %v9031 = vrot.slane %v8723, 1
      %v9032 = vrot.slane %v8771, 1
      %v9033 = vsel %vm1517, %v9031, %v9032
      %v9034 = vrot.slane %v8724, 1
      %v9035 = vrot.slane %v8772, 1
      %v9036 = vsel %vm1517, %v9034, %v9035
      %v9037 = vrot.slane %v8725, 1
      %v9038 = vrot.slane %v8773, 1
      %v9039 = vsel %vm1517, %v9037, %v9038
      %v9040 = vrot.slane %v8726, 1
      %v9041 = vrot.slane %v8774, 1
      %v9042 = vsel %vm1517, %v9040, %v9041
      %v9043 = vrot.slane %v8727, 1
      %v9044 = vrot.slane %v8775, 1
      %v9045 = vsel %vm1517, %v9043, %v9044
      %v9046 = vrot.slane %v8728, 1
      %v9047 = vrot.slane %v8776, 1
      %v9048 = vsel %vm1517, %v9046, %v9047
      %9049 = vrot.lane.b32.xlu0 %v9003, 16
      %v9050 = vpop.permute.xlu0 %9049
      %9051 = vrot.lane.b32.xlu0 %v9006, 16
      %v9052 = vpop.permute.xlu0 %9051
      %9053 = vrot.lane.b32.xlu0 %v9009, 16
      %v9054 = vpop.permute.xlu0 %9053
      %9055 = vrot.lane.b32.xlu0 %v9012, 16
      %v9056 = vpop.permute.xlu0 %9055
      %9057 = vrot.lane.b32.xlu0 %v9015, 16
      %v9058 = vpop.permute.xlu0 %9057
      %9059 = vrot.lane.b32.xlu0 %v9018, 16
      %v9060 = vpop.permute.xlu0 %9059
      %9061 = vrot.lane.b32.xlu0 %v9021, 16
      %v9062 = vpop.permute.xlu0 %9061
      %9063 = vrot.lane.b32.xlu0 %v9024, 16
      %v9064 = vpop.permute.xlu0 %9063
      %9065 = vrot.lane.b32.xlu0 %v9027, 16
      %v9066 = vpop.permute.xlu0 %9065
      %9067 = vrot.lane.b32.xlu0 %v9030, 16
      %v9068 = vpop.permute.xlu0 %9067
      %9069 = vrot.lane.b32.xlu0 %v9033, 16
      %v9070 = vpop.permute.xlu0 %9069
      %9071 = vrot.lane.b32.xlu0 %v9036, 16
      %v9072 = vpop.permute.xlu0 %9071
      %9073 = vrot.lane.b32.xlu0 %v9039, 16
      %v9074 = vpop.permute.xlu0 %9073
      %9075 = vrot.lane.b32.xlu0 %v9042, 16
      %v9076 = vpop.permute.xlu0 %9075
      %9077 = vrot.lane.b32.xlu0 %v9045, 16
      %v9078 = vpop.permute.xlu0 %9077
      %9079 = vrot.lane.b32.xlu0 %v9048, 16
      %v9080 = vpop.permute.xlu0 %9079
      %v9081 = vrot.slane %v8778, 1
      %v9082 = vrot.slane %v8780, 2
      %v9083 = vor.u32 %v9081, %v9082
      %v9084 = vshrl.u32 %v8761, 16
      %v9086 = vrot.slane %v9084, 1
      %v9087 = vrot.slane %v8785, 2
      %v9088 = vor.u32 %v9086, %v9087
      %v9089 = vsel %vm4913, %v9083, %v9088
      %v9090 = vrot.slane %v8790, 1
      %v9091 = vrot.slane %v8792, 2
      %v9092 = vor.u32 %v9090, %v9091
      %v9093 = vshrl.u32 %v8762, 16
      %v9095 = vrot.slane %v9093, 1
      %v9096 = vrot.slane %v8797, 2
      %v9097 = vor.u32 %v9095, %v9096
      %v9098 = vsel %vm4913, %v9092, %v9097
      %v9099 = vrot.slane %v8802, 1
      %v9100 = vrot.slane %v8804, 2
      %v9101 = vor.u32 %v9099, %v9100
      %v9102 = vshrl.u32 %v8763, 16
      %v9104 = vrot.slane %v9102, 1
      %v9105 = vrot.slane %v8809, 2
      %v9106 = vor.u32 %v9104, %v9105
      %v9107 = vsel %vm4913, %v9101, %v9106
      %v9108 = vrot.slane %v8814, 1
      %v9109 = vrot.slane %v8816, 2
      %v9110 = vor.u32 %v9108, %v9109
      %v9111 = vshrl.u32 %v8764, 16
      %v9113 = vrot.slane %v9111, 1
      %v9114 = vrot.slane %v8821, 2
      %v9115 = vor.u32 %v9113, %v9114
      %v9116 = vsel %vm4913, %v9110, %v9115
      %v9117 = vrot.slane %v8826, 1
      %v9118 = vrot.slane %v8828, 2
      %v9119 = vor.u32 %v9117, %v9118
      %v9120 = vshrl.u32 %v8765, 16
      %v9122 = vrot.slane %v9120, 1
      %v9123 = vrot.slane %v8833, 2
      %v9124 = vor.u32 %v9122, %v9123
      %v9125 = vsel %vm4913, %v9119, %v9124
      %v9126 = vrot.slane %v8838, 1
      %v9127 = vrot.slane %v8840, 2
      %v9128 = vor.u32 %v9126, %v9127
      %v9129 = vshrl.u32 %v8766, 16
      %v9131 = vrot.slane %v9129, 1
      %v9132 = vrot.slane %v8845, 2
      %v9133 = vor.u32 %v9131, %v9132
      %v9134 = vsel %vm4913, %v9128, %v9133
      %v9135 = vrot.slane %v8850, 1
      %v9136 = vrot.slane %v8852, 2
      %v9137 = vor.u32 %v9135, %v9136
      %v9138 = vshrl.u32 %v8767, 16
      %v9140 = vrot.slane %v9138, 1
      %v9141 = vrot.slane %v8857, 2
      %v9142 = vor.u32 %v9140, %v9141
      %v9143 = vsel %vm4913, %v9137, %v9142
      %v9144 = vrot.slane %v8862, 1
      %v9145 = vrot.slane %v8864, 2
      %v9146 = vor.u32 %v9144, %v9145
      %v9147 = vshrl.u32 %v8768, 16
      %v9149 = vrot.slane %v9147, 1
      %v9150 = vrot.slane %v8869, 2
      %v9151 = vor.u32 %v9149, %v9150
      %v9152 = vsel %vm4913, %v9146, %v9151
      %v9153 = vrot.slane %v8874, 1
      %v9154 = vrot.slane %v8876, 2
      %v9155 = vor.u32 %v9153, %v9154
      %v9156 = vshrl.u32 %v8769, 16
      %v9158 = vrot.slane %v9156, 1
      %v9159 = vrot.slane %v8881, 2
      %v9160 = vor.u32 %v9158, %v9159
      %v9161 = vsel %vm4913, %v9155, %v9160
      %v9162 = vrot.slane %v8886, 1
      %v9163 = vrot.slane %v8888, 2
      %v9164 = vor.u32 %v9162, %v9163
      %v9165 = vshrl.u32 %v8770, 16
      %v9167 = vrot.slane %v9165, 1
      %v9168 = vrot.slane %v8893, 2
      %v9169 = vor.u32 %v9167, %v9168
      %v9170 = vsel %vm4913, %v9164, %v9169
      %v9171 = vrot.slane %v8898, 1
      %v9172 = vrot.slane %v8900, 2
      %v9173 = vor.u32 %v9171, %v9172
      %v9174 = vshrl.u32 %v8771, 16
      %v9176 = vrot.slane %v9174, 1
      %v9177 = vrot.slane %v8905, 2
      %v9178 = vor.u32 %v9176, %v9177
      %v9179 = vsel %vm4913, %v9173, %v9178
      %v9180 = vrot.slane %v8910, 1
      %v9181 = vrot.slane %v8912, 2
      %v9182 = vor.u32 %v9180, %v9181
      %v9183 = vshrl.u32 %v8772, 16
      %v9185 = vrot.slane %v9183, 1
      %v9186 = vrot.slane %v8917, 2
      %v9187 = vor.u32 %v9185, %v9186
      %v9188 = vsel %vm4913, %v9182, %v9187
      %v9189 = vrot.slane %v8922, 1
      %v9190 = vrot.slane %v8924, 2
      %v9191 = vor.u32 %v9189, %v9190
      %v9192 = vshrl.u32 %v8773, 16
      %v9194 = vrot.slane %v9192, 1
      %v9195 = vrot.slane %v8929, 2
      %v9196 = vor.u32 %v9194, %v9195
      %v9197 = vsel %vm4913, %v9191, %v9196
      %v9198 = vrot.slane %v8934, 1
      %v9199 = vrot.slane %v8936, 2
      %v9200 = vor.u32 %v9198, %v9199
      %v9201 = vshrl.u32 %v8774, 16
      %v9203 = vrot.slane %v9201, 1
      %v9204 = vrot.slane %v8941, 2
      %v9205 = vor.u32 %v9203, %v9204
      %v9206 = vsel %vm4913, %v9200, %v9205
      %v9207 = vrot.slane %v8946, 1
      %v9208 = vrot.slane %v8948, 2
      %v9209 = vor.u32 %v9207, %v9208
      %v9210 = vshrl.u32 %v8775, 16
      %v9212 = vrot.slane %v9210, 1
      %v9213 = vrot.slane %v8953, 2
      %v9214 = vor.u32 %v9212, %v9213
      %v9215 = vsel %vm4913, %v9209, %v9214
      %v9216 = vrot.slane %v8958, 1
      %v9217 = vrot.slane %v8960, 2
      %v9218 = vor.u32 %v9216, %v9217
      %v9219 = vshrl.u32 %v8776, 16
      %v9221 = vrot.slane %v9219, 1
      %v9222 = vrot.slane %v8965, 2
      %v9223 = vor.u32 %v9221, %v9222
      %v9224 = vsel %vm4913, %v9218, %v9223
      %9225 = vrot.lane.b32.xlu0 %v9089, 24
      %v9226 = vpop.permute.xlu0 %9225
      %9227 = vrot.lane.b32.xlu0 %v9098, 24
      %v9228 = vpop.permute.xlu0 %9227
      %9229 = vrot.lane.b32.xlu0 %v9107, 24
      %v9230 = vpop.permute.xlu0 %9229
      %9231 = vrot.lane.b32.xlu0 %v9116, 24
      %v9232 = vpop.permute.xlu0 %9231
      %9233 = vrot.lane.b32.xlu0 %v9125, 24
      %v9234 = vpop.permute.xlu0 %9233
      %9235 = vrot.lane.b32.xlu0 %v9134, 24
      %v9236 = vpop.permute.xlu0 %9235
      %9237 = vrot.lane.b32.xlu0 %v9143, 24
      %v9238 = vpop.permute.xlu0 %9237
      %9239 = vrot.lane.b32.xlu0 %v9152, 24
      %v9240 = vpop.permute.xlu0 %9239
      %9241 = vrot.lane.b32.xlu0 %v9161, 24
      %v9242 = vpop.permute.xlu0 %9241
      %9243 = vrot.lane.b32.xlu0 %v9170, 24
      %v9244 = vpop.permute.xlu0 %9243
      %9245 = vrot.lane.b32.xlu0 %v9179, 24
      %v9246 = vpop.permute.xlu0 %9245
      %9247 = vrot.lane.b32.xlu0 %v9188, 24
      %v9248 = vpop.permute.xlu0 %9247
      %9249 = vrot.lane.b32.xlu0 %v9197, 24
      %v9250 = vpop.permute.xlu0 %9249
      %9251 = vrot.lane.b32.xlu0 %v9206, 24
      %v9252 = vpop.permute.xlu0 %9251
      %9253 = vrot.lane.b32.xlu0 %v9215, 24
      %v9254 = vpop.permute.xlu0 %9253
      %9255 = vrot.lane.b32.xlu0 %v9224, 24
      %v9256 = vpop.permute.xlu0 %9255
      %v9257 = vrot.slane %v8713, 2
      %v9258 = vrot.slane %v8761, 2
      %v9259 = vsel %vm5090, %v9257, %v9258
      %v9260 = vrot.slane %v8714, 2
      %v9261 = vrot.slane %v8762, 2
      %v9262 = vsel %vm5090, %v9260, %v9261
      %v9263 = vrot.slane %v8715, 2
      %v9264 = vrot.slane %v8763, 2
      %v9265 = vsel %vm5090, %v9263, %v9264
      %v9266 = vrot.slane %v8716, 2
      %v9267 = vrot.slane %v8764, 2
      %v9268 = vsel %vm5090, %v9266, %v9267
      %v9269 = vrot.slane %v8717, 2
      %v9270 = vrot.slane %v8765, 2
      %v9271 = vsel %vm5090, %v9269, %v9270
      %v9272 = vrot.slane %v8718, 2
      %v9273 = vrot.slane %v8766, 2
      %v9274 = vsel %vm5090, %v9272, %v9273
      %v9275 = vrot.slane %v8719, 2
      %v9276 = vrot.slane %v8767, 2
      %v9277 = vsel %vm5090, %v9275, %v9276
      %v9278 = vrot.slane %v8720, 2
      %v9279 = vrot.slane %v8768, 2
      %v9280 = vsel %vm5090, %v9278, %v9279
      %v9281 = vrot.slane %v8721, 2
      %v9282 = vrot.slane %v8769, 2
      %v9283 = vsel %vm5090, %v9281, %v9282
      %v9284 = vrot.slane %v8722, 2
      %v9285 = vrot.slane %v8770, 2
      %v9286 = vsel %vm5090, %v9284, %v9285
      %v9287 = vrot.slane %v8723, 2
      %v9288 = vrot.slane %v8771, 2
      %v9289 = vsel %vm5090, %v9287, %v9288
      %v9290 = vrot.slane %v8724, 2
      %v9291 = vrot.slane %v8772, 2
      %v9292 = vsel %vm5090, %v9290, %v9291
      %v9293 = vrot.slane %v8725, 2
      %v9294 = vrot.slane %v8773, 2
      %v9295 = vsel %vm5090, %v9293, %v9294
      %v9296 = vrot.slane %v8726, 2
      %v9297 = vrot.slane %v8774, 2
      %v9298 = vsel %vm5090, %v9296, %v9297
      %v9299 = vrot.slane %v8727, 2
      %v9300 = vrot.slane %v8775, 2
      %v9301 = vsel %vm5090, %v9299, %v9300
      %v9302 = vrot.slane %v8728, 2
      %v9303 = vrot.slane %v8776, 2
      %v9304 = vsel %vm5090, %v9302, %v9303
      %9305 = vrot.lane.b32.xlu0 %v9259, 32
      %v9306 = vpop.permute.xlu0 %9305
      %9307 = vrot.lane.b32.xlu0 %v9262, 32
      %v9308 = vpop.permute.xlu0 %9307
      %9309 = vrot.lane.b32.xlu0 %v9265, 32
      %v9310 = vpop.permute.xlu0 %9309
      %9311 = vrot.lane.b32.xlu0 %v9268, 32
      %v9312 = vpop.permute.xlu0 %9311
      %9313 = vrot.lane.b32.xlu0 %v9271, 32
      %v9314 = vpop.permute.xlu0 %9313
      %9315 = vrot.lane.b32.xlu0 %v9274, 32
      %v9316 = vpop.permute.xlu0 %9315
      %9317 = vrot.lane.b32.xlu0 %v9277, 32
      %v9318 = vpop.permute.xlu0 %9317
      %9319 = vrot.lane.b32.xlu0 %v9280, 32
      %v9320 = vpop.permute.xlu0 %9319
      %9321 = vrot.lane.b32.xlu0 %v9283, 32
      %v9322 = vpop.permute.xlu0 %9321
      %9323 = vrot.lane.b32.xlu0 %v9286, 32
      %v9324 = vpop.permute.xlu0 %9323
      %9325 = vrot.lane.b32.xlu0 %v9289, 32
      %v9326 = vpop.permute.xlu0 %9325
      %9327 = vrot.lane.b32.xlu0 %v9292, 32
      %v9328 = vpop.permute.xlu0 %9327
      %9329 = vrot.lane.b32.xlu0 %v9295, 32
      %v9330 = vpop.permute.xlu0 %9329
      %9331 = vrot.lane.b32.xlu0 %v9298, 32
      %v9332 = vpop.permute.xlu0 %9331
      %9333 = vrot.lane.b32.xlu0 %v9301, 32
      %v9334 = vpop.permute.xlu0 %9333
      %9335 = vrot.lane.b32.xlu0 %v9304, 32
      %v9336 = vpop.permute.xlu0 %9335
      %v9338 = vsel %vm1630, %v8713, %v8970
      %v9340 = vsel %vm1630, %v8714, %v8972
      %v9342 = vsel %vm1630, %v8715, %v8974
      %v9344 = vsel %vm1630, %v8716, %v8976
      %v9346 = vsel %vm1630, %v8717, %v8978
      %v9348 = vsel %vm1630, %v8718, %v8980
      %v9350 = vsel %vm1630, %v8719, %v8982
      %v9352 = vsel %vm1630, %v8720, %v8984
      %v9354 = vsel %vm1630, %v8721, %v8986
      %v9356 = vsel %vm1630, %v8722, %v8988
      %v9358 = vsel %vm1630, %v8723, %v8990
      %v9360 = vsel %vm1630, %v8724, %v8992
      %v9362 = vsel %vm1630, %v8725, %v8994
      %v9364 = vsel %vm1630, %v8726, %v8996
      %v9366 = vsel %vm1630, %v8727, %v8998
      %v9368 = vsel %vm1630, %v8728, %v9000
      %v9370 = vsel %vm1695, %v9338, %v9050
      %v9372 = vsel %vm1695, %v9340, %v9052
      %v9374 = vsel %vm1695, %v9342, %v9054
      %v9376 = vsel %vm1695, %v9344, %v9056
      %v9378 = vsel %vm1695, %v9346, %v9058
      %v9380 = vsel %vm1695, %v9348, %v9060
      %v9382 = vsel %vm1695, %v9350, %v9062
      %v9384 = vsel %vm1695, %v9352, %v9064
      %v9386 = vsel %vm1695, %v9354, %v9066
      %v9388 = vsel %vm1695, %v9356, %v9068
      %v9390 = vsel %vm1695, %v9358, %v9070
      %v9392 = vsel %vm1695, %v9360, %v9072
      %v9394 = vsel %vm1695, %v9362, %v9074
      %v9396 = vsel %vm1695, %v9364, %v9076
      %v9398 = vsel %vm1695, %v9366, %v9078
      %v9400 = vsel %vm1695, %v9368, %v9080
      %v9402 = vsel %vm1932, %v9370, %v9226
      %v9404 = vsel %vm1932, %v9372, %v9228
      %v9406 = vsel %vm1932, %v9374, %v9230
      %v9408 = vsel %vm1932, %v9376, %v9232
      %v9410 = vsel %vm1932, %v9378, %v9234
      %v9412 = vsel %vm1932, %v9380, %v9236
      %v9414 = vsel %vm1932, %v9382, %v9238
      %v9416 = vsel %vm1932, %v9384, %v9240
      %v9418 = vsel %vm1932, %v9386, %v9242
      %v9420 = vsel %vm1932, %v9388, %v9244
      %v9422 = vsel %vm1932, %v9390, %v9246
      %v9424 = vsel %vm1932, %v9392, %v9248
      %v9426 = vsel %vm1932, %v9394, %v9250
      %v9428 = vsel %vm1932, %v9396, %v9252
      %v9430 = vsel %vm1932, %v9398, %v9254
      %v9432 = vsel %vm1932, %v9400, %v9256
      %v9434 = vsel %vm5267, %v9402, %v9306
      %v9436 = vsel %vm5267, %v9404, %v9308
      %v9438 = vsel %vm5267, %v9406, %v9310
      %v9440 = vsel %vm5267, %v9408, %v9312
      %v9442 = vsel %vm5267, %v9410, %v9314
      %v9444 = vsel %vm5267, %v9412, %v9316
      %v9446 = vsel %vm5267, %v9414, %v9318
      %v9448 = vsel %vm5267, %v9416, %v9320
      %v9450 = vsel %vm5267, %v9418, %v9322
      %v9452 = vsel %vm5267, %v9420, %v9324
      %v9454 = vsel %vm5267, %v9422, %v9326
      %v9456 = vsel %vm5267, %v9424, %v9328
      %v9458 = vsel %vm5267, %v9426, %v9330
      %v9460 = vsel %vm5267, %v9428, %v9332
      %v9462 = vsel %vm5267, %v9430, %v9334
      %v9464 = vsel %vm5267, %v9432, %v9336
      %s9465 = scalar_lea.vmem %s5, 80
      %v9466 = vld [vmem:[%s9465] sm:$0xf]
      %v9467 = vld [vmem:[%s9465 + $0x4] sm:$0xf]
      %v9468 = vld [vmem:[%s9465 + $0x8] sm:$0xf]
      %v9469 = vld [vmem:[%s9465 + $0xc] sm:$0xf]
      %v9470 = vld [vmem:[%s9465 + $0x10] sm:$0xf]
      %v9476 = vunpack.c.l.b16 %v9466
      %v9477 = vunpack.c.l.b16 %v9467
      %v9478 = vunpack.c.l.b16 %v9468
      %v9479 = vunpack.c.l.b16 %v9469
      %v9480 = vunpack.c.l.b16 %v9470
      %v9481 = vpack.c.b16 %v9477, %v9476
      %v9482 = vpack.c.b16 %v9479, %v9478
      %v9483 = vpack.c.b16 %v9480, %v9480
      %v9486 = vsel %vm5320, %v9434, 0
      %v9488 = vsel %vm5320, %v9436, 0
      %v9490 = vsel %vm5320, %v9438, 0
      %v9492 = vsel %vm5320, %v9440, 0
      %v9494 = vsel %vm5320, %v9442, 0
      %v9496 = vsel %vm5320, %v9444, 0
      %v9498 = vsel %vm5320, %v9446, 0
      %v9500 = vsel %vm5320, %v9448, 0
      %v9502 = vsel %vm5320, %v9450, 0
      %v9504 = vsel %vm5320, %v9452, 0
      %v9506 = vsel %vm5320, %v9454, 0
      %v9508 = vsel %vm5320, %v9456, 0
      %v9510 = vsel %vm5320, %v9458, 0
      %v9512 = vsel %vm5320, %v9460, 0
      %v9514 = vsel %vm5320, %v9462, 0
      %v9516 = vsel %vm5320, %v9464, 0
      %v9519 = vsel %vm1981, %v9483, 0
      %9521 = vmatpush.bf16.msra.mxu0 0
      %9522 = vmatpush.bf16.msra.mxu0 0
      %9523 = vmatpush.bf16.msra.mxu0 0
      %9524 = vmatpush.bf16.msra.mxu0 0
      %9525 = vmatpush.bf16.msra.mxu0 0
      %9526 = vmatpush.bf16.msra.mxu0 %v9519
      %9527 = vmatpush.bf16.msra.mxu0 %v9482
      %9528 = vmatpush.bf16.msra.mxu0 %v9481
      %9529 = vmatmul.bf16.gmra.mxu0 %v9486
      %v9530 = vpop.f32.mrf.mxu0
      %v9531 = vadd.f32 0.0, %v9530
      %v9532 = vpop.f32.mrf.mxu0
      %v9533 = vadd.f32 0.0, %v9532
      %9534 = vmatmul.bf16.gmra.mxu0 %v9488
      %v9535 = vpop.f32.mrf.mxu0
      %v9536 = vadd.f32 0.0, %v9535
      %v9537 = vpop.f32.mrf.mxu0
      %v9538 = vadd.f32 0.0, %v9537
      %9539 = vmatmul.bf16.gmra.mxu0 %v9490
      %v9540 = vpop.f32.mrf.mxu0
      %v9541 = vadd.f32 0.0, %v9540
      %v9542 = vpop.f32.mrf.mxu0
      %v9543 = vadd.f32 0.0, %v9542
      %9544 = vmatmul.bf16.gmra.mxu0 %v9492
      %v9545 = vpop.f32.mrf.mxu0
      %v9546 = vadd.f32 0.0, %v9545
      %v9547 = vpop.f32.mrf.mxu0
      %v9548 = vadd.f32 0.0, %v9547
      %9549 = vmatmul.bf16.gmra.mxu0 %v9494
      %v9550 = vpop.f32.mrf.mxu0
      %v9551 = vadd.f32 0.0, %v9550
      %v9552 = vpop.f32.mrf.mxu0
      %v9553 = vadd.f32 0.0, %v9552
      %9554 = vmatmul.bf16.gmra.mxu0 %v9496
      %v9555 = vpop.f32.mrf.mxu0
      %v9556 = vadd.f32 0.0, %v9555
      %v9557 = vpop.f32.mrf.mxu0
      %v9558 = vadd.f32 0.0, %v9557
      %9559 = vmatmul.bf16.gmra.mxu0 %v9498
      %v9560 = vpop.f32.mrf.mxu0
      %v9561 = vadd.f32 0.0, %v9560
      %v9562 = vpop.f32.mrf.mxu0
      %v9563 = vadd.f32 0.0, %v9562
      %9564 = vmatmul.bf16.gmra.mxu0 %v9500
      %v9565 = vpop.f32.mrf.mxu0
      %v9566 = vadd.f32 0.0, %v9565
      %v9567 = vpop.f32.mrf.mxu0
      %v9568 = vadd.f32 0.0, %v9567
      %9569 = vmatmul.bf16.gmra.mxu0 %v9502
      %v9570 = vpop.f32.mrf.mxu0
      %v9571 = vadd.f32 0.0, %v9570
      %v9572 = vpop.f32.mrf.mxu0
      %v9573 = vadd.f32 0.0, %v9572
      %9574 = vmatmul.bf16.gmra.mxu0 %v9504
      %v9575 = vpop.f32.mrf.mxu0
      %v9576 = vadd.f32 0.0, %v9575
      %v9577 = vpop.f32.mrf.mxu0
      %v9578 = vadd.f32 0.0, %v9577
      %9579 = vmatmul.bf16.gmra.mxu0 %v9506
      %v9580 = vpop.f32.mrf.mxu0
      %v9581 = vadd.f32 0.0, %v9580
      %v9582 = vpop.f32.mrf.mxu0
      %v9583 = vadd.f32 0.0, %v9582
      %9584 = vmatmul.bf16.gmra.mxu0 %v9508
      %v9585 = vpop.f32.mrf.mxu0
      %v9586 = vadd.f32 0.0, %v9585
      %v9587 = vpop.f32.mrf.mxu0
      %v9588 = vadd.f32 0.0, %v9587
      %9589 = vmatmul.bf16.gmra.mxu0 %v9510
      %v9590 = vpop.f32.mrf.mxu0
      %v9591 = vadd.f32 0.0, %v9590
      %v9592 = vpop.f32.mrf.mxu0
      %v9593 = vadd.f32 0.0, %v9592
      %9594 = vmatmul.bf16.gmra.mxu0 %v9512
      %v9595 = vpop.f32.mrf.mxu0
      %v9596 = vadd.f32 0.0, %v9595
      %v9597 = vpop.f32.mrf.mxu0
      %v9598 = vadd.f32 0.0, %v9597
      %9599 = vmatmul.bf16.gmra.mxu0 %v9514
      %v9600 = vpop.f32.mrf.mxu0
      %v9601 = vadd.f32 0.0, %v9600
      %v9602 = vpop.f32.mrf.mxu0
      %v9603 = vadd.f32 0.0, %v9602
      %9604 = vmatmul.bf16.gmra.mxu0 %v9516
      %v9605 = vpop.f32.mrf.mxu0
      %v9606 = vadd.f32 0.0, %v9605
      %v9607 = vpop.f32.mrf.mxu0
      %v9608 = vadd.f32 0.0, %v9607
      %9609 = vdwg.mxu0
      %v9610 = vadd.f32 %v8568, %v9531
      %v9611 = vadd.f32 %v8569, %v9533
      %v9612 = vadd.f32 %v8570, %v9536
      %v9613 = vadd.f32 %v8571, %v9538
      %v9614 = vadd.f32 %v8572, %v9541
      %v9615 = vadd.f32 %v8573, %v9543
      %v9616 = vadd.f32 %v8574, %v9546
      %v9617 = vadd.f32 %v8575, %v9548
      %v9618 = vadd.f32 %v8576, %v9551
      %v9619 = vadd.f32 %v8577, %v9553
      %v9620 = vadd.f32 %v8578, %v9556
      %v9621 = vadd.f32 %v8579, %v9558
      %v9622 = vadd.f32 %v8580, %v9561
      %v9623 = vadd.f32 %v8581, %v9563
      %v9624 = vadd.f32 %v8582, %v9566
      %v9625 = vadd.f32 %v8583, %v9568
      %v9626 = vadd.f32 %v8584, %v9571
      %v9627 = vadd.f32 %v8585, %v9573
      %v9628 = vadd.f32 %v8586, %v9576
      %v9629 = vadd.f32 %v8587, %v9578
      %v9630 = vadd.f32 %v8588, %v9581
      %v9631 = vadd.f32 %v8589, %v9583
      %v9632 = vadd.f32 %v8590, %v9586
      %v9633 = vadd.f32 %v8591, %v9588
      %v9634 = vadd.f32 %v8592, %v9591
      %v9635 = vadd.f32 %v8593, %v9593
      %v9636 = vadd.f32 %v8594, %v9596
      %v9637 = vadd.f32 %v8595, %v9598
      %v9638 = vadd.f32 %v8596, %v9601
      %v9639 = vadd.f32 %v8597, %v9603
      %v9640 = vadd.f32 %v8598, %v9606
      %v9641 = vadd.f32 %v8599, %v9608
      %v9642 = vmax.f32 %v9610, 0.0
      %v9643 = vmax.f32 %v9611, 0.0
      %v9644 = vmax.f32 %v9612, 0.0
      %v9645 = vmax.f32 %v9613, 0.0
      %v9646 = vmax.f32 %v9614, 0.0
      %v9647 = vmax.f32 %v9615, 0.0
      %v9648 = vmax.f32 %v9616, 0.0
      %v9649 = vmax.f32 %v9617, 0.0
      %v9650 = vmax.f32 %v9618, 0.0
      %v9651 = vmax.f32 %v9619, 0.0
      %v9652 = vmax.f32 %v9620, 0.0
      %v9653 = vmax.f32 %v9621, 0.0
      %v9654 = vmax.f32 %v9622, 0.0
      %v9655 = vmax.f32 %v9623, 0.0
      %v9656 = vmax.f32 %v9624, 0.0
      %v9657 = vmax.f32 %v9625, 0.0
      %v9658 = vmax.f32 %v9626, 0.0
      %v9659 = vmax.f32 %v9627, 0.0
      %v9660 = vmax.f32 %v9628, 0.0
      %v9661 = vmax.f32 %v9629, 0.0
      %v9662 = vmax.f32 %v9630, 0.0
      %v9663 = vmax.f32 %v9631, 0.0
      %v9664 = vmax.f32 %v9632, 0.0
      %v9665 = vmax.f32 %v9633, 0.0
      %v9666 = vmax.f32 %v9634, 0.0
      %v9667 = vmax.f32 %v9635, 0.0
      %v9668 = vmax.f32 %v9636, 0.0
      %v9669 = vmax.f32 %v9637, 0.0
      %v9670 = vmax.f32 %v9638, 0.0
      %v9671 = vmax.f32 %v9639, 0.0
      %v9672 = vmax.f32 %v9640, 0.0
      %v9673 = vmax.f32 %v9641, 0.0
      %v9674 = vshrl.u32 %v517, 16
      %v9676 = vrot.slane %v9674, 7
      %v9677 = vshll.u32 %v517, 16
      %v9679 = vor.u32 %v9676, %v9677
      %v9680 = vshrl.u32 %v518, 16
      %v9682 = vrot.slane %v9680, 7
      %v9683 = vshll.u32 %v518, 16
      %v9685 = vor.u32 %v9682, %v9683
      %v9686 = vshrl.u32 %v519, 16
      %v9688 = vrot.slane %v9686, 7
      %v9689 = vshll.u32 %v519, 16
      %v9691 = vor.u32 %v9688, %v9689
      %v9692 = vshrl.u32 %v520, 16
      %v9694 = vrot.slane %v9692, 7
      %v9695 = vshll.u32 %v520, 16
      %v9697 = vor.u32 %v9694, %v9695
      %v9698 = vshrl.u32 %v521, 16
      %v9700 = vrot.slane %v9698, 7
      %v9701 = vshll.u32 %v521, 16
      %v9703 = vor.u32 %v9700, %v9701
      %v9704 = vshrl.u32 %v522, 16
      %v9706 = vrot.slane %v9704, 7
      %v9707 = vshll.u32 %v522, 16
      %v9709 = vor.u32 %v9706, %v9707
      %v9710 = vshrl.u32 %v523, 16
      %v9712 = vrot.slane %v9710, 7
      %v9713 = vshll.u32 %v523, 16
      %v9715 = vor.u32 %v9712, %v9713
      %v9716 = vshrl.u32 %v524, 16
      %v9718 = vrot.slane %v9716, 7
      %v9719 = vshll.u32 %v524, 16
      %v9721 = vor.u32 %v9718, %v9719
      %v9722 = vshrl.u32 %v525, 16
      %v9724 = vrot.slane %v9722, 7
      %v9725 = vshll.u32 %v525, 16
      %v9727 = vor.u32 %v9724, %v9725
      %v9728 = vshrl.u32 %v526, 16
      %v9730 = vrot.slane %v9728, 7
      %v9731 = vshll.u32 %v526, 16
      %v9733 = vor.u32 %v9730, %v9731
      %v9734 = vshrl.u32 %v527, 16
      %v9736 = vrot.slane %v9734, 7
      %v9737 = vshll.u32 %v527, 16
      %v9739 = vor.u32 %v9736, %v9737
      %v9740 = vshrl.u32 %v528, 16
      %v9742 = vrot.slane %v9740, 7
      %v9743 = vshll.u32 %v528, 16
      %v9745 = vor.u32 %v9742, %v9743
      %v9746 = vshrl.u32 %v529, 16
      %v9748 = vrot.slane %v9746, 7
      %v9749 = vshll.u32 %v529, 16
      %v9751 = vor.u32 %v9748, %v9749
      %v9752 = vshrl.u32 %v530, 16
      %v9754 = vrot.slane %v9752, 7
      %v9755 = vshll.u32 %v530, 16
      %v9757 = vor.u32 %v9754, %v9755
      %v9758 = vshrl.u32 %v531, 16
      %v9760 = vrot.slane %v9758, 7
      %v9761 = vshll.u32 %v531, 16
      %v9763 = vor.u32 %v9760, %v9761
      %v9764 = vshrl.u32 %v532, 16
      %v9766 = vrot.slane %v9764, 7
      %v9767 = vshll.u32 %v532, 16
      %v9769 = vor.u32 %v9766, %v9767
      %vm9786 = vsmask.f32 256
      %vm9787 = vmand %vm771, %vm9786
      %v9788 = vsel %vm9787, %v416, %v9679
      %v9789 = vsel %vm9787, %v418, %v9685
      %v9790 = vsel %vm9787, %v420, %v9691
      %v9791 = vsel %vm9787, %v422, %v9697
      %v9792 = vsel %vm9787, %v424, %v9703
      %v9793 = vsel %vm9787, %v426, %v9709
      %v9794 = vsel %vm9787, %v428, %v9715
      %v9795 = vsel %vm9787, %v430, %v9721
      %v9796 = vsel %vm9787, %v432, %v9727
      %v9797 = vsel %vm9787, %v434, %v9733
      %v9798 = vsel %vm9787, %v436, %v9739
      %v9799 = vsel %vm9787, %v438, %v9745
      %v9800 = vsel %vm9787, %v440, %v9751
      %v9801 = vsel %vm9787, %v442, %v9757
      %v9802 = vsel %vm9787, %v444, %v9763
      %v9803 = vsel %vm9787, %v446, %v9769
      %v9804 = vrot.slane %v9677, 1
      %v9805 = vor.u32 %v9674, %v9804
      %v9806 = vrot.slane %v9683, 1
      %v9807 = vor.u32 %v9680, %v9806
      %v9808 = vrot.slane %v9689, 1
      %v9809 = vor.u32 %v9686, %v9808
      %v9810 = vrot.slane %v9695, 1
      %v9811 = vor.u32 %v9692, %v9810
      %v9812 = vrot.slane %v9701, 1
      %v9813 = vor.u32 %v9698, %v9812
      %v9814 = vrot.slane %v9707, 1
      %v9815 = vor.u32 %v9704, %v9814
      %v9816 = vrot.slane %v9713, 1
      %v9817 = vor.u32 %v9710, %v9816
      %v9818 = vrot.slane %v9719, 1
      %v9819 = vor.u32 %v9716, %v9818
      %v9820 = vrot.slane %v9725, 1
      %v9821 = vor.u32 %v9722, %v9820
      %v9822 = vrot.slane %v9731, 1
      %v9823 = vor.u32 %v9728, %v9822
      %v9824 = vrot.slane %v9737, 1
      %v9825 = vor.u32 %v9734, %v9824
      %v9826 = vrot.slane %v9743, 1
      %v9827 = vor.u32 %v9740, %v9826
      %v9828 = vrot.slane %v9749, 1
      %v9829 = vor.u32 %v9746, %v9828
      %v9830 = vrot.slane %v9755, 1
      %v9831 = vor.u32 %v9752, %v9830
      %v9832 = vrot.slane %v9761, 1
      %v9833 = vor.u32 %v9758, %v9832
      %v9834 = vrot.slane %v9767, 1
      %v9835 = vor.u32 %v9764, %v9834
      %v9852 = vpack.c.b16 %v486, %v486
      %v9853 = vpack.c.b16 %v488, %v488
      %v9854 = vpack.c.b16 %v490, %v490
      %v9855 = vpack.c.b16 %v492, %v492
      %v9856 = vpack.c.b16 %v494, %v494
      %v9857 = vpack.c.b16 %v496, %v496
      %v9858 = vpack.c.b16 %v498, %v498
      %v9859 = vpack.c.b16 %v500, %v500
      %v9860 = vpack.c.b16 %v502, %v502
      %v9861 = vpack.c.b16 %v504, %v504
      %v9862 = vpack.c.b16 %v506, %v506
      %v9863 = vpack.c.b16 %v508, %v508
      %v9864 = vpack.c.b16 %v510, %v510
      %v9865 = vpack.c.b16 %v512, %v512
      %v9866 = vpack.c.b16 %v514, %v514
      %v9867 = vpack.c.b16 %v516, %v516
      %vm9884 = vcmask 1047552
      %vm9885 = vmand %vm9884, %vm1228
      %v9886 = vsel %vm9885, %v9805, %v9852
      %v9887 = vsel %vm9885, %v9807, %v9853
      %v9888 = vsel %vm9885, %v9809, %v9854
      %v9889 = vsel %vm9885, %v9811, %v9855
      %v9890 = vsel %vm9885, %v9813, %v9856
      %v9891 = vsel %vm9885, %v9815, %v9857
      %v9892 = vsel %vm9885, %v9817, %v9858
      %v9893 = vsel %vm9885, %v9819, %v9859
      %v9894 = vsel %vm9885, %v9821, %v9860
      %v9895 = vsel %vm9885, %v9823, %v9861
      %v9896 = vsel %vm9885, %v9825, %v9862
      %v9897 = vsel %vm9885, %v9827, %v9863
      %v9898 = vsel %vm9885, %v9829, %v9864
      %v9899 = vsel %vm9885, %v9831, %v9865
      %v9900 = vsel %vm9885, %v9833, %v9866
      %v9901 = vsel %vm9885, %v9835, %v9867
      %v9902 = vunpack.c.l.bf16 %v9788
      %v9903 = vunpack.c.h.bf16 %v9788
      %v9904 = vunpack.c.l.bf16 %v9789
      %v9905 = vunpack.c.h.bf16 %v9789
      %v9906 = vunpack.c.l.bf16 %v9790
      %v9907 = vunpack.c.h.bf16 %v9790
      %v9908 = vunpack.c.l.bf16 %v9791
      %v9909 = vunpack.c.h.bf16 %v9791
      %v9910 = vunpack.c.l.bf16 %v9792
      %v9911 = vunpack.c.h.bf16 %v9792
      %v9912 = vunpack.c.l.bf16 %v9793
      %v9913 = vunpack.c.h.bf16 %v9793
      %v9914 = vunpack.c.l.bf16 %v9794
      %v9915 = vunpack.c.h.bf16 %v9794
      %v9916 = vunpack.c.l.bf16 %v9795
      %v9917 = vunpack.c.h.bf16 %v9795
      %v9918 = vunpack.c.l.bf16 %v9796
      %v9919 = vunpack.c.h.bf16 %v9796
      %v9920 = vunpack.c.l.bf16 %v9797
      %v9921 = vunpack.c.h.bf16 %v9797
      %v9922 = vunpack.c.l.bf16 %v9798
      %v9923 = vunpack.c.h.bf16 %v9798
      %v9924 = vunpack.c.l.bf16 %v9799
      %v9925 = vunpack.c.h.bf16 %v9799
      %v9926 = vunpack.c.l.bf16 %v9800
      %v9927 = vunpack.c.h.bf16 %v9800
      %v9928 = vunpack.c.l.bf16 %v9801
      %v9929 = vunpack.c.h.bf16 %v9801
      %v9930 = vunpack.c.l.bf16 %v9802
      %v9931 = vunpack.c.h.bf16 %v9802
      %v9932 = vunpack.c.l.bf16 %v9803
      %v9933 = vunpack.c.h.bf16 %v9803
      %v9934 = vunpack.c.l.bf16 %v9886
      %v9935 = vunpack.c.h.bf16 %v9886
      %v9936 = vunpack.c.l.bf16 %v9887
      %v9937 = vunpack.c.h.bf16 %v9887
      %v9938 = vunpack.c.l.bf16 %v9888
      %v9939 = vunpack.c.h.bf16 %v9888
      %v9940 = vunpack.c.l.bf16 %v9889
      %v9941 = vunpack.c.h.bf16 %v9889
      %v9942 = vunpack.c.l.bf16 %v9890
      %v9943 = vunpack.c.h.bf16 %v9890
      %v9944 = vunpack.c.l.bf16 %v9891
      %v9945 = vunpack.c.h.bf16 %v9891
      %v9946 = vunpack.c.l.bf16 %v9892
      %v9947 = vunpack.c.h.bf16 %v9892
      %v9948 = vunpack.c.l.bf16 %v9893
      %v9949 = vunpack.c.h.bf16 %v9893
      %v9950 = vunpack.c.l.bf16 %v9894
      %v9951 = vunpack.c.h.bf16 %v9894
      %v9952 = vunpack.c.l.bf16 %v9895
      %v9953 = vunpack.c.h.bf16 %v9895
      %v9954 = vunpack.c.l.bf16 %v9896
      %v9955 = vunpack.c.h.bf16 %v9896
      %v9956 = vunpack.c.l.bf16 %v9897
      %v9957 = vunpack.c.h.bf16 %v9897
      %v9958 = vunpack.c.l.bf16 %v9898
      %v9959 = vunpack.c.h.bf16 %v9898
      %v9960 = vunpack.c.l.bf16 %v9899
      %v9961 = vunpack.c.h.bf16 %v9899
      %v9962 = vunpack.c.l.bf16 %v9900
      %v9963 = vunpack.c.h.bf16 %v9900
      %v9964 = vunpack.c.l.bf16 %v9901
      %v9965 = vunpack.c.h.bf16 %v9901
      %v9966 = vmax.f32 %v9902, %v9934
      %v9967 = vmax.f32 %v9903, %v9935
      %v9968 = vmax.f32 %v9904, %v9936
      %v9969 = vmax.f32 %v9905, %v9937
      %v9970 = vmax.f32 %v9906, %v9938
      %v9971 = vmax.f32 %v9907, %v9939
      %v9972 = vmax.f32 %v9908, %v9940
      %v9973 = vmax.f32 %v9909, %v9941
      %v9974 = vmax.f32 %v9910, %v9942
      %v9975 = vmax.f32 %v9911, %v9943
      %v9976 = vmax.f32 %v9912, %v9944
      %v9977 = vmax.f32 %v9913, %v9945
      %v9978 = vmax.f32 %v9914, %v9946
      %v9979 = vmax.f32 %v9915, %v9947
      %v9980 = vmax.f32 %v9916, %v9948
      %v9981 = vmax.f32 %v9917, %v9949
      %v9982 = vmax.f32 %v9918, %v9950
      %v9983 = vmax.f32 %v9919, %v9951
      %v9984 = vmax.f32 %v9920, %v9952
      %v9985 = vmax.f32 %v9921, %v9953
      %v9986 = vmax.f32 %v9922, %v9954
      %v9987 = vmax.f32 %v9923, %v9955
      %v9988 = vmax.f32 %v9924, %v9956
      %v9989 = vmax.f32 %v9925, %v9957
      %v9990 = vmax.f32 %v9926, %v9958
      %v9991 = vmax.f32 %v9927, %v9959
      %v9992 = vmax.f32 %v9928, %v9960
      %v9993 = vmax.f32 %v9929, %v9961
      %v9994 = vmax.f32 %v9930, %v9962
      %v9995 = vmax.f32 %v9931, %v9963
      %v9996 = vmax.f32 %v9932, %v9964
      %v9997 = vmax.f32 %v9933, %v9965
      %v9998 = vpack.c.bf16 %v9966, %v9966
      %v9999 = vpack.c.bf16 %v9967, %v9967
      %v10000 = vpack.c.bf16 %v9968, %v9968
      %v10001 = vpack.c.bf16 %v9969, %v9969
      %v10002 = vpack.c.bf16 %v9970, %v9970
      %v10003 = vpack.c.bf16 %v9971, %v9971
      %v10004 = vpack.c.bf16 %v9972, %v9972
      %v10005 = vpack.c.bf16 %v9973, %v9973
      %v10006 = vpack.c.bf16 %v9974, %v9974
      %v10007 = vpack.c.bf16 %v9975, %v9975
      %v10008 = vpack.c.bf16 %v9976, %v9976
      %v10009 = vpack.c.bf16 %v9977, %v9977
      %v10010 = vpack.c.bf16 %v9978, %v9978
      %v10011 = vpack.c.bf16 %v9979, %v9979
      %v10012 = vpack.c.bf16 %v9980, %v9980
      %v10013 = vpack.c.bf16 %v9981, %v9981
      %v10014 = vpack.c.bf16 %v9982, %v9982
      %v10015 = vpack.c.bf16 %v9983, %v9983
      %v10016 = vpack.c.bf16 %v9984, %v9984
      %v10017 = vpack.c.bf16 %v9985, %v9985
      %v10018 = vpack.c.bf16 %v9986, %v9986
      %v10019 = vpack.c.bf16 %v9987, %v9987
      %v10020 = vpack.c.bf16 %v9988, %v9988
      %v10021 = vpack.c.bf16 %v9989, %v9989
      %v10022 = vpack.c.bf16 %v9990, %v9990
      %v10023 = vpack.c.bf16 %v9991, %v9991
      %v10024 = vpack.c.bf16 %v9992, %v9992
      %v10025 = vpack.c.bf16 %v9993, %v9993
      %v10026 = vpack.c.bf16 %v9994, %v9994
      %v10027 = vpack.c.bf16 %v9995, %v9995
      %v10028 = vpack.c.bf16 %v9996, %v9996
      %v10029 = vpack.c.bf16 %v9997, %v9997
      %v10030 = vunpack.c.l.bf16 %v416
      %v10031 = vunpack.c.l.bf16 %v417
      %v10032 = vunpack.c.l.bf16 %v418
      %v10033 = vunpack.c.l.bf16 %v419
      %v10034 = vunpack.c.l.bf16 %v420
      %v10035 = vunpack.c.l.bf16 %v421
      %v10036 = vunpack.c.l.bf16 %v422
      %v10037 = vunpack.c.l.bf16 %v423
      %v10038 = vunpack.c.l.bf16 %v424
      %v10039 = vunpack.c.l.bf16 %v425
      %v10040 = vunpack.c.l.bf16 %v426
      %v10041 = vunpack.c.l.bf16 %v427
      %v10042 = vunpack.c.l.bf16 %v428
      %v10043 = vunpack.c.l.bf16 %v429
      %v10044 = vunpack.c.l.bf16 %v430
      %v10045 = vunpack.c.l.bf16 %v431
      %v10046 = vunpack.c.l.bf16 %v432
      %v10047 = vunpack.c.l.bf16 %v433
      %v10048 = vunpack.c.l.bf16 %v434
      %v10049 = vunpack.c.l.bf16 %v435
      %v10050 = vunpack.c.l.bf16 %v436
      %v10051 = vunpack.c.l.bf16 %v437
      %v10052 = vunpack.c.l.bf16 %v438
      %v10053 = vunpack.c.l.bf16 %v439
      %v10054 = vunpack.c.l.bf16 %v440
      %v10055 = vunpack.c.l.bf16 %v441
      %v10056 = vunpack.c.l.bf16 %v442
      %v10057 = vunpack.c.l.bf16 %v443
      %v10058 = vunpack.c.l.bf16 %v444
      %v10059 = vunpack.c.l.bf16 %v445
      %v10060 = vunpack.c.l.bf16 %v446
      %v10061 = vunpack.c.l.bf16 %v447
      %v10062 = vunpack.c.l.bf16 %v9998
      %v10063 = vunpack.c.l.bf16 %v9999
      %v10064 = vunpack.c.l.bf16 %v10000
      %v10065 = vunpack.c.l.bf16 %v10001
      %v10066 = vunpack.c.l.bf16 %v10002
      %v10067 = vunpack.c.l.bf16 %v10003
      %v10068 = vunpack.c.l.bf16 %v10004
      %v10069 = vunpack.c.l.bf16 %v10005
      %v10070 = vunpack.c.l.bf16 %v10006
      %v10071 = vunpack.c.l.bf16 %v10007
      %v10072 = vunpack.c.l.bf16 %v10008
      %v10073 = vunpack.c.l.bf16 %v10009
      %v10074 = vunpack.c.l.bf16 %v10010
      %v10075 = vunpack.c.l.bf16 %v10011
      %v10076 = vunpack.c.l.bf16 %v10012
      %v10077 = vunpack.c.l.bf16 %v10013
      %v10078 = vunpack.c.l.bf16 %v10014
      %v10079 = vunpack.c.l.bf16 %v10015
      %v10080 = vunpack.c.l.bf16 %v10016
      %v10081 = vunpack.c.l.bf16 %v10017
      %v10082 = vunpack.c.l.bf16 %v10018
      %v10083 = vunpack.c.l.bf16 %v10019
      %v10084 = vunpack.c.l.bf16 %v10020
      %v10085 = vunpack.c.l.bf16 %v10021
      %v10086 = vunpack.c.l.bf16 %v10022
      %v10087 = vunpack.c.l.bf16 %v10023
      %v10088 = vunpack.c.l.bf16 %v10024
      %v10089 = vunpack.c.l.bf16 %v10025
      %v10090 = vunpack.c.l.bf16 %v10026
      %v10091 = vunpack.c.l.bf16 %v10027
      %v10092 = vunpack.c.l.bf16 %v10028
      %v10093 = vunpack.c.l.bf16 %v10029
      %v10094 = vmax.f32 %v10030, %v10062
      %v10095 = vmax.f32 %v10031, %v10063
      %v10096 = vmax.f32 %v10032, %v10064
      %v10097 = vmax.f32 %v10033, %v10065
      %v10098 = vmax.f32 %v10034, %v10066
      %v10099 = vmax.f32 %v10035, %v10067
      %v10100 = vmax.f32 %v10036, %v10068
      %v10101 = vmax.f32 %v10037, %v10069
      %v10102 = vmax.f32 %v10038, %v10070
      %v10103 = vmax.f32 %v10039, %v10071
      %v10104 = vmax.f32 %v10040, %v10072
      %v10105 = vmax.f32 %v10041, %v10073
      %v10106 = vmax.f32 %v10042, %v10074
      %v10107 = vmax.f32 %v10043, %v10075
      %v10108 = vmax.f32 %v10044, %v10076
      %v10109 = vmax.f32 %v10045, %v10077
      %v10110 = vmax.f32 %v10046, %v10078
      %v10111 = vmax.f32 %v10047, %v10079
      %v10112 = vmax.f32 %v10048, %v10080
      %v10113 = vmax.f32 %v10049, %v10081
      %v10114 = vmax.f32 %v10050, %v10082
      %v10115 = vmax.f32 %v10051, %v10083
      %v10116 = vmax.f32 %v10052, %v10084
      %v10117 = vmax.f32 %v10053, %v10085
      %v10118 = vmax.f32 %v10054, %v10086
      %v10119 = vmax.f32 %v10055, %v10087
      %v10120 = vmax.f32 %v10056, %v10088
      %v10121 = vmax.f32 %v10057, %v10089
      %v10122 = vmax.f32 %v10058, %v10090
      %v10123 = vmax.f32 %v10059, %v10091
      %v10124 = vmax.f32 %v10060, %v10092
      %v10125 = vmax.f32 %v10061, %v10093
      %v10126 = vpack.c.bf16 %v10094, %v10094
      %v10127 = vpack.c.bf16 %v10095, %v10095
      %v10128 = vpack.c.bf16 %v10096, %v10096
      %v10129 = vpack.c.bf16 %v10097, %v10097
      %v10130 = vpack.c.bf16 %v10098, %v10098
      %v10131 = vpack.c.bf16 %v10099, %v10099
      %v10132 = vpack.c.bf16 %v10100, %v10100
      %v10133 = vpack.c.bf16 %v10101, %v10101
      %v10134 = vpack.c.bf16 %v10102, %v10102
      %v10135 = vpack.c.bf16 %v10103, %v10103
      %v10136 = vpack.c.bf16 %v10104, %v10104
      %v10137 = vpack.c.bf16 %v10105, %v10105
      %v10138 = vpack.c.bf16 %v10106, %v10106
      %v10139 = vpack.c.bf16 %v10107, %v10107
      %v10140 = vpack.c.bf16 %v10108, %v10108
      %v10141 = vpack.c.bf16 %v10109, %v10109
      %v10142 = vpack.c.bf16 %v10110, %v10110
      %v10143 = vpack.c.bf16 %v10111, %v10111
      %v10144 = vpack.c.bf16 %v10112, %v10112
      %v10145 = vpack.c.bf16 %v10113, %v10113
      %v10146 = vpack.c.bf16 %v10114, %v10114
      %v10147 = vpack.c.bf16 %v10115, %v10115
      %v10148 = vpack.c.bf16 %v10116, %v10116
      %v10149 = vpack.c.bf16 %v10117, %v10117
      %v10150 = vpack.c.bf16 %v10118, %v10118
      %v10151 = vpack.c.bf16 %v10119, %v10119
      %v10152 = vpack.c.bf16 %v10120, %v10120
      %v10153 = vpack.c.bf16 %v10121, %v10121
      %v10154 = vpack.c.bf16 %v10122, %v10122
      %v10155 = vpack.c.bf16 %v10123, %v10123
      %v10156 = vpack.c.bf16 %v10124, %v10124
      %v10157 = vpack.c.bf16 %v10125, %v10125
      %v10158 = vunpack.c.l.bf16 %v10126
      %v10159 = vunpack.c.l.bf16 %v10127
      %v10160 = vunpack.c.l.bf16 %v10128
      %v10161 = vunpack.c.l.bf16 %v10129
      %v10162 = vunpack.c.l.bf16 %v10130
      %v10163 = vunpack.c.l.bf16 %v10131
      %v10164 = vunpack.c.l.bf16 %v10132
      %v10165 = vunpack.c.l.bf16 %v10133
      %v10166 = vunpack.c.l.bf16 %v10134
      %v10167 = vunpack.c.l.bf16 %v10135
      %v10168 = vunpack.c.l.bf16 %v10136
      %v10169 = vunpack.c.l.bf16 %v10137
      %v10170 = vunpack.c.l.bf16 %v10138
      %v10171 = vunpack.c.l.bf16 %v10139
      %v10172 = vunpack.c.l.bf16 %v10140
      %v10173 = vunpack.c.l.bf16 %v10141
      %v10174 = vunpack.c.l.bf16 %v10142
      %v10175 = vunpack.c.l.bf16 %v10143
      %v10176 = vunpack.c.l.bf16 %v10144
      %v10177 = vunpack.c.l.bf16 %v10145
      %v10178 = vunpack.c.l.bf16 %v10146
      %v10179 = vunpack.c.l.bf16 %v10147
      %v10180 = vunpack.c.l.bf16 %v10148
      %v10181 = vunpack.c.l.bf16 %v10149
      %v10182 = vunpack.c.l.bf16 %v10150
      %v10183 = vunpack.c.l.bf16 %v10151
      %v10184 = vunpack.c.l.bf16 %v10152
      %v10185 = vunpack.c.l.bf16 %v10153
      %v10186 = vunpack.c.l.bf16 %v10154
      %v10187 = vunpack.c.l.bf16 %v10155
      %v10188 = vunpack.c.l.bf16 %v10156
      %v10189 = vunpack.c.l.bf16 %v10157
      %v10190 = vmax.f32 %v10158, %v10160
      %v10191 = vmax.f32 %v10159, %v10161
      %v10192 = vmax.f32 %v10158, %v10162
      %v10193 = vmax.f32 %v10159, %v10163
      %v10194 = vmax.f32 %v10160, %v10164
      %v10195 = vmax.f32 %v10161, %v10165
      %v10196 = vmax.f32 %v10162, %v10166
      %v10197 = vmax.f32 %v10163, %v10167
      %v10198 = vmax.f32 %v10164, %v10168
      %v10199 = vmax.f32 %v10165, %v10169
      %v10200 = vmax.f32 %v10166, %v10170
      %v10201 = vmax.f32 %v10167, %v10171
      %v10202 = vmax.f32 %v10168, %v10172
      %v10203 = vmax.f32 %v10169, %v10173
      %v10204 = vmax.f32 %v10170, %v10174
      %v10205 = vmax.f32 %v10171, %v10175
      %v10206 = vmax.f32 %v10172, %v10176
      %v10207 = vmax.f32 %v10173, %v10177
      %v10208 = vmax.f32 %v10174, %v10178
      %v10209 = vmax.f32 %v10175, %v10179
      %v10210 = vmax.f32 %v10176, %v10180
      %v10211 = vmax.f32 %v10177, %v10181
      %v10212 = vmax.f32 %v10178, %v10182
      %v10213 = vmax.f32 %v10179, %v10183
      %v10214 = vmax.f32 %v10180, %v10184
      %v10215 = vmax.f32 %v10181, %v10185
      %v10216 = vmax.f32 %v10182, %v10186
      %v10217 = vmax.f32 %v10183, %v10187
      %v10218 = vmax.f32 %v10184, %v10188
      %v10219 = vmax.f32 %v10185, %v10189
      %v10220 = vmax.f32 %v10186, %v10188
      %v10221 = vmax.f32 %v10187, %v10189
      %v10222 = vpack.c.bf16 %v10190, %v10190
      %v10223 = vpack.c.bf16 %v10191, %v10191
      %v10224 = vpack.c.bf16 %v10192, %v10192
      %v10225 = vpack.c.bf16 %v10193, %v10193
      %v10226 = vpack.c.bf16 %v10194, %v10194
      %v10227 = vpack.c.bf16 %v10195, %v10195
      %v10228 = vpack.c.bf16 %v10196, %v10196
      %v10229 = vpack.c.bf16 %v10197, %v10197
      %v10230 = vpack.c.bf16 %v10198, %v10198
      %v10231 = vpack.c.bf16 %v10199, %v10199
      %v10232 = vpack.c.bf16 %v10200, %v10200
      %v10233 = vpack.c.bf16 %v10201, %v10201
      %v10234 = vpack.c.bf16 %v10202, %v10202
      %v10235 = vpack.c.bf16 %v10203, %v10203
      %v10236 = vpack.c.bf16 %v10204, %v10204
      %v10237 = vpack.c.bf16 %v10205, %v10205
      %v10238 = vpack.c.bf16 %v10206, %v10206
      %v10239 = vpack.c.bf16 %v10207, %v10207
      %v10240 = vpack.c.bf16 %v10208, %v10208
      %v10241 = vpack.c.bf16 %v10209, %v10209
      %v10242 = vpack.c.bf16 %v10210, %v10210
      %v10243 = vpack.c.bf16 %v10211, %v10211
      %v10244 = vpack.c.bf16 %v10212, %v10212
      %v10245 = vpack.c.bf16 %v10213, %v10213
      %v10246 = vpack.c.bf16 %v10214, %v10214
      %v10247 = vpack.c.bf16 %v10215, %v10215
      %v10248 = vpack.c.bf16 %v10216, %v10216
      %v10249 = vpack.c.bf16 %v10217, %v10217
      %v10250 = vpack.c.bf16 %v10218, %v10218
      %v10251 = vpack.c.bf16 %v10219, %v10219
      %v10252 = vpack.c.bf16 %v10220, %v10220
      %v10253 = vpack.c.bf16 %v10221, %v10221
      %v10254 = vunpack.c.l.bf16 %v10222
      %v10255 = vunpack.c.l.bf16 %v10223
      %v10256 = vunpack.c.l.bf16 %v10224
      %v10257 = vunpack.c.l.bf16 %v10225
      %v10258 = vunpack.c.l.bf16 %v10226
      %v10259 = vunpack.c.l.bf16 %v10227
      %v10260 = vunpack.c.l.bf16 %v10228
      %v10261 = vunpack.c.l.bf16 %v10229
      %v10262 = vunpack.c.l.bf16 %v10230
      %v10263 = vunpack.c.l.bf16 %v10231
      %v10264 = vunpack.c.l.bf16 %v10232
      %v10265 = vunpack.c.l.bf16 %v10233
      %v10266 = vunpack.c.l.bf16 %v10234
      %v10267 = vunpack.c.l.bf16 %v10235
      %v10268 = vunpack.c.l.bf16 %v10236
      %v10269 = vunpack.c.l.bf16 %v10237
      %v10270 = vunpack.c.l.bf16 %v10238
      %v10271 = vunpack.c.l.bf16 %v10239
      %v10272 = vunpack.c.l.bf16 %v10240
      %v10273 = vunpack.c.l.bf16 %v10241
      %v10274 = vunpack.c.l.bf16 %v10242
      %v10275 = vunpack.c.l.bf16 %v10243
      %v10276 = vunpack.c.l.bf16 %v10244
      %v10277 = vunpack.c.l.bf16 %v10245
      %v10278 = vunpack.c.l.bf16 %v10246
      %v10279 = vunpack.c.l.bf16 %v10247
      %v10280 = vunpack.c.l.bf16 %v10248
      %v10281 = vunpack.c.l.bf16 %v10249
      %v10282 = vunpack.c.l.bf16 %v10250
      %v10283 = vunpack.c.l.bf16 %v10251
      %v10284 = vunpack.c.l.bf16 %v10252
      %v10285 = vunpack.c.l.bf16 %v10253
      %v10286 = vmax.f32 %v10158, %v10254
      %v10287 = vmax.f32 %v10159, %v10255
      %v10288 = vmax.f32 %v10160, %v10256
      %v10289 = vmax.f32 %v10161, %v10257
      %v10290 = vmax.f32 %v10162, %v10258
      %v10291 = vmax.f32 %v10163, %v10259
      %v10292 = vmax.f32 %v10164, %v10260
      %v10293 = vmax.f32 %v10165, %v10261
      %v10294 = vmax.f32 %v10166, %v10262
      %v10295 = vmax.f32 %v10167, %v10263
      %v10296 = vmax.f32 %v10168, %v10264
      %v10297 = vmax.f32 %v10169, %v10265
      %v10298 = vmax.f32 %v10170, %v10266
      %v10299 = vmax.f32 %v10171, %v10267
      %v10300 = vmax.f32 %v10172, %v10268
      %v10301 = vmax.f32 %v10173, %v10269
      %v10302 = vmax.f32 %v10174, %v10270
      %v10303 = vmax.f32 %v10175, %v10271
      %v10304 = vmax.f32 %v10176, %v10272
      %v10305 = vmax.f32 %v10177, %v10273
      %v10306 = vmax.f32 %v10178, %v10274
      %v10307 = vmax.f32 %v10179, %v10275
      %v10308 = vmax.f32 %v10180, %v10276
      %v10309 = vmax.f32 %v10181, %v10277
      %v10310 = vmax.f32 %v10182, %v10278
      %v10311 = vmax.f32 %v10183, %v10279
      %v10312 = vmax.f32 %v10184, %v10280
      %v10313 = vmax.f32 %v10185, %v10281
      %v10314 = vmax.f32 %v10186, %v10282
      %v10315 = vmax.f32 %v10187, %v10283
      %v10316 = vmax.f32 %v10188, %v10284
      %v10317 = vmax.f32 %v10189, %v10285
      %v10318 = vpack.c.bf16 %v10286, %v10286
      %v10319 = vpack.c.bf16 %v10287, %v10287
      %v10320 = vpack.c.bf16 %v10288, %v10288
      %v10321 = vpack.c.bf16 %v10289, %v10289
      %v10322 = vpack.c.bf16 %v10290, %v10290
      %v10323 = vpack.c.bf16 %v10291, %v10291
      %v10324 = vpack.c.bf16 %v10292, %v10292
      %v10325 = vpack.c.bf16 %v10293, %v10293
      %v10326 = vpack.c.bf16 %v10294, %v10294
      %v10327 = vpack.c.bf16 %v10295, %v10295
      %v10328 = vpack.c.bf16 %v10296, %v10296
      %v10329 = vpack.c.bf16 %v10297, %v10297
      %v10330 = vpack.c.bf16 %v10298, %v10298
      %v10331 = vpack.c.bf16 %v10299, %v10299
      %v10332 = vpack.c.bf16 %v10300, %v10300
      %v10333 = vpack.c.bf16 %v10301, %v10301
      %v10334 = vpack.c.bf16 %v10302, %v10302
      %v10335 = vpack.c.bf16 %v10303, %v10303
      %v10336 = vpack.c.bf16 %v10304, %v10304
      %v10337 = vpack.c.bf16 %v10305, %v10305
      %v10338 = vpack.c.bf16 %v10306, %v10306
      %v10339 = vpack.c.bf16 %v10307, %v10307
      %v10340 = vpack.c.bf16 %v10308, %v10308
      %v10341 = vpack.c.bf16 %v10309, %v10309
      %v10342 = vpack.c.bf16 %v10310, %v10310
      %v10343 = vpack.c.bf16 %v10311, %v10311
      %v10344 = vpack.c.bf16 %v10312, %v10312
      %v10345 = vpack.c.bf16 %v10313, %v10313
      %v10346 = vpack.c.bf16 %v10314, %v10314
      %v10347 = vpack.c.bf16 %v10315, %v10315
      %v10348 = vpack.c.bf16 %v10316, %v10316
      %v10349 = vpack.c.bf16 %v10317, %v10317
      %v10350 = vld [vmem:[%s7] sm:$0x3]
      %v10351 = vld [vmem:[%s8] sm:$0x1]
      %v10353 = vperm.slane %v10351, 0
      %v10387 = vunpack.c.l.b16 %v10318
      %v10388 = vunpack.c.l.b16 %v10319
      %v10389 = vunpack.c.l.b16 %v10320
      %v10390 = vunpack.c.l.b16 %v10321
      %v10391 = vunpack.c.l.b16 %v10322
      %v10392 = vunpack.c.l.b16 %v10323
      %v10393 = vunpack.c.l.b16 %v10324
      %v10394 = vunpack.c.l.b16 %v10325
      %v10395 = vunpack.c.l.b16 %v10326
      %v10396 = vunpack.c.l.b16 %v10327
      %v10397 = vunpack.c.l.b16 %v10328
      %v10398 = vunpack.c.l.b16 %v10329
      %v10399 = vunpack.c.l.b16 %v10330
      %v10400 = vunpack.c.l.b16 %v10331
      %v10401 = vunpack.c.l.b16 %v10332
      %v10402 = vunpack.c.l.b16 %v10333
      %v10403 = vunpack.c.l.b16 %v10334
      %v10404 = vunpack.c.l.b16 %v10335
      %v10405 = vunpack.c.l.b16 %v10336
      %v10406 = vunpack.c.l.b16 %v10337
      %v10407 = vunpack.c.l.b16 %v10338
      %v10408 = vunpack.c.l.b16 %v10339
      %v10409 = vunpack.c.l.b16 %v10340
      %v10410 = vunpack.c.l.b16 %v10341
      %v10411 = vunpack.c.l.b16 %v10342
      %v10412 = vunpack.c.l.b16 %v10343
      %v10413 = vunpack.c.l.b16 %v10344
      %v10414 = vunpack.c.l.b16 %v10345
      %v10415 = vunpack.c.l.b16 %v10346
      %v10416 = vunpack.c.l.b16 %v10347
      %v10417 = vunpack.c.l.b16 %v10348
      %v10418 = vunpack.c.l.b16 %v10349
      %v10419 = vpack.c.b16 %v10388, %v10387
      %v10420 = vpack.c.b16 %v10390, %v10389
      %v10421 = vpack.c.b16 %v10392, %v10391
      %v10422 = vpack.c.b16 %v10394, %v10393
      %v10423 = vpack.c.b16 %v10396, %v10395
      %v10424 = vpack.c.b16 %v10398, %v10397
      %v10425 = vpack.c.b16 %v10400, %v10399
      %v10426 = vpack.c.b16 %v10402, %v10401
      %v10427 = vpack.c.b16 %v10404, %v10403
      %v10428 = vpack.c.b16 %v10406, %v10405
      %v10429 = vpack.c.b16 %v10408, %v10407
      %v10430 = vpack.c.b16 %v10410, %v10409
      %v10431 = vpack.c.b16 %v10412, %v10411
      %v10432 = vpack.c.b16 %v10414, %v10413
      %v10433 = vpack.c.b16 %v10416, %v10415
      %v10434 = vpack.c.b16 %v10418, %v10417
      %v10436 = vsel %vm533, %v10419, 0
      %v10439 = vsel %vm533, %v10420, 0
      %v10442 = vsel %vm533, %v10421, 0
      %v10445 = vsel %vm533, %v10422, 0
      %v10448 = vsel %vm533, %v10423, 0
      %v10451 = vsel %vm533, %v10424, 0
      %v10454 = vsel %vm533, %v10425, 0
      %v10457 = vsel %vm533, %v10426, 0
      %v10460 = vsel %vm533, %v10427, 0
      %v10463 = vsel %vm533, %v10428, 0
      %v10466 = vsel %vm533, %v10429, 0
      %v10469 = vsel %vm533, %v10430, 0
      %v10472 = vsel %vm533, %v10431, 0
      %v10475 = vsel %vm533, %v10432, 0
      %v10478 = vsel %vm533, %v10433, 0
      %v10481 = vsel %vm533, %v10434, 0
      %v10484 = vsel %vm582, %v10350, 0
      %10486 = vmatpush.bf16.msra.mxu0 0
      %10487 = vmatpush.bf16.msra.mxu0 0
      %10488 = vmatpush.bf16.msra.mxu0 0
      %10489 = vmatpush.bf16.msra.mxu0 0
      %10490 = vmatpush.bf16.msra.mxu0 0
      %10491 = vmatpush.bf16.msra.mxu0 0
      %10492 = vmatpush.bf16.msra.mxu0 0
      %10493 = vmatpush.bf16.msra.mxu0 %v10484
      %10494 = vmatmul.bf16.gmra.mxu0 %v10436
      %v10495 = vpop.f32.mrf.mxu0
      %v10496 = vadd.f32 %v10353, %v10495
      %v10497 = vpop.f32.mrf.mxu0
      %v10498 = vadd.f32 %v10353, %v10497
      %10499 = vmatmul.bf16.gmra.mxu0 %v10439
      %v10500 = vpop.f32.mrf.mxu0
      %v10501 = vadd.f32 %v10353, %v10500
      %v10502 = vpop.f32.mrf.mxu0
      %v10503 = vadd.f32 %v10353, %v10502
      %10504 = vmatmul.bf16.gmra.mxu0 %v10442
      %v10505 = vpop.f32.mrf.mxu0
      %v10506 = vadd.f32 %v10353, %v10505
      %v10507 = vpop.f32.mrf.mxu0
      %v10508 = vadd.f32 %v10353, %v10507
      %10509 = vmatmul.bf16.gmra.mxu0 %v10445
      %v10510 = vpop.f32.mrf.mxu0
      %v10511 = vadd.f32 %v10353, %v10510
      %v10512 = vpop.f32.mrf.mxu0
      %v10513 = vadd.f32 %v10353, %v10512
      %10514 = vmatmul.bf16.gmra.mxu0 %v10448
      %v10515 = vpop.f32.mrf.mxu0
      %v10516 = vadd.f32 %v10353, %v10515
      %v10517 = vpop.f32.mrf.mxu0
      %v10518 = vadd.f32 %v10353, %v10517
      %10519 = vmatmul.bf16.gmra.mxu0 %v10451
      %v10520 = vpop.f32.mrf.mxu0
      %v10521 = vadd.f32 %v10353, %v10520
      %v10522 = vpop.f32.mrf.mxu0
      %v10523 = vadd.f32 %v10353, %v10522
      %10524 = vmatmul.bf16.gmra.mxu0 %v10454
      %v10525 = vpop.f32.mrf.mxu0
      %v10526 = vadd.f32 %v10353, %v10525
      %v10527 = vpop.f32.mrf.mxu0
      %v10528 = vadd.f32 %v10353, %v10527
      %10529 = vmatmul.bf16.gmra.mxu0 %v10457
      %v10530 = vpop.f32.mrf.mxu0
      %v10531 = vadd.f32 %v10353, %v10530
      %v10532 = vpop.f32.mrf.mxu0
      %v10533 = vadd.f32 %v10353, %v10532
      %10534 = vmatmul.bf16.gmra.mxu0 %v10460
      %v10535 = vpop.f32.mrf.mxu0
      %v10536 = vadd.f32 %v10353, %v10535
      %v10537 = vpop.f32.mrf.mxu0
      %v10538 = vadd.f32 %v10353, %v10537
      %10539 = vmatmul.bf16.gmra.mxu0 %v10463
      %v10540 = vpop.f32.mrf.mxu0
      %v10541 = vadd.f32 %v10353, %v10540
      %v10542 = vpop.f32.mrf.mxu0
      %v10543 = vadd.f32 %v10353, %v10542
      %10544 = vmatmul.bf16.gmra.mxu0 %v10466
      %v10545 = vpop.f32.mrf.mxu0
      %v10546 = vadd.f32 %v10353, %v10545
      %v10547 = vpop.f32.mrf.mxu0
      %v10548 = vadd.f32 %v10353, %v10547
      %10549 = vmatmul.bf16.gmra.mxu0 %v10469
      %v10550 = vpop.f32.mrf.mxu0
      %v10551 = vadd.f32 %v10353, %v10550
      %v10552 = vpop.f32.mrf.mxu0
      %v10553 = vadd.f32 %v10353, %v10552
      %10554 = vmatmul.bf16.gmra.mxu0 %v10472
      %v10555 = vpop.f32.mrf.mxu0
      %v10556 = vadd.f32 %v10353, %v10555
      %v10557 = vpop.f32.mrf.mxu0
      %v10558 = vadd.f32 %v10353, %v10557
      %10559 = vmatmul.bf16.gmra.mxu0 %v10475
      %v10560 = vpop.f32.mrf.mxu0
      %v10561 = vadd.f32 %v10353, %v10560
      %v10562 = vpop.f32.mrf.mxu0
      %v10563 = vadd.f32 %v10353, %v10562
      %10564 = vmatmul.bf16.gmra.mxu0 %v10478
      %v10565 = vpop.f32.mrf.mxu0
      %v10566 = vadd.f32 %v10353, %v10565
      %v10567 = vpop.f32.mrf.mxu0
      %v10568 = vadd.f32 %v10353, %v10567
      %10569 = vmatmul.bf16.gmra.mxu0 %v10481
      %v10570 = vpop.f32.mrf.mxu0
      %v10571 = vadd.f32 %v10353, %v10570
      %v10572 = vpop.f32.mrf.mxu0
      %v10573 = vadd.f32 %v10353, %v10572
      %10574 = vdwg.mxu0
      %v10575 = vmax.f32 %v10496, 0.0
      %v10576 = vmax.f32 %v10498, 0.0
      %v10577 = vmax.f32 %v10501, 0.0
      %v10578 = vmax.f32 %v10503, 0.0
      %v10579 = vmax.f32 %v10506, 0.0
      %v10580 = vmax.f32 %v10508, 0.0
      %v10581 = vmax.f32 %v10511, 0.0
      %v10582 = vmax.f32 %v10513, 0.0
      %v10583 = vmax.f32 %v10516, 0.0
      %v10584 = vmax.f32 %v10518, 0.0
      %v10585 = vmax.f32 %v10521, 0.0
      %v10586 = vmax.f32 %v10523, 0.0
      %v10587 = vmax.f32 %v10526, 0.0
      %v10588 = vmax.f32 %v10528, 0.0
      %v10589 = vmax.f32 %v10531, 0.0
      %v10590 = vmax.f32 %v10533, 0.0
      %v10591 = vmax.f32 %v10536, 0.0
      %v10592 = vmax.f32 %v10538, 0.0
      %v10593 = vmax.f32 %v10541, 0.0
      %v10594 = vmax.f32 %v10543, 0.0
      %v10595 = vmax.f32 %v10546, 0.0
      %v10596 = vmax.f32 %v10548, 0.0
      %v10597 = vmax.f32 %v10551, 0.0
      %v10598 = vmax.f32 %v10553, 0.0
      %v10599 = vmax.f32 %v10556, 0.0
      %v10600 = vmax.f32 %v10558, 0.0
      %v10601 = vmax.f32 %v10561, 0.0
      %v10602 = vmax.f32 %v10563, 0.0
      %v10603 = vmax.f32 %v10566, 0.0
      %v10604 = vmax.f32 %v10568, 0.0
      %v10605 = vmax.f32 %v10571, 0.0
      %v10606 = vmax.f32 %v10573, 0.0
      %10639 = vrot.lane.b32.xlu0 %v4205, 8
      %v10640 = vpop.permute.xlu0 %10639
      %10641 = vrot.lane.b32.xlu0 %v4206, 8
      %v10642 = vpop.permute.xlu0 %10641
      %10643 = vrot.lane.b32.xlu0 %v4207, 8
      %v10644 = vpop.permute.xlu0 %10643
      %10645 = vrot.lane.b32.xlu0 %v4208, 8
      %v10646 = vpop.permute.xlu0 %10645
      %10647 = vrot.lane.b32.xlu0 %v4209, 8
      %v10648 = vpop.permute.xlu0 %10647
      %10649 = vrot.lane.b32.xlu0 %v4210, 8
      %v10650 = vpop.permute.xlu0 %10649
      %10651 = vrot.lane.b32.xlu0 %v4211, 8
      %v10652 = vpop.permute.xlu0 %10651
      %10653 = vrot.lane.b32.xlu0 %v4212, 8
      %v10654 = vpop.permute.xlu0 %10653
      %10655 = vrot.lane.b32.xlu0 %v4213, 8
      %v10656 = vpop.permute.xlu0 %10655
      %10657 = vrot.lane.b32.xlu0 %v4214, 8
      %v10658 = vpop.permute.xlu0 %10657
      %10659 = vrot.lane.b32.xlu0 %v4215, 8
      %v10660 = vpop.permute.xlu0 %10659
      %10661 = vrot.lane.b32.xlu0 %v4216, 8
      %v10662 = vpop.permute.xlu0 %10661
      %10663 = vrot.lane.b32.xlu0 %v4217, 8
      %v10664 = vpop.permute.xlu0 %10663
      %10665 = vrot.lane.b32.xlu0 %v4218, 8
      %v10666 = vpop.permute.xlu0 %10665
      %10667 = vrot.lane.b32.xlu0 %v4219, 8
      %v10668 = vpop.permute.xlu0 %10667
      %10669 = vrot.lane.b32.xlu0 %v4220, 8
      %v10670 = vpop.permute.xlu0 %10669
      %10671 = vrot.lane.b32.xlu0 %v4221, 8
      %v10672 = vpop.permute.xlu0 %10671
      %10673 = vrot.lane.b32.xlu0 %v4222, 8
      %v10674 = vpop.permute.xlu0 %10673
      %10675 = vrot.lane.b32.xlu0 %v4223, 8
      %v10676 = vpop.permute.xlu0 %10675
      %10677 = vrot.lane.b32.xlu0 %v4224, 8
      %v10678 = vpop.permute.xlu0 %10677
      %10679 = vrot.lane.b32.xlu0 %v4225, 8
      %v10680 = vpop.permute.xlu0 %10679
      %10681 = vrot.lane.b32.xlu0 %v4226, 8
      %v10682 = vpop.permute.xlu0 %10681
      %10683 = vrot.lane.b32.xlu0 %v4227, 8
      %v10684 = vpop.permute.xlu0 %10683
      %10685 = vrot.lane.b32.xlu0 %v4228, 8
      %v10686 = vpop.permute.xlu0 %10685
      %10687 = vrot.lane.b32.xlu0 %v4229, 8
      %v10688 = vpop.permute.xlu0 %10687
      %10689 = vrot.lane.b32.xlu0 %v4230, 8
      %v10690 = vpop.permute.xlu0 %10689
      %10691 = vrot.lane.b32.xlu0 %v4231, 8
      %v10692 = vpop.permute.xlu0 %10691
      %10693 = vrot.lane.b32.xlu0 %v4232, 8
      %v10694 = vpop.permute.xlu0 %10693
      %10695 = vrot.lane.b32.xlu0 %v4233, 8
      %v10696 = vpop.permute.xlu0 %10695
      %10697 = vrot.lane.b32.xlu0 %v4234, 8
      %v10698 = vpop.permute.xlu0 %10697
      %10699 = vrot.lane.b32.xlu0 %v4235, 8
      %v10700 = vpop.permute.xlu0 %10699
      %10701 = vrot.lane.b32.xlu0 %v4236, 8
      %v10702 = vpop.permute.xlu0 %10701
      %10767 = vrot.lane.b32.xlu0 %v9642, 16
      %v10768 = vpop.permute.xlu0 %10767
      %10769 = vrot.lane.b32.xlu0 %v9643, 16
      %v10770 = vpop.permute.xlu0 %10769
      %10771 = vrot.lane.b32.xlu0 %v9644, 16
      %v10772 = vpop.permute.xlu0 %10771
      %10773 = vrot.lane.b32.xlu0 %v9645, 16
      %v10774 = vpop.permute.xlu0 %10773
      %10775 = vrot.lane.b32.xlu0 %v9646, 16
      %v10776 = vpop.permute.xlu0 %10775
      %10777 = vrot.lane.b32.xlu0 %v9647, 16
      %v10778 = vpop.permute.xlu0 %10777
      %10779 = vrot.lane.b32.xlu0 %v9648, 16
      %v10780 = vpop.permute.xlu0 %10779
      %10781 = vrot.lane.b32.xlu0 %v9649, 16
      %v10782 = vpop.permute.xlu0 %10781
      %10783 = vrot.lane.b32.xlu0 %v9650, 16
      %v10784 = vpop.permute.xlu0 %10783
      %10785 = vrot.lane.b32.xlu0 %v9651, 16
      %v10786 = vpop.permute.xlu0 %10785
      %10787 = vrot.lane.b32.xlu0 %v9652, 16
      %v10788 = vpop.permute.xlu0 %10787
      %10789 = vrot.lane.b32.xlu0 %v9653, 16
      %v10790 = vpop.permute.xlu0 %10789
      %10791 = vrot.lane.b32.xlu0 %v9654, 16
      %v10792 = vpop.permute.xlu0 %10791
      %10793 = vrot.lane.b32.xlu0 %v9655, 16
      %v10794 = vpop.permute.xlu0 %10793
      %10795 = vrot.lane.b32.xlu0 %v9656, 16
      %v10796 = vpop.permute.xlu0 %10795
      %10797 = vrot.lane.b32.xlu0 %v9657, 16
      %v10798 = vpop.permute.xlu0 %10797
      %10799 = vrot.lane.b32.xlu0 %v9658, 16
      %v10800 = vpop.permute.xlu0 %10799
      %10801 = vrot.lane.b32.xlu0 %v9659, 16
      %v10802 = vpop.permute.xlu0 %10801
      %10803 = vrot.lane.b32.xlu0 %v9660, 16
      %v10804 = vpop.permute.xlu0 %10803
      %10805 = vrot.lane.b32.xlu0 %v9661, 16
      %v10806 = vpop.permute.xlu0 %10805
      %10807 = vrot.lane.b32.xlu0 %v9662, 16
      %v10808 = vpop.permute.xlu0 %10807
      %10809 = vrot.lane.b32.xlu0 %v9663, 16
      %v10810 = vpop.permute.xlu0 %10809
      %10811 = vrot.lane.b32.xlu0 %v9664, 16
      %v10812 = vpop.permute.xlu0 %10811
      %10813 = vrot.lane.b32.xlu0 %v9665, 16
      %v10814 = vpop.permute.xlu0 %10813
      %10815 = vrot.lane.b32.xlu0 %v9666, 16
      %v10816 = vpop.permute.xlu0 %10815
      %10817 = vrot.lane.b32.xlu0 %v9667, 16
      %v10818 = vpop.permute.xlu0 %10817
      %10819 = vrot.lane.b32.xlu0 %v9668, 16
      %v10820 = vpop.permute.xlu0 %10819
      %10821 = vrot.lane.b32.xlu0 %v9669, 16
      %v10822 = vpop.permute.xlu0 %10821
      %10823 = vrot.lane.b32.xlu0 %v9670, 16
      %v10824 = vpop.permute.xlu0 %10823
      %10825 = vrot.lane.b32.xlu0 %v9671, 16
      %v10826 = vpop.permute.xlu0 %10825
      %10827 = vrot.lane.b32.xlu0 %v9672, 16
      %v10828 = vpop.permute.xlu0 %10827
      %10829 = vrot.lane.b32.xlu0 %v9673, 16
      %v10830 = vpop.permute.xlu0 %10829
      %10895 = vrot.lane.b32.xlu0 %v10575, 24
      %v10896 = vpop.permute.xlu0 %10895
      %10897 = vrot.lane.b32.xlu0 %v10576, 24
      %v10898 = vpop.permute.xlu0 %10897
      %10899 = vrot.lane.b32.xlu0 %v10577, 24
      %v10900 = vpop.permute.xlu0 %10899
      %10901 = vrot.lane.b32.xlu0 %v10578, 24
      %v10902 = vpop.permute.xlu0 %10901
      %10903 = vrot.lane.b32.xlu0 %v10579, 24
      %v10904 = vpop.permute.xlu0 %10903
      %10905 = vrot.lane.b32.xlu0 %v10580, 24
      %v10906 = vpop.permute.xlu0 %10905
      %10907 = vrot.lane.b32.xlu0 %v10581, 24
      %v10908 = vpop.permute.xlu0 %10907
      %10909 = vrot.lane.b32.xlu0 %v10582, 24
      %v10910 = vpop.permute.xlu0 %10909
      %10911 = vrot.lane.b32.xlu0 %v10583, 24
      %v10912 = vpop.permute.xlu0 %10911
      %10913 = vrot.lane.b32.xlu0 %v10584, 24
      %v10914 = vpop.permute.xlu0 %10913
      %10915 = vrot.lane.b32.xlu0 %v10585, 24
      %v10916 = vpop.permute.xlu0 %10915
      %10917 = vrot.lane.b32.xlu0 %v10586, 24
      %v10918 = vpop.permute.xlu0 %10917
      %10919 = vrot.lane.b32.xlu0 %v10587, 24
      %v10920 = vpop.permute.xlu0 %10919
      %10921 = vrot.lane.b32.xlu0 %v10588, 24
      %v10922 = vpop.permute.xlu0 %10921
      %10923 = vrot.lane.b32.xlu0 %v10589, 24
      %v10924 = vpop.permute.xlu0 %10923
      %10925 = vrot.lane.b32.xlu0 %v10590, 24
      %v10926 = vpop.permute.xlu0 %10925
      %10927 = vrot.lane.b32.xlu0 %v10591, 24
      %v10928 = vpop.permute.xlu0 %10927
      %10929 = vrot.lane.b32.xlu0 %v10592, 24
      %v10930 = vpop.permute.xlu0 %10929
      %10931 = vrot.lane.b32.xlu0 %v10593, 24
      %v10932 = vpop.permute.xlu0 %10931
      %10933 = vrot.lane.b32.xlu0 %v10594, 24
      %v10934 = vpop.permute.xlu0 %10933
      %10935 = vrot.lane.b32.xlu0 %v10595, 24
      %v10936 = vpop.permute.xlu0 %10935
      %10937 = vrot.lane.b32.xlu0 %v10596, 24
      %v10938 = vpop.permute.xlu0 %10937
      %10939 = vrot.lane.b32.xlu0 %v10597, 24
      %v10940 = vpop.permute.xlu0 %10939
      %10941 = vrot.lane.b32.xlu0 %v10598, 24
      %v10942 = vpop.permute.xlu0 %10941
      %10943 = vrot.lane.b32.xlu0 %v10599, 24
      %v10944 = vpop.permute.xlu0 %10943
      %10945 = vrot.lane.b32.xlu0 %v10600, 24
      %v10946 = vpop.permute.xlu0 %10945
      %10947 = vrot.lane.b32.xlu0 %v10601, 24
      %v10948 = vpop.permute.xlu0 %10947
      %10949 = vrot.lane.b32.xlu0 %v10602, 24
      %v10950 = vpop.permute.xlu0 %10949
      %10951 = vrot.lane.b32.xlu0 %v10603, 24
      %v10952 = vpop.permute.xlu0 %10951
      %10953 = vrot.lane.b32.xlu0 %v10604, 24
      %v10954 = vpop.permute.xlu0 %10953
      %10955 = vrot.lane.b32.xlu0 %v10605, 24
      %v10956 = vpop.permute.xlu0 %10955
      %10957 = vrot.lane.b32.xlu0 %v10606, 24
      %v10958 = vpop.permute.xlu0 %10957
      %v10991 = vsel %vm1630, %v675, %v10640
      %v10992 = vsel %vm1630, %v676, %v10642
      %v10993 = vsel %vm1630, %v677, %v10644
      %v10994 = vsel %vm1630, %v678, %v10646
      %v10995 = vsel %vm1630, %v679, %v10648
      %v10996 = vsel %vm1630, %v680, %v10650
      %v10997 = vsel %vm1630, %v681, %v10652
      %v10998 = vsel %vm1630, %v682, %v10654
      %v10999 = vsel %vm1630, %v683, %v10656
      %v11000 = vsel %vm1630, %v684, %v10658
      %v11001 = vsel %vm1630, %v685, %v10660
      %v11002 = vsel %vm1630, %v686, %v10662
      %v11003 = vsel %vm1630, %v687, %v10664
      %v11004 = vsel %vm1630, %v688, %v10666
      %v11005 = vsel %vm1630, %v689, %v10668
      %v11006 = vsel %vm1630, %v690, %v10670
      %v11007 = vsel %vm1630, %v691, %v10672
      %v11008 = vsel %vm1630, %v692, %v10674
      %v11009 = vsel %vm1630, %v693, %v10676
      %v11010 = vsel %vm1630, %v694, %v10678
      %v11011 = vsel %vm1630, %v695, %v10680
      %v11012 = vsel %vm1630, %v696, %v10682
      %v11013 = vsel %vm1630, %v697, %v10684
      %v11014 = vsel %vm1630, %v698, %v10686
      %v11015 = vsel %vm1630, %v699, %v10688
      %v11016 = vsel %vm1630, %v700, %v10690
      %v11017 = vsel %vm1630, %v701, %v10692
      %v11018 = vsel %vm1630, %v702, %v10694
      %v11019 = vsel %vm1630, %v703, %v10696
      %v11020 = vsel %vm1630, %v704, %v10698
      %v11021 = vsel %vm1630, %v705, %v10700
      %v11022 = vsel %vm1630, %v706, %v10702
      %v11023 = vsel %vm1695, %v10991, %v10768
      %v11024 = vsel %vm1695, %v10992, %v10770
      %v11025 = vsel %vm1695, %v10993, %v10772
      %v11026 = vsel %vm1695, %v10994, %v10774
      %v11027 = vsel %vm1695, %v10995, %v10776
      %v11028 = vsel %vm1695, %v10996, %v10778
      %v11029 = vsel %vm1695, %v10997, %v10780
      %v11030 = vsel %vm1695, %v10998, %v10782
      %v11031 = vsel %vm1695, %v10999, %v10784
      %v11032 = vsel %vm1695, %v11000, %v10786
      %v11033 = vsel %vm1695, %v11001, %v10788
      %v11034 = vsel %vm1695, %v11002, %v10790
      %v11035 = vsel %vm1695, %v11003, %v10792
      %v11036 = vsel %vm1695, %v11004, %v10794
      %v11037 = vsel %vm1695, %v11005, %v10796
      %v11038 = vsel %vm1695, %v11006, %v10798
      %v11039 = vsel %vm1695, %v11007, %v10800
      %v11040 = vsel %vm1695, %v11008, %v10802
      %v11041 = vsel %vm1695, %v11009, %v10804
      %v11042 = vsel %vm1695, %v11010, %v10806
      %v11043 = vsel %vm1695, %v11011, %v10808
      %v11044 = vsel %vm1695, %v11012, %v10810
      %v11045 = vsel %vm1695, %v11013, %v10812
      %v11046 = vsel %vm1695, %v11014, %v10814
      %v11047 = vsel %vm1695, %v11015, %v10816
      %v11048 = vsel %vm1695, %v11016, %v10818
      %v11049 = vsel %vm1695, %v11017, %v10820
      %v11050 = vsel %vm1695, %v11018, %v10822
      %v11051 = vsel %vm1695, %v11019, %v10824
      %v11052 = vsel %vm1695, %v11020, %v10826
      %v11053 = vsel %vm1695, %v11021, %v10828
      %v11054 = vsel %vm1695, %v11022, %v10830
      %v11055 = vsel %vm1932, %v11023, %v10896
      %v11056 = vsel %vm1932, %v11024, %v10898
      %v11057 = vsel %vm1932, %v11025, %v10900
      %v11058 = vsel %vm1932, %v11026, %v10902
      %v11059 = vsel %vm1932, %v11027, %v10904
      %v11060 = vsel %vm1932, %v11028, %v10906
      %v11061 = vsel %vm1932, %v11029, %v10908
      %v11062 = vsel %vm1932, %v11030, %v10910
      %v11063 = vsel %vm1932, %v11031, %v10912
      %v11064 = vsel %vm1932, %v11032, %v10914
      %v11065 = vsel %vm1932, %v11033, %v10916
      %v11066 = vsel %vm1932, %v11034, %v10918
      %v11067 = vsel %vm1932, %v11035, %v10920
      %v11068 = vsel %vm1932, %v11036, %v10922
      %v11069 = vsel %vm1932, %v11037, %v10924
      %v11070 = vsel %vm1932, %v11038, %v10926
      %v11071 = vsel %vm1932, %v11039, %v10928
      %v11072 = vsel %vm1932, %v11040, %v10930
      %v11073 = vsel %vm1932, %v11041, %v10932
      %v11074 = vsel %vm1932, %v11042, %v10934
      %v11075 = vsel %vm1932, %v11043, %v10936
      %v11076 = vsel %vm1932, %v11044, %v10938
      %v11077 = vsel %vm1932, %v11045, %v10940
      %v11078 = vsel %vm1932, %v11046, %v10942
      %v11079 = vsel %vm1932, %v11047, %v10944
      %v11080 = vsel %vm1932, %v11048, %v10946
      %v11081 = vsel %vm1932, %v11049, %v10948
      %v11082 = vsel %vm1932, %v11050, %v10950
      %v11083 = vsel %vm1932, %v11051, %v10952
      %v11084 = vsel %vm1932, %v11052, %v10954
      %v11085 = vsel %vm1932, %v11053, %v10956
      %v11086 = vsel %vm1932, %v11054, %v10958
      %11087 = vst.msk [vmem:[%s332] sm:$0xff] %vm5267, %v11055
      %11088 = vst.msk [vmem:[%s332 + $0x8] sm:$0xff] %vm5267, %v11056
      %11089 = vst.msk [vmem:[%s332 + $0x10] sm:$0xff] %vm5267, %v11057
      %11090 = vst.msk [vmem:[%s332 + $0x18] sm:$0xff] %vm5267, %v11058
      %11091 = vst.msk [vmem:[%s332 + $0x20] sm:$0xff] %vm5267, %v11059
      %11092 = vst.msk [vmem:[%s332 + $0x28] sm:$0xff] %vm5267, %v11060
      %11093 = vst.msk [vmem:[%s332 + $0x30] sm:$0xff] %vm5267, %v11061
      %11094 = vst.msk [vmem:[%s332 + $0x38] sm:$0xff] %vm5267, %v11062
      %11095 = vst.msk [vmem:[%s332 + $0x40] sm:$0xff] %vm5267, %v11063
      %11096 = vst.msk [vmem:[%s332 + $0x48] sm:$0xff] %vm5267, %v11064
      %11097 = vst.msk [vmem:[%s332 + $0x50] sm:$0xff] %vm5267, %v11065
      %11098 = vst.msk [vmem:[%s332 + $0x58] sm:$0xff] %vm5267, %v11066
      %11099 = vst.msk [vmem:[%s332 + $0x60] sm:$0xff] %vm5267, %v11067
      %11100 = vst.msk [vmem:[%s332 + $0x68] sm:$0xff] %vm5267, %v11068
      %11101 = vst.msk [vmem:[%s332 + $0x70] sm:$0xff] %vm5267, %v11069
      %11102 = vst.msk [vmem:[%s332 + $0x78] sm:$0xff] %vm5267, %v11070
      %11103 = vst.msk [vmem:[%s332 + $0x80] sm:$0xff] %vm5267, %v11071
      %11104 = vst.msk [vmem:[%s332 + $0x88] sm:$0xff] %vm5267, %v11072
      %11105 = vst.msk [vmem:[%s332 + $0x90] sm:$0xff] %vm5267, %v11073
      %11106 = vst.msk [vmem:[%s332 + $0x98] sm:$0xff] %vm5267, %v11074
      %11107 = vst.msk [vmem:[%s332 + $0xa0] sm:$0xff] %vm5267, %v11075
      %11108 = vst.msk [vmem:[%s332 + $0xa8] sm:$0xff] %vm5267, %v11076
      %11109 = vst.msk [vmem:[%s332 + $0xb0] sm:$0xff] %vm5267, %v11077
      %11110 = vst.msk [vmem:[%s332 + $0xb8] sm:$0xff] %vm5267, %v11078
      %11111 = vst.msk [vmem:[%s332 + $0xc0] sm:$0xff] %vm5267, %v11079
      %11112 = vst.msk [vmem:[%s332 + $0xc8] sm:$0xff] %vm5267, %v11080
      %11113 = vst.msk [vmem:[%s332 + $0xd0] sm:$0xff] %vm5267, %v11081
      %11114 = vst.msk [vmem:[%s332 + $0xd8] sm:$0xff] %vm5267, %v11082
      %11115 = vst.msk [vmem:[%s332 + $0xe0] sm:$0xff] %vm5267, %v11083
      %11116 = vst.msk [vmem:[%s332 + $0xe8] sm:$0xff] %vm5267, %v11084
      %11117 = vst.msk [vmem:[%s332 + $0xf0] sm:$0xff] %vm5267, %v11085
      %11118 = vst.msk [vmem:[%s332 + $0xf8] sm:$0xff] %vm5267, %v11086
      %p11119 = scmp.lt.s32.totalorder %s20, 1
      %s11120 = scalar_select %p11119, %s20, 1
      %s11121 = smul.addr %s11120, 32
      %s11122 = smul.addr %s11121, 8
      %s11123 = scalar_lea.vmem %s9, %s11122
      // Predicated region
      $region57: #{tpu_custom_call.1} parent=55 // pred_check
        %p11124 = pneg %p232
      $region58: #{tpu_custom_call.1} parent=55 // pred_check_branch
        %11126 = sbr.rel (%p11124) target = $region60
      $region59: #{tpu_custom_call.1} parent=55 // pred_region
        _
      $region60: #{tpu_custom_call.1} parent=55 // pred_fallthru
        _
    $region56: #{tpu_custom_call.1} parent=5 // pred_fallthru
      _
    %p11127 = scmp.le.s32.totalorder 2, %s15
    // Predicated region
    $region61: #{tpu_custom_call.1} parent=5 // pred_check
      %p11128 = pneg %p11127
    $region62: #{tpu_custom_call.1} parent=5 // pred_check_branch
      %11130 = sbr.rel (%p11128) target = $region64
    $region63: #{tpu_custom_call.1} parent=5 // pred_region
      %s11131 = ssub.s32 %s15, 2
      // Predicated region
      $region65: #{tpu_custom_call.1} parent=63 // pred_check
        %p11132 = pneg %p238
      $region66: #{tpu_custom_call.1} parent=63 // pred_check_branch
        %11134 = sbr.rel (%p11132) target = $region68
      $region67: #{tpu_custom_call.1} parent=63 // pred_region
        %p11135 = scmp.lt.s32.totalorder %s21, 1
        %s11136 = scalar_select %p11135, %s21, 1
        %s11137 = smul.addr %s11136, 32
        %s11138 = smul.addr %s11137, 8
        %s11139 = scalar_lea.vmem %s9, %s11138
      $region68: #{tpu_custom_call.1} parent=63 // pred_fallthru
        _
    $region64: #{tpu_custom_call.1} parent=5 // pred_fallthru
      _
  $region6: #{tpu_custom_call.1} parent=0 // loop_footer
    %s19 = sadd.s32 1, %s15
  $region7: #{tpu_custom_call.1} parent=0 // loop_footer_branch
    %14 = sbr.rel target = $region3
  $region8: #{tpu_custom_call.1} parent=0 // loop_exit
    _

</llo_original>
